<compile_context>
chip_gen: v5e
topology: v5e:2x2
jax: 0.10.0
libtpu: 0.0.40
codegen_flags: <defaults>
</compile_context>

<pallas_src>
from functools import partial

import jax
import jax.numpy as jnp
from jax.experimental import pallas as pl
from jax.experimental.pallas import tpu as pltpu


def _round_up(v, m):
    return ((v + m - 1) // m) * m


def _resblock_kernel(xconv_ref, xres_ref, mask_ref,
                     w1_ref, g1_ref, be1_ref,
                     w2_ref, g2_ref, be2_ref,
                     out_ref, hbig_ref,
                     *, G, Lp, Wp, inv_count, eps):
    C = xres_ref.shape[1]
    mask = mask_ref[...]                       # (Lp, 1): 1 on real pixels, 0 on pad rows

    def conv3x3(src_ref, w_ref):
        # src_ref: (Lp + 2G, C) bf16 padded-flat image with zero guard rows.
        # im2col: concatenate the 9 shifted (Lp, C) slices along the lane axis
        # and do ONE (Lp, 9C) @ (9C, C) MXU matmul with f32 accumulation.
        taps = []
        for dy in (-1, 0, 1):
            for dx in (-1, 0, 1):
                off = dy * Wp + dx             # static Python int
                taps.append(src_ref[G + off: G + off + Lp, :])
        col = jnp.concatenate(taps, axis=1)    # (Lp, 9C) bf16
        return jnp.dot(col, w_ref[...], preferred_element_type=jnp.float32)

    def batchnorm(y, g_ref, be_ref):
        # One-pass masked batch statistics (biased variance), all in f32.
        ym = y * mask
        mean = jnp.sum(ym, axis=0, keepdims=True) * inv_count          # (1, C)
        var = jnp.sum(ym * ym, axis=0, keepdims=True) * inv_count - mean * mean
        return (y - mean) * jax.lax.rsqrt(var + eps) * g_ref[...] + be_ref[...]

    # ---- conv1 -> bn1 -> relu (mask re-zeroes pad rows so conv2 sees zero padding) ----
    h = jnp.maximum(batchnorm(conv3x3(xconv_ref, w1_ref), g1_ref, be1_ref), 0.0)
    h = (h * mask).astype(hbig_ref.dtype)      # bf16 for the second matmul

    # Stage h in a guarded bf16 scratch; zero only the guard rows (the interior
    # is fully overwritten on the next line).
    hbig_ref[:G, :] = jnp.zeros((G, C), hbig_ref.dtype)
    hbig_ref[G + Lp:G + Lp + G, :] = jnp.zeros((G, C), hbig_ref.dtype)
    hbig_ref[G:G + Lp, :] = h

    # ---- conv2 -> bn2 -> + residual -> relu (wrapper crops pad rows; no mask) ----
    y = batchnorm(conv3x3(hbig_ref, w2_ref), g2_ref, be2_ref)
    out_ref[...] = jnp.maximum(y + xres_ref[...], 0.0)


def pack_resblock_params(params):
    """Hoisted, call once: pack conv weights into im2col (9*Cin, Cout) bf16.

    Conv biases are dropped: training-mode BN subtracts the batch mean, which
    cancels any per-channel pre-BN bias exactly (pad rows are masked/cropped).
    """
    w1, b1, g1, be1, w2, b2, g2, be2 = params
    C = w1.shape[0]

    def prep_w(w):                             # (Cout, Cin, 3, 3) -> (9*Cin, Cout)
        return jnp.transpose(w, (2, 3, 1, 0)).reshape(9 * C, C).astype(jnp.bfloat16)

    def row(v):
        return v.reshape(1, C).astype(jnp.float32)

    return (prep_w(w1), row(g1), row(be1), prep_w(w2), row(g2), row(be2))


@jax.jit
def resblock_pallas(x, packed_params):
    """x: (N, C, H, W) float32 (PyTorch NCHW). Returns (N, C, H, W) float32."""
    N, C, H, W = x.shape
    Hp, Wp = H + 2, W + 2
    L = N * Hp * Wp
    Lp = _round_up(L, 16)                      # sublane-align (bf16 tile = 16 rows)
    G = _round_up(Wp + 1, 16)                  # guard rows cover +/-(Wp+1) tap shifts
    Lg = Lp + 2 * G
    inv_count = 1.0 / float(N * H * W)
    eps = 1e-5

    # ---- glue: NCHW -> padded-flat NHWC rows (+ alignment pad, + guard rows) ----
    x_nhwc = jnp.transpose(x, (0, 2, 3, 1))
    x_flat = jnp.pad(x_nhwc, ((0, 0), (1, 1), (1, 1), (0, 0))).reshape(L, C)
    x_flat = jnp.pad(x_flat, ((0, Lp - L), (0, 0)))                    # (Lp, C) f32 (residual)
    x_conv = jnp.pad(x_flat, ((G, G), (0, 0))).astype(jnp.bfloat16)    # (Lg, C) bf16 (conv1 src)

    mask = jnp.pad(jnp.ones((N, H, W, 1), jnp.float32),
                   ((0, 0), (1, 1), (1, 1), (0, 0))).reshape(L, 1)
    mask = jnp.pad(mask, ((0, Lp - L), (0, 0)))                        # (Lp, 1)

    w1, g1, be1, w2, g2, be2 = packed_params
    args = (x_conv, x_flat, mask, w1, g1, be1, w2, g2, be2)

    kern = partial(_resblock_kernel, G=G, Lp=Lp, Wp=Wp,
                   inv_count=inv_count, eps=eps)
    vmem = pl.BlockSpec(memory_space=pltpu.MemorySpace.VMEM)   # whole array resident in VMEM

    flops = 2 * (2 * Lp * (9 * C) * C) + 24 * Lp * C           # 2 convs + BN/relu/residual
    bytes_accessed = (Lg * C * 2 + Lp * C * 4 + Lp * 4
                      + 2 * 9 * C * C * 2 + 4 * C * 4 + Lp * C * 4)

    # NOTE: batch here is tiny, so a single grid point with everything in VMEM
    # is fine; for large N this would be tiled over rows (grid + BlockSpec) and
    # split across TensorCores on v7x.
    out_flat = pl.pallas_call(
        kern,
        out_shape=jax.ShapeDtypeStruct((Lp, C), jnp.float32),
        in_specs=[vmem] * len(args),
        out_specs=vmem,
        scratch_shapes=[pltpu.VMEM((Lg, C), jnp.bfloat16)],
        cost_estimate=pl.CostEstimate(flops=int(flops), transcendentals=0,
                                      bytes_accessed=int(bytes_accessed)),
    )(*args)

    # ---- glue: padded-flat -> NCHW interior ----
    out = out_flat[:L].reshape(N, Hp, Wp, C)[:, 1:1 + H, 1:1 + W, :]
    return jnp.transpose(out, (0, 3, 1, 2))


def resblock_ref(x, params):
    """Pure-JAX f32 reference matching the PyTorch forward (training-mode BN)."""
    w1, b1, g1, be1, w2, b2, g2, be2 = params

    def conv(z, w, b):
        y = jax.lax.conv_general_dilated(
            z, w, (1, 1), ((1, 1), (1, 1)),
            dimension_numbers=('NCHW', 'OIHW', 'NCHW'))
        return y + b[None, :, None, None]

    def bn(z, g, be, eps=1e-5):
        mean = jnp.mean(z, axis=(0, 2, 3), keepdims=True)
        var = jnp.mean((z - mean) ** 2, axis=(0, 2, 3), keepdims=True)
        return (z - mean) * jax.lax.rsqrt(var + eps) * g[None, :, None, None] \
            + be[None, :, None, None]

    h = jax.nn.relu(bn(conv(x, w1, b1), g1, be1))
    y = bn(conv(h, w2, b2), g2, be2) + x
    return jax.nn.relu(y)


if __name__ == "__main__":
    key = jax.random.PRNGKey(0)
    N, C, H, W = 2, 32, 16, 16                 # num_hidden = 32

    ks = jax.random.split(key, 9)
    x = jax.random.normal(ks[0], (N, C, H, W), jnp.float32)
    w1 = 0.1 * jax.random.normal(ks[1], (C, C, 3, 3), jnp.float32)
    b1 = 0.1 * jax.random.normal(ks[2], (C,), jnp.float32)
    g1 = 1.0 + 0.1 * jax.random.normal(ks[3], (C,), jnp.float32)
    be1 = 0.1 * jax.random.normal(ks[4], (C,), jnp.float32)
    w2 = 0.1 * jax.random.normal(ks[5], (C, C, 3, 3), jnp.float32)
    b2 = 0.1 * jax.random.normal(ks[6], (C,), jnp.float32)
    g2 = 1.0 + 0.1 * jax.random.normal(ks[7], (C,), jnp.float32)
    be2 = 0.1 * jax.random.normal(ks[8], (C,), jnp.float32)
    params = (w1, b1, g1, be1, w2, b2, g2, be2)

    packed = pack_resblock_params(params)      # hoisted weight prep (reusable across calls)
    out = jax.block_until_ready(resblock_pallas(x, packed))
    ref = jax.block_until_ready(resblock_ref(x, params))

    assert out.shape == (N, C, H, W)
    # bf16 matmul operands (f32 accumulate) vs a pure-f32 reference: use a
    # bf16-appropriate tolerance.
    assert jnp.allclose(out, ref, atol=2e-2, rtol=2e-2), \
        f"max abs err = {float(jnp.max(jnp.abs(out - ref)))}"
    print("KERNEL_OK")
</pallas_src>

<mosaic_0001>
module attributes {stable_mosaic.version = 11 : i64} {
  func.func @_resblock_kernel(%arg0: memref<720x32xbf16, #tpu.memory_space<vmem>>, %arg1: memref<656x32xf32, #tpu.memory_space<vmem>>, %arg2: memref<656x1xf32, #tpu.memory_space<vmem>>, %arg3: memref<288x32xbf16, #tpu.memory_space<vmem>>, %arg4: memref<1x32xf32, #tpu.memory_space<vmem>>, %arg5: memref<1x32xf32, #tpu.memory_space<vmem>>, %arg6: memref<288x32xbf16, #tpu.memory_space<vmem>>, %arg7: memref<1x32xf32, #tpu.memory_space<vmem>>, %arg8: memref<1x32xf32, #tpu.memory_space<vmem>>, %arg9: memref<656x32xf32, #tpu.memory_space<vmem>>, %arg10: memref<720x32xbf16, #tpu.memory_space<vmem>>) attributes {dimension_semantics = [], scalar_prefetch = 0 : i64, scratch_operands = 1 : i64, tpu.core_type = #tpu.core_type<tc>} {
    %c0 = arith.constant 0 : index
    %c0_0 = arith.constant 0 : index
    %0 = vector.load %arg2[%c0, %c0_0] : memref<656x1xf32, #tpu.memory_space<vmem>>, vector<656x1xf32>
    %c13 = arith.constant 13 : index
    %c0_1 = arith.constant 0 : index
    %1 = vector.load %arg0[%c13, %c0_1] : memref<720x32xbf16, #tpu.memory_space<vmem>>, vector<656x32xbf16>
    %c14 = arith.constant 14 : index
    %c0_2 = arith.constant 0 : index
    %2 = vector.load %arg0[%c14, %c0_2] : memref<720x32xbf16, #tpu.memory_space<vmem>>, vector<656x32xbf16>
    %c15 = arith.constant 15 : index
    %c0_3 = arith.constant 0 : index
    %3 = vector.load %arg0[%c15, %c0_3] : memref<720x32xbf16, #tpu.memory_space<vmem>>, vector<656x32xbf16>
    %c31 = arith.constant 31 : index
    %c0_4 = arith.constant 0 : index
    %4 = vector.load %arg0[%c31, %c0_4] : memref<720x32xbf16, #tpu.memory_space<vmem>>, vector<656x32xbf16>
    %c32 = arith.constant 32 : index
    %c0_5 = arith.constant 0 : index
    %5 = vector.load %arg0[%c32, %c0_5] : memref<720x32xbf16, #tpu.memory_space<vmem>>, vector<656x32xbf16>
    %c33 = arith.constant 33 : index
    %c0_6 = arith.constant 0 : index
    %6 = vector.load %arg0[%c33, %c0_6] : memref<720x32xbf16, #tpu.memory_space<vmem>>, vector<656x32xbf16>
    %c49 = arith.constant 49 : index
    %c0_7 = arith.constant 0 : index
    %7 = vector.load %arg0[%c49, %c0_7] : memref<720x32xbf16, #tpu.memory_space<vmem>>, vector<656x32xbf16>
    %c50 = arith.constant 50 : index
    %c0_8 = arith.constant 0 : index
    %8 = vector.load %arg0[%c50, %c0_8] : memref<720x32xbf16, #tpu.memory_space<vmem>>, vector<656x32xbf16>
    %c51 = arith.constant 51 : index
    %c0_9 = arith.constant 0 : index
    %9 = vector.load %arg0[%c51, %c0_9] : memref<720x32xbf16, #tpu.memory_space<vmem>>, vector<656x32xbf16>
    %10 = tpu.concatenate %1, %2, %3, %4, %5, %6, %7, %8, %9 in 1 : vector<656x32xbf16>, vector<656x32xbf16>, vector<656x32xbf16>, vector<656x32xbf16>, vector<656x32xbf16>, vector<656x32xbf16>, vector<656x32xbf16>, vector<656x32xbf16>, vector<656x32xbf16> -> vector<656x288xbf16>
    %c0_10 = arith.constant 0 : index
    %c0_11 = arith.constant 0 : index
    %11 = vector.load %arg3[%c0_10, %c0_11] : memref<288x32xbf16, #tpu.memory_space<vmem>>, vector<288x32xbf16>
    %cst = arith.constant dense<0.000000e+00> : vector<656x32xf32>
    %12 = tpu.matmul %10, %11, %cst {dimension_numbers = #tpu.dot_dimension_numbers<[1], [0], [0], [1], [0, 0, 1, 1], [], []>} : vector<656x288xbf16>, vector<288x32xbf16>, vector<656x32xf32> -> vector<656x32xf32>
    %13 = vector.broadcast %0 : vector<656x1xf32> to vector<656x32xf32>
    %14 = arith.mulf %12, %13 : vector<656x32xf32>
    %cst_12 = arith.constant dense<0.000000e+00> : vector<32xf32>
    %15 = vector.multi_reduction <add>, %14, %cst_12 [0] : vector<656x32xf32> to vector<32xf32>
    %16 = vector.shape_cast %15 : vector<32xf32> to vector<1x32xf32>
    %cst_13 = arith.constant 0.001953125 : f32
    %17 = vector.broadcast %cst_13 : f32 to vector<1x32xf32>
    %18 = arith.mulf %16, %17 : vector<1x32xf32>
    %19 = arith.mulf %14, %14 : vector<656x32xf32>
    %cst_14 = arith.constant dense<0.000000e+00> : vector<32xf32>
    %20 = vector.multi_reduction <add>, %19, %cst_14 [0] : vector<656x32xf32> to vector<32xf32>
    %21 = vector.shape_cast %20 : vector<32xf32> to vector<1x32xf32>
    %cst_15 = arith.constant 0.001953125 : f32
    %22 = vector.broadcast %cst_15 : f32 to vector<1x32xf32>
    %23 = arith.mulf %21, %22 : vector<1x32xf32>
    %24 = arith.mulf %18, %18 : vector<1x32xf32>
    %25 = arith.subf %23, %24 : vector<1x32xf32>
    %26 = vector.broadcast %18 : vector<1x32xf32> to vector<656x32xf32>
    %27 = arith.subf %12, %26 : vector<656x32xf32>
    %cst_16 = arith.constant 9.99999974E-6 : f32
    %28 = vector.broadcast %cst_16 : f32 to vector<1x32xf32>
    %29 = arith.addf %25, %28 : vector<1x32xf32>
    %30 = math.rsqrt %29 : vector<1x32xf32>
    %31 = vector.broadcast %30 : vector<1x32xf32> to vector<656x32xf32>
    %32 = arith.mulf %27, %31 : vector<656x32xf32>
    %c0_17 = arith.constant 0 : index
    %c0_18 = arith.constant 0 : index
    %33 = vector.load %arg4[%c0_17, %c0_18] : memref<1x32xf32, #tpu.memory_space<vmem>>, vector<1x32xf32>
    %34 = vector.broadcast %33 : vector<1x32xf32> to vector<656x32xf32>
    %35 = arith.mulf %32, %34 : vector<656x32xf32>
    %c0_19 = arith.constant 0 : index
    %c0_20 = arith.constant 0 : index
    %36 = vector.load %arg5[%c0_19, %c0_20] : memref<1x32xf32, #tpu.memory_space<vmem>>, vector<1x32xf32>
    %37 = vector.broadcast %36 : vector<1x32xf32> to vector<656x32xf32>
    %38 = arith.addf %35, %37 : vector<656x32xf32>
    %cst_21 = arith.constant 0.000000e+00 : f32
    %39 = vector.broadcast %cst_21 : f32 to vector<656x32xf32>
    %40 = arith.maximumf %38, %39 : vector<656x32xf32>
    %41 = vector.broadcast %0 : vector<656x1xf32> to vector<656x32xf32>
    %42 = arith.mulf %40, %41 : vector<656x32xf32>
    %43 = arith.truncf %42 : vector<656x32xf32> to vector<656x32xbf16>
    %cst_22 = arith.constant 0.000000e+00 : bf16
    %44 = vector.broadcast %cst_22 : bf16 to vector<32x32xbf16>
    %c0_23 = arith.constant 0 : index
    %c0_24 = arith.constant 0 : index
    %45 = vector.load %arg10[%c0_23, %c0_24] : memref<720x32xbf16, #tpu.memory_space<vmem>>, vector<32x32xbf16>
    tpu.vector_store %arg10[%c0_23, %c0_24], %44 {strides = array<i32>} : memref<720x32xbf16, #tpu.memory_space<vmem>>, vector<32x32xbf16>,
    %cst_25 = arith.constant 0.000000e+00 : bf16
    %46 = vector.broadcast %cst_25 : bf16 to vector<32x32xbf16>
    %c688 = arith.constant 688 : index
    %c0_26 = arith.constant 0 : index
    %47 = vector.load %arg10[%c688, %c0_26] : memref<720x32xbf16, #tpu.memory_space<vmem>>, vector<32x32xbf16>
    tpu.vector_store %arg10[%c688, %c0_26], %46 {strides = array<i32>} : memref<720x32xbf16, #tpu.memory_space<vmem>>, vector<32x32xbf16>,
    %c32_27 = arith.constant 32 : index
    %c0_28 = arith.constant 0 : index
    %48 = vector.load %arg10[%c32_27, %c0_28] : memref<720x32xbf16, #tpu.memory_space<vmem>>, vector<656x32xbf16>
    tpu.vector_store %arg10[%c32_27, %c0_28], %43 {strides = array<i32>} : memref<720x32xbf16, #tpu.memory_space<vmem>>, vector<656x32xbf16>,
    %c13_29 = arith.constant 13 : index
    %c0_30 = arith.constant 0 : index
    %49 = vector.load %arg10[%c13_29, %c0_30] : memref<720x32xbf16, #tpu.memory_space<vmem>>, vector<656x32xbf16>
    %c14_31 = arith.constant 14 : index
    %c0_32 = arith.constant 0 : index
    %50 = vector.load %arg10[%c14_31, %c0_32] : memref<720x32xbf16, #tpu.memory_space<vmem>>, vector<656x32xbf16>
    %c15_33 = arith.constant 15 : index
    %c0_34 = arith.constant 0 : index
    %51 = vector.load %arg10[%c15_33, %c0_34] : memref<720x32xbf16, #tpu.memory_space<vmem>>, vector<656x32xbf16>
    %c31_35 = arith.constant 31 : index
    %c0_36 = arith.constant 0 : index
    %52 = vector.load %arg10[%c31_35, %c0_36] : memref<720x32xbf16, #tpu.memory_space<vmem>>, vector<656x32xbf16>
    %c32_37 = arith.constant 32 : index
    %c0_38 = arith.constant 0 : index
    %53 = vector.load %arg10[%c32_37, %c0_38] : memref<720x32xbf16, #tpu.memory_space<vmem>>, vector<656x32xbf16>
    %c33_39 = arith.constant 33 : index
    %c0_40 = arith.constant 0 : index
    %54 = vector.load %arg10[%c33_39, %c0_40] : memref<720x32xbf16, #tpu.memory_space<vmem>>, vector<656x32xbf16>
    %c49_41 = arith.constant 49 : index
    %c0_42 = arith.constant 0 : index
    %55 = vector.load %arg10[%c49_41, %c0_42] : memref<720x32xbf16, #tpu.memory_space<vmem>>, vector<656x32xbf16>
    %c50_43 = arith.constant 50 : index
    %c0_44 = arith.constant 0 : index
    %56 = vector.load %arg10[%c50_43, %c0_44] : memref<720x32xbf16, #tpu.memory_space<vmem>>, vector<656x32xbf16>
    %c51_45 = arith.constant 51 : index
    %c0_46 = arith.constant 0 : index
    %57 = vector.load %arg10[%c51_45, %c0_46] : memref<720x32xbf16, #tpu.memory_space<vmem>>, vector<656x32xbf16>
    %58 = tpu.concatenate %49, %50, %51, %52, %53, %54, %55, %56, %57 in 1 : vector<656x32xbf16>, vector<656x32xbf16>, vector<656x32xbf16>, vector<656x32xbf16>, vector<656x32xbf16>, vector<656x32xbf16>, vector<656x32xbf16>, vector<656x32xbf16>, vector<656x32xbf16> -> vector<656x288xbf16>
    %c0_47 = arith.constant 0 : index
    %c0_48 = arith.constant 0 : index
    %59 = vector.load %arg6[%c0_47, %c0_48] : memref<288x32xbf16, #tpu.memory_space<vmem>>, vector<288x32xbf16>
    %cst_49 = arith.constant dense<0.000000e+00> : vector<656x32xf32>
    %60 = tpu.matmul %58, %59, %cst_49 {dimension_numbers = #tpu.dot_dimension_numbers<[1], [0], [0], [1], [0, 0, 1, 1], [], []>} : vector<656x288xbf16>, vector<288x32xbf16>, vector<656x32xf32> -> vector<656x32xf32>
    %61 = vector.broadcast %0 : vector<656x1xf32> to vector<656x32xf32>
    %62 = arith.mulf %60, %61 : vector<656x32xf32>
    %cst_50 = arith.constant dense<0.000000e+00> : vector<32xf32>
    %63 = vector.multi_reduction <add>, %62, %cst_50 [0] : vector<656x32xf32> to vector<32xf32>
    %64 = vector.shape_cast %63 : vector<32xf32> to vector<1x32xf32>
    %cst_51 = arith.constant 0.001953125 : f32
    %65 = vector.broadcast %cst_51 : f32 to vector<1x32xf32>
    %66 = arith.mulf %64, %65 : vector<1x32xf32>
    %67 = arith.mulf %62, %62 : vector<656x32xf32>
    %cst_52 = arith.constant dense<0.000000e+00> : vector<32xf32>
    %68 = vector.multi_reduction <add>, %67, %cst_52 [0] : vector<656x32xf32> to vector<32xf32>
    %69 = vector.shape_cast %68 : vector<32xf32> to vector<1x32xf32>
    %cst_53 = arith.constant 0.001953125 : f32
    %70 = vector.broadcast %cst_53 : f32 to vector<1x32xf32>
    %71 = arith.mulf %69, %70 : vector<1x32xf32>
    %72 = arith.mulf %66, %66 : vector<1x32xf32>
    %73 = arith.subf %71, %72 : vector<1x32xf32>
    %74 = vector.broadcast %66 : vector<1x32xf32> to vector<656x32xf32>
    %75 = arith.subf %60, %74 : vector<656x32xf32>
    %cst_54 = arith.constant 9.99999974E-6 : f32
    %76 = vector.broadcast %cst_54 : f32 to vector<1x32xf32>
    %77 = arith.addf %73, %76 : vector<1x32xf32>
    %78 = math.rsqrt %77 : vector<1x32xf32>
    %79 = vector.broadcast %78 : vector<1x32xf32> to vector<656x32xf32>
    %80 = arith.mulf %75, %79 : vector<656x32xf32>
    %c0_55 = arith.constant 0 : index
    %c0_56 = arith.constant 0 : index
    %81 = vector.load %arg7[%c0_55, %c0_56] : memref<1x32xf32, #tpu.memory_space<vmem>>, vector<1x32xf32>
    %82 = vector.broadcast %81 : vector<1x32xf32> to vector<656x32xf32>
    %83 = arith.mulf %80, %82 : vector<656x32xf32>
    %c0_57 = arith.constant 0 : index
    %c0_58 = arith.constant 0 : index
    %84 = vector.load %arg8[%c0_57, %c0_58] : memref<1x32xf32, #tpu.memory_space<vmem>>, vector<1x32xf32>
    %85 = vector.broadcast %84 : vector<1x32xf32> to vector<656x32xf32>
    %86 = arith.addf %83, %85 : vector<656x32xf32>
    %c0_59 = arith.constant 0 : index
    %c0_60 = arith.constant 0 : index
    %87 = vector.load %arg1[%c0_59, %c0_60] : memref<656x32xf32, #tpu.memory_space<vmem>>, vector<656x32xf32>
    %88 = arith.addf %86, %87 : vector<656x32xf32>
    %cst_61 = arith.constant 0.000000e+00 : f32
    %89 = vector.broadcast %cst_61 : f32 to vector<656x32xf32>
    %90 = arith.maximumf %88, %89 : vector<656x32xf32>
    %c0_62 = arith.constant 0 : index
    %c0_63 = arith.constant 0 : index
    %91 = vector.load %arg9[%c0_62, %c0_63] : memref<656x32xf32, #tpu.memory_space<vmem>>, vector<656x32xf32>
    tpu.vector_store %arg9[%c0_62, %c0_63], %90 {strides = array<i32>} : memref<656x32xf32, #tpu.memory_space<vmem>>, vector<656x32xf32>,
    return
  }
}

</mosaic_0001>

<llo_original>
// kernel: resblock_pallas.1
$region0: #{resblock_pallas.1}
  #allocation0 [shape = 'u32[]', space=smem, size = 0x4, offset = 0x4, fixed_abs, tag = 'smem constant byte address 0x4 - core index']
  #allocation1 [shape = 'u32[72,128]{1,0:T(1,128)}', space=vmem, size = 0x9000, scoped, tag = 'internal scratch']
  #allocation2 [shape = 'bf16[720,32]{1,0:T(8,128)(2,1)}', space=vmem, size = 0x2d000, scoped, tag = 'scratch operand']
  %s0 = inlined_call_operand.vmem [shape: bf16[720,32], index: 0, kind: input, shape index: {}]
  %s1 = inlined_call_operand.vmem [shape: f32[656,32], index: 1, kind: input, shape index: {}]
  %s2 = inlined_call_operand.vmem [shape: f32[656,1], index: 2, kind: input, shape index: {}]
  %s3 = inlined_call_operand.vmem [shape: bf16[288,32], index: 3, kind: input, shape index: {}]
  %s4 = inlined_call_operand.vmem [shape: f32[1,32], index: 4, kind: input, shape index: {}]
  %s5 = inlined_call_operand.vmem [shape: f32[1,32], index: 5, kind: input, shape index: {}]
  %s6 = inlined_call_operand.vmem [shape: bf16[288,32], index: 6, kind: input, shape index: {}]
  %s7 = inlined_call_operand.vmem [shape: f32[1,32], index: 7, kind: input, shape index: {}]
  %s8 = inlined_call_operand.vmem [shape: f32[1,32], index: 8, kind: input, shape index: {}]
  %s9 = inlined_call_operand.vmem [shape: f32[656,32], index: 9, kind: output, shape index: {}]
  %s10 = sld [smem:[#allocation0]]
  $region46: #{resblock_pallas.1} parent=0
    _
  %s12 = ssub.s32 1, %s10
  %s13 = scalar_select 0, %s12, %s10
  // Predicated region
  $region2: #{resblock_pallas.1} parent=0 // pred_check
    _
  $region3: #{resblock_pallas.1} parent=0 // pred_check_branch
    %15 = sbr.rel (0) target = $region5
  $region4: #{resblock_pallas.1} parent=0 // pred_region
    _
  $region5: #{resblock_pallas.1} parent=0 // pred_fallthru
    _
  // Predicated region
  $region6: #{resblock_pallas.1} parent=0 // pred_check
    _
  $region7: #{resblock_pallas.1} parent=0 // pred_check_branch
    %17 = sbr.rel (0) target = $region9
  $region8: #{resblock_pallas.1} parent=0 // pred_region
    _
  $region9: #{resblock_pallas.1} parent=0 // pred_fallthru
    _
  // Predicated region
  $region10: #{resblock_pallas.1} parent=0 // pred_check
    _
  $region11: #{resblock_pallas.1} parent=0 // pred_check_branch
    %19 = sbr.rel (0) target = $region13
  $region12: #{resblock_pallas.1} parent=0 // pred_region
    _
  $region13: #{resblock_pallas.1} parent=0 // pred_fallthru
    _
  // Predicated region
  $region14: #{resblock_pallas.1} parent=0 // pred_check
    _
  $region15: #{resblock_pallas.1} parent=0 // pred_check_branch
    %21 = sbr.rel (0) target = $region17
  $region16: #{resblock_pallas.1} parent=0 // pred_region
    _
  $region17: #{resblock_pallas.1} parent=0 // pred_fallthru
    _
  // Predicated region
  $region18: #{resblock_pallas.1} parent=0 // pred_check
    _
  $region19: #{resblock_pallas.1} parent=0 // pred_check_branch
    %23 = sbr.rel (0) target = $region21
  $region20: #{resblock_pallas.1} parent=0 // pred_region
    _
  $region21: #{resblock_pallas.1} parent=0 // pred_fallthru
    _
  // Predicated region
  $region22: #{resblock_pallas.1} parent=0 // pred_check
    _
  $region23: #{resblock_pallas.1} parent=0 // pred_check_branch
    %25 = sbr.rel (0) target = $region25
  $region24: #{resblock_pallas.1} parent=0 // pred_region
    _
  $region25: #{resblock_pallas.1} parent=0 // pred_fallthru
    _
  // Predicated region
  $region26: #{resblock_pallas.1} parent=0 // pred_check
    _
  $region27: #{resblock_pallas.1} parent=0 // pred_check_branch
    %27 = sbr.rel (0) target = $region29
  $region28: #{resblock_pallas.1} parent=0 // pred_region
    _
  $region29: #{resblock_pallas.1} parent=0 // pred_fallthru
    _
  // Predicated region
  $region30: #{resblock_pallas.1} parent=0 // pred_check
    _
  $region31: #{resblock_pallas.1} parent=0 // pred_check_branch
    %29 = sbr.rel (0) target = $region33
  $region32: #{resblock_pallas.1} parent=0 // pred_region
    _
  $region33: #{resblock_pallas.1} parent=0 // pred_fallthru
    _
  // Predicated region
  $region34: #{resblock_pallas.1} parent=0 // pred_check
    _
  $region35: #{resblock_pallas.1} parent=0 // pred_check_branch
    %31 = sbr.rel (0) target = $region37
  $region36: #{resblock_pallas.1} parent=0 // pred_region
    _
  $region37: #{resblock_pallas.1} parent=0 // pred_fallthru
    _
  %v33 = vld [vmem:[%s2] sm:$0xff]
  %v34 = vld [vmem:[%s2 + $0x8] sm:$0xff]
  %v35 = vld [vmem:[%s2 + $0x10] sm:$0xff]
  %v36 = vld [vmem:[%s2 + $0x18] sm:$0xff]
  %v37 = vld [vmem:[%s2 + $0x20] sm:$0xff]
  %v38 = vld [vmem:[%s2 + $0x28] sm:$0xff]
  %v39 = vld [vmem:[%s2 + $0x30] sm:$0xff]
  %v40 = vld [vmem:[%s2 + $0x38] sm:$0xff]
  %v41 = vld [vmem:[%s2 + $0x40] sm:$0xff]
  %v42 = vld [vmem:[%s2 + $0x48] sm:$0xff]
  %v43 = vld [vmem:[%s2 + $0x50] sm:$0xff]
  %v44 = vld [vmem:[%s2 + $0x58] sm:$0xff]
  %v45 = vld [vmem:[%s2 + $0x60] sm:$0xff]
  %v46 = vld [vmem:[%s2 + $0x68] sm:$0xff]
  %v47 = vld [vmem:[%s2 + $0x70] sm:$0xff]
  %v48 = vld [vmem:[%s2 + $0x78] sm:$0xff]
  %v49 = vld [vmem:[%s2 + $0x80] sm:$0xff]
  %v50 = vld [vmem:[%s2 + $0x88] sm:$0xff]
  %v51 = vld [vmem:[%s2 + $0x90] sm:$0xff]
  %v52 = vld [vmem:[%s2 + $0x98] sm:$0xff]
  %v53 = vld [vmem:[%s2 + $0xa0] sm:$0xff]
  %v54 = vld [vmem:[%s2 + $0xa8] sm:$0xff]
  %v55 = vld [vmem:[%s2 + $0xb0] sm:$0xff]
  %v56 = vld [vmem:[%s2 + $0xb8] sm:$0xff]
  %v57 = vld [vmem:[%s2 + $0xc0] sm:$0xff]
  %v58 = vld [vmem:[%s2 + $0xc8] sm:$0xff]
  %v59 = vld [vmem:[%s2 + $0xd0] sm:$0xff]
  %v60 = vld [vmem:[%s2 + $0xd8] sm:$0xff]
  %v61 = vld [vmem:[%s2 + $0xe0] sm:$0xff]
  %v62 = vld [vmem:[%s2 + $0xe8] sm:$0xff]
  %v63 = vld [vmem:[%s2 + $0xf0] sm:$0xff]
  %v64 = vld [vmem:[%s2 + $0xf8] sm:$0xff]
  %v65 = vld [vmem:[%s2 + $0x100] sm:$0xff]
  %v66 = vld [vmem:[%s2 + $0x108] sm:$0xff]
  %v67 = vld [vmem:[%s2 + $0x110] sm:$0xff]
  %v68 = vld [vmem:[%s2 + $0x118] sm:$0xff]
  %v69 = vld [vmem:[%s2 + $0x120] sm:$0xff]
  %v70 = vld [vmem:[%s2 + $0x128] sm:$0xff]
  %v71 = vld [vmem:[%s2 + $0x130] sm:$0xff]
  %v72 = vld [vmem:[%s2 + $0x138] sm:$0xff]
  %v73 = vld [vmem:[%s2 + $0x140] sm:$0xff]
  %v74 = vld [vmem:[%s2 + $0x148] sm:$0xff]
  %v75 = vld [vmem:[%s2 + $0x150] sm:$0xff]
  %v76 = vld [vmem:[%s2 + $0x158] sm:$0xff]
  %v77 = vld [vmem:[%s2 + $0x160] sm:$0xff]
  %v78 = vld [vmem:[%s2 + $0x168] sm:$0xff]
  %v79 = vld [vmem:[%s2 + $0x170] sm:$0xff]
  %v80 = vld [vmem:[%s2 + $0x178] sm:$0xff]
  %v81 = vld [vmem:[%s2 + $0x180] sm:$0xff]
  %v82 = vld [vmem:[%s2 + $0x188] sm:$0xff]
  %v83 = vld [vmem:[%s2 + $0x190] sm:$0xff]
  %v84 = vld [vmem:[%s2 + $0x198] sm:$0xff]
  %v85 = vld [vmem:[%s2 + $0x1a0] sm:$0xff]
  %v86 = vld [vmem:[%s2 + $0x1a8] sm:$0xff]
  %v87 = vld [vmem:[%s2 + $0x1b0] sm:$0xff]
  %v88 = vld [vmem:[%s2 + $0x1b8] sm:$0xff]
  %v89 = vld [vmem:[%s2 + $0x1c0] sm:$0xff]
  %v90 = vld [vmem:[%s2 + $0x1c8] sm:$0xff]
  %v91 = vld [vmem:[%s2 + $0x1d0] sm:$0xff]
  %v92 = vld [vmem:[%s2 + $0x1d8] sm:$0xff]
  %v93 = vld [vmem:[%s2 + $0x1e0] sm:$0xff]
  %v94 = vld [vmem:[%s2 + $0x1e8] sm:$0xff]
  %v95 = vld [vmem:[%s2 + $0x1f0] sm:$0xff]
  %v96 = vld [vmem:[%s2 + $0x1f8] sm:$0xff]
  %v97 = vld [vmem:[%s2 + $0x200] sm:$0xff]
  %v98 = vld [vmem:[%s2 + $0x208] sm:$0xff]
  %v99 = vld [vmem:[%s2 + $0x210] sm:$0xff]
  %v100 = vld [vmem:[%s2 + $0x218] sm:$0xff]
  %v101 = vld [vmem:[%s2 + $0x220] sm:$0xff]
  %v102 = vld [vmem:[%s2 + $0x228] sm:$0xff]
  %v103 = vld [vmem:[%s2 + $0x230] sm:$0xff]
  %v104 = vld [vmem:[%s2 + $0x238] sm:$0xff]
  %v105 = vld [vmem:[%s2 + $0x240] sm:$0xff]
  %v106 = vld [vmem:[%s2 + $0x248] sm:$0xff]
  %v107 = vld [vmem:[%s2 + $0x250] sm:$0xff]
  %v108 = vld [vmem:[%s2 + $0x258] sm:$0xff]
  %v109 = vld [vmem:[%s2 + $0x260] sm:$0xff]
  %v110 = vld [vmem:[%s2 + $0x268] sm:$0xff]
  %v111 = vld [vmem:[%s2 + $0x270] sm:$0xff]
  %v112 = vld [vmem:[%s2 + $0x278] sm:$0xff]
  %v113 = vld [vmem:[%s2 + $0x280] sm:$0xff]
  %v114 = vld [vmem:[%s2 + $0x288] sm:$0xff]
  %v115 = vld [vmem:[%s0 + $0x4] sm:$0xc]
  %v116 = vld [vmem:[%s0 + $0x8] sm:$0xf]
  %v117 = vld [vmem:[%s0 + $0xc] sm:$0xf]
  %v118 = vld [vmem:[%s0 + $0x10] sm:$0xf]
  %v119 = vld [vmem:[%s0 + $0x14] sm:$0xf]
  %v120 = vld [vmem:[%s0 + $0x18] sm:$0xf]
  %v121 = vld [vmem:[%s0 + $0x1c] sm:$0xf]
  %v122 = vld [vmem:[%s0 + $0x20] sm:$0xf]
  %v123 = vld [vmem:[%s0 + $0x24] sm:$0xf]
  %v124 = vld [vmem:[%s0 + $0x28] sm:$0xf]
  %v125 = vld [vmem:[%s0 + $0x2c] sm:$0xf]
  %v126 = vld [vmem:[%s0 + $0x30] sm:$0xf]
  %v127 = vld [vmem:[%s0 + $0x34] sm:$0xf]
  %v128 = vld [vmem:[%s0 + $0x38] sm:$0xf]
  %v129 = vld [vmem:[%s0 + $0x3c] sm:$0xf]
  %v130 = vld [vmem:[%s0 + $0x40] sm:$0xf]
  %v131 = vld [vmem:[%s0 + $0x44] sm:$0xf]
  %v132 = vld [vmem:[%s0 + $0x48] sm:$0xf]
  %v133 = vld [vmem:[%s0 + $0x4c] sm:$0xf]
  %v134 = vld [vmem:[%s0 + $0x50] sm:$0xf]
  %v135 = vld [vmem:[%s0 + $0x54] sm:$0xf]
  %v136 = vld [vmem:[%s0 + $0x58] sm:$0xf]
  %v137 = vld [vmem:[%s0 + $0x5c] sm:$0xf]
  %v138 = vld [vmem:[%s0 + $0x60] sm:$0xf]
  %v139 = vld [vmem:[%s0 + $0x64] sm:$0xf]
  %v140 = vld [vmem:[%s0 + $0x68] sm:$0xf]
  %v141 = vld [vmem:[%s0 + $0x6c] sm:$0xf]
  %v142 = vld [vmem:[%s0 + $0x70] sm:$0xf]
  %v143 = vld [vmem:[%s0 + $0x74] sm:$0xf]
  %v144 = vld [vmem:[%s0 + $0x78] sm:$0xf]
  %v145 = vld [vmem:[%s0 + $0x7c] sm:$0xf]
  %v146 = vld [vmem:[%s0 + $0x80] sm:$0xf]
  %v147 = vld [vmem:[%s0 + $0x84] sm:$0xf]
  %v148 = vld [vmem:[%s0 + $0x88] sm:$0xf]
  %v149 = vld [vmem:[%s0 + $0x8c] sm:$0xf]
  %v150 = vld [vmem:[%s0 + $0x90] sm:$0xf]
  %v151 = vld [vmem:[%s0 + $0x94] sm:$0xf]
  %v152 = vld [vmem:[%s0 + $0x98] sm:$0xf]
  %v153 = vld [vmem:[%s0 + $0x9c] sm:$0xf]
  %v154 = vld [vmem:[%s0 + $0xa0] sm:$0xf]
  %v155 = vld [vmem:[%s0 + $0xa4] sm:$0xf]
  %v156 = vld [vmem:[%s0 + $0xa8] sm:$0xf]
  %v157 = vld [vmem:[%s0 + $0xac] sm:$0xf]
  %v158 = vld [vmem:[%s0 + $0xb0] sm:$0xf]
  %v159 = vld [vmem:[%s0 + $0xb4] sm:$0xf]
  %v160 = vld [vmem:[%s0 + $0xb8] sm:$0xf]
  %v161 = vld [vmem:[%s0 + $0xbc] sm:$0xf]
  %v162 = vld [vmem:[%s0 + $0xc0] sm:$0xf]
  %v163 = vld [vmem:[%s0 + $0xc4] sm:$0xf]
  %v164 = vld [vmem:[%s0 + $0xc8] sm:$0xf]
  %v165 = vld [vmem:[%s0 + $0xcc] sm:$0xf]
  %v166 = vld [vmem:[%s0 + $0xd0] sm:$0xf]
  %v167 = vld [vmem:[%s0 + $0xd4] sm:$0xf]
  %v168 = vld [vmem:[%s0 + $0xd8] sm:$0xf]
  %v169 = vld [vmem:[%s0 + $0xdc] sm:$0xf]
  %v170 = vld [vmem:[%s0 + $0xe0] sm:$0xf]
  %v171 = vld [vmem:[%s0 + $0xe4] sm:$0xf]
  %v172 = vld [vmem:[%s0 + $0xe8] sm:$0xf]
  %v173 = vld [vmem:[%s0 + $0xec] sm:$0xf]
  %v174 = vld [vmem:[%s0 + $0xf0] sm:$0xf]
  %v175 = vld [vmem:[%s0 + $0xf4] sm:$0xf]
  %v176 = vld [vmem:[%s0 + $0xf8] sm:$0xf]
  %v177 = vld [vmem:[%s0 + $0xfc] sm:$0xf]
  %v178 = vld [vmem:[%s0 + $0x100] sm:$0xf]
  %v179 = vld [vmem:[%s0 + $0x104] sm:$0xf]
  %v180 = vld [vmem:[%s0 + $0x108] sm:$0xf]
  %v181 = vld [vmem:[%s0 + $0x10c] sm:$0xf]
  %v182 = vld [vmem:[%s0 + $0x110] sm:$0xf]
  %v183 = vld [vmem:[%s0 + $0x114] sm:$0xf]
  %v184 = vld [vmem:[%s0 + $0x118] sm:$0xf]
  %v185 = vld [vmem:[%s0 + $0x11c] sm:$0xf]
  %v186 = vld [vmem:[%s0 + $0x120] sm:$0xf]
  %v187 = vld [vmem:[%s0 + $0x124] sm:$0xf]
  %v188 = vld [vmem:[%s0 + $0x128] sm:$0xf]
  %v189 = vld [vmem:[%s0 + $0x12c] sm:$0xf]
  %v190 = vld [vmem:[%s0 + $0x130] sm:$0xf]
  %v191 = vld [vmem:[%s0 + $0x134] sm:$0xf]
  %v192 = vld [vmem:[%s0 + $0x138] sm:$0xf]
  %v193 = vld [vmem:[%s0 + $0x13c] sm:$0xf]
  %v194 = vld [vmem:[%s0 + $0x140] sm:$0xf]
  %v195 = vld [vmem:[%s0 + $0x144] sm:$0xf]
  %v196 = vld [vmem:[%s0 + $0x148] sm:$0xf]
  %v197 = vld [vmem:[%s0 + $0x14c] sm:$0x7]
  %v198 = vld [vmem:[%s0 + $0x4] sm:$0x8]
  %v199 = vld [vmem:[%s0 + $0x14c] sm:$0xf]
  %v200 = vld [vmem:[%s0 + $0xc] sm:$0x8]
  %v201 = vld [vmem:[%s0 + $0x150] sm:$0xf]
  %v202 = vld [vmem:[%s0 + $0x154] sm:$0xf]
  %v203 = vld [vmem:[%s0 + $0x158] sm:$0x1]
  %v204 = vld [vmem:[%s0 + $0x158] sm:$0xf]
  %v205 = vld [vmem:[%s0 + $0x15c] sm:$0xf]
  %v206 = vld [vmem:[%s0 + $0x160] sm:$0x1]
  %v207 = vld [vmem:[%s0 + $0x18] sm:$0xe]
  %v208 = vld [vmem:[%s0 + $0x160] sm:$0x3]
  %v292 = vunpack.c.l.b16 %v115
  %v293 = vunpack.c.l.b16 %v116
  %v294 = vunpack.c.l.b16 %v117
  %v295 = vunpack.c.l.b16 %v118
  %v296 = vunpack.c.l.b16 %v119
  %v297 = vunpack.c.l.b16 %v120
  %v298 = vunpack.c.l.b16 %v121
  %v299 = vunpack.c.l.b16 %v122
  %v300 = vunpack.c.l.b16 %v123
  %v301 = vunpack.c.l.b16 %v124
  %v302 = vunpack.c.l.b16 %v125
  %v303 = vunpack.c.l.b16 %v126
  %v304 = vunpack.c.l.b16 %v127
  %v305 = vunpack.c.l.b16 %v128
  %v306 = vunpack.c.l.b16 %v129
  %v307 = vunpack.c.l.b16 %v130
  %v308 = vunpack.c.l.b16 %v131
  %v309 = vunpack.c.l.b16 %v132
  %v310 = vunpack.c.l.b16 %v133
  %v311 = vunpack.c.l.b16 %v134
  %v312 = vunpack.c.l.b16 %v135
  %v313 = vunpack.c.l.b16 %v136
  %v314 = vunpack.c.l.b16 %v137
  %v315 = vunpack.c.l.b16 %v138
  %v316 = vunpack.c.l.b16 %v139
  %v317 = vunpack.c.l.b16 %v140
  %v318 = vunpack.c.l.b16 %v141
  %v319 = vunpack.c.l.b16 %v142
  %v320 = vunpack.c.l.b16 %v143
  %v321 = vunpack.c.l.b16 %v144
  %v322 = vunpack.c.l.b16 %v145
  %v323 = vunpack.c.l.b16 %v146
  %v324 = vunpack.c.l.b16 %v147
  %v325 = vunpack.c.l.b16 %v148
  %v326 = vunpack.c.l.b16 %v149
  %v327 = vunpack.c.l.b16 %v150
  %v328 = vunpack.c.l.b16 %v151
  %v329 = vunpack.c.l.b16 %v152
  %v330 = vunpack.c.l.b16 %v153
  %v331 = vunpack.c.l.b16 %v154
  %v332 = vunpack.c.l.b16 %v155
  %v333 = vunpack.c.l.b16 %v156
  %v334 = vunpack.c.l.b16 %v157
  %v335 = vunpack.c.l.b16 %v158
  %v336 = vunpack.c.l.b16 %v159
  %v337 = vunpack.c.l.b16 %v160
  %v338 = vunpack.c.l.b16 %v161
  %v339 = vunpack.c.l.b16 %v162
  %v340 = vunpack.c.l.b16 %v163
  %v341 = vunpack.c.l.b16 %v164
  %v342 = vunpack.c.l.b16 %v165
  %v343 = vunpack.c.l.b16 %v166
  %v344 = vunpack.c.l.b16 %v167
  %v345 = vunpack.c.l.b16 %v168
  %v346 = vunpack.c.l.b16 %v169
  %v347 = vunpack.c.l.b16 %v170
  %v348 = vunpack.c.l.b16 %v171
  %v349 = vunpack.c.l.b16 %v172
  %v350 = vunpack.c.l.b16 %v173
  %v351 = vunpack.c.l.b16 %v174
  %v352 = vunpack.c.l.b16 %v175
  %v353 = vunpack.c.l.b16 %v176
  %v354 = vunpack.c.l.b16 %v177
  %v355 = vunpack.c.l.b16 %v178
  %v356 = vunpack.c.l.b16 %v179
  %v357 = vunpack.c.l.b16 %v180
  %v358 = vunpack.c.l.b16 %v181
  %v359 = vunpack.c.l.b16 %v182
  %v360 = vunpack.c.l.b16 %v183
  %v361 = vunpack.c.l.b16 %v184
  %v362 = vunpack.c.l.b16 %v185
  %v363 = vunpack.c.l.b16 %v186
  %v364 = vunpack.c.l.b16 %v187
  %v365 = vunpack.c.l.b16 %v188
  %v366 = vunpack.c.l.b16 %v189
  %v367 = vunpack.c.l.b16 %v190
  %v368 = vunpack.c.l.b16 %v191
  %v369 = vunpack.c.l.b16 %v192
  %v370 = vunpack.c.l.b16 %v193
  %v371 = vunpack.c.l.b16 %v194
  %v372 = vunpack.c.l.b16 %v195
  %v373 = vunpack.c.l.b16 %v196
  %v374 = vunpack.c.l.b16 %v197
  %v375 = vpack.c.b16 %v293, %v292
  %v376 = vpack.c.b16 %v295, %v294
  %v377 = vpack.c.b16 %v297, %v296
  %v378 = vpack.c.b16 %v299, %v298
  %v379 = vpack.c.b16 %v301, %v300
  %v380 = vpack.c.b16 %v303, %v302
  %v381 = vpack.c.b16 %v305, %v304
  %v382 = vpack.c.b16 %v307, %v306
  %v383 = vpack.c.b16 %v309, %v308
  %v384 = vpack.c.b16 %v311, %v310
  %v385 = vpack.c.b16 %v313, %v312
  %v386 = vpack.c.b16 %v315, %v314
  %v387 = vpack.c.b16 %v317, %v316
  %v388 = vpack.c.b16 %v319, %v318
  %v389 = vpack.c.b16 %v321, %v320
  %v390 = vpack.c.b16 %v323, %v322
  %v391 = vpack.c.b16 %v325, %v324
  %v392 = vpack.c.b16 %v327, %v326
  %v393 = vpack.c.b16 %v329, %v328
  %v394 = vpack.c.b16 %v331, %v330
  %v395 = vpack.c.b16 %v333, %v332
  %v396 = vpack.c.b16 %v335, %v334
  %v397 = vpack.c.b16 %v337, %v336
  %v398 = vpack.c.b16 %v339, %v338
  %v399 = vpack.c.b16 %v341, %v340
  %v400 = vpack.c.b16 %v343, %v342
  %v401 = vpack.c.b16 %v345, %v344
  %v402 = vpack.c.b16 %v347, %v346
  %v403 = vpack.c.b16 %v349, %v348
  %v404 = vpack.c.b16 %v351, %v350
  %v405 = vpack.c.b16 %v353, %v352
  %v406 = vpack.c.b16 %v355, %v354
  %v407 = vpack.c.b16 %v357, %v356
  %v408 = vpack.c.b16 %v359, %v358
  %v409 = vpack.c.b16 %v361, %v360
  %v410 = vpack.c.b16 %v363, %v362
  %v411 = vpack.c.b16 %v365, %v364
  %v412 = vpack.c.b16 %v367, %v366
  %v413 = vpack.c.b16 %v369, %v368
  %v414 = vpack.c.b16 %v371, %v370
  %v415 = vpack.c.b16 %v373, %v372
  %v416 = vpack.c.b16 %v374, %v374
  %v418 = vunpack.c.l.b16 %v198
  %v419 = vpack.c.b16 %v293, %v418
  %vm420 = vsmask.f32 7424
  %v422 = vshrl.u32 %v419, 16
  %v424 = vshll.u32 %v419, 16
  %v426 = vrot.slane %v424, 1
  %v427 = vor.u32 %v422, %v426
  %v429 = vshll.u32 %v376, 16
  %v431 = vrot.slane %v429, 1
  %v432 = vsel %vm420, %v427, %v431
  %v433 = vshrl.u32 %v376, 16
  %v435 = vor.u32 %v433, %v431
  %v437 = vshll.u32 %v377, 16
  %v439 = vrot.slane %v437, 1
  %v440 = vsel %vm420, %v435, %v439
  %v441 = vshrl.u32 %v377, 16
  %v443 = vor.u32 %v441, %v439
  %v445 = vshll.u32 %v378, 16
  %v447 = vrot.slane %v445, 1
  %v448 = vsel %vm420, %v443, %v447
  %v449 = vshrl.u32 %v378, 16
  %v451 = vor.u32 %v449, %v447
  %v453 = vshll.u32 %v379, 16
  %v455 = vrot.slane %v453, 1
  %v456 = vsel %vm420, %v451, %v455
  %v457 = vshrl.u32 %v379, 16
  %v459 = vor.u32 %v457, %v455
  %v461 = vshll.u32 %v380, 16
  %v463 = vrot.slane %v461, 1
  %v464 = vsel %vm420, %v459, %v463
  %v465 = vshrl.u32 %v380, 16
  %v467 = vor.u32 %v465, %v463
  %v469 = vshll.u32 %v381, 16
  %v471 = vrot.slane %v469, 1
  %v472 = vsel %vm420, %v467, %v471
  %v473 = vshrl.u32 %v381, 16
  %v475 = vor.u32 %v473, %v471
  %v477 = vshll.u32 %v382, 16
  %v479 = vrot.slane %v477, 1
  %v480 = vsel %vm420, %v475, %v479
  %v481 = vshrl.u32 %v382, 16
  %v483 = vor.u32 %v481, %v479
  %v485 = vshll.u32 %v383, 16
  %v487 = vrot.slane %v485, 1
  %v488 = vsel %vm420, %v483, %v487
  %v489 = vshrl.u32 %v383, 16
  %v491 = vor.u32 %v489, %v487
  %v493 = vshll.u32 %v384, 16
  %v495 = vrot.slane %v493, 1
  %v496 = vsel %vm420, %v491, %v495
  %v497 = vshrl.u32 %v384, 16
  %v499 = vor.u32 %v497, %v495
  %v501 = vshll.u32 %v385, 16
  %v503 = vrot.slane %v501, 1
  %v504 = vsel %vm420, %v499, %v503
  %v505 = vshrl.u32 %v385, 16
  %v507 = vor.u32 %v505, %v503
  %v509 = vshll.u32 %v386, 16
  %v511 = vrot.slane %v509, 1
  %v512 = vsel %vm420, %v507, %v511
  %v513 = vshrl.u32 %v386, 16
  %v515 = vor.u32 %v513, %v511
  %v517 = vshll.u32 %v387, 16
  %v519 = vrot.slane %v517, 1
  %v520 = vsel %vm420, %v515, %v519
  %v521 = vshrl.u32 %v387, 16
  %v523 = vor.u32 %v521, %v519
  %v525 = vshll.u32 %v388, 16
  %v527 = vrot.slane %v525, 1
  %v528 = vsel %vm420, %v523, %v527
  %v529 = vshrl.u32 %v388, 16
  %v531 = vor.u32 %v529, %v527
  %v533 = vshll.u32 %v389, 16
  %v535 = vrot.slane %v533, 1
  %v536 = vsel %vm420, %v531, %v535
  %v537 = vshrl.u32 %v389, 16
  %v539 = vor.u32 %v537, %v535
  %v541 = vshll.u32 %v390, 16
  %v543 = vrot.slane %v541, 1
  %v544 = vsel %vm420, %v539, %v543
  %v545 = vshrl.u32 %v390, 16
  %v547 = vor.u32 %v545, %v543
  %v549 = vshll.u32 %v391, 16
  %v551 = vrot.slane %v549, 1
  %v552 = vsel %vm420, %v547, %v551
  %v553 = vshrl.u32 %v391, 16
  %v555 = vor.u32 %v553, %v551
  %v557 = vshll.u32 %v392, 16
  %v559 = vrot.slane %v557, 1
  %v560 = vsel %vm420, %v555, %v559
  %v561 = vshrl.u32 %v392, 16
  %v563 = vor.u32 %v561, %v559
  %v565 = vshll.u32 %v393, 16
  %v567 = vrot.slane %v565, 1
  %v568 = vsel %vm420, %v563, %v567
  %v569 = vshrl.u32 %v393, 16
  %v571 = vor.u32 %v569, %v567
  %v573 = vshll.u32 %v394, 16
  %v575 = vrot.slane %v573, 1
  %v576 = vsel %vm420, %v571, %v575
  %v577 = vshrl.u32 %v394, 16
  %v579 = vor.u32 %v577, %v575
  %v581 = vshll.u32 %v395, 16
  %v583 = vrot.slane %v581, 1
  %v584 = vsel %vm420, %v579, %v583
  %v585 = vshrl.u32 %v395, 16
  %v587 = vor.u32 %v585, %v583
  %v589 = vshll.u32 %v396, 16
  %v591 = vrot.slane %v589, 1
  %v592 = vsel %vm420, %v587, %v591
  %v593 = vshrl.u32 %v396, 16
  %v595 = vor.u32 %v593, %v591
  %v597 = vshll.u32 %v397, 16
  %v599 = vrot.slane %v597, 1
  %v600 = vsel %vm420, %v595, %v599
  %v601 = vshrl.u32 %v397, 16
  %v603 = vor.u32 %v601, %v599
  %v605 = vshll.u32 %v398, 16
  %v607 = vrot.slane %v605, 1
  %v608 = vsel %vm420, %v603, %v607
  %v609 = vshrl.u32 %v398, 16
  %v611 = vor.u32 %v609, %v607
  %v613 = vshll.u32 %v399, 16
  %v615 = vrot.slane %v613, 1
  %v616 = vsel %vm420, %v611, %v615
  %v617 = vshrl.u32 %v399, 16
  %v619 = vor.u32 %v617, %v615
  %v621 = vshll.u32 %v400, 16
  %v623 = vrot.slane %v621, 1
  %v624 = vsel %vm420, %v619, %v623
  %v625 = vshrl.u32 %v400, 16
  %v627 = vor.u32 %v625, %v623
  %v629 = vshll.u32 %v401, 16
  %v631 = vrot.slane %v629, 1
  %v632 = vsel %vm420, %v627, %v631
  %v633 = vshrl.u32 %v401, 16
  %v635 = vor.u32 %v633, %v631
  %v637 = vshll.u32 %v402, 16
  %v639 = vrot.slane %v637, 1
  %v640 = vsel %vm420, %v635, %v639
  %v641 = vshrl.u32 %v402, 16
  %v643 = vor.u32 %v641, %v639
  %v645 = vshll.u32 %v403, 16
  %v647 = vrot.slane %v645, 1
  %v648 = vsel %vm420, %v643, %v647
  %v649 = vshrl.u32 %v403, 16
  %v651 = vor.u32 %v649, %v647
  %v653 = vshll.u32 %v404, 16
  %v655 = vrot.slane %v653, 1
  %v656 = vsel %vm420, %v651, %v655
  %v657 = vshrl.u32 %v404, 16
  %v659 = vor.u32 %v657, %v655
  %v661 = vshll.u32 %v405, 16
  %v663 = vrot.slane %v661, 1
  %v664 = vsel %vm420, %v659, %v663
  %v665 = vshrl.u32 %v405, 16
  %v667 = vor.u32 %v665, %v663
  %v669 = vshll.u32 %v406, 16
  %v671 = vrot.slane %v669, 1
  %v672 = vsel %vm420, %v667, %v671
  %v673 = vshrl.u32 %v406, 16
  %v675 = vor.u32 %v673, %v671
  %v677 = vshll.u32 %v407, 16
  %v679 = vrot.slane %v677, 1
  %v680 = vsel %vm420, %v675, %v679
  %v681 = vshrl.u32 %v407, 16
  %v683 = vor.u32 %v681, %v679
  %v685 = vshll.u32 %v408, 16
  %v687 = vrot.slane %v685, 1
  %v688 = vsel %vm420, %v683, %v687
  %v689 = vshrl.u32 %v408, 16
  %v691 = vor.u32 %v689, %v687
  %v693 = vshll.u32 %v409, 16
  %v695 = vrot.slane %v693, 1
  %v696 = vsel %vm420, %v691, %v695
  %v697 = vshrl.u32 %v409, 16
  %v699 = vor.u32 %v697, %v695
  %v701 = vshll.u32 %v410, 16
  %v703 = vrot.slane %v701, 1
  %v704 = vsel %vm420, %v699, %v703
  %v705 = vshrl.u32 %v410, 16
  %v707 = vor.u32 %v705, %v703
  %v709 = vshll.u32 %v411, 16
  %v711 = vrot.slane %v709, 1
  %v712 = vsel %vm420, %v707, %v711
  %v713 = vshrl.u32 %v411, 16
  %v715 = vor.u32 %v713, %v711
  %v717 = vshll.u32 %v412, 16
  %v719 = vrot.slane %v717, 1
  %v720 = vsel %vm420, %v715, %v719
  %v721 = vshrl.u32 %v412, 16
  %v723 = vor.u32 %v721, %v719
  %v725 = vshll.u32 %v413, 16
  %v727 = vrot.slane %v725, 1
  %v728 = vsel %vm420, %v723, %v727
  %v729 = vshrl.u32 %v413, 16
  %v731 = vor.u32 %v729, %v727
  %v733 = vshll.u32 %v414, 16
  %v735 = vrot.slane %v733, 1
  %v736 = vsel %vm420, %v731, %v735
  %v737 = vshrl.u32 %v414, 16
  %v739 = vor.u32 %v737, %v735
  %v741 = vshll.u32 %v415, 16
  %v743 = vrot.slane %v741, 1
  %v744 = vsel %vm420, %v739, %v743
  %v745 = vshrl.u32 %v415, 16
  %v747 = vor.u32 %v745, %v743
  %v749 = vshll.u32 %v416, 16
  %v751 = vrot.slane %v749, 1
  %v752 = vsel %vm420, %v747, %v751
  %v753 = vshrl.u32 %v416, 16
  %v755 = vor.u32 %v753, %v751
  %756 = vrot.lane.b32.xlu0 %v432, 32
  %v757 = vpop.permute.xlu0 %756
  %758 = vrot.lane.b32.xlu0 %v440, 32
  %v759 = vpop.permute.xlu0 %758
  %760 = vrot.lane.b32.xlu0 %v448, 32
  %v761 = vpop.permute.xlu0 %760
  %762 = vrot.lane.b32.xlu0 %v456, 32
  %v763 = vpop.permute.xlu0 %762
  %764 = vrot.lane.b32.xlu0 %v464, 32
  %v765 = vpop.permute.xlu0 %764
  %766 = vrot.lane.b32.xlu0 %v472, 32
  %v767 = vpop.permute.xlu0 %766
  %768 = vrot.lane.b32.xlu0 %v480, 32
  %v769 = vpop.permute.xlu0 %768
  %770 = vrot.lane.b32.xlu0 %v488, 32
  %v771 = vpop.permute.xlu0 %770
  %772 = vrot.lane.b32.xlu0 %v496, 32
  %v773 = vpop.permute.xlu0 %772
  %774 = vrot.lane.b32.xlu0 %v504, 32
  %v775 = vpop.permute.xlu0 %774
  %776 = vrot.lane.b32.xlu0 %v512, 32
  %v777 = vpop.permute.xlu0 %776
  %778 = vrot.lane.b32.xlu0 %v520, 32
  %v779 = vpop.permute.xlu0 %778
  %780 = vrot.lane.b32.xlu0 %v528, 32
  %v781 = vpop.permute.xlu0 %780
  %782 = vrot.lane.b32.xlu0 %v536, 32
  %v783 = vpop.permute.xlu0 %782
  %784 = vrot.lane.b32.xlu0 %v544, 32
  %v785 = vpop.permute.xlu0 %784
  %786 = vrot.lane.b32.xlu0 %v552, 32
  %v787 = vpop.permute.xlu0 %786
  %788 = vrot.lane.b32.xlu0 %v560, 32
  %v789 = vpop.permute.xlu0 %788
  %790 = vrot.lane.b32.xlu0 %v568, 32
  %v791 = vpop.permute.xlu0 %790
  %792 = vrot.lane.b32.xlu0 %v576, 32
  %v793 = vpop.permute.xlu0 %792
  %794 = vrot.lane.b32.xlu0 %v584, 32
  %v795 = vpop.permute.xlu0 %794
  %796 = vrot.lane.b32.xlu0 %v592, 32
  %v797 = vpop.permute.xlu0 %796
  %798 = vrot.lane.b32.xlu0 %v600, 32
  %v799 = vpop.permute.xlu0 %798
  %800 = vrot.lane.b32.xlu0 %v608, 32
  %v801 = vpop.permute.xlu0 %800
  %802 = vrot.lane.b32.xlu0 %v616, 32
  %v803 = vpop.permute.xlu0 %802
  %804 = vrot.lane.b32.xlu0 %v624, 32
  %v805 = vpop.permute.xlu0 %804
  %806 = vrot.lane.b32.xlu0 %v632, 32
  %v807 = vpop.permute.xlu0 %806
  %808 = vrot.lane.b32.xlu0 %v640, 32
  %v809 = vpop.permute.xlu0 %808
  %810 = vrot.lane.b32.xlu0 %v648, 32
  %v811 = vpop.permute.xlu0 %810
  %812 = vrot.lane.b32.xlu0 %v656, 32
  %v813 = vpop.permute.xlu0 %812
  %814 = vrot.lane.b32.xlu0 %v664, 32
  %v815 = vpop.permute.xlu0 %814
  %816 = vrot.lane.b32.xlu0 %v672, 32
  %v817 = vpop.permute.xlu0 %816
  %818 = vrot.lane.b32.xlu0 %v680, 32
  %v819 = vpop.permute.xlu0 %818
  %820 = vrot.lane.b32.xlu0 %v688, 32
  %v821 = vpop.permute.xlu0 %820
  %822 = vrot.lane.b32.xlu0 %v696, 32
  %v823 = vpop.permute.xlu0 %822
  %824 = vrot.lane.b32.xlu0 %v704, 32
  %v825 = vpop.permute.xlu0 %824
  %826 = vrot.lane.b32.xlu0 %v712, 32
  %v827 = vpop.permute.xlu0 %826
  %828 = vrot.lane.b32.xlu0 %v720, 32
  %v829 = vpop.permute.xlu0 %828
  %830 = vrot.lane.b32.xlu0 %v728, 32
  %v831 = vpop.permute.xlu0 %830
  %832 = vrot.lane.b32.xlu0 %v736, 32
  %v833 = vpop.permute.xlu0 %832
  %834 = vrot.lane.b32.xlu0 %v744, 32
  %v835 = vpop.permute.xlu0 %834
  %836 = vrot.lane.b32.xlu0 %v752, 32
  %v837 = vpop.permute.xlu0 %836
  %838 = vrot.lane.b32.xlu0 %v755, 32
  %v839 = vpop.permute.xlu0 %838
  %v841 = vunpack.c.l.b16 %v199
  %v842 = vpack.c.b16 %v841, %v841
  %vm843 = vcmask 1046528
  %v844 = vrot.slane %v419, 1
  %v845 = vrot.slane %v376, 1
  %v846 = vsel %vm843, %v844, %v845
  %v847 = vrot.slane %v377, 1
  %v848 = vsel %vm843, %v845, %v847
  %v849 = vrot.slane %v378, 1
  %v850 = vsel %vm843, %v847, %v849
  %v851 = vrot.slane %v379, 1
  %v852 = vsel %vm843, %v849, %v851
  %v853 = vrot.slane %v380, 1
  %v854 = vsel %vm843, %v851, %v853
  %v855 = vrot.slane %v381, 1
  %v856 = vsel %vm843, %v853, %v855
  %v857 = vrot.slane %v382, 1
  %v858 = vsel %vm843, %v855, %v857
  %v859 = vrot.slane %v383, 1
  %v860 = vsel %vm843, %v857, %v859
  %v861 = vrot.slane %v384, 1
  %v862 = vsel %vm843, %v859, %v861
  %v863 = vrot.slane %v385, 1
  %v864 = vsel %vm843, %v861, %v863
  %v865 = vrot.slane %v386, 1
  %v866 = vsel %vm843, %v863, %v865
  %v867 = vrot.slane %v387, 1
  %v868 = vsel %vm843, %v865, %v867
  %v869 = vrot.slane %v388, 1
  %v870 = vsel %vm843, %v867, %v869
  %v871 = vrot.slane %v389, 1
  %v872 = vsel %vm843, %v869, %v871
  %v873 = vrot.slane %v390, 1
  %v874 = vsel %vm843, %v871, %v873
  %v875 = vrot.slane %v391, 1
  %v876 = vsel %vm843, %v873, %v875
  %v877 = vrot.slane %v392, 1
  %v878 = vsel %vm843, %v875, %v877
  %v879 = vrot.slane %v393, 1
  %v880 = vsel %vm843, %v877, %v879
  %v881 = vrot.slane %v394, 1
  %v882 = vsel %vm843, %v879, %v881
  %v883 = vrot.slane %v395, 1
  %v884 = vsel %vm843, %v881, %v883
  %v885 = vrot.slane %v396, 1
  %v886 = vsel %vm843, %v883, %v885
  %v887 = vrot.slane %v397, 1
  %v888 = vsel %vm843, %v885, %v887
  %v889 = vrot.slane %v398, 1
  %v890 = vsel %vm843, %v887, %v889
  %v891 = vrot.slane %v399, 1
  %v892 = vsel %vm843, %v889, %v891
  %v893 = vrot.slane %v400, 1
  %v894 = vsel %vm843, %v891, %v893
  %v895 = vrot.slane %v401, 1
  %v896 = vsel %vm843, %v893, %v895
  %v897 = vrot.slane %v402, 1
  %v898 = vsel %vm843, %v895, %v897
  %v899 = vrot.slane %v403, 1
  %v900 = vsel %vm843, %v897, %v899
  %v901 = vrot.slane %v404, 1
  %v902 = vsel %vm843, %v899, %v901
  %v903 = vrot.slane %v405, 1
  %v904 = vsel %vm843, %v901, %v903
  %v905 = vrot.slane %v406, 1
  %v906 = vsel %vm843, %v903, %v905
  %v907 = vrot.slane %v407, 1
  %v908 = vsel %vm843, %v905, %v907
  %v909 = vrot.slane %v408, 1
  %v910 = vsel %vm843, %v907, %v909
  %v911 = vrot.slane %v409, 1
  %v912 = vsel %vm843, %v909, %v911
  %v913 = vrot.slane %v410, 1
  %v914 = vsel %vm843, %v911, %v913
  %v915 = vrot.slane %v411, 1
  %v916 = vsel %vm843, %v913, %v915
  %v917 = vrot.slane %v412, 1
  %v918 = vsel %vm843, %v915, %v917
  %v919 = vrot.slane %v413, 1
  %v920 = vsel %vm843, %v917, %v919
  %v921 = vrot.slane %v414, 1
  %v922 = vsel %vm843, %v919, %v921
  %v923 = vrot.slane %v415, 1
  %v924 = vsel %vm843, %v921, %v923
  %v925 = vrot.slane %v842, 1
  %v926 = vsel %vm843, %v923, %v925
  %927 = vrot.lane.b32.xlu0 %v846, 64
  %v928 = vpop.permute.xlu0 %927
  %929 = vrot.lane.b32.xlu0 %v848, 64
  %v930 = vpop.permute.xlu0 %929
  %931 = vrot.lane.b32.xlu0 %v850, 64
  %v932 = vpop.permute.xlu0 %931
  %933 = vrot.lane.b32.xlu0 %v852, 64
  %v934 = vpop.permute.xlu0 %933
  %935 = vrot.lane.b32.xlu0 %v854, 64
  %v936 = vpop.permute.xlu0 %935
  %937 = vrot.lane.b32.xlu0 %v856, 64
  %v938 = vpop.permute.xlu0 %937
  %939 = vrot.lane.b32.xlu0 %v858, 64
  %v940 = vpop.permute.xlu0 %939
  %941 = vrot.lane.b32.xlu0 %v860, 64
  %v942 = vpop.permute.xlu0 %941
  %943 = vrot.lane.b32.xlu0 %v862, 64
  %v944 = vpop.permute.xlu0 %943
  %945 = vrot.lane.b32.xlu0 %v864, 64
  %v946 = vpop.permute.xlu0 %945
  %947 = vrot.lane.b32.xlu0 %v866, 64
  %v948 = vpop.permute.xlu0 %947
  %949 = vrot.lane.b32.xlu0 %v868, 64
  %v950 = vpop.permute.xlu0 %949
  %951 = vrot.lane.b32.xlu0 %v870, 64
  %v952 = vpop.permute.xlu0 %951
  %953 = vrot.lane.b32.xlu0 %v872, 64
  %v954 = vpop.permute.xlu0 %953
  %955 = vrot.lane.b32.xlu0 %v874, 64
  %v956 = vpop.permute.xlu0 %955
  %957 = vrot.lane.b32.xlu0 %v876, 64
  %v958 = vpop.permute.xlu0 %957
  %959 = vrot.lane.b32.xlu0 %v878, 64
  %v960 = vpop.permute.xlu0 %959
  %961 = vrot.lane.b32.xlu0 %v880, 64
  %v962 = vpop.permute.xlu0 %961
  %963 = vrot.lane.b32.xlu0 %v882, 64
  %v964 = vpop.permute.xlu0 %963
  %965 = vrot.lane.b32.xlu0 %v884, 64
  %v966 = vpop.permute.xlu0 %965
  %967 = vrot.lane.b32.xlu0 %v886, 64
  %v968 = vpop.permute.xlu0 %967
  %969 = vrot.lane.b32.xlu0 %v888, 64
  %v970 = vpop.permute.xlu0 %969
  %971 = vrot.lane.b32.xlu0 %v890, 64
  %v972 = vpop.permute.xlu0 %971
  %973 = vrot.lane.b32.xlu0 %v892, 64
  %v974 = vpop.permute.xlu0 %973
  %975 = vrot.lane.b32.xlu0 %v894, 64
  %v976 = vpop.permute.xlu0 %975
  %977 = vrot.lane.b32.xlu0 %v896, 64
  %v978 = vpop.permute.xlu0 %977
  %979 = vrot.lane.b32.xlu0 %v898, 64
  %v980 = vpop.permute.xlu0 %979
  %981 = vrot.lane.b32.xlu0 %v900, 64
  %v982 = vpop.permute.xlu0 %981
  %983 = vrot.lane.b32.xlu0 %v902, 64
  %v984 = vpop.permute.xlu0 %983
  %985 = vrot.lane.b32.xlu0 %v904, 64
  %v986 = vpop.permute.xlu0 %985
  %987 = vrot.lane.b32.xlu0 %v906, 64
  %v988 = vpop.permute.xlu0 %987
  %989 = vrot.lane.b32.xlu0 %v908, 64
  %v990 = vpop.permute.xlu0 %989
  %991 = vrot.lane.b32.xlu0 %v910, 64
  %v992 = vpop.permute.xlu0 %991
  %993 = vrot.lane.b32.xlu0 %v912, 64
  %v994 = vpop.permute.xlu0 %993
  %995 = vrot.lane.b32.xlu0 %v914, 64
  %v996 = vpop.permute.xlu0 %995
  %997 = vrot.lane.b32.xlu0 %v916, 64
  %v998 = vpop.permute.xlu0 %997
  %999 = vrot.lane.b32.xlu0 %v918, 64
  %v1000 = vpop.permute.xlu0 %999
  %1001 = vrot.lane.b32.xlu0 %v920, 64
  %v1002 = vpop.permute.xlu0 %1001
  %1003 = vrot.lane.b32.xlu0 %v922, 64
  %v1004 = vpop.permute.xlu0 %1003
  %1005 = vrot.lane.b32.xlu0 %v924, 64
  %v1006 = vpop.permute.xlu0 %1005
  %1007 = vrot.lane.b32.xlu0 %v926, 64
  %v1008 = vpop.permute.xlu0 %1007
  %1009 = vrot.lane.b32.xlu0 %v925, 64
  %v1010 = vpop.permute.xlu0 %1009
  %v1014 = vunpack.c.l.b16 %v200
  %v1015 = vunpack.c.l.b16 %v201
  %v1016 = vunpack.c.l.b16 %v202
  %v1017 = vpack.c.b16 %v295, %v1014
  %v1018 = vpack.c.b16 %v1015, %v841
  %v1019 = vpack.c.b16 %v1016, %v1016
  %v1020 = vrot.slane %v1017, 1
  %v1021 = vsel %vm843, %v1020, %v847
  %v1022 = vrot.slane %v1018, 1
  %v1023 = vsel %vm843, %v923, %v1022
  %v1024 = vrot.slane %v1019, 1
  %v1025 = vsel %vm843, %v1022, %v1024
  %1026 = vrot.lane.b32.xlu0 %v1021, 96
  %v1027 = vpop.permute.xlu0 %1026
  %1028 = vrot.lane.b32.xlu0 %v850, 96
  %v1029 = vpop.permute.xlu0 %1028
  %1030 = vrot.lane.b32.xlu0 %v852, 96
  %v1031 = vpop.permute.xlu0 %1030
  %1032 = vrot.lane.b32.xlu0 %v854, 96
  %v1033 = vpop.permute.xlu0 %1032
  %1034 = vrot.lane.b32.xlu0 %v856, 96
  %v1035 = vpop.permute.xlu0 %1034
  %1036 = vrot.lane.b32.xlu0 %v858, 96
  %v1037 = vpop.permute.xlu0 %1036
  %1038 = vrot.lane.b32.xlu0 %v860, 96
  %v1039 = vpop.permute.xlu0 %1038
  %1040 = vrot.lane.b32.xlu0 %v862, 96
  %v1041 = vpop.permute.xlu0 %1040
  %1042 = vrot.lane.b32.xlu0 %v864, 96
  %v1043 = vpop.permute.xlu0 %1042
  %1044 = vrot.lane.b32.xlu0 %v866, 96
  %v1045 = vpop.permute.xlu0 %1044
  %1046 = vrot.lane.b32.xlu0 %v868, 96
  %v1047 = vpop.permute.xlu0 %1046
  %1048 = vrot.lane.b32.xlu0 %v870, 96
  %v1049 = vpop.permute.xlu0 %1048
  %1050 = vrot.lane.b32.xlu0 %v872, 96
  %v1051 = vpop.permute.xlu0 %1050
  %1052 = vrot.lane.b32.xlu0 %v874, 96
  %v1053 = vpop.permute.xlu0 %1052
  %1054 = vrot.lane.b32.xlu0 %v876, 96
  %v1055 = vpop.permute.xlu0 %1054
  %1056 = vrot.lane.b32.xlu0 %v878, 96
  %v1057 = vpop.permute.xlu0 %1056
  %1058 = vrot.lane.b32.xlu0 %v880, 96
  %v1059 = vpop.permute.xlu0 %1058
  %1060 = vrot.lane.b32.xlu0 %v882, 96
  %v1061 = vpop.permute.xlu0 %1060
  %1062 = vrot.lane.b32.xlu0 %v884, 96
  %v1063 = vpop.permute.xlu0 %1062
  %1064 = vrot.lane.b32.xlu0 %v886, 96
  %v1065 = vpop.permute.xlu0 %1064
  %1066 = vrot.lane.b32.xlu0 %v888, 96
  %v1067 = vpop.permute.xlu0 %1066
  %1068 = vrot.lane.b32.xlu0 %v890, 96
  %v1069 = vpop.permute.xlu0 %1068
  %1070 = vrot.lane.b32.xlu0 %v892, 96
  %v1071 = vpop.permute.xlu0 %1070
  %1072 = vrot.lane.b32.xlu0 %v894, 96
  %v1073 = vpop.permute.xlu0 %1072
  %1074 = vrot.lane.b32.xlu0 %v896, 96
  %v1075 = vpop.permute.xlu0 %1074
  %1076 = vrot.lane.b32.xlu0 %v898, 96
  %v1077 = vpop.permute.xlu0 %1076
  %1078 = vrot.lane.b32.xlu0 %v900, 96
  %v1079 = vpop.permute.xlu0 %1078
  %1080 = vrot.lane.b32.xlu0 %v902, 96
  %v1081 = vpop.permute.xlu0 %1080
  %1082 = vrot.lane.b32.xlu0 %v904, 96
  %v1083 = vpop.permute.xlu0 %1082
  %1084 = vrot.lane.b32.xlu0 %v906, 96
  %v1085 = vpop.permute.xlu0 %1084
  %1086 = vrot.lane.b32.xlu0 %v908, 96
  %v1087 = vpop.permute.xlu0 %1086
  %1088 = vrot.lane.b32.xlu0 %v910, 96
  %v1089 = vpop.permute.xlu0 %1088
  %1090 = vrot.lane.b32.xlu0 %v912, 96
  %v1091 = vpop.permute.xlu0 %1090
  %1092 = vrot.lane.b32.xlu0 %v914, 96
  %v1093 = vpop.permute.xlu0 %1092
  %1094 = vrot.lane.b32.xlu0 %v916, 96
  %v1095 = vpop.permute.xlu0 %1094
  %1096 = vrot.lane.b32.xlu0 %v918, 96
  %v1097 = vpop.permute.xlu0 %1096
  %1098 = vrot.lane.b32.xlu0 %v920, 96
  %v1099 = vpop.permute.xlu0 %1098
  %1100 = vrot.lane.b32.xlu0 %v922, 96
  %v1101 = vpop.permute.xlu0 %1100
  %1102 = vrot.lane.b32.xlu0 %v924, 96
  %v1103 = vpop.permute.xlu0 %1102
  %1104 = vrot.lane.b32.xlu0 %v1023, 96
  %v1105 = vpop.permute.xlu0 %1104
  %1106 = vrot.lane.b32.xlu0 %v1025, 96
  %v1107 = vpop.permute.xlu0 %1106
  %1108 = vrot.lane.b32.xlu0 %v1024, 96
  %v1109 = vpop.permute.xlu0 %1108
  %v1110 = vpack.c.b16 %v296, %v295
  %v1111 = vpack.c.b16 %v298, %v297
  %v1112 = vpack.c.b16 %v300, %v299
  %v1113 = vpack.c.b16 %v302, %v301
  %v1114 = vpack.c.b16 %v304, %v303
  %v1115 = vpack.c.b16 %v306, %v305
  %v1116 = vpack.c.b16 %v308, %v307
  %v1117 = vpack.c.b16 %v310, %v309
  %v1118 = vpack.c.b16 %v312, %v311
  %v1119 = vpack.c.b16 %v314, %v313
  %v1120 = vpack.c.b16 %v316, %v315
  %v1121 = vpack.c.b16 %v318, %v317
  %v1122 = vpack.c.b16 %v320, %v319
  %v1123 = vpack.c.b16 %v322, %v321
  %v1124 = vpack.c.b16 %v324, %v323
  %v1125 = vpack.c.b16 %v326, %v325
  %v1126 = vpack.c.b16 %v328, %v327
  %v1127 = vpack.c.b16 %v330, %v329
  %v1128 = vpack.c.b16 %v332, %v331
  %v1129 = vpack.c.b16 %v334, %v333
  %v1130 = vpack.c.b16 %v336, %v335
  %v1131 = vpack.c.b16 %v338, %v337
  %v1132 = vpack.c.b16 %v340, %v339
  %v1133 = vpack.c.b16 %v342, %v341
  %v1134 = vpack.c.b16 %v344, %v343
  %v1135 = vpack.c.b16 %v346, %v345
  %v1136 = vpack.c.b16 %v348, %v347
  %v1137 = vpack.c.b16 %v350, %v349
  %v1138 = vpack.c.b16 %v352, %v351
  %v1139 = vpack.c.b16 %v354, %v353
  %v1140 = vpack.c.b16 %v356, %v355
  %v1141 = vpack.c.b16 %v358, %v357
  %v1142 = vpack.c.b16 %v360, %v359
  %v1143 = vpack.c.b16 %v362, %v361
  %v1144 = vpack.c.b16 %v364, %v363
  %v1145 = vpack.c.b16 %v366, %v365
  %v1146 = vpack.c.b16 %v368, %v367
  %v1147 = vpack.c.b16 %v370, %v369
  %v1148 = vpack.c.b16 %v372, %v371
  %v1149 = vpack.c.b16 %v841, %v373
  %v1150 = vpack.c.b16 %v1016, %v1015
  %vm1151 = vsmask.f32 2304
  %v1153 = vshrl.u32 %v1110, 16
  %v1155 = vrot.slane %v1153, 5
  %v1156 = vshll.u32 %v1110, 16
  %v1158 = vrot.slane %v1156, 6
  %v1159 = vor.u32 %v1155, %v1158
  %v1161 = vshrl.u32 %v1111, 16
  %v1163 = vrot.slane %v1161, 5
  %v1164 = vshll.u32 %v1111, 16
  %v1166 = vrot.slane %v1164, 6
  %v1167 = vor.u32 %v1163, %v1166
  %v1168 = vsel %vm1151, %v1159, %v1167
  %v1170 = vshrl.u32 %v1112, 16
  %v1172 = vrot.slane %v1170, 5
  %v1173 = vshll.u32 %v1112, 16
  %v1175 = vrot.slane %v1173, 6
  %v1176 = vor.u32 %v1172, %v1175
  %v1177 = vsel %vm1151, %v1167, %v1176
  %v1179 = vshrl.u32 %v1113, 16
  %v1181 = vrot.slane %v1179, 5
  %v1182 = vshll.u32 %v1113, 16
  %v1184 = vrot.slane %v1182, 6
  %v1185 = vor.u32 %v1181, %v1184
  %v1186 = vsel %vm1151, %v1176, %v1185
  %v1188 = vshrl.u32 %v1114, 16
  %v1190 = vrot.slane %v1188, 5
  %v1191 = vshll.u32 %v1114, 16
  %v1193 = vrot.slane %v1191, 6
  %v1194 = vor.u32 %v1190, %v1193
  %v1195 = vsel %vm1151, %v1185, %v1194
  %v1197 = vshrl.u32 %v1115, 16
  %v1199 = vrot.slane %v1197, 5
  %v1200 = vshll.u32 %v1115, 16
  %v1202 = vrot.slane %v1200, 6
  %v1203 = vor.u32 %v1199, %v1202
  %v1204 = vsel %vm1151, %v1194, %v1203
  %v1206 = vshrl.u32 %v1116, 16
  %v1208 = vrot.slane %v1206, 5
  %v1209 = vshll.u32 %v1116, 16
  %v1211 = vrot.slane %v1209, 6
  %v1212 = vor.u32 %v1208, %v1211
  %v1213 = vsel %vm1151, %v1203, %v1212
  %v1215 = vshrl.u32 %v1117, 16
  %v1217 = vrot.slane %v1215, 5
  %v1218 = vshll.u32 %v1117, 16
  %v1220 = vrot.slane %v1218, 6
  %v1221 = vor.u32 %v1217, %v1220
  %v1222 = vsel %vm1151, %v1212, %v1221
  %v1224 = vshrl.u32 %v1118, 16
  %v1226 = vrot.slane %v1224, 5
  %v1227 = vshll.u32 %v1118, 16
  %v1229 = vrot.slane %v1227, 6
  %v1230 = vor.u32 %v1226, %v1229
  %v1231 = vsel %vm1151, %v1221, %v1230
  %v1233 = vshrl.u32 %v1119, 16
  %v1235 = vrot.slane %v1233, 5
  %v1236 = vshll.u32 %v1119, 16
  %v1238 = vrot.slane %v1236, 6
  %v1239 = vor.u32 %v1235, %v1238
  %v1240 = vsel %vm1151, %v1230, %v1239
  %v1242 = vshrl.u32 %v1120, 16
  %v1244 = vrot.slane %v1242, 5
  %v1245 = vshll.u32 %v1120, 16
  %v1247 = vrot.slane %v1245, 6
  %v1248 = vor.u32 %v1244, %v1247
  %v1249 = vsel %vm1151, %v1239, %v1248
  %v1251 = vshrl.u32 %v1121, 16
  %v1253 = vrot.slane %v1251, 5
  %v1254 = vshll.u32 %v1121, 16
  %v1256 = vrot.slane %v1254, 6
  %v1257 = vor.u32 %v1253, %v1256
  %v1258 = vsel %vm1151, %v1248, %v1257
  %v1260 = vshrl.u32 %v1122, 16
  %v1262 = vrot.slane %v1260, 5
  %v1263 = vshll.u32 %v1122, 16
  %v1265 = vrot.slane %v1263, 6
  %v1266 = vor.u32 %v1262, %v1265
  %v1267 = vsel %vm1151, %v1257, %v1266
  %v1269 = vshrl.u32 %v1123, 16
  %v1271 = vrot.slane %v1269, 5
  %v1272 = vshll.u32 %v1123, 16
  %v1274 = vrot.slane %v1272, 6
  %v1275 = vor.u32 %v1271, %v1274
  %v1276 = vsel %vm1151, %v1266, %v1275
  %v1278 = vshrl.u32 %v1124, 16
  %v1280 = vrot.slane %v1278, 5
  %v1281 = vshll.u32 %v1124, 16
  %v1283 = vrot.slane %v1281, 6
  %v1284 = vor.u32 %v1280, %v1283
  %v1285 = vsel %vm1151, %v1275, %v1284
  %v1287 = vshrl.u32 %v1125, 16
  %v1289 = vrot.slane %v1287, 5
  %v1290 = vshll.u32 %v1125, 16
  %v1292 = vrot.slane %v1290, 6
  %v1293 = vor.u32 %v1289, %v1292
  %v1294 = vsel %vm1151, %v1284, %v1293
  %v1296 = vshrl.u32 %v1126, 16
  %v1298 = vrot.slane %v1296, 5
  %v1299 = vshll.u32 %v1126, 16
  %v1301 = vrot.slane %v1299, 6
  %v1302 = vor.u32 %v1298, %v1301
  %v1303 = vsel %vm1151, %v1293, %v1302
  %v1305 = vshrl.u32 %v1127, 16
  %v1307 = vrot.slane %v1305, 5
  %v1308 = vshll.u32 %v1127, 16
  %v1310 = vrot.slane %v1308, 6
  %v1311 = vor.u32 %v1307, %v1310
  %v1312 = vsel %vm1151, %v1302, %v1311
  %v1314 = vshrl.u32 %v1128, 16
  %v1316 = vrot.slane %v1314, 5
  %v1317 = vshll.u32 %v1128, 16
  %v1319 = vrot.slane %v1317, 6
  %v1320 = vor.u32 %v1316, %v1319
  %v1321 = vsel %vm1151, %v1311, %v1320
  %v1323 = vshrl.u32 %v1129, 16
  %v1325 = vrot.slane %v1323, 5
  %v1326 = vshll.u32 %v1129, 16
  %v1328 = vrot.slane %v1326, 6
  %v1329 = vor.u32 %v1325, %v1328
  %v1330 = vsel %vm1151, %v1320, %v1329
  %v1332 = vshrl.u32 %v1130, 16
  %v1334 = vrot.slane %v1332, 5
  %v1335 = vshll.u32 %v1130, 16
  %v1337 = vrot.slane %v1335, 6
  %v1338 = vor.u32 %v1334, %v1337
  %v1339 = vsel %vm1151, %v1329, %v1338
  %v1341 = vshrl.u32 %v1131, 16
  %v1343 = vrot.slane %v1341, 5
  %v1344 = vshll.u32 %v1131, 16
  %v1346 = vrot.slane %v1344, 6
  %v1347 = vor.u32 %v1343, %v1346
  %v1348 = vsel %vm1151, %v1338, %v1347
  %v1350 = vshrl.u32 %v1132, 16
  %v1352 = vrot.slane %v1350, 5
  %v1353 = vshll.u32 %v1132, 16
  %v1355 = vrot.slane %v1353, 6
  %v1356 = vor.u32 %v1352, %v1355
  %v1357 = vsel %vm1151, %v1347, %v1356
  %v1359 = vshrl.u32 %v1133, 16
  %v1361 = vrot.slane %v1359, 5
  %v1362 = vshll.u32 %v1133, 16
  %v1364 = vrot.slane %v1362, 6
  %v1365 = vor.u32 %v1361, %v1364
  %v1366 = vsel %vm1151, %v1356, %v1365
  %v1368 = vshrl.u32 %v1134, 16
  %v1370 = vrot.slane %v1368, 5
  %v1371 = vshll.u32 %v1134, 16
  %v1373 = vrot.slane %v1371, 6
  %v1374 = vor.u32 %v1370, %v1373
  %v1375 = vsel %vm1151, %v1365, %v1374
  %v1377 = vshrl.u32 %v1135, 16
  %v1379 = vrot.slane %v1377, 5
  %v1380 = vshll.u32 %v1135, 16
  %v1382 = vrot.slane %v1380, 6
  %v1383 = vor.u32 %v1379, %v1382
  %v1384 = vsel %vm1151, %v1374, %v1383
  %v1386 = vshrl.u32 %v1136, 16
  %v1388 = vrot.slane %v1386, 5
  %v1389 = vshll.u32 %v1136, 16
  %v1391 = vrot.slane %v1389, 6
  %v1392 = vor.u32 %v1388, %v1391
  %v1393 = vsel %vm1151, %v1383, %v1392
  %v1395 = vshrl.u32 %v1137, 16
  %v1397 = vrot.slane %v1395, 5
  %v1398 = vshll.u32 %v1137, 16
  %v1400 = vrot.slane %v1398, 6
  %v1401 = vor.u32 %v1397, %v1400
  %v1402 = vsel %vm1151, %v1392, %v1401
  %v1404 = vshrl.u32 %v1138, 16
  %v1406 = vrot.slane %v1404, 5
  %v1407 = vshll.u32 %v1138, 16
  %v1409 = vrot.slane %v1407, 6
  %v1410 = vor.u32 %v1406, %v1409
  %v1411 = vsel %vm1151, %v1401, %v1410
  %v1413 = vshrl.u32 %v1139, 16
  %v1415 = vrot.slane %v1413, 5
  %v1416 = vshll.u32 %v1139, 16
  %v1418 = vrot.slane %v1416, 6
  %v1419 = vor.u32 %v1415, %v1418
  %v1420 = vsel %vm1151, %v1410, %v1419
  %v1422 = vshrl.u32 %v1140, 16
  %v1424 = vrot.slane %v1422, 5
  %v1425 = vshll.u32 %v1140, 16
  %v1427 = vrot.slane %v1425, 6
  %v1428 = vor.u32 %v1424, %v1427
  %v1429 = vsel %vm1151, %v1419, %v1428
  %v1431 = vshrl.u32 %v1141, 16
  %v1433 = vrot.slane %v1431, 5
  %v1434 = vshll.u32 %v1141, 16
  %v1436 = vrot.slane %v1434, 6
  %v1437 = vor.u32 %v1433, %v1436
  %v1438 = vsel %vm1151, %v1428, %v1437
  %v1440 = vshrl.u32 %v1142, 16
  %v1442 = vrot.slane %v1440, 5
  %v1443 = vshll.u32 %v1142, 16
  %v1445 = vrot.slane %v1443, 6
  %v1446 = vor.u32 %v1442, %v1445
  %v1447 = vsel %vm1151, %v1437, %v1446
  %v1449 = vshrl.u32 %v1143, 16
  %v1451 = vrot.slane %v1449, 5
  %v1452 = vshll.u32 %v1143, 16
  %v1454 = vrot.slane %v1452, 6
  %v1455 = vor.u32 %v1451, %v1454
  %v1456 = vsel %vm1151, %v1446, %v1455
  %v1458 = vshrl.u32 %v1144, 16
  %v1460 = vrot.slane %v1458, 5
  %v1461 = vshll.u32 %v1144, 16
  %v1463 = vrot.slane %v1461, 6
  %v1464 = vor.u32 %v1460, %v1463
  %v1465 = vsel %vm1151, %v1455, %v1464
  %v1467 = vshrl.u32 %v1145, 16
  %v1469 = vrot.slane %v1467, 5
  %v1470 = vshll.u32 %v1145, 16
  %v1472 = vrot.slane %v1470, 6
  %v1473 = vor.u32 %v1469, %v1472
  %v1474 = vsel %vm1151, %v1464, %v1473
  %v1476 = vshrl.u32 %v1146, 16
  %v1478 = vrot.slane %v1476, 5
  %v1479 = vshll.u32 %v1146, 16
  %v1481 = vrot.slane %v1479, 6
  %v1482 = vor.u32 %v1478, %v1481
  %v1483 = vsel %vm1151, %v1473, %v1482
  %v1485 = vshrl.u32 %v1147, 16
  %v1487 = vrot.slane %v1485, 5
  %v1488 = vshll.u32 %v1147, 16
  %v1490 = vrot.slane %v1488, 6
  %v1491 = vor.u32 %v1487, %v1490
  %v1492 = vsel %vm1151, %v1482, %v1491
  %v1494 = vshrl.u32 %v1148, 16
  %v1496 = vrot.slane %v1494, 5
  %v1497 = vshll.u32 %v1148, 16
  %v1499 = vrot.slane %v1497, 6
  %v1500 = vor.u32 %v1496, %v1499
  %v1501 = vsel %vm1151, %v1491, %v1500
  %v1503 = vshrl.u32 %v1149, 16
  %v1505 = vrot.slane %v1503, 5
  %v1506 = vshll.u32 %v1149, 16
  %v1508 = vrot.slane %v1506, 6
  %v1509 = vor.u32 %v1505, %v1508
  %v1510 = vsel %vm1151, %v1500, %v1509
  %v1512 = vshrl.u32 %v1150, 16
  %v1514 = vrot.slane %v1512, 5
  %v1515 = vshll.u32 %v1150, 16
  %v1517 = vrot.slane %v1515, 6
  %v1518 = vor.u32 %v1514, %v1517
  %v1519 = vsel %vm1151, %v1509, %v1518
  %v1521 = vunpack.c.l.b16 %v203
  %v1522 = vpack.c.b16 %v1521, %v1521
  %vm1523 = vcmask 1041408
  %v1524 = vrot.slane %v1110, 6
  %v1525 = vrot.slane %v1111, 6
  %v1526 = vsel %vm1523, %v1524, %v1525
  %v1527 = vrot.slane %v1112, 6
  %v1528 = vsel %vm1523, %v1525, %v1527
  %v1529 = vrot.slane %v1113, 6
  %v1530 = vsel %vm1523, %v1527, %v1529
  %v1531 = vrot.slane %v1114, 6
  %v1532 = vsel %vm1523, %v1529, %v1531
  %v1533 = vrot.slane %v1115, 6
  %v1534 = vsel %vm1523, %v1531, %v1533
  %v1535 = vrot.slane %v1116, 6
  %v1536 = vsel %vm1523, %v1533, %v1535
  %v1537 = vrot.slane %v1117, 6
  %v1538 = vsel %vm1523, %v1535, %v1537
  %v1539 = vrot.slane %v1118, 6
  %v1540 = vsel %vm1523, %v1537, %v1539
  %v1541 = vrot.slane %v1119, 6
  %v1542 = vsel %vm1523, %v1539, %v1541
  %v1543 = vrot.slane %v1120, 6
  %v1544 = vsel %vm1523, %v1541, %v1543
  %v1545 = vrot.slane %v1121, 6
  %v1546 = vsel %vm1523, %v1543, %v1545
  %v1547 = vrot.slane %v1122, 6
  %v1548 = vsel %vm1523, %v1545, %v1547
  %v1549 = vrot.slane %v1123, 6
  %v1550 = vsel %vm1523, %v1547, %v1549
  %v1551 = vrot.slane %v1124, 6
  %v1552 = vsel %vm1523, %v1549, %v1551
  %v1553 = vrot.slane %v1125, 6
  %v1554 = vsel %vm1523, %v1551, %v1553
  %v1555 = vrot.slane %v1126, 6
  %v1556 = vsel %vm1523, %v1553, %v1555
  %v1557 = vrot.slane %v1127, 6
  %v1558 = vsel %vm1523, %v1555, %v1557
  %v1559 = vrot.slane %v1128, 6
  %v1560 = vsel %vm1523, %v1557, %v1559
  %v1561 = vrot.slane %v1129, 6
  %v1562 = vsel %vm1523, %v1559, %v1561
  %v1563 = vrot.slane %v1130, 6
  %v1564 = vsel %vm1523, %v1561, %v1563
  %v1565 = vrot.slane %v1131, 6
  %v1566 = vsel %vm1523, %v1563, %v1565
  %v1567 = vrot.slane %v1132, 6
  %v1568 = vsel %vm1523, %v1565, %v1567
  %v1569 = vrot.slane %v1133, 6
  %v1570 = vsel %vm1523, %v1567, %v1569
  %v1571 = vrot.slane %v1134, 6
  %v1572 = vsel %vm1523, %v1569, %v1571
  %v1573 = vrot.slane %v1135, 6
  %v1574 = vsel %vm1523, %v1571, %v1573
  %v1575 = vrot.slane %v1136, 6
  %v1576 = vsel %vm1523, %v1573, %v1575
  %v1577 = vrot.slane %v1137, 6
  %v1578 = vsel %vm1523, %v1575, %v1577
  %v1579 = vrot.slane %v1138, 6
  %v1580 = vsel %vm1523, %v1577, %v1579
  %v1581 = vrot.slane %v1139, 6
  %v1582 = vsel %vm1523, %v1579, %v1581
  %v1583 = vrot.slane %v1140, 6
  %v1584 = vsel %vm1523, %v1581, %v1583
  %v1585 = vrot.slane %v1141, 6
  %v1586 = vsel %vm1523, %v1583, %v1585
  %v1587 = vrot.slane %v1142, 6
  %v1588 = vsel %vm1523, %v1585, %v1587
  %v1589 = vrot.slane %v1143, 6
  %v1590 = vsel %vm1523, %v1587, %v1589
  %v1591 = vrot.slane %v1144, 6
  %v1592 = vsel %vm1523, %v1589, %v1591
  %v1593 = vrot.slane %v1145, 6
  %v1594 = vsel %vm1523, %v1591, %v1593
  %v1595 = vrot.slane %v1146, 6
  %v1596 = vsel %vm1523, %v1593, %v1595
  %v1597 = vrot.slane %v1147, 6
  %v1598 = vsel %vm1523, %v1595, %v1597
  %v1599 = vrot.slane %v1148, 6
  %v1600 = vsel %vm1523, %v1597, %v1599
  %v1601 = vrot.slane %v1149, 6
  %v1602 = vsel %vm1523, %v1599, %v1601
  %v1603 = vrot.slane %v1150, 6
  %v1604 = vsel %vm1523, %v1601, %v1603
  %v1605 = vrot.slane %v1522, 6
  %v1606 = vsel %vm1523, %v1603, %v1605
  %1607 = vrot.lane.b32.xlu0 %v1524, 32
  %v1608 = vpop.permute.xlu0 %1607
  %1609 = vrot.lane.b32.xlu0 %v1526, 32
  %v1610 = vpop.permute.xlu0 %1609
  %1611 = vrot.lane.b32.xlu0 %v1528, 32
  %v1612 = vpop.permute.xlu0 %1611
  %1613 = vrot.lane.b32.xlu0 %v1530, 32
  %v1614 = vpop.permute.xlu0 %1613
  %1615 = vrot.lane.b32.xlu0 %v1532, 32
  %v1616 = vpop.permute.xlu0 %1615
  %1617 = vrot.lane.b32.xlu0 %v1534, 32
  %v1618 = vpop.permute.xlu0 %1617
  %1619 = vrot.lane.b32.xlu0 %v1536, 32
  %v1620 = vpop.permute.xlu0 %1619
  %1621 = vrot.lane.b32.xlu0 %v1538, 32
  %v1622 = vpop.permute.xlu0 %1621
  %1623 = vrot.lane.b32.xlu0 %v1540, 32
  %v1624 = vpop.permute.xlu0 %1623
  %1625 = vrot.lane.b32.xlu0 %v1542, 32
  %v1626 = vpop.permute.xlu0 %1625
  %1627 = vrot.lane.b32.xlu0 %v1544, 32
  %v1628 = vpop.permute.xlu0 %1627
  %1629 = vrot.lane.b32.xlu0 %v1546, 32
  %v1630 = vpop.permute.xlu0 %1629
  %1631 = vrot.lane.b32.xlu0 %v1548, 32
  %v1632 = vpop.permute.xlu0 %1631
  %1633 = vrot.lane.b32.xlu0 %v1550, 32
  %v1634 = vpop.permute.xlu0 %1633
  %1635 = vrot.lane.b32.xlu0 %v1552, 32
  %v1636 = vpop.permute.xlu0 %1635
  %1637 = vrot.lane.b32.xlu0 %v1554, 32
  %v1638 = vpop.permute.xlu0 %1637
  %1639 = vrot.lane.b32.xlu0 %v1556, 32
  %v1640 = vpop.permute.xlu0 %1639
  %1641 = vrot.lane.b32.xlu0 %v1558, 32
  %v1642 = vpop.permute.xlu0 %1641
  %1643 = vrot.lane.b32.xlu0 %v1560, 32
  %v1644 = vpop.permute.xlu0 %1643
  %1645 = vrot.lane.b32.xlu0 %v1562, 32
  %v1646 = vpop.permute.xlu0 %1645
  %1647 = vrot.lane.b32.xlu0 %v1564, 32
  %v1648 = vpop.permute.xlu0 %1647
  %1649 = vrot.lane.b32.xlu0 %v1566, 32
  %v1650 = vpop.permute.xlu0 %1649
  %1651 = vrot.lane.b32.xlu0 %v1568, 32
  %v1652 = vpop.permute.xlu0 %1651
  %1653 = vrot.lane.b32.xlu0 %v1570, 32
  %v1654 = vpop.permute.xlu0 %1653
  %1655 = vrot.lane.b32.xlu0 %v1572, 32
  %v1656 = vpop.permute.xlu0 %1655
  %1657 = vrot.lane.b32.xlu0 %v1574, 32
  %v1658 = vpop.permute.xlu0 %1657
  %1659 = vrot.lane.b32.xlu0 %v1576, 32
  %v1660 = vpop.permute.xlu0 %1659
  %1661 = vrot.lane.b32.xlu0 %v1578, 32
  %v1662 = vpop.permute.xlu0 %1661
  %1663 = vrot.lane.b32.xlu0 %v1580, 32
  %v1664 = vpop.permute.xlu0 %1663
  %1665 = vrot.lane.b32.xlu0 %v1582, 32
  %v1666 = vpop.permute.xlu0 %1665
  %1667 = vrot.lane.b32.xlu0 %v1584, 32
  %v1668 = vpop.permute.xlu0 %1667
  %1669 = vrot.lane.b32.xlu0 %v1586, 32
  %v1670 = vpop.permute.xlu0 %1669
  %1671 = vrot.lane.b32.xlu0 %v1588, 32
  %v1672 = vpop.permute.xlu0 %1671
  %1673 = vrot.lane.b32.xlu0 %v1590, 32
  %v1674 = vpop.permute.xlu0 %1673
  %1675 = vrot.lane.b32.xlu0 %v1592, 32
  %v1676 = vpop.permute.xlu0 %1675
  %1677 = vrot.lane.b32.xlu0 %v1594, 32
  %v1678 = vpop.permute.xlu0 %1677
  %1679 = vrot.lane.b32.xlu0 %v1596, 32
  %v1680 = vpop.permute.xlu0 %1679
  %1681 = vrot.lane.b32.xlu0 %v1598, 32
  %v1682 = vpop.permute.xlu0 %1681
  %1683 = vrot.lane.b32.xlu0 %v1600, 32
  %v1684 = vpop.permute.xlu0 %1683
  %1685 = vrot.lane.b32.xlu0 %v1602, 32
  %v1686 = vpop.permute.xlu0 %1685
  %1687 = vrot.lane.b32.xlu0 %v1604, 32
  %v1688 = vpop.permute.xlu0 %1687
  %1689 = vrot.lane.b32.xlu0 %v1606, 32
  %v1690 = vpop.permute.xlu0 %1689
  %v1694 = vunpack.c.l.b16 %v204
  %v1695 = vunpack.c.l.b16 %v205
  %v1696 = vunpack.c.l.b16 %v206
  %v1697 = vpack.c.b16 %v1695, %v1694
  %v1698 = vpack.c.b16 %v1696, %v1696
  %v1699 = vrot.slane %v1697, 6
  %v1700 = vsel %vm1523, %v1603, %v1699
  %v1701 = vrot.slane %v1698, 6
  %v1702 = vsel %vm1523, %v1699, %v1701
  %1703 = vrot.lane.b32.xlu0 %v1525, 64
  %v1704 = vpop.permute.xlu0 %1703
  %1705 = vrot.lane.b32.xlu0 %v1528, 64
  %v1706 = vpop.permute.xlu0 %1705
  %1707 = vrot.lane.b32.xlu0 %v1530, 64
  %v1708 = vpop.permute.xlu0 %1707
  %1709 = vrot.lane.b32.xlu0 %v1532, 64
  %v1710 = vpop.permute.xlu0 %1709
  %1711 = vrot.lane.b32.xlu0 %v1534, 64
  %v1712 = vpop.permute.xlu0 %1711
  %1713 = vrot.lane.b32.xlu0 %v1536, 64
  %v1714 = vpop.permute.xlu0 %1713
  %1715 = vrot.lane.b32.xlu0 %v1538, 64
  %v1716 = vpop.permute.xlu0 %1715
  %1717 = vrot.lane.b32.xlu0 %v1540, 64
  %v1718 = vpop.permute.xlu0 %1717
  %1719 = vrot.lane.b32.xlu0 %v1542, 64
  %v1720 = vpop.permute.xlu0 %1719
  %1721 = vrot.lane.b32.xlu0 %v1544, 64
  %v1722 = vpop.permute.xlu0 %1721
  %1723 = vrot.lane.b32.xlu0 %v1546, 64
  %v1724 = vpop.permute.xlu0 %1723
  %1725 = vrot.lane.b32.xlu0 %v1548, 64
  %v1726 = vpop.permute.xlu0 %1725
  %1727 = vrot.lane.b32.xlu0 %v1550, 64
  %v1728 = vpop.permute.xlu0 %1727
  %1729 = vrot.lane.b32.xlu0 %v1552, 64
  %v1730 = vpop.permute.xlu0 %1729
  %1731 = vrot.lane.b32.xlu0 %v1554, 64
  %v1732 = vpop.permute.xlu0 %1731
  %1733 = vrot.lane.b32.xlu0 %v1556, 64
  %v1734 = vpop.permute.xlu0 %1733
  %1735 = vrot.lane.b32.xlu0 %v1558, 64
  %v1736 = vpop.permute.xlu0 %1735
  %1737 = vrot.lane.b32.xlu0 %v1560, 64
  %v1738 = vpop.permute.xlu0 %1737
  %1739 = vrot.lane.b32.xlu0 %v1562, 64
  %v1740 = vpop.permute.xlu0 %1739
  %1741 = vrot.lane.b32.xlu0 %v1564, 64
  %v1742 = vpop.permute.xlu0 %1741
  %1743 = vrot.lane.b32.xlu0 %v1566, 64
  %v1744 = vpop.permute.xlu0 %1743
  %1745 = vrot.lane.b32.xlu0 %v1568, 64
  %v1746 = vpop.permute.xlu0 %1745
  %1747 = vrot.lane.b32.xlu0 %v1570, 64
  %v1748 = vpop.permute.xlu0 %1747
  %1749 = vrot.lane.b32.xlu0 %v1572, 64
  %v1750 = vpop.permute.xlu0 %1749
  %1751 = vrot.lane.b32.xlu0 %v1574, 64
  %v1752 = vpop.permute.xlu0 %1751
  %1753 = vrot.lane.b32.xlu0 %v1576, 64
  %v1754 = vpop.permute.xlu0 %1753
  %1755 = vrot.lane.b32.xlu0 %v1578, 64
  %v1756 = vpop.permute.xlu0 %1755
  %1757 = vrot.lane.b32.xlu0 %v1580, 64
  %v1758 = vpop.permute.xlu0 %1757
  %1759 = vrot.lane.b32.xlu0 %v1582, 64
  %v1760 = vpop.permute.xlu0 %1759
  %1761 = vrot.lane.b32.xlu0 %v1584, 64
  %v1762 = vpop.permute.xlu0 %1761
  %1763 = vrot.lane.b32.xlu0 %v1586, 64
  %v1764 = vpop.permute.xlu0 %1763
  %1765 = vrot.lane.b32.xlu0 %v1588, 64
  %v1766 = vpop.permute.xlu0 %1765
  %1767 = vrot.lane.b32.xlu0 %v1590, 64
  %v1768 = vpop.permute.xlu0 %1767
  %1769 = vrot.lane.b32.xlu0 %v1592, 64
  %v1770 = vpop.permute.xlu0 %1769
  %1771 = vrot.lane.b32.xlu0 %v1594, 64
  %v1772 = vpop.permute.xlu0 %1771
  %1773 = vrot.lane.b32.xlu0 %v1596, 64
  %v1774 = vpop.permute.xlu0 %1773
  %1775 = vrot.lane.b32.xlu0 %v1598, 64
  %v1776 = vpop.permute.xlu0 %1775
  %1777 = vrot.lane.b32.xlu0 %v1600, 64
  %v1778 = vpop.permute.xlu0 %1777
  %1779 = vrot.lane.b32.xlu0 %v1602, 64
  %v1780 = vpop.permute.xlu0 %1779
  %1781 = vrot.lane.b32.xlu0 %v1604, 64
  %v1782 = vpop.permute.xlu0 %1781
  %1783 = vrot.lane.b32.xlu0 %v1700, 64
  %v1784 = vpop.permute.xlu0 %1783
  %1785 = vrot.lane.b32.xlu0 %v1702, 64
  %v1786 = vpop.permute.xlu0 %1785
  %v1788 = vunpack.c.l.b16 %v207
  %v1789 = vpack.c.b16 %v298, %v1788
  %vm1790 = vsmask.f32 1280
  %v1792 = vshrl.u32 %v1789, 16
  %v1794 = vrot.slane %v1792, 6
  %v1795 = vshll.u32 %v1789, 16
  %v1797 = vrot.slane %v1795, 7
  %v1798 = vor.u32 %v1794, %v1797
  %v1799 = vrot.slane %v1170, 6
  %v1800 = vrot.slane %v1173, 7
  %v1801 = vor.u32 %v1799, %v1800
  %v1802 = vsel %vm1790, %v1798, %v1801
  %v1803 = vrot.slane %v1179, 6
  %v1804 = vrot.slane %v1182, 7
  %v1805 = vor.u32 %v1803, %v1804
  %v1806 = vsel %vm1790, %v1801, %v1805
  %v1807 = vrot.slane %v1188, 6
  %v1808 = vrot.slane %v1191, 7
  %v1809 = vor.u32 %v1807, %v1808
  %v1810 = vsel %vm1790, %v1805, %v1809
  %v1811 = vrot.slane %v1197, 6
  %v1812 = vrot.slane %v1200, 7
  %v1813 = vor.u32 %v1811, %v1812
  %v1814 = vsel %vm1790, %v1809, %v1813
  %v1815 = vrot.slane %v1206, 6
  %v1816 = vrot.slane %v1209, 7
  %v1817 = vor.u32 %v1815, %v1816
  %v1818 = vsel %vm1790, %v1813, %v1817
  %v1819 = vrot.slane %v1215, 6
  %v1820 = vrot.slane %v1218, 7
  %v1821 = vor.u32 %v1819, %v1820
  %v1822 = vsel %vm1790, %v1817, %v1821
  %v1823 = vrot.slane %v1224, 6
  %v1824 = vrot.slane %v1227, 7
  %v1825 = vor.u32 %v1823, %v1824
  %v1826 = vsel %vm1790, %v1821, %v1825
  %v1827 = vrot.slane %v1233, 6
  %v1828 = vrot.slane %v1236, 7
  %v1829 = vor.u32 %v1827, %v1828
  %v1830 = vsel %vm1790, %v1825, %v1829
  %v1831 = vrot.slane %v1242, 6
  %v1832 = vrot.slane %v1245, 7
  %v1833 = vor.u32 %v1831, %v1832
  %v1834 = vsel %vm1790, %v1829, %v1833
  %v1835 = vrot.slane %v1251, 6
  %v1836 = vrot.slane %v1254, 7
  %v1837 = vor.u32 %v1835, %v1836
  %v1838 = vsel %vm1790, %v1833, %v1837
  %v1839 = vrot.slane %v1260, 6
  %v1840 = vrot.slane %v1263, 7
  %v1841 = vor.u32 %v1839, %v1840
  %v1842 = vsel %vm1790, %v1837, %v1841
  %v1843 = vrot.slane %v1269, 6
  %v1844 = vrot.slane %v1272, 7
  %v1845 = vor.u32 %v1843, %v1844
  %v1846 = vsel %vm1790, %v1841, %v1845
  %v1847 = vrot.slane %v1278, 6
  %v1848 = vrot.slane %v1281, 7
  %v1849 = vor.u32 %v1847, %v1848
  %v1850 = vsel %vm1790, %v1845, %v1849
  %v1851 = vrot.slane %v1287, 6
  %v1852 = vrot.slane %v1290, 7
  %v1853 = vor.u32 %v1851, %v1852
  %v1854 = vsel %vm1790, %v1849, %v1853
  %v1855 = vrot.slane %v1296, 6
  %v1856 = vrot.slane %v1299, 7
  %v1857 = vor.u32 %v1855, %v1856
  %v1858 = vsel %vm1790, %v1853, %v1857
  %v1859 = vrot.slane %v1305, 6
  %v1860 = vrot.slane %v1308, 7
  %v1861 = vor.u32 %v1859, %v1860
  %v1862 = vsel %vm1790, %v1857, %v1861
  %v1863 = vrot.slane %v1314, 6
  %v1864 = vrot.slane %v1317, 7
  %v1865 = vor.u32 %v1863, %v1864
  %v1866 = vsel %vm1790, %v1861, %v1865
  %v1867 = vrot.slane %v1323, 6
  %v1868 = vrot.slane %v1326, 7
  %v1869 = vor.u32 %v1867, %v1868
  %v1870 = vsel %vm1790, %v1865, %v1869
  %v1871 = vrot.slane %v1332, 6
  %v1872 = vrot.slane %v1335, 7
  %v1873 = vor.u32 %v1871, %v1872
  %v1874 = vsel %vm1790, %v1869, %v1873
  %v1875 = vrot.slane %v1341, 6
  %v1876 = vrot.slane %v1344, 7
  %v1877 = vor.u32 %v1875, %v1876
  %v1878 = vsel %vm1790, %v1873, %v1877
  %v1879 = vrot.slane %v1350, 6
  %v1880 = vrot.slane %v1353, 7
  %v1881 = vor.u32 %v1879, %v1880
  %v1882 = vsel %vm1790, %v1877, %v1881
  %v1883 = vrot.slane %v1359, 6
  %v1884 = vrot.slane %v1362, 7
  %v1885 = vor.u32 %v1883, %v1884
  %v1886 = vsel %vm1790, %v1881, %v1885
  %v1887 = vrot.slane %v1368, 6
  %v1888 = vrot.slane %v1371, 7
  %v1889 = vor.u32 %v1887, %v1888
  %v1890 = vsel %vm1790, %v1885, %v1889
  %v1891 = vrot.slane %v1377, 6
  %v1892 = vrot.slane %v1380, 7
  %v1893 = vor.u32 %v1891, %v1892
  %v1894 = vsel %vm1790, %v1889, %v1893
  %v1895 = vrot.slane %v1386, 6
  %v1896 = vrot.slane %v1389, 7
  %v1897 = vor.u32 %v1895, %v1896
  %v1898 = vsel %vm1790, %v1893, %v1897
  %v1899 = vrot.slane %v1395, 6
  %v1900 = vrot.slane %v1398, 7
  %v1901 = vor.u32 %v1899, %v1900
  %v1902 = vsel %vm1790, %v1897, %v1901
  %v1903 = vrot.slane %v1404, 6
  %v1904 = vrot.slane %v1407, 7
  %v1905 = vor.u32 %v1903, %v1904
  %v1906 = vsel %vm1790, %v1901, %v1905
  %v1907 = vrot.slane %v1413, 6
  %v1908 = vrot.slane %v1416, 7
  %v1909 = vor.u32 %v1907, %v1908
  %v1910 = vsel %vm1790, %v1905, %v1909
  %v1911 = vrot.slane %v1422, 6
  %v1912 = vrot.slane %v1425, 7
  %v1913 = vor.u32 %v1911, %v1912
  %v1914 = vsel %vm1790, %v1909, %v1913
  %v1915 = vrot.slane %v1431, 6
  %v1916 = vrot.slane %v1434, 7
  %v1917 = vor.u32 %v1915, %v1916
  %v1918 = vsel %vm1790, %v1913, %v1917
  %v1919 = vrot.slane %v1440, 6
  %v1920 = vrot.slane %v1443, 7
  %v1921 = vor.u32 %v1919, %v1920
  %v1922 = vsel %vm1790, %v1917, %v1921
  %v1923 = vrot.slane %v1449, 6
  %v1924 = vrot.slane %v1452, 7
  %v1925 = vor.u32 %v1923, %v1924
  %v1926 = vsel %vm1790, %v1921, %v1925
  %v1927 = vrot.slane %v1458, 6
  %v1928 = vrot.slane %v1461, 7
  %v1929 = vor.u32 %v1927, %v1928
  %v1930 = vsel %vm1790, %v1925, %v1929
  %v1931 = vrot.slane %v1467, 6
  %v1932 = vrot.slane %v1470, 7
  %v1933 = vor.u32 %v1931, %v1932
  %v1934 = vsel %vm1790, %v1929, %v1933
  %v1935 = vrot.slane %v1476, 6
  %v1936 = vrot.slane %v1479, 7
  %v1937 = vor.u32 %v1935, %v1936
  %v1938 = vsel %vm1790, %v1933, %v1937
  %v1939 = vrot.slane %v1485, 6
  %v1940 = vrot.slane %v1488, 7
  %v1941 = vor.u32 %v1939, %v1940
  %v1942 = vsel %vm1790, %v1937, %v1941
  %v1943 = vrot.slane %v1494, 6
  %v1944 = vrot.slane %v1497, 7
  %v1945 = vor.u32 %v1943, %v1944
  %v1946 = vsel %vm1790, %v1941, %v1945
  %v1947 = vrot.slane %v1503, 6
  %v1948 = vrot.slane %v1506, 7
  %v1949 = vor.u32 %v1947, %v1948
  %v1950 = vsel %vm1790, %v1945, %v1949
  %v1951 = vrot.slane %v1512, 6
  %v1952 = vrot.slane %v1515, 7
  %v1953 = vor.u32 %v1951, %v1952
  %v1954 = vsel %vm1790, %v1949, %v1953
  %v1956 = vshrl.u32 %v1697, 16
  %v1958 = vrot.slane %v1956, 6
  %v1959 = vshll.u32 %v1697, 16
  %v1961 = vrot.slane %v1959, 7
  %v1962 = vor.u32 %v1958, %v1961
  %v1963 = vsel %vm1790, %v1953, %v1962
  %v1965 = vshrl.u32 %v1698, 16
  %v1967 = vrot.slane %v1965, 6
  %v1968 = vshll.u32 %v1698, 16
  %v1970 = vrot.slane %v1968, 7
  %v1971 = vor.u32 %v1967, %v1970
  %v1972 = vsel %vm1790, %v1962, %v1971
  %1973 = vrot.lane.b32.xlu0 %v1798, 96
  %v1974 = vpop.permute.xlu0 %1973
  %1975 = vrot.lane.b32.xlu0 %v1802, 96
  %v1976 = vpop.permute.xlu0 %1975
  %1977 = vrot.lane.b32.xlu0 %v1806, 96
  %v1978 = vpop.permute.xlu0 %1977
  %1979 = vrot.lane.b32.xlu0 %v1810, 96
  %v1980 = vpop.permute.xlu0 %1979
  %1981 = vrot.lane.b32.xlu0 %v1814, 96
  %v1982 = vpop.permute.xlu0 %1981
  %1983 = vrot.lane.b32.xlu0 %v1818, 96
  %v1984 = vpop.permute.xlu0 %1983
  %1985 = vrot.lane.b32.xlu0 %v1822, 96
  %v1986 = vpop.permute.xlu0 %1985
  %1987 = vrot.lane.b32.xlu0 %v1826, 96
  %v1988 = vpop.permute.xlu0 %1987
  %1989 = vrot.lane.b32.xlu0 %v1830, 96
  %v1990 = vpop.permute.xlu0 %1989
  %1991 = vrot.lane.b32.xlu0 %v1834, 96
  %v1992 = vpop.permute.xlu0 %1991
  %1993 = vrot.lane.b32.xlu0 %v1838, 96
  %v1994 = vpop.permute.xlu0 %1993
  %1995 = vrot.lane.b32.xlu0 %v1842, 96
  %v1996 = vpop.permute.xlu0 %1995
  %1997 = vrot.lane.b32.xlu0 %v1846, 96
  %v1998 = vpop.permute.xlu0 %1997
  %1999 = vrot.lane.b32.xlu0 %v1850, 96
  %v2000 = vpop.permute.xlu0 %1999
  %2001 = vrot.lane.b32.xlu0 %v1854, 96
  %v2002 = vpop.permute.xlu0 %2001
  %2003 = vrot.lane.b32.xlu0 %v1858, 96
  %v2004 = vpop.permute.xlu0 %2003
  %2005 = vrot.lane.b32.xlu0 %v1862, 96
  %v2006 = vpop.permute.xlu0 %2005
  %2007 = vrot.lane.b32.xlu0 %v1866, 96
  %v2008 = vpop.permute.xlu0 %2007
  %2009 = vrot.lane.b32.xlu0 %v1870, 96
  %v2010 = vpop.permute.xlu0 %2009
  %2011 = vrot.lane.b32.xlu0 %v1874, 96
  %v2012 = vpop.permute.xlu0 %2011
  %2013 = vrot.lane.b32.xlu0 %v1878, 96
  %v2014 = vpop.permute.xlu0 %2013
  %2015 = vrot.lane.b32.xlu0 %v1882, 96
  %v2016 = vpop.permute.xlu0 %2015
  %2017 = vrot.lane.b32.xlu0 %v1886, 96
  %v2018 = vpop.permute.xlu0 %2017
  %2019 = vrot.lane.b32.xlu0 %v1890, 96
  %v2020 = vpop.permute.xlu0 %2019
  %2021 = vrot.lane.b32.xlu0 %v1894, 96
  %v2022 = vpop.permute.xlu0 %2021
  %2023 = vrot.lane.b32.xlu0 %v1898, 96
  %v2024 = vpop.permute.xlu0 %2023
  %2025 = vrot.lane.b32.xlu0 %v1902, 96
  %v2026 = vpop.permute.xlu0 %2025
  %2027 = vrot.lane.b32.xlu0 %v1906, 96
  %v2028 = vpop.permute.xlu0 %2027
  %2029 = vrot.lane.b32.xlu0 %v1910, 96
  %v2030 = vpop.permute.xlu0 %2029
  %2031 = vrot.lane.b32.xlu0 %v1914, 96
  %v2032 = vpop.permute.xlu0 %2031
  %2033 = vrot.lane.b32.xlu0 %v1918, 96
  %v2034 = vpop.permute.xlu0 %2033
  %2035 = vrot.lane.b32.xlu0 %v1922, 96
  %v2036 = vpop.permute.xlu0 %2035
  %2037 = vrot.lane.b32.xlu0 %v1926, 96
  %v2038 = vpop.permute.xlu0 %2037
  %2039 = vrot.lane.b32.xlu0 %v1930, 96
  %v2040 = vpop.permute.xlu0 %2039
  %2041 = vrot.lane.b32.xlu0 %v1934, 96
  %v2042 = vpop.permute.xlu0 %2041
  %2043 = vrot.lane.b32.xlu0 %v1938, 96
  %v2044 = vpop.permute.xlu0 %2043
  %2045 = vrot.lane.b32.xlu0 %v1942, 96
  %v2046 = vpop.permute.xlu0 %2045
  %2047 = vrot.lane.b32.xlu0 %v1946, 96
  %v2048 = vpop.permute.xlu0 %2047
  %2049 = vrot.lane.b32.xlu0 %v1950, 96
  %v2050 = vpop.permute.xlu0 %2049
  %2051 = vrot.lane.b32.xlu0 %v1954, 96
  %v2052 = vpop.permute.xlu0 %2051
  %2053 = vrot.lane.b32.xlu0 %v1963, 96
  %v2054 = vpop.permute.xlu0 %2053
  %2055 = vrot.lane.b32.xlu0 %v1972, 96
  %v2056 = vpop.permute.xlu0 %2055
  %v2058 = vunpack.c.l.b16 %v208
  %v2059 = vpack.c.b16 %v2058, %v2058
  %vm2060 = vcmask 1040384
  %v2061 = vrot.slane %v1789, 7
  %v2062 = vrot.slane %v1112, 7
  %v2063 = vsel %vm2060, %v2061, %v2062
  %v2064 = vrot.slane %v1113, 7
  %v2065 = vsel %vm2060, %v2062, %v2064
  %v2066 = vrot.slane %v1114, 7
  %v2067 = vsel %vm2060, %v2064, %v2066
  %v2068 = vrot.slane %v1115, 7
  %v2069 = vsel %vm2060, %v2066, %v2068
  %v2070 = vrot.slane %v1116, 7
  %v2071 = vsel %vm2060, %v2068, %v2070
  %v2072 = vrot.slane %v1117, 7
  %v2073 = vsel %vm2060, %v2070, %v2072
  %v2074 = vrot.slane %v1118, 7
  %v2075 = vsel %vm2060, %v2072, %v2074
  %v2076 = vrot.slane %v1119, 7
  %v2077 = vsel %vm2060, %v2074, %v2076
  %v2078 = vrot.slane %v1120, 7
  %v2079 = vsel %vm2060, %v2076, %v2078
  %v2080 = vrot.slane %v1121, 7
  %v2081 = vsel %vm2060, %v2078, %v2080
  %v2082 = vrot.slane %v1122, 7
  %v2083 = vsel %vm2060, %v2080, %v2082
  %v2084 = vrot.slane %v1123, 7
  %v2085 = vsel %vm2060, %v2082, %v2084
  %v2086 = vrot.slane %v1124, 7
  %v2087 = vsel %vm2060, %v2084, %v2086
  %v2088 = vrot.slane %v1125, 7
  %v2089 = vsel %vm2060, %v2086, %v2088
  %v2090 = vrot.slane %v1126, 7
  %v2091 = vsel %vm2060, %v2088, %v2090
  %v2092 = vrot.slane %v1127, 7
  %v2093 = vsel %vm2060, %v2090, %v2092
  %v2094 = vrot.slane %v1128, 7
  %v2095 = vsel %vm2060, %v2092, %v2094
  %v2096 = vrot.slane %v1129, 7
  %v2097 = vsel %vm2060, %v2094, %v2096
  %v2098 = vrot.slane %v1130, 7
  %v2099 = vsel %vm2060, %v2096, %v2098
  %v2100 = vrot.slane %v1131, 7
  %v2101 = vsel %vm2060, %v2098, %v2100
  %v2102 = vrot.slane %v1132, 7
  %v2103 = vsel %vm2060, %v2100, %v2102
  %v2104 = vrot.slane %v1133, 7
  %v2105 = vsel %vm2060, %v2102, %v2104
  %v2106 = vrot.slane %v1134, 7
  %v2107 = vsel %vm2060, %v2104, %v2106
  %v2108 = vrot.slane %v1135, 7
  %v2109 = vsel %vm2060, %v2106, %v2108
  %v2110 = vrot.slane %v1136, 7
  %v2111 = vsel %vm2060, %v2108, %v2110
  %v2112 = vrot.slane %v1137, 7
  %v2113 = vsel %vm2060, %v2110, %v2112
  %v2114 = vrot.slane %v1138, 7
  %v2115 = vsel %vm2060, %v2112, %v2114
  %v2116 = vrot.slane %v1139, 7
  %v2117 = vsel %vm2060, %v2114, %v2116
  %v2118 = vrot.slane %v1140, 7
  %v2119 = vsel %vm2060, %v2116, %v2118
  %v2120 = vrot.slane %v1141, 7
  %v2121 = vsel %vm2060, %v2118, %v2120
  %v2122 = vrot.slane %v1142, 7
  %v2123 = vsel %vm2060, %v2120, %v2122
  %v2124 = vrot.slane %v1143, 7
  %v2125 = vsel %vm2060, %v2122, %v2124
  %v2126 = vrot.slane %v1144, 7
  %v2127 = vsel %vm2060, %v2124, %v2126
  %v2128 = vrot.slane %v1145, 7
  %v2129 = vsel %vm2060, %v2126, %v2128
  %v2130 = vrot.slane %v1146, 7
  %v2131 = vsel %vm2060, %v2128, %v2130
  %v2132 = vrot.slane %v1147, 7
  %v2133 = vsel %vm2060, %v2130, %v2132
  %v2134 = vrot.slane %v1148, 7
  %v2135 = vsel %vm2060, %v2132, %v2134
  %v2136 = vrot.slane %v1149, 7
  %v2137 = vsel %vm2060, %v2134, %v2136
  %v2138 = vrot.slane %v1150, 7
  %v2139 = vsel %vm2060, %v2136, %v2138
  %v2140 = vrot.slane %v1697, 7
  %v2141 = vsel %vm2060, %v2138, %v2140
  %v2142 = vrot.slane %v2059, 7
  %v2143 = vsel %vm2060, %v2140, %v2142
  %vm2144 = vcmask 261120
  %v2147 = vsel %vm2144, %v375, %v757
  %v2149 = vsel %vm2144, %v376, %v759
  %v2151 = vsel %vm2144, %v377, %v761
  %v2153 = vsel %vm2144, %v378, %v763
  %v2155 = vsel %vm2144, %v379, %v765
  %v2157 = vsel %vm2144, %v380, %v767
  %v2159 = vsel %vm2144, %v381, %v769
  %v2161 = vsel %vm2144, %v382, %v771
  %v2163 = vsel %vm2144, %v383, %v773
  %v2165 = vsel %vm2144, %v384, %v775
  %v2167 = vsel %vm2144, %v385, %v777
  %v2169 = vsel %vm2144, %v386, %v779
  %v2171 = vsel %vm2144, %v387, %v781
  %v2173 = vsel %vm2144, %v388, %v783
  %v2175 = vsel %vm2144, %v389, %v785
  %v2177 = vsel %vm2144, %v390, %v787
  %v2179 = vsel %vm2144, %v391, %v789
  %v2181 = vsel %vm2144, %v392, %v791
  %v2183 = vsel %vm2144, %v393, %v793
  %v2185 = vsel %vm2144, %v394, %v795
  %v2187 = vsel %vm2144, %v395, %v797
  %v2189 = vsel %vm2144, %v396, %v799
  %v2191 = vsel %vm2144, %v397, %v801
  %v2193 = vsel %vm2144, %v398, %v803
  %v2195 = vsel %vm2144, %v399, %v805
  %v2197 = vsel %vm2144, %v400, %v807
  %v2199 = vsel %vm2144, %v401, %v809
  %v2201 = vsel %vm2144, %v402, %v811
  %v2203 = vsel %vm2144, %v403, %v813
  %v2205 = vsel %vm2144, %v404, %v815
  %v2207 = vsel %vm2144, %v405, %v817
  %v2209 = vsel %vm2144, %v406, %v819
  %v2211 = vsel %vm2144, %v407, %v821
  %v2213 = vsel %vm2144, %v408, %v823
  %v2215 = vsel %vm2144, %v409, %v825
  %v2217 = vsel %vm2144, %v410, %v827
  %v2219 = vsel %vm2144, %v411, %v829
  %v2221 = vsel %vm2144, %v412, %v831
  %v2223 = vsel %vm2144, %v413, %v833
  %v2225 = vsel %vm2144, %v414, %v835
  %v2227 = vsel %vm2144, %v415, %v837
  %v2229 = vsel %vm2144, %v416, %v839
  %vm2230 = vcmask 523264
  %v2232 = vsel %vm2230, %v2147, %v928
  %v2234 = vsel %vm2230, %v2149, %v930
  %v2236 = vsel %vm2230, %v2151, %v932
  %v2238 = vsel %vm2230, %v2153, %v934
  %v2240 = vsel %vm2230, %v2155, %v936
  %v2242 = vsel %vm2230, %v2157, %v938
  %v2244 = vsel %vm2230, %v2159, %v940
  %v2246 = vsel %vm2230, %v2161, %v942
  %v2248 = vsel %vm2230, %v2163, %v944
  %v2250 = vsel %vm2230, %v2165, %v946
  %v2252 = vsel %vm2230, %v2167, %v948
  %v2254 = vsel %vm2230, %v2169, %v950
  %v2256 = vsel %vm2230, %v2171, %v952
  %v2258 = vsel %vm2230, %v2173, %v954
  %v2260 = vsel %vm2230, %v2175, %v956
  %v2262 = vsel %vm2230, %v2177, %v958
  %v2264 = vsel %vm2230, %v2179, %v960
  %v2266 = vsel %vm2230, %v2181, %v962
  %v2268 = vsel %vm2230, %v2183, %v964
  %v2270 = vsel %vm2230, %v2185, %v966
  %v2272 = vsel %vm2230, %v2187, %v968
  %v2274 = vsel %vm2230, %v2189, %v970
  %v2276 = vsel %vm2230, %v2191, %v972
  %v2278 = vsel %vm2230, %v2193, %v974
  %v2280 = vsel %vm2230, %v2195, %v976
  %v2282 = vsel %vm2230, %v2197, %v978
  %v2284 = vsel %vm2230, %v2199, %v980
  %v2286 = vsel %vm2230, %v2201, %v982
  %v2288 = vsel %vm2230, %v2203, %v984
  %v2290 = vsel %vm2230, %v2205, %v986
  %v2292 = vsel %vm2230, %v2207, %v988
  %v2294 = vsel %vm2230, %v2209, %v990
  %v2296 = vsel %vm2230, %v2211, %v992
  %v2298 = vsel %vm2230, %v2213, %v994
  %v2300 = vsel %vm2230, %v2215, %v996
  %v2302 = vsel %vm2230, %v2217, %v998
  %v2304 = vsel %vm2230, %v2219, %v1000
  %v2306 = vsel %vm2230, %v2221, %v1002
  %v2308 = vsel %vm2230, %v2223, %v1004
  %v2310 = vsel %vm2230, %v2225, %v1006
  %v2312 = vsel %vm2230, %v2227, %v1008
  %v2314 = vsel %vm2230, %v2229, %v1010
  %vm2315 = vcmask 785408
  %v2317 = vsel %vm2315, %v2232, %v1027
  %v2319 = vsel %vm2315, %v2234, %v1029
  %v2321 = vsel %vm2315, %v2236, %v1031
  %v2323 = vsel %vm2315, %v2238, %v1033
  %v2325 = vsel %vm2315, %v2240, %v1035
  %v2327 = vsel %vm2315, %v2242, %v1037
  %v2329 = vsel %vm2315, %v2244, %v1039
  %v2331 = vsel %vm2315, %v2246, %v1041
  %v2333 = vsel %vm2315, %v2248, %v1043
  %v2335 = vsel %vm2315, %v2250, %v1045
  %v2337 = vsel %vm2315, %v2252, %v1047
  %v2339 = vsel %vm2315, %v2254, %v1049
  %v2341 = vsel %vm2315, %v2256, %v1051
  %v2343 = vsel %vm2315, %v2258, %v1053
  %v2345 = vsel %vm2315, %v2260, %v1055
  %v2347 = vsel %vm2315, %v2262, %v1057
  %v2349 = vsel %vm2315, %v2264, %v1059
  %v2351 = vsel %vm2315, %v2266, %v1061
  %v2353 = vsel %vm2315, %v2268, %v1063
  %v2355 = vsel %vm2315, %v2270, %v1065
  %v2357 = vsel %vm2315, %v2272, %v1067
  %v2359 = vsel %vm2315, %v2274, %v1069
  %v2361 = vsel %vm2315, %v2276, %v1071
  %v2363 = vsel %vm2315, %v2278, %v1073
  %v2365 = vsel %vm2315, %v2280, %v1075
  %v2367 = vsel %vm2315, %v2282, %v1077
  %v2369 = vsel %vm2315, %v2284, %v1079
  %v2371 = vsel %vm2315, %v2286, %v1081
  %v2373 = vsel %vm2315, %v2288, %v1083
  %v2375 = vsel %vm2315, %v2290, %v1085
  %v2377 = vsel %vm2315, %v2292, %v1087
  %v2379 = vsel %vm2315, %v2294, %v1089
  %v2381 = vsel %vm2315, %v2296, %v1091
  %v2383 = vsel %vm2315, %v2298, %v1093
  %v2385 = vsel %vm2315, %v2300, %v1095
  %v2387 = vsel %vm2315, %v2302, %v1097
  %v2389 = vsel %vm2315, %v2304, %v1099
  %v2391 = vsel %vm2315, %v2306, %v1101
  %v2393 = vsel %vm2315, %v2308, %v1103
  %v2395 = vsel %vm2315, %v2310, %v1105
  %v2397 = vsel %vm2315, %v2312, %v1107
  %v2399 = vsel %vm2315, %v2314, %v1109
  %v2402 = vsel %vm2144, %v1159, %v1608
  %v2405 = vsel %vm2144, %v1168, %v1610
  %v2408 = vsel %vm2144, %v1177, %v1612
  %v2411 = vsel %vm2144, %v1186, %v1614
  %v2414 = vsel %vm2144, %v1195, %v1616
  %v2417 = vsel %vm2144, %v1204, %v1618
  %v2420 = vsel %vm2144, %v1213, %v1620
  %v2423 = vsel %vm2144, %v1222, %v1622
  %v2426 = vsel %vm2144, %v1231, %v1624
  %v2429 = vsel %vm2144, %v1240, %v1626
  %v2432 = vsel %vm2144, %v1249, %v1628
  %v2435 = vsel %vm2144, %v1258, %v1630
  %v2438 = vsel %vm2144, %v1267, %v1632
  %v2441 = vsel %vm2144, %v1276, %v1634
  %v2444 = vsel %vm2144, %v1285, %v1636
  %v2447 = vsel %vm2144, %v1294, %v1638
  %v2450 = vsel %vm2144, %v1303, %v1640
  %v2453 = vsel %vm2144, %v1312, %v1642
  %v2456 = vsel %vm2144, %v1321, %v1644
  %v2459 = vsel %vm2144, %v1330, %v1646
  %v2462 = vsel %vm2144, %v1339, %v1648
  %v2465 = vsel %vm2144, %v1348, %v1650
  %v2468 = vsel %vm2144, %v1357, %v1652
  %v2471 = vsel %vm2144, %v1366, %v1654
  %v2474 = vsel %vm2144, %v1375, %v1656
  %v2477 = vsel %vm2144, %v1384, %v1658
  %v2480 = vsel %vm2144, %v1393, %v1660
  %v2483 = vsel %vm2144, %v1402, %v1662
  %v2486 = vsel %vm2144, %v1411, %v1664
  %v2489 = vsel %vm2144, %v1420, %v1666
  %v2492 = vsel %vm2144, %v1429, %v1668
  %v2495 = vsel %vm2144, %v1438, %v1670
  %v2498 = vsel %vm2144, %v1447, %v1672
  %v2501 = vsel %vm2144, %v1456, %v1674
  %v2504 = vsel %vm2144, %v1465, %v1676
  %v2507 = vsel %vm2144, %v1474, %v1678
  %v2510 = vsel %vm2144, %v1483, %v1680
  %v2513 = vsel %vm2144, %v1492, %v1682
  %v2516 = vsel %vm2144, %v1501, %v1684
  %v2519 = vsel %vm2144, %v1510, %v1686
  %v2522 = vsel %vm2144, %v1519, %v1688
  %v2525 = vsel %vm2144, %v1518, %v1690
  %v2527 = vsel %vm2230, %v2402, %v1704
  %v2529 = vsel %vm2230, %v2405, %v1706
  %v2531 = vsel %vm2230, %v2408, %v1708
  %v2533 = vsel %vm2230, %v2411, %v1710
  %v2535 = vsel %vm2230, %v2414, %v1712
  %v2537 = vsel %vm2230, %v2417, %v1714
  %v2539 = vsel %vm2230, %v2420, %v1716
  %v2541 = vsel %vm2230, %v2423, %v1718
  %v2543 = vsel %vm2230, %v2426, %v1720
  %v2545 = vsel %vm2230, %v2429, %v1722
  %v2547 = vsel %vm2230, %v2432, %v1724
  %v2549 = vsel %vm2230, %v2435, %v1726
  %v2551 = vsel %vm2230, %v2438, %v1728
  %v2553 = vsel %vm2230, %v2441, %v1730
  %v2555 = vsel %vm2230, %v2444, %v1732
  %v2557 = vsel %vm2230, %v2447, %v1734
  %v2559 = vsel %vm2230, %v2450, %v1736
  %v2561 = vsel %vm2230, %v2453, %v1738
  %v2563 = vsel %vm2230, %v2456, %v1740
  %v2565 = vsel %vm2230, %v2459, %v1742
  %v2567 = vsel %vm2230, %v2462, %v1744
  %v2569 = vsel %vm2230, %v2465, %v1746
  %v2571 = vsel %vm2230, %v2468, %v1748
  %v2573 = vsel %vm2230, %v2471, %v1750
  %v2575 = vsel %vm2230, %v2474, %v1752
  %v2577 = vsel %vm2230, %v2477, %v1754
  %v2579 = vsel %vm2230, %v2480, %v1756
  %v2581 = vsel %vm2230, %v2483, %v1758
  %v2583 = vsel %vm2230, %v2486, %v1760
  %v2585 = vsel %vm2230, %v2489, %v1762
  %v2587 = vsel %vm2230, %v2492, %v1764
  %v2589 = vsel %vm2230, %v2495, %v1766
  %v2591 = vsel %vm2230, %v2498, %v1768
  %v2593 = vsel %vm2230, %v2501, %v1770
  %v2595 = vsel %vm2230, %v2504, %v1772
  %v2597 = vsel %vm2230, %v2507, %v1774
  %v2599 = vsel %vm2230, %v2510, %v1776
  %v2601 = vsel %vm2230, %v2513, %v1778
  %v2603 = vsel %vm2230, %v2516, %v1780
  %v2605 = vsel %vm2230, %v2519, %v1782
  %v2607 = vsel %vm2230, %v2522, %v1784
  %v2609 = vsel %vm2230, %v2525, %v1786
  %v2611 = vsel %vm2315, %v2527, %v1974
  %v2613 = vsel %vm2315, %v2529, %v1976
  %v2615 = vsel %vm2315, %v2531, %v1978
  %v2617 = vsel %vm2315, %v2533, %v1980
  %v2619 = vsel %vm2315, %v2535, %v1982
  %v2621 = vsel %vm2315, %v2537, %v1984
  %v2623 = vsel %vm2315, %v2539, %v1986
  %v2625 = vsel %vm2315, %v2541, %v1988
  %v2627 = vsel %vm2315, %v2543, %v1990
  %v2629 = vsel %vm2315, %v2545, %v1992
  %v2631 = vsel %vm2315, %v2547, %v1994
  %v2633 = vsel %vm2315, %v2549, %v1996
  %v2635 = vsel %vm2315, %v2551, %v1998
  %v2637 = vsel %vm2315, %v2553, %v2000
  %v2639 = vsel %vm2315, %v2555, %v2002
  %v2641 = vsel %vm2315, %v2557, %v2004
  %v2643 = vsel %vm2315, %v2559, %v2006
  %v2645 = vsel %vm2315, %v2561, %v2008
  %v2647 = vsel %vm2315, %v2563, %v2010
  %v2649 = vsel %vm2315, %v2565, %v2012
  %v2651 = vsel %vm2315, %v2567, %v2014
  %v2653 = vsel %vm2315, %v2569, %v2016
  %v2655 = vsel %vm2315, %v2571, %v2018
  %v2657 = vsel %vm2315, %v2573, %v2020
  %v2659 = vsel %vm2315, %v2575, %v2022
  %v2661 = vsel %vm2315, %v2577, %v2024
  %v2663 = vsel %vm2315, %v2579, %v2026
  %v2665 = vsel %vm2315, %v2581, %v2028
  %v2667 = vsel %vm2315, %v2583, %v2030
  %v2669 = vsel %vm2315, %v2585, %v2032
  %v2671 = vsel %vm2315, %v2587, %v2034
  %v2673 = vsel %vm2315, %v2589, %v2036
  %v2675 = vsel %vm2315, %v2591, %v2038
  %v2677 = vsel %vm2315, %v2593, %v2040
  %v2679 = vsel %vm2315, %v2595, %v2042
  %v2681 = vsel %vm2315, %v2597, %v2044
  %v2683 = vsel %vm2315, %v2599, %v2046
  %v2685 = vsel %vm2315, %v2601, %v2048
  %v2687 = vsel %vm2315, %v2603, %v2050
  %v2689 = vsel %vm2315, %v2605, %v2052
  %v2691 = vsel %vm2315, %v2607, %v2054
  %v2693 = vsel %vm2315, %v2609, %v2056
  %v2694 = vld [vmem:[%s3] sm:$0xf]
  %v2695 = vld [vmem:[%s3 + $0x4] sm:$0xf]
  %v2696 = vld [vmem:[%s3 + $0x8] sm:$0xf]
  %v2697 = vld [vmem:[%s3 + $0xc] sm:$0xf]
  %v2698 = vld [vmem:[%s3 + $0x10] sm:$0xf]
  %v2699 = vld [vmem:[%s3 + $0x14] sm:$0xf]
  %v2700 = vld [vmem:[%s3 + $0x18] sm:$0xf]
  %v2701 = vld [vmem:[%s3 + $0x1c] sm:$0xf]
  %v2702 = vld [vmem:[%s3 + $0x20] sm:$0xf]
  %v2703 = vld [vmem:[%s3 + $0x24] sm:$0xf]
  %v2704 = vld [vmem:[%s3 + $0x28] sm:$0xf]
  %v2705 = vld [vmem:[%s3 + $0x2c] sm:$0xf]
  %v2706 = vld [vmem:[%s3 + $0x30] sm:$0xf]
  %v2707 = vld [vmem:[%s3 + $0x34] sm:$0xf]
  %v2708 = vld [vmem:[%s3 + $0x38] sm:$0xf]
  %v2709 = vld [vmem:[%s3 + $0x3c] sm:$0xf]
  %v2710 = vld [vmem:[%s3 + $0x40] sm:$0xf]
  %v2711 = vld [vmem:[%s3 + $0x44] sm:$0xf]
  %v2712 = vld [vmem:[%s3 + $0x48] sm:$0xf]
  %v2713 = vld [vmem:[%s3 + $0x4c] sm:$0xf]
  %v2714 = vld [vmem:[%s3 + $0x50] sm:$0xf]
  %v2715 = vld [vmem:[%s3 + $0x54] sm:$0xf]
  %v2716 = vld [vmem:[%s3 + $0x58] sm:$0xf]
  %v2717 = vld [vmem:[%s3 + $0x5c] sm:$0xf]
  %v2718 = vld [vmem:[%s3 + $0x60] sm:$0xf]
  %v2719 = vld [vmem:[%s3 + $0x64] sm:$0xf]
  %v2720 = vld [vmem:[%s3 + $0x68] sm:$0xf]
  %v2721 = vld [vmem:[%s3 + $0x6c] sm:$0xf]
  %v2722 = vld [vmem:[%s3 + $0x70] sm:$0xf]
  %v2723 = vld [vmem:[%s3 + $0x74] sm:$0xf]
  %v2724 = vld [vmem:[%s3 + $0x78] sm:$0xf]
  %v2725 = vld [vmem:[%s3 + $0x7c] sm:$0xf]
  %v2726 = vld [vmem:[%s3 + $0x80] sm:$0xf]
  %v2727 = vld [vmem:[%s3 + $0x84] sm:$0xf]
  %v2728 = vld [vmem:[%s3 + $0x88] sm:$0xf]
  %v2729 = vld [vmem:[%s3 + $0x8c] sm:$0xf]
  %vm2730 = vsmask.f32 5376
  %v2731 = vshrl.u32 %v2317, 16
  %v2733 = vrot.slane %v2731, 2
  %v2734 = vshll.u32 %v2317, 16
  %v2736 = vrot.slane %v2734, 3
  %v2737 = vor.u32 %v2733, %v2736
  %v2738 = vshrl.u32 %v2319, 16
  %v2740 = vrot.slane %v2738, 2
  %v2741 = vshll.u32 %v2319, 16
  %v2743 = vrot.slane %v2741, 3
  %v2744 = vor.u32 %v2740, %v2743
  %v2745 = vsel %vm2730, %v2737, %v2744
  %v2746 = vshrl.u32 %v2611, 16
  %v2748 = vrot.slane %v2746, 2
  %v2749 = vshll.u32 %v2611, 16
  %v2751 = vrot.slane %v2749, 3
  %v2752 = vor.u32 %v2748, %v2751
  %v2753 = vshrl.u32 %v2613, 16
  %v2755 = vrot.slane %v2753, 2
  %v2756 = vshll.u32 %v2613, 16
  %v2758 = vrot.slane %v2756, 3
  %v2759 = vor.u32 %v2755, %v2758
  %v2760 = vsel %vm2730, %v2752, %v2759
  %v2762 = vshrl.u32 %v2061, 16
  %v2764 = vrot.slane %v2762, 2
  %v2765 = vshll.u32 %v2061, 16
  %v2767 = vrot.slane %v2765, 3
  %v2768 = vor.u32 %v2764, %v2767
  %v2770 = vshrl.u32 %v2063, 16
  %v2772 = vrot.slane %v2770, 2
  %v2773 = vshll.u32 %v2063, 16
  %v2775 = vrot.slane %v2773, 3
  %v2776 = vor.u32 %v2772, %v2775
  %v2777 = vsel %vm2730, %v2768, %v2776
  %v2778 = vshrl.u32 %v2321, 16
  %v2780 = vrot.slane %v2778, 2
  %v2781 = vshll.u32 %v2321, 16
  %v2783 = vrot.slane %v2781, 3
  %v2784 = vor.u32 %v2780, %v2783
  %v2785 = vsel %vm2730, %v2744, %v2784
  %v2786 = vshrl.u32 %v2615, 16
  %v2788 = vrot.slane %v2786, 2
  %v2789 = vshll.u32 %v2615, 16
  %v2791 = vrot.slane %v2789, 3
  %v2792 = vor.u32 %v2788, %v2791
  %v2793 = vsel %vm2730, %v2759, %v2792
  %v2795 = vshrl.u32 %v2065, 16
  %v2797 = vrot.slane %v2795, 2
  %v2798 = vshll.u32 %v2065, 16
  %v2800 = vrot.slane %v2798, 3
  %v2801 = vor.u32 %v2797, %v2800
  %v2802 = vsel %vm2730, %v2776, %v2801
  %v2803 = vshrl.u32 %v2323, 16
  %v2805 = vrot.slane %v2803, 2
  %v2806 = vshll.u32 %v2323, 16
  %v2808 = vrot.slane %v2806, 3
  %v2809 = vor.u32 %v2805, %v2808
  %v2810 = vsel %vm2730, %v2784, %v2809
  %v2811 = vshrl.u32 %v2617, 16
  %v2813 = vrot.slane %v2811, 2
  %v2814 = vshll.u32 %v2617, 16
  %v2816 = vrot.slane %v2814, 3
  %v2817 = vor.u32 %v2813, %v2816
  %v2818 = vsel %vm2730, %v2792, %v2817
  %v2820 = vshrl.u32 %v2067, 16
  %v2822 = vrot.slane %v2820, 2
  %v2823 = vshll.u32 %v2067, 16
  %v2825 = vrot.slane %v2823, 3
  %v2826 = vor.u32 %v2822, %v2825
  %v2827 = vsel %vm2730, %v2801, %v2826
  %v2828 = vshrl.u32 %v2325, 16
  %v2830 = vrot.slane %v2828, 2
  %v2831 = vshll.u32 %v2325, 16
  %v2833 = vrot.slane %v2831, 3
  %v2834 = vor.u32 %v2830, %v2833
  %v2835 = vsel %vm2730, %v2809, %v2834
  %v2836 = vshrl.u32 %v2619, 16
  %v2838 = vrot.slane %v2836, 2
  %v2839 = vshll.u32 %v2619, 16
  %v2841 = vrot.slane %v2839, 3
  %v2842 = vor.u32 %v2838, %v2841
  %v2843 = vsel %vm2730, %v2817, %v2842
  %v2845 = vshrl.u32 %v2069, 16
  %v2847 = vrot.slane %v2845, 2
  %v2848 = vshll.u32 %v2069, 16
  %v2850 = vrot.slane %v2848, 3
  %v2851 = vor.u32 %v2847, %v2850
  %v2852 = vsel %vm2730, %v2826, %v2851
  %v2853 = vshrl.u32 %v2327, 16
  %v2855 = vrot.slane %v2853, 2
  %v2856 = vshll.u32 %v2327, 16
  %v2858 = vrot.slane %v2856, 3
  %v2859 = vor.u32 %v2855, %v2858
  %v2860 = vsel %vm2730, %v2834, %v2859
  %v2861 = vshrl.u32 %v2621, 16
  %v2863 = vrot.slane %v2861, 2
  %v2864 = vshll.u32 %v2621, 16
  %v2866 = vrot.slane %v2864, 3
  %v2867 = vor.u32 %v2863, %v2866
  %v2868 = vsel %vm2730, %v2842, %v2867
  %v2870 = vshrl.u32 %v2071, 16
  %v2872 = vrot.slane %v2870, 2
  %v2873 = vshll.u32 %v2071, 16
  %v2875 = vrot.slane %v2873, 3
  %v2876 = vor.u32 %v2872, %v2875
  %v2877 = vsel %vm2730, %v2851, %v2876
  %v2878 = vshrl.u32 %v2329, 16
  %v2880 = vrot.slane %v2878, 2
  %v2881 = vshll.u32 %v2329, 16
  %v2883 = vrot.slane %v2881, 3
  %v2884 = vor.u32 %v2880, %v2883
  %v2885 = vsel %vm2730, %v2859, %v2884
  %v2886 = vshrl.u32 %v2623, 16
  %v2888 = vrot.slane %v2886, 2
  %v2889 = vshll.u32 %v2623, 16
  %v2891 = vrot.slane %v2889, 3
  %v2892 = vor.u32 %v2888, %v2891
  %v2893 = vsel %vm2730, %v2867, %v2892
  %v2895 = vshrl.u32 %v2073, 16
  %v2897 = vrot.slane %v2895, 2
  %v2898 = vshll.u32 %v2073, 16
  %v2900 = vrot.slane %v2898, 3
  %v2901 = vor.u32 %v2897, %v2900
  %v2902 = vsel %vm2730, %v2876, %v2901
  %v2903 = vshrl.u32 %v2331, 16
  %v2905 = vrot.slane %v2903, 2
  %v2906 = vshll.u32 %v2331, 16
  %v2908 = vrot.slane %v2906, 3
  %v2909 = vor.u32 %v2905, %v2908
  %v2910 = vsel %vm2730, %v2884, %v2909
  %v2911 = vshrl.u32 %v2625, 16
  %v2913 = vrot.slane %v2911, 2
  %v2914 = vshll.u32 %v2625, 16
  %v2916 = vrot.slane %v2914, 3
  %v2917 = vor.u32 %v2913, %v2916
  %v2918 = vsel %vm2730, %v2892, %v2917
  %v2920 = vshrl.u32 %v2075, 16
  %v2922 = vrot.slane %v2920, 2
  %v2923 = vshll.u32 %v2075, 16
  %v2925 = vrot.slane %v2923, 3
  %v2926 = vor.u32 %v2922, %v2925
  %v2927 = vsel %vm2730, %v2901, %v2926
  %v2928 = vshrl.u32 %v2333, 16
  %v2930 = vrot.slane %v2928, 2
  %v2931 = vshll.u32 %v2333, 16
  %v2933 = vrot.slane %v2931, 3
  %v2934 = vor.u32 %v2930, %v2933
  %v2935 = vsel %vm2730, %v2909, %v2934
  %v2936 = vshrl.u32 %v2627, 16
  %v2938 = vrot.slane %v2936, 2
  %v2939 = vshll.u32 %v2627, 16
  %v2941 = vrot.slane %v2939, 3
  %v2942 = vor.u32 %v2938, %v2941
  %v2943 = vsel %vm2730, %v2917, %v2942
  %v2945 = vshrl.u32 %v2077, 16
  %v2947 = vrot.slane %v2945, 2
  %v2948 = vshll.u32 %v2077, 16
  %v2950 = vrot.slane %v2948, 3
  %v2951 = vor.u32 %v2947, %v2950
  %v2952 = vsel %vm2730, %v2926, %v2951
  %v2953 = vshrl.u32 %v2335, 16
  %v2955 = vrot.slane %v2953, 2
  %v2956 = vshll.u32 %v2335, 16
  %v2958 = vrot.slane %v2956, 3
  %v2959 = vor.u32 %v2955, %v2958
  %v2960 = vsel %vm2730, %v2934, %v2959
  %v2961 = vshrl.u32 %v2629, 16
  %v2963 = vrot.slane %v2961, 2
  %v2964 = vshll.u32 %v2629, 16
  %v2966 = vrot.slane %v2964, 3
  %v2967 = vor.u32 %v2963, %v2966
  %v2968 = vsel %vm2730, %v2942, %v2967
  %v2970 = vshrl.u32 %v2079, 16
  %v2972 = vrot.slane %v2970, 2
  %v2973 = vshll.u32 %v2079, 16
  %v2975 = vrot.slane %v2973, 3
  %v2976 = vor.u32 %v2972, %v2975
  %v2977 = vsel %vm2730, %v2951, %v2976
  %v2978 = vshrl.u32 %v2337, 16
  %v2980 = vrot.slane %v2978, 2
  %v2981 = vshll.u32 %v2337, 16
  %v2983 = vrot.slane %v2981, 3
  %v2984 = vor.u32 %v2980, %v2983
  %v2985 = vsel %vm2730, %v2959, %v2984
  %v2986 = vshrl.u32 %v2631, 16
  %v2988 = vrot.slane %v2986, 2
  %v2989 = vshll.u32 %v2631, 16
  %v2991 = vrot.slane %v2989, 3
  %v2992 = vor.u32 %v2988, %v2991
  %v2993 = vsel %vm2730, %v2967, %v2992
  %v2995 = vshrl.u32 %v2081, 16
  %v2997 = vrot.slane %v2995, 2
  %v2998 = vshll.u32 %v2081, 16
  %v3000 = vrot.slane %v2998, 3
  %v3001 = vor.u32 %v2997, %v3000
  %v3002 = vsel %vm2730, %v2976, %v3001
  %v3003 = vshrl.u32 %v2339, 16
  %v3005 = vrot.slane %v3003, 2
  %v3006 = vshll.u32 %v2339, 16
  %v3008 = vrot.slane %v3006, 3
  %v3009 = vor.u32 %v3005, %v3008
  %v3010 = vsel %vm2730, %v2984, %v3009
  %v3011 = vshrl.u32 %v2633, 16
  %v3013 = vrot.slane %v3011, 2
  %v3014 = vshll.u32 %v2633, 16
  %v3016 = vrot.slane %v3014, 3
  %v3017 = vor.u32 %v3013, %v3016
  %v3018 = vsel %vm2730, %v2992, %v3017
  %v3020 = vshrl.u32 %v2083, 16
  %v3022 = vrot.slane %v3020, 2
  %v3023 = vshll.u32 %v2083, 16
  %v3025 = vrot.slane %v3023, 3
  %v3026 = vor.u32 %v3022, %v3025
  %v3027 = vsel %vm2730, %v3001, %v3026
  %v3028 = vshrl.u32 %v2341, 16
  %v3030 = vrot.slane %v3028, 2
  %v3031 = vshll.u32 %v2341, 16
  %v3033 = vrot.slane %v3031, 3
  %v3034 = vor.u32 %v3030, %v3033
  %v3035 = vsel %vm2730, %v3009, %v3034
  %v3036 = vshrl.u32 %v2635, 16
  %v3038 = vrot.slane %v3036, 2
  %v3039 = vshll.u32 %v2635, 16
  %v3041 = vrot.slane %v3039, 3
  %v3042 = vor.u32 %v3038, %v3041
  %v3043 = vsel %vm2730, %v3017, %v3042
  %v3045 = vshrl.u32 %v2085, 16
  %v3047 = vrot.slane %v3045, 2
  %v3048 = vshll.u32 %v2085, 16
  %v3050 = vrot.slane %v3048, 3
  %v3051 = vor.u32 %v3047, %v3050
  %v3052 = vsel %vm2730, %v3026, %v3051
  %v3053 = vshrl.u32 %v2343, 16
  %v3055 = vrot.slane %v3053, 2
  %v3056 = vshll.u32 %v2343, 16
  %v3058 = vrot.slane %v3056, 3
  %v3059 = vor.u32 %v3055, %v3058
  %v3060 = vsel %vm2730, %v3034, %v3059
  %v3061 = vshrl.u32 %v2637, 16
  %v3063 = vrot.slane %v3061, 2
  %v3064 = vshll.u32 %v2637, 16
  %v3066 = vrot.slane %v3064, 3
  %v3067 = vor.u32 %v3063, %v3066
  %v3068 = vsel %vm2730, %v3042, %v3067
  %v3070 = vshrl.u32 %v2087, 16
  %v3072 = vrot.slane %v3070, 2
  %v3073 = vshll.u32 %v2087, 16
  %v3075 = vrot.slane %v3073, 3
  %v3076 = vor.u32 %v3072, %v3075
  %v3077 = vsel %vm2730, %v3051, %v3076
  %v3078 = vshrl.u32 %v2345, 16
  %v3080 = vrot.slane %v3078, 2
  %v3081 = vshll.u32 %v2345, 16
  %v3083 = vrot.slane %v3081, 3
  %v3084 = vor.u32 %v3080, %v3083
  %v3085 = vsel %vm2730, %v3059, %v3084
  %v3086 = vshrl.u32 %v2639, 16
  %v3088 = vrot.slane %v3086, 2
  %v3089 = vshll.u32 %v2639, 16
  %v3091 = vrot.slane %v3089, 3
  %v3092 = vor.u32 %v3088, %v3091
  %v3093 = vsel %vm2730, %v3067, %v3092
  %v3095 = vshrl.u32 %v2089, 16
  %v3097 = vrot.slane %v3095, 2
  %v3098 = vshll.u32 %v2089, 16
  %v3100 = vrot.slane %v3098, 3
  %v3101 = vor.u32 %v3097, %v3100
  %v3102 = vsel %vm2730, %v3076, %v3101
  %v3103 = vshrl.u32 %v2347, 16
  %v3105 = vrot.slane %v3103, 2
  %v3106 = vshll.u32 %v2347, 16
  %v3108 = vrot.slane %v3106, 3
  %v3109 = vor.u32 %v3105, %v3108
  %v3110 = vsel %vm2730, %v3084, %v3109
  %v3111 = vshrl.u32 %v2641, 16
  %v3113 = vrot.slane %v3111, 2
  %v3114 = vshll.u32 %v2641, 16
  %v3116 = vrot.slane %v3114, 3
  %v3117 = vor.u32 %v3113, %v3116
  %v3118 = vsel %vm2730, %v3092, %v3117
  %v3120 = vshrl.u32 %v2091, 16
  %v3122 = vrot.slane %v3120, 2
  %v3123 = vshll.u32 %v2091, 16
  %v3125 = vrot.slane %v3123, 3
  %v3126 = vor.u32 %v3122, %v3125
  %v3127 = vsel %vm2730, %v3101, %v3126
  %v3128 = vshrl.u32 %v2349, 16
  %v3130 = vrot.slane %v3128, 2
  %v3131 = vshll.u32 %v2349, 16
  %v3133 = vrot.slane %v3131, 3
  %v3134 = vor.u32 %v3130, %v3133
  %v3135 = vsel %vm2730, %v3109, %v3134
  %v3136 = vshrl.u32 %v2643, 16
  %v3138 = vrot.slane %v3136, 2
  %v3139 = vshll.u32 %v2643, 16
  %v3141 = vrot.slane %v3139, 3
  %v3142 = vor.u32 %v3138, %v3141
  %v3143 = vsel %vm2730, %v3117, %v3142
  %v3145 = vshrl.u32 %v2093, 16
  %v3147 = vrot.slane %v3145, 2
  %v3148 = vshll.u32 %v2093, 16
  %v3150 = vrot.slane %v3148, 3
  %v3151 = vor.u32 %v3147, %v3150
  %v3152 = vsel %vm2730, %v3126, %v3151
  %v3153 = vshrl.u32 %v2351, 16
  %v3155 = vrot.slane %v3153, 2
  %v3156 = vshll.u32 %v2351, 16
  %v3158 = vrot.slane %v3156, 3
  %v3159 = vor.u32 %v3155, %v3158
  %v3160 = vsel %vm2730, %v3134, %v3159
  %v3161 = vshrl.u32 %v2645, 16
  %v3163 = vrot.slane %v3161, 2
  %v3164 = vshll.u32 %v2645, 16
  %v3166 = vrot.slane %v3164, 3
  %v3167 = vor.u32 %v3163, %v3166
  %v3168 = vsel %vm2730, %v3142, %v3167
  %v3170 = vshrl.u32 %v2095, 16
  %v3172 = vrot.slane %v3170, 2
  %v3173 = vshll.u32 %v2095, 16
  %v3175 = vrot.slane %v3173, 3
  %v3176 = vor.u32 %v3172, %v3175
  %v3177 = vsel %vm2730, %v3151, %v3176
  %v3178 = vshrl.u32 %v2353, 16
  %v3180 = vrot.slane %v3178, 2
  %v3181 = vshll.u32 %v2353, 16
  %v3183 = vrot.slane %v3181, 3
  %v3184 = vor.u32 %v3180, %v3183
  %v3185 = vsel %vm2730, %v3159, %v3184
  %v3186 = vshrl.u32 %v2647, 16
  %v3188 = vrot.slane %v3186, 2
  %v3189 = vshll.u32 %v2647, 16
  %v3191 = vrot.slane %v3189, 3
  %v3192 = vor.u32 %v3188, %v3191
  %v3193 = vsel %vm2730, %v3167, %v3192
  %v3195 = vshrl.u32 %v2097, 16
  %v3197 = vrot.slane %v3195, 2
  %v3198 = vshll.u32 %v2097, 16
  %v3200 = vrot.slane %v3198, 3
  %v3201 = vor.u32 %v3197, %v3200
  %v3202 = vsel %vm2730, %v3176, %v3201
  %v3203 = vshrl.u32 %v2355, 16
  %v3205 = vrot.slane %v3203, 2
  %v3206 = vshll.u32 %v2355, 16
  %v3208 = vrot.slane %v3206, 3
  %v3209 = vor.u32 %v3205, %v3208
  %v3210 = vsel %vm2730, %v3184, %v3209
  %v3211 = vshrl.u32 %v2649, 16
  %v3213 = vrot.slane %v3211, 2
  %v3214 = vshll.u32 %v2649, 16
  %v3216 = vrot.slane %v3214, 3
  %v3217 = vor.u32 %v3213, %v3216
  %v3218 = vsel %vm2730, %v3192, %v3217
  %v3220 = vshrl.u32 %v2099, 16
  %v3222 = vrot.slane %v3220, 2
  %v3223 = vshll.u32 %v2099, 16
  %v3225 = vrot.slane %v3223, 3
  %v3226 = vor.u32 %v3222, %v3225
  %v3227 = vsel %vm2730, %v3201, %v3226
  %v3228 = vshrl.u32 %v2357, 16
  %v3230 = vrot.slane %v3228, 2
  %v3231 = vshll.u32 %v2357, 16
  %v3233 = vrot.slane %v3231, 3
  %v3234 = vor.u32 %v3230, %v3233
  %v3235 = vsel %vm2730, %v3209, %v3234
  %v3236 = vshrl.u32 %v2651, 16
  %v3238 = vrot.slane %v3236, 2
  %v3239 = vshll.u32 %v2651, 16
  %v3241 = vrot.slane %v3239, 3
  %v3242 = vor.u32 %v3238, %v3241
  %v3243 = vsel %vm2730, %v3217, %v3242
  %v3245 = vshrl.u32 %v2101, 16
  %v3247 = vrot.slane %v3245, 2
  %v3248 = vshll.u32 %v2101, 16
  %v3250 = vrot.slane %v3248, 3
  %v3251 = vor.u32 %v3247, %v3250
  %v3252 = vsel %vm2730, %v3226, %v3251
  %v3253 = vshrl.u32 %v2359, 16
  %v3255 = vrot.slane %v3253, 2
  %v3256 = vshll.u32 %v2359, 16
  %v3258 = vrot.slane %v3256, 3
  %v3259 = vor.u32 %v3255, %v3258
  %v3260 = vsel %vm2730, %v3234, %v3259
  %v3261 = vshrl.u32 %v2653, 16
  %v3263 = vrot.slane %v3261, 2
  %v3264 = vshll.u32 %v2653, 16
  %v3266 = vrot.slane %v3264, 3
  %v3267 = vor.u32 %v3263, %v3266
  %v3268 = vsel %vm2730, %v3242, %v3267
  %v3270 = vshrl.u32 %v2103, 16
  %v3272 = vrot.slane %v3270, 2
  %v3273 = vshll.u32 %v2103, 16
  %v3275 = vrot.slane %v3273, 3
  %v3276 = vor.u32 %v3272, %v3275
  %v3277 = vsel %vm2730, %v3251, %v3276
  %v3278 = vshrl.u32 %v2361, 16
  %v3280 = vrot.slane %v3278, 2
  %v3281 = vshll.u32 %v2361, 16
  %v3283 = vrot.slane %v3281, 3
  %v3284 = vor.u32 %v3280, %v3283
  %v3285 = vsel %vm2730, %v3259, %v3284
  %v3286 = vshrl.u32 %v2655, 16
  %v3288 = vrot.slane %v3286, 2
  %v3289 = vshll.u32 %v2655, 16
  %v3291 = vrot.slane %v3289, 3
  %v3292 = vor.u32 %v3288, %v3291
  %v3293 = vsel %vm2730, %v3267, %v3292
  %v3295 = vshrl.u32 %v2105, 16
  %v3297 = vrot.slane %v3295, 2
  %v3298 = vshll.u32 %v2105, 16
  %v3300 = vrot.slane %v3298, 3
  %v3301 = vor.u32 %v3297, %v3300
  %v3302 = vsel %vm2730, %v3276, %v3301
  %v3303 = vshrl.u32 %v2363, 16
  %v3305 = vrot.slane %v3303, 2
  %v3306 = vshll.u32 %v2363, 16
  %v3308 = vrot.slane %v3306, 3
  %v3309 = vor.u32 %v3305, %v3308
  %v3310 = vsel %vm2730, %v3284, %v3309
  %v3311 = vshrl.u32 %v2657, 16
  %v3313 = vrot.slane %v3311, 2
  %v3314 = vshll.u32 %v2657, 16
  %v3316 = vrot.slane %v3314, 3
  %v3317 = vor.u32 %v3313, %v3316
  %v3318 = vsel %vm2730, %v3292, %v3317
  %v3320 = vshrl.u32 %v2107, 16
  %v3322 = vrot.slane %v3320, 2
  %v3323 = vshll.u32 %v2107, 16
  %v3325 = vrot.slane %v3323, 3
  %v3326 = vor.u32 %v3322, %v3325
  %v3327 = vsel %vm2730, %v3301, %v3326
  %v3328 = vshrl.u32 %v2365, 16
  %v3330 = vrot.slane %v3328, 2
  %v3331 = vshll.u32 %v2365, 16
  %v3333 = vrot.slane %v3331, 3
  %v3334 = vor.u32 %v3330, %v3333
  %v3335 = vsel %vm2730, %v3309, %v3334
  %v3336 = vshrl.u32 %v2659, 16
  %v3338 = vrot.slane %v3336, 2
  %v3339 = vshll.u32 %v2659, 16
  %v3341 = vrot.slane %v3339, 3
  %v3342 = vor.u32 %v3338, %v3341
  %v3343 = vsel %vm2730, %v3317, %v3342
  %v3345 = vshrl.u32 %v2109, 16
  %v3347 = vrot.slane %v3345, 2
  %v3348 = vshll.u32 %v2109, 16
  %v3350 = vrot.slane %v3348, 3
  %v3351 = vor.u32 %v3347, %v3350
  %v3352 = vsel %vm2730, %v3326, %v3351
  %v3353 = vshrl.u32 %v2367, 16
  %v3355 = vrot.slane %v3353, 2
  %v3356 = vshll.u32 %v2367, 16
  %v3358 = vrot.slane %v3356, 3
  %v3359 = vor.u32 %v3355, %v3358
  %v3360 = vsel %vm2730, %v3334, %v3359
  %v3361 = vshrl.u32 %v2661, 16
  %v3363 = vrot.slane %v3361, 2
  %v3364 = vshll.u32 %v2661, 16
  %v3366 = vrot.slane %v3364, 3
  %v3367 = vor.u32 %v3363, %v3366
  %v3368 = vsel %vm2730, %v3342, %v3367
  %v3370 = vshrl.u32 %v2111, 16
  %v3372 = vrot.slane %v3370, 2
  %v3373 = vshll.u32 %v2111, 16
  %v3375 = vrot.slane %v3373, 3
  %v3376 = vor.u32 %v3372, %v3375
  %v3377 = vsel %vm2730, %v3351, %v3376
  %v3378 = vshrl.u32 %v2369, 16
  %v3380 = vrot.slane %v3378, 2
  %v3381 = vshll.u32 %v2369, 16
  %v3383 = vrot.slane %v3381, 3
  %v3384 = vor.u32 %v3380, %v3383
  %v3385 = vsel %vm2730, %v3359, %v3384
  %v3386 = vshrl.u32 %v2663, 16
  %v3388 = vrot.slane %v3386, 2
  %v3389 = vshll.u32 %v2663, 16
  %v3391 = vrot.slane %v3389, 3
  %v3392 = vor.u32 %v3388, %v3391
  %v3393 = vsel %vm2730, %v3367, %v3392
  %v3395 = vshrl.u32 %v2113, 16
  %v3397 = vrot.slane %v3395, 2
  %v3398 = vshll.u32 %v2113, 16
  %v3400 = vrot.slane %v3398, 3
  %v3401 = vor.u32 %v3397, %v3400
  %v3402 = vsel %vm2730, %v3376, %v3401
  %v3403 = vshrl.u32 %v2371, 16
  %v3405 = vrot.slane %v3403, 2
  %v3406 = vshll.u32 %v2371, 16
  %v3408 = vrot.slane %v3406, 3
  %v3409 = vor.u32 %v3405, %v3408
  %v3410 = vsel %vm2730, %v3384, %v3409
  %v3411 = vshrl.u32 %v2665, 16
  %v3413 = vrot.slane %v3411, 2
  %v3414 = vshll.u32 %v2665, 16
  %v3416 = vrot.slane %v3414, 3
  %v3417 = vor.u32 %v3413, %v3416
  %v3418 = vsel %vm2730, %v3392, %v3417
  %v3420 = vshrl.u32 %v2115, 16
  %v3422 = vrot.slane %v3420, 2
  %v3423 = vshll.u32 %v2115, 16
  %v3425 = vrot.slane %v3423, 3
  %v3426 = vor.u32 %v3422, %v3425
  %v3427 = vsel %vm2730, %v3401, %v3426
  %v3428 = vshrl.u32 %v2373, 16
  %v3430 = vrot.slane %v3428, 2
  %v3431 = vshll.u32 %v2373, 16
  %v3433 = vrot.slane %v3431, 3
  %v3434 = vor.u32 %v3430, %v3433
  %v3435 = vsel %vm2730, %v3409, %v3434
  %v3436 = vshrl.u32 %v2667, 16
  %v3438 = vrot.slane %v3436, 2
  %v3439 = vshll.u32 %v2667, 16
  %v3441 = vrot.slane %v3439, 3
  %v3442 = vor.u32 %v3438, %v3441
  %v3443 = vsel %vm2730, %v3417, %v3442
  %v3445 = vshrl.u32 %v2117, 16
  %v3447 = vrot.slane %v3445, 2
  %v3448 = vshll.u32 %v2117, 16
  %v3450 = vrot.slane %v3448, 3
  %v3451 = vor.u32 %v3447, %v3450
  %v3452 = vsel %vm2730, %v3426, %v3451
  %v3453 = vshrl.u32 %v2375, 16
  %v3455 = vrot.slane %v3453, 2
  %v3456 = vshll.u32 %v2375, 16
  %v3458 = vrot.slane %v3456, 3
  %v3459 = vor.u32 %v3455, %v3458
  %v3460 = vsel %vm2730, %v3434, %v3459
  %v3461 = vshrl.u32 %v2669, 16
  %v3463 = vrot.slane %v3461, 2
  %v3464 = vshll.u32 %v2669, 16
  %v3466 = vrot.slane %v3464, 3
  %v3467 = vor.u32 %v3463, %v3466
  %v3468 = vsel %vm2730, %v3442, %v3467
  %v3470 = vshrl.u32 %v2119, 16
  %v3472 = vrot.slane %v3470, 2
  %v3473 = vshll.u32 %v2119, 16
  %v3475 = vrot.slane %v3473, 3
  %v3476 = vor.u32 %v3472, %v3475
  %v3477 = vsel %vm2730, %v3451, %v3476
  %v3478 = vshrl.u32 %v2377, 16
  %v3480 = vrot.slane %v3478, 2
  %v3481 = vshll.u32 %v2377, 16
  %v3483 = vrot.slane %v3481, 3
  %v3484 = vor.u32 %v3480, %v3483
  %v3485 = vsel %vm2730, %v3459, %v3484
  %v3486 = vshrl.u32 %v2671, 16
  %v3488 = vrot.slane %v3486, 2
  %v3489 = vshll.u32 %v2671, 16
  %v3491 = vrot.slane %v3489, 3
  %v3492 = vor.u32 %v3488, %v3491
  %v3493 = vsel %vm2730, %v3467, %v3492
  %v3495 = vshrl.u32 %v2121, 16
  %v3497 = vrot.slane %v3495, 2
  %v3498 = vshll.u32 %v2121, 16
  %v3500 = vrot.slane %v3498, 3
  %v3501 = vor.u32 %v3497, %v3500
  %v3502 = vsel %vm2730, %v3476, %v3501
  %v3503 = vshrl.u32 %v2379, 16
  %v3505 = vrot.slane %v3503, 2
  %v3506 = vshll.u32 %v2379, 16
  %v3508 = vrot.slane %v3506, 3
  %v3509 = vor.u32 %v3505, %v3508
  %v3510 = vsel %vm2730, %v3484, %v3509
  %v3511 = vshrl.u32 %v2673, 16
  %v3513 = vrot.slane %v3511, 2
  %v3514 = vshll.u32 %v2673, 16
  %v3516 = vrot.slane %v3514, 3
  %v3517 = vor.u32 %v3513, %v3516
  %v3518 = vsel %vm2730, %v3492, %v3517
  %v3520 = vshrl.u32 %v2123, 16
  %v3522 = vrot.slane %v3520, 2
  %v3523 = vshll.u32 %v2123, 16
  %v3525 = vrot.slane %v3523, 3
  %v3526 = vor.u32 %v3522, %v3525
  %v3527 = vsel %vm2730, %v3501, %v3526
  %v3528 = vshrl.u32 %v2381, 16
  %v3530 = vrot.slane %v3528, 2
  %v3531 = vshll.u32 %v2381, 16
  %v3533 = vrot.slane %v3531, 3
  %v3534 = vor.u32 %v3530, %v3533
  %v3535 = vsel %vm2730, %v3509, %v3534
  %v3536 = vshrl.u32 %v2675, 16
  %v3538 = vrot.slane %v3536, 2
  %v3539 = vshll.u32 %v2675, 16
  %v3541 = vrot.slane %v3539, 3
  %v3542 = vor.u32 %v3538, %v3541
  %v3543 = vsel %vm2730, %v3517, %v3542
  %v3545 = vshrl.u32 %v2125, 16
  %v3547 = vrot.slane %v3545, 2
  %v3548 = vshll.u32 %v2125, 16
  %v3550 = vrot.slane %v3548, 3
  %v3551 = vor.u32 %v3547, %v3550
  %v3552 = vsel %vm2730, %v3526, %v3551
  %v3553 = vshrl.u32 %v2383, 16
  %v3555 = vrot.slane %v3553, 2
  %v3556 = vshll.u32 %v2383, 16
  %v3558 = vrot.slane %v3556, 3
  %v3559 = vor.u32 %v3555, %v3558
  %v3560 = vsel %vm2730, %v3534, %v3559
  %v3561 = vshrl.u32 %v2677, 16
  %v3563 = vrot.slane %v3561, 2
  %v3564 = vshll.u32 %v2677, 16
  %v3566 = vrot.slane %v3564, 3
  %v3567 = vor.u32 %v3563, %v3566
  %v3568 = vsel %vm2730, %v3542, %v3567
  %v3570 = vshrl.u32 %v2127, 16
  %v3572 = vrot.slane %v3570, 2
  %v3573 = vshll.u32 %v2127, 16
  %v3575 = vrot.slane %v3573, 3
  %v3576 = vor.u32 %v3572, %v3575
  %v3577 = vsel %vm2730, %v3551, %v3576
  %v3578 = vshrl.u32 %v2385, 16
  %v3580 = vrot.slane %v3578, 2
  %v3581 = vshll.u32 %v2385, 16
  %v3583 = vrot.slane %v3581, 3
  %v3584 = vor.u32 %v3580, %v3583
  %v3585 = vsel %vm2730, %v3559, %v3584
  %v3586 = vshrl.u32 %v2679, 16
  %v3588 = vrot.slane %v3586, 2
  %v3589 = vshll.u32 %v2679, 16
  %v3591 = vrot.slane %v3589, 3
  %v3592 = vor.u32 %v3588, %v3591
  %v3593 = vsel %vm2730, %v3567, %v3592
  %v3595 = vshrl.u32 %v2129, 16
  %v3597 = vrot.slane %v3595, 2
  %v3598 = vshll.u32 %v2129, 16
  %v3600 = vrot.slane %v3598, 3
  %v3601 = vor.u32 %v3597, %v3600
  %v3602 = vsel %vm2730, %v3576, %v3601
  %v3603 = vshrl.u32 %v2387, 16
  %v3605 = vrot.slane %v3603, 2
  %v3606 = vshll.u32 %v2387, 16
  %v3608 = vrot.slane %v3606, 3
  %v3609 = vor.u32 %v3605, %v3608
  %v3610 = vsel %vm2730, %v3584, %v3609
  %v3611 = vshrl.u32 %v2681, 16
  %v3613 = vrot.slane %v3611, 2
  %v3614 = vshll.u32 %v2681, 16
  %v3616 = vrot.slane %v3614, 3
  %v3617 = vor.u32 %v3613, %v3616
  %v3618 = vsel %vm2730, %v3592, %v3617
  %v3620 = vshrl.u32 %v2131, 16
  %v3622 = vrot.slane %v3620, 2
  %v3623 = vshll.u32 %v2131, 16
  %v3625 = vrot.slane %v3623, 3
  %v3626 = vor.u32 %v3622, %v3625
  %v3627 = vsel %vm2730, %v3601, %v3626
  %v3628 = vshrl.u32 %v2389, 16
  %v3630 = vrot.slane %v3628, 2
  %v3631 = vshll.u32 %v2389, 16
  %v3633 = vrot.slane %v3631, 3
  %v3634 = vor.u32 %v3630, %v3633
  %v3635 = vsel %vm2730, %v3609, %v3634
  %v3636 = vshrl.u32 %v2683, 16
  %v3638 = vrot.slane %v3636, 2
  %v3639 = vshll.u32 %v2683, 16
  %v3641 = vrot.slane %v3639, 3
  %v3642 = vor.u32 %v3638, %v3641
  %v3643 = vsel %vm2730, %v3617, %v3642
  %v3645 = vshrl.u32 %v2133, 16
  %v3647 = vrot.slane %v3645, 2
  %v3648 = vshll.u32 %v2133, 16
  %v3650 = vrot.slane %v3648, 3
  %v3651 = vor.u32 %v3647, %v3650
  %v3652 = vsel %vm2730, %v3626, %v3651
  %v3653 = vshrl.u32 %v2391, 16
  %v3655 = vrot.slane %v3653, 2
  %v3656 = vshll.u32 %v2391, 16
  %v3658 = vrot.slane %v3656, 3
  %v3659 = vor.u32 %v3655, %v3658
  %v3660 = vsel %vm2730, %v3634, %v3659
  %v3661 = vshrl.u32 %v2685, 16
  %v3663 = vrot.slane %v3661, 2
  %v3664 = vshll.u32 %v2685, 16
  %v3666 = vrot.slane %v3664, 3
  %v3667 = vor.u32 %v3663, %v3666
  %v3668 = vsel %vm2730, %v3642, %v3667
  %v3670 = vshrl.u32 %v2135, 16
  %v3672 = vrot.slane %v3670, 2
  %v3673 = vshll.u32 %v2135, 16
  %v3675 = vrot.slane %v3673, 3
  %v3676 = vor.u32 %v3672, %v3675
  %v3677 = vsel %vm2730, %v3651, %v3676
  %v3678 = vshrl.u32 %v2393, 16
  %v3680 = vrot.slane %v3678, 2
  %v3681 = vshll.u32 %v2393, 16
  %v3683 = vrot.slane %v3681, 3
  %v3684 = vor.u32 %v3680, %v3683
  %v3685 = vsel %vm2730, %v3659, %v3684
  %v3686 = vshrl.u32 %v2687, 16
  %v3688 = vrot.slane %v3686, 2
  %v3689 = vshll.u32 %v2687, 16
  %v3691 = vrot.slane %v3689, 3
  %v3692 = vor.u32 %v3688, %v3691
  %v3693 = vsel %vm2730, %v3667, %v3692
  %v3695 = vshrl.u32 %v2137, 16
  %v3697 = vrot.slane %v3695, 2
  %v3698 = vshll.u32 %v2137, 16
  %v3700 = vrot.slane %v3698, 3
  %v3701 = vor.u32 %v3697, %v3700
  %v3702 = vsel %vm2730, %v3676, %v3701
  %v3703 = vshrl.u32 %v2395, 16
  %v3705 = vrot.slane %v3703, 2
  %v3706 = vshll.u32 %v2395, 16
  %v3708 = vrot.slane %v3706, 3
  %v3709 = vor.u32 %v3705, %v3708
  %v3710 = vsel %vm2730, %v3684, %v3709
  %v3711 = vshrl.u32 %v2689, 16
  %v3713 = vrot.slane %v3711, 2
  %v3714 = vshll.u32 %v2689, 16
  %v3716 = vrot.slane %v3714, 3
  %v3717 = vor.u32 %v3713, %v3716
  %v3718 = vsel %vm2730, %v3692, %v3717
  %v3720 = vshrl.u32 %v2139, 16
  %v3722 = vrot.slane %v3720, 2
  %v3723 = vshll.u32 %v2139, 16
  %v3725 = vrot.slane %v3723, 3
  %v3726 = vor.u32 %v3722, %v3725
  %v3727 = vsel %vm2730, %v3701, %v3726
  %v3728 = vshrl.u32 %v2397, 16
  %v3730 = vrot.slane %v3728, 2
  %v3731 = vshll.u32 %v2397, 16
  %v3733 = vrot.slane %v3731, 3
  %v3734 = vor.u32 %v3730, %v3733
  %v3735 = vsel %vm2730, %v3709, %v3734
  %v3736 = vshrl.u32 %v2691, 16
  %v3738 = vrot.slane %v3736, 2
  %v3739 = vshll.u32 %v2691, 16
  %v3741 = vrot.slane %v3739, 3
  %v3742 = vor.u32 %v3738, %v3741
  %v3743 = vsel %vm2730, %v3717, %v3742
  %v3745 = vshrl.u32 %v2141, 16
  %v3747 = vrot.slane %v3745, 2
  %v3748 = vshll.u32 %v2141, 16
  %v3750 = vrot.slane %v3748, 3
  %v3751 = vor.u32 %v3747, %v3750
  %v3752 = vsel %vm2730, %v3726, %v3751
  %v3753 = vshrl.u32 %v2399, 16
  %v3755 = vrot.slane %v3753, 2
  %v3756 = vshll.u32 %v2399, 16
  %v3758 = vrot.slane %v3756, 3
  %v3759 = vor.u32 %v3755, %v3758
  %v3760 = vsel %vm2730, %v3734, %v3759
  %v3761 = vshrl.u32 %v2693, 16
  %v3763 = vrot.slane %v3761, 2
  %v3764 = vshll.u32 %v2693, 16
  %v3766 = vrot.slane %v3764, 3
  %v3767 = vor.u32 %v3763, %v3766
  %v3768 = vsel %vm2730, %v3742, %v3767
  %v3770 = vshrl.u32 %v2143, 16
  %v3772 = vrot.slane %v3770, 2
  %v3773 = vshll.u32 %v2143, 16
  %v3775 = vrot.slane %v3773, 3
  %v3776 = vor.u32 %v3772, %v3775
  %v3777 = vsel %vm2730, %v3751, %v3776
  %v3896 = vunpack.c.l.b16 %v2694
  %v3897 = vunpack.c.l.b16 %v2695
  %v3898 = vunpack.c.l.b16 %v2696
  %v3899 = vunpack.c.l.b16 %v2697
  %v3900 = vunpack.c.l.b16 %v2698
  %v3901 = vunpack.c.l.b16 %v2699
  %v3902 = vunpack.c.l.b16 %v2700
  %v3903 = vunpack.c.l.b16 %v2701
  %v3904 = vunpack.c.l.b16 %v2702
  %v3905 = vunpack.c.l.b16 %v2703
  %v3906 = vunpack.c.l.b16 %v2704
  %v3907 = vunpack.c.l.b16 %v2705
  %v3908 = vunpack.c.l.b16 %v2706
  %v3909 = vunpack.c.l.b16 %v2707
  %v3910 = vunpack.c.l.b16 %v2708
  %v3911 = vunpack.c.l.b16 %v2709
  %v3912 = vunpack.c.l.b16 %v2710
  %v3913 = vunpack.c.l.b16 %v2711
  %v3914 = vunpack.c.l.b16 %v2712
  %v3915 = vunpack.c.l.b16 %v2713
  %v3916 = vunpack.c.l.b16 %v2714
  %v3917 = vunpack.c.l.b16 %v2715
  %v3918 = vunpack.c.l.b16 %v2716
  %v3919 = vunpack.c.l.b16 %v2717
  %v3920 = vunpack.c.l.b16 %v2718
  %v3921 = vunpack.c.l.b16 %v2719
  %v3922 = vunpack.c.l.b16 %v2720
  %v3923 = vunpack.c.l.b16 %v2721
  %v3924 = vunpack.c.l.b16 %v2722
  %v3925 = vunpack.c.l.b16 %v2723
  %v3926 = vunpack.c.l.b16 %v2724
  %v3927 = vunpack.c.l.b16 %v2725
  %v3928 = vunpack.c.l.b16 %v2726
  %v3929 = vunpack.c.l.b16 %v2727
  %v3930 = vunpack.c.l.b16 %v2728
  %v3931 = vunpack.c.l.b16 %v2729
  %v3932 = vpack.c.b16 %v3897, %v3896
  %v3933 = vpack.c.b16 %v3899, %v3898
  %v3934 = vpack.c.b16 %v3901, %v3900
  %v3935 = vpack.c.b16 %v3903, %v3902
  %v3936 = vpack.c.b16 %v3905, %v3904
  %v3937 = vpack.c.b16 %v3907, %v3906
  %v3938 = vpack.c.b16 %v3909, %v3908
  %v3939 = vpack.c.b16 %v3911, %v3910
  %v3940 = vpack.c.b16 %v3913, %v3912
  %v3941 = vpack.c.b16 %v3915, %v3914
  %v3942 = vpack.c.b16 %v3917, %v3916
  %v3943 = vpack.c.b16 %v3919, %v3918
  %v3944 = vpack.c.b16 %v3921, %v3920
  %v3945 = vpack.c.b16 %v3923, %v3922
  %v3946 = vpack.c.b16 %v3925, %v3924
  %v3947 = vpack.c.b16 %v3927, %v3926
  %v3948 = vpack.c.b16 %v3929, %v3928
  %v3949 = vpack.c.b16 %v3931, %v3930
  %v3969 = vsel %vm2144, %v2777, 0
  %v3972 = vsel %vm2144, %v2802, 0
  %v3975 = vsel %vm2144, %v2827, 0
  %v3978 = vsel %vm2144, %v2852, 0
  %v3981 = vsel %vm2144, %v2877, 0
  %v3984 = vsel %vm2144, %v2902, 0
  %v3987 = vsel %vm2144, %v2927, 0
  %v3990 = vsel %vm2144, %v2952, 0
  %v3993 = vsel %vm2144, %v2977, 0
  %v3996 = vsel %vm2144, %v3002, 0
  %v3999 = vsel %vm2144, %v3027, 0
  %v4002 = vsel %vm2144, %v3052, 0
  %v4005 = vsel %vm2144, %v3077, 0
  %v4008 = vsel %vm2144, %v3102, 0
  %v4011 = vsel %vm2144, %v3127, 0
  %v4014 = vsel %vm2144, %v3152, 0
  %v4017 = vsel %vm2144, %v3177, 0
  %v4020 = vsel %vm2144, %v3202, 0
  %v4023 = vsel %vm2144, %v3227, 0
  %v4026 = vsel %vm2144, %v3252, 0
  %v4029 = vsel %vm2144, %v3277, 0
  %v4032 = vsel %vm2144, %v3302, 0
  %v4035 = vsel %vm2144, %v3327, 0
  %v4038 = vsel %vm2144, %v3352, 0
  %v4041 = vsel %vm2144, %v3377, 0
  %v4044 = vsel %vm2144, %v3402, 0
  %v4047 = vsel %vm2144, %v3427, 0
  %v4050 = vsel %vm2144, %v3452, 0
  %v4053 = vsel %vm2144, %v3477, 0
  %v4056 = vsel %vm2144, %v3502, 0
  %v4059 = vsel %vm2144, %v3527, 0
  %v4062 = vsel %vm2144, %v3552, 0
  %v4065 = vsel %vm2144, %v3577, 0
  %v4068 = vsel %vm2144, %v3602, 0
  %v4071 = vsel %vm2144, %v3627, 0
  %v4074 = vsel %vm2144, %v3652, 0
  %v4077 = vsel %vm2144, %v3677, 0
  %v4080 = vsel %vm2144, %v3702, 0
  %v4083 = vsel %vm2144, %v3727, 0
  %v4086 = vsel %vm2144, %v3752, 0
  %v4089 = vsel %vm2144, %v3777, 0
  %4091 = vmatpush.bf16.msra.mxu0 %v3939
  %4092 = vmatpush.bf16.msra.mxu0 %v3938
  %4093 = vmatpush.bf16.msra.mxu0 %v3937
  %4094 = vmatpush.bf16.msra.mxu0 %v3936
  %4095 = vmatpush.bf16.msra.mxu0 %v3935
  %4096 = vmatpush.bf16.msra.mxu0 %v3934
  %4097 = vmatpush.bf16.msra.mxu0 %v3933
  %4098 = vmatpush.bf16.msra.mxu0 %v3932
  %4099 = vmatmul.bf16.gmra.mxu0 %v2745
  %v4100 = vpop.f32.mrf.mxu0
  %v4101 = vadd.f32 0.0, %v4100
  %v4102 = vpop.f32.mrf.mxu0
  %v4103 = vadd.f32 0.0, %v4102
  %4104 = vmatmul.bf16.gmra.mxu0 %v2785
  %v4105 = vpop.f32.mrf.mxu0
  %v4106 = vadd.f32 0.0, %v4105
  %v4107 = vpop.f32.mrf.mxu0
  %v4108 = vadd.f32 0.0, %v4107
  %4109 = vmatmul.bf16.gmra.mxu0 %v2810
  %v4110 = vpop.f32.mrf.mxu0
  %v4111 = vadd.f32 0.0, %v4110
  %v4112 = vpop.f32.mrf.mxu0
  %v4113 = vadd.f32 0.0, %v4112
  %4114 = vmatmul.bf16.gmra.mxu0 %v2835
  %v4115 = vpop.f32.mrf.mxu0
  %v4116 = vadd.f32 0.0, %v4115
  %v4117 = vpop.f32.mrf.mxu0
  %v4118 = vadd.f32 0.0, %v4117
  %4119 = vmatmul.bf16.gmra.mxu0 %v2860
  %v4120 = vpop.f32.mrf.mxu0
  %v4121 = vadd.f32 0.0, %v4120
  %v4122 = vpop.f32.mrf.mxu0
  %v4123 = vadd.f32 0.0, %v4122
  %4124 = vmatmul.bf16.gmra.mxu0 %v2885
  %v4125 = vpop.f32.mrf.mxu0
  %v4126 = vadd.f32 0.0, %v4125
  %v4127 = vpop.f32.mrf.mxu0
  %v4128 = vadd.f32 0.0, %v4127
  %4129 = vmatmul.bf16.gmra.mxu0 %v2910
  %v4130 = vpop.f32.mrf.mxu0
  %v4131 = vadd.f32 0.0, %v4130
  %v4132 = vpop.f32.mrf.mxu0
  %v4133 = vadd.f32 0.0, %v4132
  %4134 = vmatmul.bf16.gmra.mxu0 %v2935
  %v4135 = vpop.f32.mrf.mxu0
  %v4136 = vadd.f32 0.0, %v4135
  %v4137 = vpop.f32.mrf.mxu0
  %v4138 = vadd.f32 0.0, %v4137
  %4139 = vmatmul.bf16.gmra.mxu0 %v2960
  %v4140 = vpop.f32.mrf.mxu0
  %v4141 = vadd.f32 0.0, %v4140
  %v4142 = vpop.f32.mrf.mxu0
  %v4143 = vadd.f32 0.0, %v4142
  %4144 = vmatmul.bf16.gmra.mxu0 %v2985
  %v4145 = vpop.f32.mrf.mxu0
  %v4146 = vadd.f32 0.0, %v4145
  %v4147 = vpop.f32.mrf.mxu0
  %v4148 = vadd.f32 0.0, %v4147
  %4149 = vmatmul.bf16.gmra.mxu0 %v3010
  %v4150 = vpop.f32.mrf.mxu0
  %v4151 = vadd.f32 0.0, %v4150
  %v4152 = vpop.f32.mrf.mxu0
  %v4153 = vadd.f32 0.0, %v4152
  %4154 = vmatmul.bf16.gmra.mxu0 %v3035
  %v4155 = vpop.f32.mrf.mxu0
  %v4156 = vadd.f32 0.0, %v4155
  %v4157 = vpop.f32.mrf.mxu0
  %v4158 = vadd.f32 0.0, %v4157
  %4159 = vmatmul.bf16.gmra.mxu0 %v3060
  %v4160 = vpop.f32.mrf.mxu0
  %v4161 = vadd.f32 0.0, %v4160
  %v4162 = vpop.f32.mrf.mxu0
  %v4163 = vadd.f32 0.0, %v4162
  %4164 = vmatmul.bf16.gmra.mxu0 %v3085
  %v4165 = vpop.f32.mrf.mxu0
  %v4166 = vadd.f32 0.0, %v4165
  %v4167 = vpop.f32.mrf.mxu0
  %v4168 = vadd.f32 0.0, %v4167
  %4169 = vmatmul.bf16.gmra.mxu0 %v3110
  %v4170 = vpop.f32.mrf.mxu0
  %v4171 = vadd.f32 0.0, %v4170
  %v4172 = vpop.f32.mrf.mxu0
  %v4173 = vadd.f32 0.0, %v4172
  %4174 = vmatmul.bf16.gmra.mxu0 %v3135
  %v4175 = vpop.f32.mrf.mxu0
  %v4176 = vadd.f32 0.0, %v4175
  %v4177 = vpop.f32.mrf.mxu0
  %v4178 = vadd.f32 0.0, %v4177
  %4179 = vmatmul.bf16.gmra.mxu0 %v3160
  %v4180 = vpop.f32.mrf.mxu0
  %v4181 = vadd.f32 0.0, %v4180
  %v4182 = vpop.f32.mrf.mxu0
  %v4183 = vadd.f32 0.0, %v4182
  %4184 = vmatmul.bf16.gmra.mxu0 %v3185
  %v4185 = vpop.f32.mrf.mxu0
  %v4186 = vadd.f32 0.0, %v4185
  %v4187 = vpop.f32.mrf.mxu0
  %v4188 = vadd.f32 0.0, %v4187
  %4189 = vmatmul.bf16.gmra.mxu0 %v3210
  %v4190 = vpop.f32.mrf.mxu0
  %v4191 = vadd.f32 0.0, %v4190
  %v4192 = vpop.f32.mrf.mxu0
  %v4193 = vadd.f32 0.0, %v4192
  %4194 = vmatmul.bf16.gmra.mxu0 %v3235
  %v4195 = vpop.f32.mrf.mxu0
  %v4196 = vadd.f32 0.0, %v4195
  %v4197 = vpop.f32.mrf.mxu0
  %v4198 = vadd.f32 0.0, %v4197
  %4199 = vmatmul.bf16.gmra.mxu0 %v3260
  %v4200 = vpop.f32.mrf.mxu0
  %v4201 = vadd.f32 0.0, %v4200
  %v4202 = vpop.f32.mrf.mxu0
  %v4203 = vadd.f32 0.0, %v4202
  %4204 = vmatmul.bf16.gmra.mxu0 %v3285
  %v4205 = vpop.f32.mrf.mxu0
  %v4206 = vadd.f32 0.0, %v4205
  %v4207 = vpop.f32.mrf.mxu0
  %v4208 = vadd.f32 0.0, %v4207
  %4209 = vmatmul.bf16.gmra.mxu0 %v3310
  %v4210 = vpop.f32.mrf.mxu0
  %v4211 = vadd.f32 0.0, %v4210
  %v4212 = vpop.f32.mrf.mxu0
  %v4213 = vadd.f32 0.0, %v4212
  %4214 = vmatmul.bf16.gmra.mxu0 %v3335
  %v4215 = vpop.f32.mrf.mxu0
  %v4216 = vadd.f32 0.0, %v4215
  %v4217 = vpop.f32.mrf.mxu0
  %v4218 = vadd.f32 0.0, %v4217
  %4219 = vmatmul.bf16.gmra.mxu0 %v3360
  %v4220 = vpop.f32.mrf.mxu0
  %v4221 = vadd.f32 0.0, %v4220
  %v4222 = vpop.f32.mrf.mxu0
  %v4223 = vadd.f32 0.0, %v4222
  %4224 = vmatmul.bf16.gmra.mxu0 %v3385
  %v4225 = vpop.f32.mrf.mxu0
  %v4226 = vadd.f32 0.0, %v4225
  %v4227 = vpop.f32.mrf.mxu0
  %v4228 = vadd.f32 0.0, %v4227
  %4229 = vmatmul.bf16.gmra.mxu0 %v3410
  %v4230 = vpop.f32.mrf.mxu0
  %v4231 = vadd.f32 0.0, %v4230
  %v4232 = vpop.f32.mrf.mxu0
  %v4233 = vadd.f32 0.0, %v4232
  %4234 = vmatmul.bf16.gmra.mxu0 %v3435
  %v4235 = vpop.f32.mrf.mxu0
  %v4236 = vadd.f32 0.0, %v4235
  %v4237 = vpop.f32.mrf.mxu0
  %v4238 = vadd.f32 0.0, %v4237
  %4239 = vmatmul.bf16.gmra.mxu0 %v3460
  %v4240 = vpop.f32.mrf.mxu0
  %v4241 = vadd.f32 0.0, %v4240
  %v4242 = vpop.f32.mrf.mxu0
  %v4243 = vadd.f32 0.0, %v4242
  %4244 = vmatmul.bf16.gmra.mxu0 %v3485
  %v4245 = vpop.f32.mrf.mxu0
  %v4246 = vadd.f32 0.0, %v4245
  %v4247 = vpop.f32.mrf.mxu0
  %v4248 = vadd.f32 0.0, %v4247
  %4249 = vmatmul.bf16.gmra.mxu0 %v3510
  %v4250 = vpop.f32.mrf.mxu0
  %v4251 = vadd.f32 0.0, %v4250
  %v4252 = vpop.f32.mrf.mxu0
  %v4253 = vadd.f32 0.0, %v4252
  %4254 = vmatmul.bf16.gmra.mxu0 %v3535
  %v4255 = vpop.f32.mrf.mxu0
  %v4256 = vadd.f32 0.0, %v4255
  %v4257 = vpop.f32.mrf.mxu0
  %v4258 = vadd.f32 0.0, %v4257
  %4259 = vmatmul.bf16.gmra.mxu0 %v3560
  %v4260 = vpop.f32.mrf.mxu0
  %v4261 = vadd.f32 0.0, %v4260
  %v4262 = vpop.f32.mrf.mxu0
  %v4263 = vadd.f32 0.0, %v4262
  %4264 = vmatmul.bf16.gmra.mxu0 %v3585
  %v4265 = vpop.f32.mrf.mxu0
  %v4266 = vadd.f32 0.0, %v4265
  %v4267 = vpop.f32.mrf.mxu0
  %v4268 = vadd.f32 0.0, %v4267
  %4269 = vmatmul.bf16.gmra.mxu0 %v3610
  %v4270 = vpop.f32.mrf.mxu0
  %v4271 = vadd.f32 0.0, %v4270
  %v4272 = vpop.f32.mrf.mxu0
  %v4273 = vadd.f32 0.0, %v4272
  %4274 = vmatmul.bf16.gmra.mxu0 %v3635
  %v4275 = vpop.f32.mrf.mxu0
  %v4276 = vadd.f32 0.0, %v4275
  %v4277 = vpop.f32.mrf.mxu0
  %v4278 = vadd.f32 0.0, %v4277
  %4279 = vmatmul.bf16.gmra.mxu0 %v3660
  %v4280 = vpop.f32.mrf.mxu0
  %v4281 = vadd.f32 0.0, %v4280
  %v4282 = vpop.f32.mrf.mxu0
  %v4283 = vadd.f32 0.0, %v4282
  %4284 = vmatmul.bf16.gmra.mxu0 %v3685
  %v4285 = vpop.f32.mrf.mxu0
  %v4286 = vadd.f32 0.0, %v4285
  %v4287 = vpop.f32.mrf.mxu0
  %v4288 = vadd.f32 0.0, %v4287
  %4289 = vmatmul.bf16.gmra.mxu0 %v3710
  %v4290 = vpop.f32.mrf.mxu0
  %v4291 = vadd.f32 0.0, %v4290
  %v4292 = vpop.f32.mrf.mxu0
  %v4293 = vadd.f32 0.0, %v4292
  %4294 = vmatmul.bf16.gmra.mxu0 %v3735
  %v4295 = vpop.f32.mrf.mxu0
  %v4296 = vadd.f32 0.0, %v4295
  %v4297 = vpop.f32.mrf.mxu0
  %v4298 = vadd.f32 0.0, %v4297
  %4299 = vmatmul.bf16.gmra.mxu0 %v3760
  %v4300 = vpop.f32.mrf.mxu0
  %v4301 = vadd.f32 0.0, %v4300
  %v4302 = vpop.f32.mrf.mxu0
  %v4303 = vadd.f32 0.0, %v4302
  %4304 = vdwg.mxu0
  %4305 = vmatpush.bf16.msra.mxu0 %v3947
  %4306 = vmatpush.bf16.msra.mxu0 %v3946
  %4307 = vmatpush.bf16.msra.mxu0 %v3945
  %4308 = vmatpush.bf16.msra.mxu0 %v3944
  %4309 = vmatpush.bf16.msra.mxu0 %v3943
  %4310 = vmatpush.bf16.msra.mxu0 %v3942
  %4311 = vmatpush.bf16.msra.mxu0 %v3941
  %4312 = vmatpush.bf16.msra.mxu0 %v3940
  %4313 = vmatmul.bf16.gmra.mxu0 %v2760
  %v4314 = vpop.f32.mrf.mxu0
  %v4315 = vadd.f32 %v4101, %v4314
  %v4316 = vpop.f32.mrf.mxu0
  %v4317 = vadd.f32 %v4103, %v4316
  %4318 = vmatmul.bf16.gmra.mxu0 %v2793
  %v4319 = vpop.f32.mrf.mxu0
  %v4320 = vadd.f32 %v4106, %v4319
  %v4321 = vpop.f32.mrf.mxu0
  %v4322 = vadd.f32 %v4108, %v4321
  %4323 = vmatmul.bf16.gmra.mxu0 %v2818
  %v4324 = vpop.f32.mrf.mxu0
  %v4325 = vadd.f32 %v4111, %v4324
  %v4326 = vpop.f32.mrf.mxu0
  %v4327 = vadd.f32 %v4113, %v4326
  %4328 = vmatmul.bf16.gmra.mxu0 %v2843
  %v4329 = vpop.f32.mrf.mxu0
  %v4330 = vadd.f32 %v4116, %v4329
  %v4331 = vpop.f32.mrf.mxu0
  %v4332 = vadd.f32 %v4118, %v4331
  %4333 = vmatmul.bf16.gmra.mxu0 %v2868
  %v4334 = vpop.f32.mrf.mxu0
  %v4335 = vadd.f32 %v4121, %v4334
  %v4336 = vpop.f32.mrf.mxu0
  %v4337 = vadd.f32 %v4123, %v4336
  %4338 = vmatmul.bf16.gmra.mxu0 %v2893
  %v4339 = vpop.f32.mrf.mxu0
  %v4340 = vadd.f32 %v4126, %v4339
  %v4341 = vpop.f32.mrf.mxu0
  %v4342 = vadd.f32 %v4128, %v4341
  %4343 = vmatmul.bf16.gmra.mxu0 %v2918
  %v4344 = vpop.f32.mrf.mxu0
  %v4345 = vadd.f32 %v4131, %v4344
  %v4346 = vpop.f32.mrf.mxu0
  %v4347 = vadd.f32 %v4133, %v4346
  %4348 = vmatmul.bf16.gmra.mxu0 %v2943
  %v4349 = vpop.f32.mrf.mxu0
  %v4350 = vadd.f32 %v4136, %v4349
  %v4351 = vpop.f32.mrf.mxu0
  %v4352 = vadd.f32 %v4138, %v4351
  %4353 = vmatmul.bf16.gmra.mxu0 %v2968
  %v4354 = vpop.f32.mrf.mxu0
  %v4355 = vadd.f32 %v4141, %v4354
  %v4356 = vpop.f32.mrf.mxu0
  %v4357 = vadd.f32 %v4143, %v4356
  %4358 = vmatmul.bf16.gmra.mxu0 %v2993
  %v4359 = vpop.f32.mrf.mxu0
  %v4360 = vadd.f32 %v4146, %v4359
  %v4361 = vpop.f32.mrf.mxu0
  %v4362 = vadd.f32 %v4148, %v4361
  %4363 = vmatmul.bf16.gmra.mxu0 %v3018
  %v4364 = vpop.f32.mrf.mxu0
  %v4365 = vadd.f32 %v4151, %v4364
  %v4366 = vpop.f32.mrf.mxu0
  %v4367 = vadd.f32 %v4153, %v4366
  %4368 = vmatmul.bf16.gmra.mxu0 %v3043
  %v4369 = vpop.f32.mrf.mxu0
  %v4370 = vadd.f32 %v4156, %v4369
  %v4371 = vpop.f32.mrf.mxu0
  %v4372 = vadd.f32 %v4158, %v4371
  %4373 = vmatmul.bf16.gmra.mxu0 %v3068
  %v4374 = vpop.f32.mrf.mxu0
  %v4375 = vadd.f32 %v4161, %v4374
  %v4376 = vpop.f32.mrf.mxu0
  %v4377 = vadd.f32 %v4163, %v4376
  %4378 = vmatmul.bf16.gmra.mxu0 %v3093
  %v4379 = vpop.f32.mrf.mxu0
  %v4380 = vadd.f32 %v4166, %v4379
  %v4381 = vpop.f32.mrf.mxu0
  %v4382 = vadd.f32 %v4168, %v4381
  %4383 = vmatmul.bf16.gmra.mxu0 %v3118
  %v4384 = vpop.f32.mrf.mxu0
  %v4385 = vadd.f32 %v4171, %v4384
  %v4386 = vpop.f32.mrf.mxu0
  %v4387 = vadd.f32 %v4173, %v4386
  %4388 = vmatmul.bf16.gmra.mxu0 %v3143
  %v4389 = vpop.f32.mrf.mxu0
  %v4390 = vadd.f32 %v4176, %v4389
  %v4391 = vpop.f32.mrf.mxu0
  %v4392 = vadd.f32 %v4178, %v4391
  %4393 = vmatmul.bf16.gmra.mxu0 %v3168
  %v4394 = vpop.f32.mrf.mxu0
  %v4395 = vadd.f32 %v4181, %v4394
  %v4396 = vpop.f32.mrf.mxu0
  %v4397 = vadd.f32 %v4183, %v4396
  %4398 = vmatmul.bf16.gmra.mxu0 %v3193
  %v4399 = vpop.f32.mrf.mxu0
  %v4400 = vadd.f32 %v4186, %v4399
  %v4401 = vpop.f32.mrf.mxu0
  %v4402 = vadd.f32 %v4188, %v4401
  %4403 = vmatmul.bf16.gmra.mxu0 %v3218
  %v4404 = vpop.f32.mrf.mxu0
  %v4405 = vadd.f32 %v4191, %v4404
  %v4406 = vpop.f32.mrf.mxu0
  %v4407 = vadd.f32 %v4193, %v4406
  %4408 = vmatmul.bf16.gmra.mxu0 %v3243
  %v4409 = vpop.f32.mrf.mxu0
  %v4410 = vadd.f32 %v4196, %v4409
  %v4411 = vpop.f32.mrf.mxu0
  %v4412 = vadd.f32 %v4198, %v4411
  %4413 = vmatmul.bf16.gmra.mxu0 %v3268
  %v4414 = vpop.f32.mrf.mxu0
  %v4415 = vadd.f32 %v4201, %v4414
  %v4416 = vpop.f32.mrf.mxu0
  %v4417 = vadd.f32 %v4203, %v4416
  %4418 = vmatmul.bf16.gmra.mxu0 %v3293
  %v4419 = vpop.f32.mrf.mxu0
  %v4420 = vadd.f32 %v4206, %v4419
  %v4421 = vpop.f32.mrf.mxu0
  %v4422 = vadd.f32 %v4208, %v4421
  %4423 = vmatmul.bf16.gmra.mxu0 %v3318
  %v4424 = vpop.f32.mrf.mxu0
  %v4425 = vadd.f32 %v4211, %v4424
  %v4426 = vpop.f32.mrf.mxu0
  %v4427 = vadd.f32 %v4213, %v4426
  %4428 = vmatmul.bf16.gmra.mxu0 %v3343
  %v4429 = vpop.f32.mrf.mxu0
  %v4430 = vadd.f32 %v4216, %v4429
  %v4431 = vpop.f32.mrf.mxu0
  %v4432 = vadd.f32 %v4218, %v4431
  %4433 = vmatmul.bf16.gmra.mxu0 %v3368
  %v4434 = vpop.f32.mrf.mxu0
  %v4435 = vadd.f32 %v4221, %v4434
  %v4436 = vpop.f32.mrf.mxu0
  %v4437 = vadd.f32 %v4223, %v4436
  %4438 = vmatmul.bf16.gmra.mxu0 %v3393
  %v4439 = vpop.f32.mrf.mxu0
  %v4440 = vadd.f32 %v4226, %v4439
  %v4441 = vpop.f32.mrf.mxu0
  %v4442 = vadd.f32 %v4228, %v4441
  %4443 = vmatmul.bf16.gmra.mxu0 %v3418
  %v4444 = vpop.f32.mrf.mxu0
  %v4445 = vadd.f32 %v4231, %v4444
  %v4446 = vpop.f32.mrf.mxu0
  %v4447 = vadd.f32 %v4233, %v4446
  %4448 = vmatmul.bf16.gmra.mxu0 %v3443
  %v4449 = vpop.f32.mrf.mxu0
  %v4450 = vadd.f32 %v4236, %v4449
  %v4451 = vpop.f32.mrf.mxu0
  %v4452 = vadd.f32 %v4238, %v4451
  %4453 = vmatmul.bf16.gmra.mxu0 %v3468
  %v4454 = vpop.f32.mrf.mxu0
  %v4455 = vadd.f32 %v4241, %v4454
  %v4456 = vpop.f32.mrf.mxu0
  %v4457 = vadd.f32 %v4243, %v4456
  %4458 = vmatmul.bf16.gmra.mxu0 %v3493
  %v4459 = vpop.f32.mrf.mxu0
  %v4460 = vadd.f32 %v4246, %v4459
  %v4461 = vpop.f32.mrf.mxu0
  %v4462 = vadd.f32 %v4248, %v4461
  %4463 = vmatmul.bf16.gmra.mxu0 %v3518
  %v4464 = vpop.f32.mrf.mxu0
  %v4465 = vadd.f32 %v4251, %v4464
  %v4466 = vpop.f32.mrf.mxu0
  %v4467 = vadd.f32 %v4253, %v4466
  %4468 = vmatmul.bf16.gmra.mxu0 %v3543
  %v4469 = vpop.f32.mrf.mxu0
  %v4470 = vadd.f32 %v4256, %v4469
  %v4471 = vpop.f32.mrf.mxu0
  %v4472 = vadd.f32 %v4258, %v4471
  %4473 = vmatmul.bf16.gmra.mxu0 %v3568
  %v4474 = vpop.f32.mrf.mxu0
  %v4475 = vadd.f32 %v4261, %v4474
  %v4476 = vpop.f32.mrf.mxu0
  %v4477 = vadd.f32 %v4263, %v4476
  %4478 = vmatmul.bf16.gmra.mxu0 %v3593
  %v4479 = vpop.f32.mrf.mxu0
  %v4480 = vadd.f32 %v4266, %v4479
  %v4481 = vpop.f32.mrf.mxu0
  %v4482 = vadd.f32 %v4268, %v4481
  %4483 = vmatmul.bf16.gmra.mxu0 %v3618
  %v4484 = vpop.f32.mrf.mxu0
  %v4485 = vadd.f32 %v4271, %v4484
  %v4486 = vpop.f32.mrf.mxu0
  %v4487 = vadd.f32 %v4273, %v4486
  %4488 = vmatmul.bf16.gmra.mxu0 %v3643
  %v4489 = vpop.f32.mrf.mxu0
  %v4490 = vadd.f32 %v4276, %v4489
  %v4491 = vpop.f32.mrf.mxu0
  %v4492 = vadd.f32 %v4278, %v4491
  %4493 = vmatmul.bf16.gmra.mxu0 %v3668
  %v4494 = vpop.f32.mrf.mxu0
  %v4495 = vadd.f32 %v4281, %v4494
  %v4496 = vpop.f32.mrf.mxu0
  %v4497 = vadd.f32 %v4283, %v4496
  %4498 = vmatmul.bf16.gmra.mxu0 %v3693
  %v4499 = vpop.f32.mrf.mxu0
  %v4500 = vadd.f32 %v4286, %v4499
  %v4501 = vpop.f32.mrf.mxu0
  %v4502 = vadd.f32 %v4288, %v4501
  %4503 = vmatmul.bf16.gmra.mxu0 %v3718
  %v4504 = vpop.f32.mrf.mxu0
  %v4505 = vadd.f32 %v4291, %v4504
  %v4506 = vpop.f32.mrf.mxu0
  %v4507 = vadd.f32 %v4293, %v4506
  %4508 = vmatmul.bf16.gmra.mxu0 %v3743
  %v4509 = vpop.f32.mrf.mxu0
  %v4510 = vadd.f32 %v4296, %v4509
  %v4511 = vpop.f32.mrf.mxu0
  %v4512 = vadd.f32 %v4298, %v4511
  %4513 = vmatmul.bf16.gmra.mxu0 %v3768
  %v4514 = vpop.f32.mrf.mxu0
  %v4515 = vadd.f32 %v4301, %v4514
  %v4516 = vpop.f32.mrf.mxu0
  %v4517 = vadd.f32 %v4303, %v4516
  %4518 = vdwg.mxu0
  %4519 = vmatpush.bf16.msra.mxu0 0
  %4520 = vmatpush.bf16.msra.mxu0 0
  %4521 = vmatpush.bf16.msra.mxu0 0
  %4522 = vmatpush.bf16.msra.mxu0 0
  %4523 = vmatpush.bf16.msra.mxu0 0
  %4524 = vmatpush.bf16.msra.mxu0 0
  %4525 = vmatpush.bf16.msra.mxu0 %v3949
  %4526 = vmatpush.bf16.msra.mxu0 %v3948
  %4527 = vmatmul.bf16.gmra.mxu0 %v3969
  %v4528 = vpop.f32.mrf.mxu0
  %v4529 = vadd.f32 %v4315, %v4528
  %v4530 = vpop.f32.mrf.mxu0
  %v4531 = vadd.f32 %v4317, %v4530
  %4532 = vmatmul.bf16.gmra.mxu0 %v3972
  %v4533 = vpop.f32.mrf.mxu0
  %v4534 = vadd.f32 %v4320, %v4533
  %v4535 = vpop.f32.mrf.mxu0
  %v4536 = vadd.f32 %v4322, %v4535
  %4537 = vmatmul.bf16.gmra.mxu0 %v3975
  %v4538 = vpop.f32.mrf.mxu0
  %v4539 = vadd.f32 %v4325, %v4538
  %v4540 = vpop.f32.mrf.mxu0
  %v4541 = vadd.f32 %v4327, %v4540
  %4542 = vmatmul.bf16.gmra.mxu0 %v3978
  %v4543 = vpop.f32.mrf.mxu0
  %v4544 = vadd.f32 %v4330, %v4543
  %v4545 = vpop.f32.mrf.mxu0
  %v4546 = vadd.f32 %v4332, %v4545
  %4547 = vmatmul.bf16.gmra.mxu0 %v3981
  %v4548 = vpop.f32.mrf.mxu0
  %v4549 = vadd.f32 %v4335, %v4548
  %v4550 = vpop.f32.mrf.mxu0
  %v4551 = vadd.f32 %v4337, %v4550
  %4552 = vmatmul.bf16.gmra.mxu0 %v3984
  %v4553 = vpop.f32.mrf.mxu0
  %v4554 = vadd.f32 %v4340, %v4553
  %v4555 = vpop.f32.mrf.mxu0
  %v4556 = vadd.f32 %v4342, %v4555
  %4557 = vmatmul.bf16.gmra.mxu0 %v3987
  %v4558 = vpop.f32.mrf.mxu0
  %v4559 = vadd.f32 %v4345, %v4558
  %v4560 = vpop.f32.mrf.mxu0
  %v4561 = vadd.f32 %v4347, %v4560
  %4562 = vmatmul.bf16.gmra.mxu0 %v3990
  %v4563 = vpop.f32.mrf.mxu0
  %v4564 = vadd.f32 %v4350, %v4563
  %v4565 = vpop.f32.mrf.mxu0
  %v4566 = vadd.f32 %v4352, %v4565
  %4567 = vmatmul.bf16.gmra.mxu0 %v3993
  %v4568 = vpop.f32.mrf.mxu0
  %v4569 = vadd.f32 %v4355, %v4568
  %v4570 = vpop.f32.mrf.mxu0
  %v4571 = vadd.f32 %v4357, %v4570
  %4572 = vmatmul.bf16.gmra.mxu0 %v3996
  %v4573 = vpop.f32.mrf.mxu0
  %v4574 = vadd.f32 %v4360, %v4573
  %v4575 = vpop.f32.mrf.mxu0
  %v4576 = vadd.f32 %v4362, %v4575
  %4577 = vmatmul.bf16.gmra.mxu0 %v3999
  %v4578 = vpop.f32.mrf.mxu0
  %v4579 = vadd.f32 %v4365, %v4578
  %v4580 = vpop.f32.mrf.mxu0
  %v4581 = vadd.f32 %v4367, %v4580
  %4582 = vmatmul.bf16.gmra.mxu0 %v4002
  %v4583 = vpop.f32.mrf.mxu0
  %v4584 = vadd.f32 %v4370, %v4583
  %v4585 = vpop.f32.mrf.mxu0
  %v4586 = vadd.f32 %v4372, %v4585
  %4587 = vmatmul.bf16.gmra.mxu0 %v4005
  %v4588 = vpop.f32.mrf.mxu0
  %v4589 = vadd.f32 %v4375, %v4588
  %v4590 = vpop.f32.mrf.mxu0
  %v4591 = vadd.f32 %v4377, %v4590
  %4592 = vmatmul.bf16.gmra.mxu0 %v4008
  %v4593 = vpop.f32.mrf.mxu0
  %v4594 = vadd.f32 %v4380, %v4593
  %v4595 = vpop.f32.mrf.mxu0
  %v4596 = vadd.f32 %v4382, %v4595
  %4597 = vmatmul.bf16.gmra.mxu0 %v4011
  %v4598 = vpop.f32.mrf.mxu0
  %v4599 = vadd.f32 %v4385, %v4598
  %v4600 = vpop.f32.mrf.mxu0
  %v4601 = vadd.f32 %v4387, %v4600
  %4602 = vmatmul.bf16.gmra.mxu0 %v4014
  %v4603 = vpop.f32.mrf.mxu0
  %v4604 = vadd.f32 %v4390, %v4603
  %v4605 = vpop.f32.mrf.mxu0
  %v4606 = vadd.f32 %v4392, %v4605
  %4607 = vmatmul.bf16.gmra.mxu0 %v4017
  %v4608 = vpop.f32.mrf.mxu0
  %v4609 = vadd.f32 %v4395, %v4608
  %v4610 = vpop.f32.mrf.mxu0
  %v4611 = vadd.f32 %v4397, %v4610
  %4612 = vmatmul.bf16.gmra.mxu0 %v4020
  %v4613 = vpop.f32.mrf.mxu0
  %v4614 = vadd.f32 %v4400, %v4613
  %v4615 = vpop.f32.mrf.mxu0
  %v4616 = vadd.f32 %v4402, %v4615
  %4617 = vmatmul.bf16.gmra.mxu0 %v4023
  %v4618 = vpop.f32.mrf.mxu0
  %v4619 = vadd.f32 %v4405, %v4618
  %v4620 = vpop.f32.mrf.mxu0
  %v4621 = vadd.f32 %v4407, %v4620
  %4622 = vmatmul.bf16.gmra.mxu0 %v4026
  %v4623 = vpop.f32.mrf.mxu0
  %v4624 = vadd.f32 %v4410, %v4623
  %v4625 = vpop.f32.mrf.mxu0
  %v4626 = vadd.f32 %v4412, %v4625
  %4627 = vmatmul.bf16.gmra.mxu0 %v4029
  %v4628 = vpop.f32.mrf.mxu0
  %v4629 = vadd.f32 %v4415, %v4628
  %v4630 = vpop.f32.mrf.mxu0
  %v4631 = vadd.f32 %v4417, %v4630
  %4632 = vmatmul.bf16.gmra.mxu0 %v4032
  %v4633 = vpop.f32.mrf.mxu0
  %v4634 = vadd.f32 %v4420, %v4633
  %v4635 = vpop.f32.mrf.mxu0
  %v4636 = vadd.f32 %v4422, %v4635
  %4637 = vmatmul.bf16.gmra.mxu0 %v4035
  %v4638 = vpop.f32.mrf.mxu0
  %v4639 = vadd.f32 %v4425, %v4638
  %v4640 = vpop.f32.mrf.mxu0
  %v4641 = vadd.f32 %v4427, %v4640
  %4642 = vmatmul.bf16.gmra.mxu0 %v4038
  %v4643 = vpop.f32.mrf.mxu0
  %v4644 = vadd.f32 %v4430, %v4643
  %v4645 = vpop.f32.mrf.mxu0
  %v4646 = vadd.f32 %v4432, %v4645
  %4647 = vmatmul.bf16.gmra.mxu0 %v4041
  %v4648 = vpop.f32.mrf.mxu0
  %v4649 = vadd.f32 %v4435, %v4648
  %v4650 = vpop.f32.mrf.mxu0
  %v4651 = vadd.f32 %v4437, %v4650
  %4652 = vmatmul.bf16.gmra.mxu0 %v4044
  %v4653 = vpop.f32.mrf.mxu0
  %v4654 = vadd.f32 %v4440, %v4653
  %v4655 = vpop.f32.mrf.mxu0
  %v4656 = vadd.f32 %v4442, %v4655
  %4657 = vmatmul.bf16.gmra.mxu0 %v4047
  %v4658 = vpop.f32.mrf.mxu0
  %v4659 = vadd.f32 %v4445, %v4658
  %v4660 = vpop.f32.mrf.mxu0
  %v4661 = vadd.f32 %v4447, %v4660
  %4662 = vmatmul.bf16.gmra.mxu0 %v4050
  %v4663 = vpop.f32.mrf.mxu0
  %v4664 = vadd.f32 %v4450, %v4663
  %v4665 = vpop.f32.mrf.mxu0
  %v4666 = vadd.f32 %v4452, %v4665
  %4667 = vmatmul.bf16.gmra.mxu0 %v4053
  %v4668 = vpop.f32.mrf.mxu0
  %v4669 = vadd.f32 %v4455, %v4668
  %v4670 = vpop.f32.mrf.mxu0
  %v4671 = vadd.f32 %v4457, %v4670
  %4672 = vmatmul.bf16.gmra.mxu0 %v4056
  %v4673 = vpop.f32.mrf.mxu0
  %v4674 = vadd.f32 %v4460, %v4673
  %v4675 = vpop.f32.mrf.mxu0
  %v4676 = vadd.f32 %v4462, %v4675
  %4677 = vmatmul.bf16.gmra.mxu0 %v4059
  %v4678 = vpop.f32.mrf.mxu0
  %v4679 = vadd.f32 %v4465, %v4678
  %v4680 = vpop.f32.mrf.mxu0
  %v4681 = vadd.f32 %v4467, %v4680
  %4682 = vmatmul.bf16.gmra.mxu0 %v4062
  %v4683 = vpop.f32.mrf.mxu0
  %v4684 = vadd.f32 %v4470, %v4683
  %v4685 = vpop.f32.mrf.mxu0
  %v4686 = vadd.f32 %v4472, %v4685
  %4687 = vmatmul.bf16.gmra.mxu0 %v4065
  %v4688 = vpop.f32.mrf.mxu0
  %v4689 = vadd.f32 %v4475, %v4688
  %v4690 = vpop.f32.mrf.mxu0
  %v4691 = vadd.f32 %v4477, %v4690
  %4692 = vmatmul.bf16.gmra.mxu0 %v4068
  %v4693 = vpop.f32.mrf.mxu0
  %v4694 = vadd.f32 %v4480, %v4693
  %v4695 = vpop.f32.mrf.mxu0
  %v4696 = vadd.f32 %v4482, %v4695
  %4697 = vmatmul.bf16.gmra.mxu0 %v4071
  %v4698 = vpop.f32.mrf.mxu0
  %v4699 = vadd.f32 %v4485, %v4698
  %v4700 = vpop.f32.mrf.mxu0
  %v4701 = vadd.f32 %v4487, %v4700
  %4702 = vmatmul.bf16.gmra.mxu0 %v4074
  %v4703 = vpop.f32.mrf.mxu0
  %v4704 = vadd.f32 %v4490, %v4703
  %v4705 = vpop.f32.mrf.mxu0
  %v4706 = vadd.f32 %v4492, %v4705
  %4707 = vmatmul.bf16.gmra.mxu0 %v4077
  %v4708 = vpop.f32.mrf.mxu0
  %v4709 = vadd.f32 %v4495, %v4708
  %v4710 = vpop.f32.mrf.mxu0
  %v4711 = vadd.f32 %v4497, %v4710
  %4712 = vmatmul.bf16.gmra.mxu0 %v4080
  %v4713 = vpop.f32.mrf.mxu0
  %v4714 = vadd.f32 %v4500, %v4713
  %v4715 = vpop.f32.mrf.mxu0
  %v4716 = vadd.f32 %v4502, %v4715
  %4717 = vmatmul.bf16.gmra.mxu0 %v4083
  %v4718 = vpop.f32.mrf.mxu0
  %v4719 = vadd.f32 %v4505, %v4718
  %v4720 = vpop.f32.mrf.mxu0
  %v4721 = vadd.f32 %v4507, %v4720
  %4722 = vmatmul.bf16.gmra.mxu0 %v4086
  %v4723 = vpop.f32.mrf.mxu0
  %v4724 = vadd.f32 %v4510, %v4723
  %v4725 = vpop.f32.mrf.mxu0
  %v4726 = vadd.f32 %v4512, %v4725
  %4727 = vmatmul.bf16.gmra.mxu0 %v4089
  %v4728 = vpop.f32.mrf.mxu0
  %v4729 = vadd.f32 %v4515, %v4728
  %v4730 = vpop.f32.mrf.mxu0
  %v4731 = vadd.f32 %v4517, %v4730
  %4732 = vdwg.mxu0
  %4734 = vset.pattern.permute.xlu0 0
  %4735 = vperm.xlu0 %4734, %v33
  %v4736 = vpop.permute.xlu0 %4735
  %4739 = vset.pattern.permute.xlu0 0
  %4740 = vperm.xlu0 %4739, %v34
  %v4741 = vpop.permute.xlu0 %4740
  %4744 = vset.pattern.permute.xlu0 0
  %4745 = vperm.xlu0 %4744, %v35
  %v4746 = vpop.permute.xlu0 %4745
  %4749 = vset.pattern.permute.xlu0 0
  %4750 = vperm.xlu0 %4749, %v36
  %v4751 = vpop.permute.xlu0 %4750
  %4754 = vset.pattern.permute.xlu0 0
  %4755 = vperm.xlu0 %4754, %v37
  %v4756 = vpop.permute.xlu0 %4755
  %4759 = vset.pattern.permute.xlu0 0
  %4760 = vperm.xlu0 %4759, %v38
  %v4761 = vpop.permute.xlu0 %4760
  %4764 = vset.pattern.permute.xlu0 0
  %4765 = vperm.xlu0 %4764, %v39
  %v4766 = vpop.permute.xlu0 %4765
  %4769 = vset.pattern.permute.xlu0 0
  %4770 = vperm.xlu0 %4769, %v40
  %v4771 = vpop.permute.xlu0 %4770
  %4774 = vset.pattern.permute.xlu0 0
  %4775 = vperm.xlu0 %4774, %v41
  %v4776 = vpop.permute.xlu0 %4775
  %4779 = vset.pattern.permute.xlu0 0
  %4780 = vperm.xlu0 %4779, %v42
  %v4781 = vpop.permute.xlu0 %4780
  %4784 = vset.pattern.permute.xlu0 0
  %4785 = vperm.xlu0 %4784, %v43
  %v4786 = vpop.permute.xlu0 %4785
  %4789 = vset.pattern.permute.xlu0 0
  %4790 = vperm.xlu0 %4789, %v44
  %v4791 = vpop.permute.xlu0 %4790
  %4794 = vset.pattern.permute.xlu0 0
  %4795 = vperm.xlu0 %4794, %v45
  %v4796 = vpop.permute.xlu0 %4795
  %4799 = vset.pattern.permute.xlu0 0
  %4800 = vperm.xlu0 %4799, %v46
  %v4801 = vpop.permute.xlu0 %4800
  %4804 = vset.pattern.permute.xlu0 0
  %4805 = vperm.xlu0 %4804, %v47
  %v4806 = vpop.permute.xlu0 %4805
  %4809 = vset.pattern.permute.xlu0 0
  %4810 = vperm.xlu0 %4809, %v48
  %v4811 = vpop.permute.xlu0 %4810
  %4814 = vset.pattern.permute.xlu0 0
  %4815 = vperm.xlu0 %4814, %v49
  %v4816 = vpop.permute.xlu0 %4815
  %4819 = vset.pattern.permute.xlu0 0
  %4820 = vperm.xlu0 %4819, %v50
  %v4821 = vpop.permute.xlu0 %4820
  %4824 = vset.pattern.permute.xlu0 0
  %4825 = vperm.xlu0 %4824, %v51
  %v4826 = vpop.permute.xlu0 %4825
  %4829 = vset.pattern.permute.xlu0 0
  %4830 = vperm.xlu0 %4829, %v52
  %v4831 = vpop.permute.xlu0 %4830
  %4834 = vset.pattern.permute.xlu0 0
  %4835 = vperm.xlu0 %4834, %v53
  %v4836 = vpop.permute.xlu0 %4835
  %4839 = vset.pattern.permute.xlu0 0
  %4840 = vperm.xlu0 %4839, %v54
  %v4841 = vpop.permute.xlu0 %4840
  %4844 = vset.pattern.permute.xlu0 0
  %4845 = vperm.xlu0 %4844, %v55
  %v4846 = vpop.permute.xlu0 %4845
  %4849 = vset.pattern.permute.xlu0 0
  %4850 = vperm.xlu0 %4849, %v56
  %v4851 = vpop.permute.xlu0 %4850
  %4854 = vset.pattern.permute.xlu0 0
  %4855 = vperm.xlu0 %4854, %v57
  %v4856 = vpop.permute.xlu0 %4855
  %4859 = vset.pattern.permute.xlu0 0
  %4860 = vperm.xlu0 %4859, %v58
  %v4861 = vpop.permute.xlu0 %4860
  %4864 = vset.pattern.permute.xlu0 0
  %4865 = vperm.xlu0 %4864, %v59
  %v4866 = vpop.permute.xlu0 %4865
  %4869 = vset.pattern.permute.xlu0 0
  %4870 = vperm.xlu0 %4869, %v60
  %v4871 = vpop.permute.xlu0 %4870
  %4874 = vset.pattern.permute.xlu0 0
  %4875 = vperm.xlu0 %4874, %v61
  %v4876 = vpop.permute.xlu0 %4875
  %4879 = vset.pattern.permute.xlu0 0
  %4880 = vperm.xlu0 %4879, %v62
  %v4881 = vpop.permute.xlu0 %4880
  %4884 = vset.pattern.permute.xlu0 0
  %4885 = vperm.xlu0 %4884, %v63
  %v4886 = vpop.permute.xlu0 %4885
  %4889 = vset.pattern.permute.xlu0 0
  %4890 = vperm.xlu0 %4889, %v64
  %v4891 = vpop.permute.xlu0 %4890
  %4894 = vset.pattern.permute.xlu0 0
  %4895 = vperm.xlu0 %4894, %v65
  %v4896 = vpop.permute.xlu0 %4895
  %4899 = vset.pattern.permute.xlu0 0
  %4900 = vperm.xlu0 %4899, %v66
  %v4901 = vpop.permute.xlu0 %4900
  %4904 = vset.pattern.permute.xlu0 0
  %4905 = vperm.xlu0 %4904, %v67
  %v4906 = vpop.permute.xlu0 %4905
  %4909 = vset.pattern.permute.xlu0 0
  %4910 = vperm.xlu0 %4909, %v68
  %v4911 = vpop.permute.xlu0 %4910
  %4914 = vset.pattern.permute.xlu0 0
  %4915 = vperm.xlu0 %4914, %v69
  %v4916 = vpop.permute.xlu0 %4915
  %4919 = vset.pattern.permute.xlu0 0
  %4920 = vperm.xlu0 %4919, %v70
  %v4921 = vpop.permute.xlu0 %4920
  %4924 = vset.pattern.permute.xlu0 0
  %4925 = vperm.xlu0 %4924, %v71
  %v4926 = vpop.permute.xlu0 %4925
  %4929 = vset.pattern.permute.xlu0 0
  %4930 = vperm.xlu0 %4929, %v72
  %v4931 = vpop.permute.xlu0 %4930
  %4934 = vset.pattern.permute.xlu0 0
  %4935 = vperm.xlu0 %4934, %v73
  %v4936 = vpop.permute.xlu0 %4935
  %4939 = vset.pattern.permute.xlu0 0
  %4940 = vperm.xlu0 %4939, %v74
  %v4941 = vpop.permute.xlu0 %4940
  %4944 = vset.pattern.permute.xlu0 0
  %4945 = vperm.xlu0 %4944, %v75
  %v4946 = vpop.permute.xlu0 %4945
  %4949 = vset.pattern.permute.xlu0 0
  %4950 = vperm.xlu0 %4949, %v76
  %v4951 = vpop.permute.xlu0 %4950
  %4954 = vset.pattern.permute.xlu0 0
  %4955 = vperm.xlu0 %4954, %v77
  %v4956 = vpop.permute.xlu0 %4955
  %4959 = vset.pattern.permute.xlu0 0
  %4960 = vperm.xlu0 %4959, %v78
  %v4961 = vpop.permute.xlu0 %4960
  %4964 = vset.pattern.permute.xlu0 0
  %4965 = vperm.xlu0 %4964, %v79
  %v4966 = vpop.permute.xlu0 %4965
  %4969 = vset.pattern.permute.xlu0 0
  %4970 = vperm.xlu0 %4969, %v80
  %v4971 = vpop.permute.xlu0 %4970
  %4974 = vset.pattern.permute.xlu0 0
  %4975 = vperm.xlu0 %4974, %v81
  %v4976 = vpop.permute.xlu0 %4975
  %4979 = vset.pattern.permute.xlu0 0
  %4980 = vperm.xlu0 %4979, %v82
  %v4981 = vpop.permute.xlu0 %4980
  %4984 = vset.pattern.permute.xlu0 0
  %4985 = vperm.xlu0 %4984, %v83
  %v4986 = vpop.permute.xlu0 %4985
  %4989 = vset.pattern.permute.xlu0 0
  %4990 = vperm.xlu0 %4989, %v84
  %v4991 = vpop.permute.xlu0 %4990
  %4994 = vset.pattern.permute.xlu0 0
  %4995 = vperm.xlu0 %4994, %v85
  %v4996 = vpop.permute.xlu0 %4995
  %4999 = vset.pattern.permute.xlu0 0
  %5000 = vperm.xlu0 %4999, %v86
  %v5001 = vpop.permute.xlu0 %5000
  %5004 = vset.pattern.permute.xlu0 0
  %5005 = vperm.xlu0 %5004, %v87
  %v5006 = vpop.permute.xlu0 %5005
  %5009 = vset.pattern.permute.xlu0 0
  %5010 = vperm.xlu0 %5009, %v88
  %v5011 = vpop.permute.xlu0 %5010
  %5014 = vset.pattern.permute.xlu0 0
  %5015 = vperm.xlu0 %5014, %v89
  %v5016 = vpop.permute.xlu0 %5015
  %5019 = vset.pattern.permute.xlu0 0
  %5020 = vperm.xlu0 %5019, %v90
  %v5021 = vpop.permute.xlu0 %5020
  %5024 = vset.pattern.permute.xlu0 0
  %5025 = vperm.xlu0 %5024, %v91
  %v5026 = vpop.permute.xlu0 %5025
  %5029 = vset.pattern.permute.xlu0 0
  %5030 = vperm.xlu0 %5029, %v92
  %v5031 = vpop.permute.xlu0 %5030
  %5034 = vset.pattern.permute.xlu0 0
  %5035 = vperm.xlu0 %5034, %v93
  %v5036 = vpop.permute.xlu0 %5035
  %5039 = vset.pattern.permute.xlu0 0
  %5040 = vperm.xlu0 %5039, %v94
  %v5041 = vpop.permute.xlu0 %5040
  %5044 = vset.pattern.permute.xlu0 0
  %5045 = vperm.xlu0 %5044, %v95
  %v5046 = vpop.permute.xlu0 %5045
  %5049 = vset.pattern.permute.xlu0 0
  %5050 = vperm.xlu0 %5049, %v96
  %v5051 = vpop.permute.xlu0 %5050
  %5054 = vset.pattern.permute.xlu0 0
  %5055 = vperm.xlu0 %5054, %v97
  %v5056 = vpop.permute.xlu0 %5055
  %5059 = vset.pattern.permute.xlu0 0
  %5060 = vperm.xlu0 %5059, %v98
  %v5061 = vpop.permute.xlu0 %5060
  %5064 = vset.pattern.permute.xlu0 0
  %5065 = vperm.xlu0 %5064, %v99
  %v5066 = vpop.permute.xlu0 %5065
  %5069 = vset.pattern.permute.xlu0 0
  %5070 = vperm.xlu0 %5069, %v100
  %v5071 = vpop.permute.xlu0 %5070
  %5074 = vset.pattern.permute.xlu0 0
  %5075 = vperm.xlu0 %5074, %v101
  %v5076 = vpop.permute.xlu0 %5075
  %5079 = vset.pattern.permute.xlu0 0
  %5080 = vperm.xlu0 %5079, %v102
  %v5081 = vpop.permute.xlu0 %5080
  %5084 = vset.pattern.permute.xlu0 0
  %5085 = vperm.xlu0 %5084, %v103
  %v5086 = vpop.permute.xlu0 %5085
  %5089 = vset.pattern.permute.xlu0 0
  %5090 = vperm.xlu0 %5089, %v104
  %v5091 = vpop.permute.xlu0 %5090
  %5094 = vset.pattern.permute.xlu0 0
  %5095 = vperm.xlu0 %5094, %v105
  %v5096 = vpop.permute.xlu0 %5095
  %5099 = vset.pattern.permute.xlu0 0
  %5100 = vperm.xlu0 %5099, %v106
  %v5101 = vpop.permute.xlu0 %5100
  %5104 = vset.pattern.permute.xlu0 0
  %5105 = vperm.xlu0 %5104, %v107
  %v5106 = vpop.permute.xlu0 %5105
  %5109 = vset.pattern.permute.xlu0 0
  %5110 = vperm.xlu0 %5109, %v108
  %v5111 = vpop.permute.xlu0 %5110
  %5114 = vset.pattern.permute.xlu0 0
  %5115 = vperm.xlu0 %5114, %v109
  %v5116 = vpop.permute.xlu0 %5115
  %5119 = vset.pattern.permute.xlu0 0
  %5120 = vperm.xlu0 %5119, %v110
  %v5121 = vpop.permute.xlu0 %5120
  %5124 = vset.pattern.permute.xlu0 0
  %5125 = vperm.xlu0 %5124, %v111
  %v5126 = vpop.permute.xlu0 %5125
  %5129 = vset.pattern.permute.xlu0 0
  %5130 = vperm.xlu0 %5129, %v112
  %v5131 = vpop.permute.xlu0 %5130
  %5134 = vset.pattern.permute.xlu0 0
  %5135 = vperm.xlu0 %5134, %v113
  %v5136 = vpop.permute.xlu0 %5135
  %5139 = vset.pattern.permute.xlu0 0
  %5140 = vperm.xlu0 %5139, %v114
  %v5141 = vpop.permute.xlu0 %5140
  %v5143 = vmul.f32 %v4529, %v4736
  %v5144 = vmul.f32 %v4531, %v4741
  %v5145 = vmul.f32 %v4534, %v4746
  %v5146 = vmul.f32 %v4536, %v4751
  %v5147 = vmul.f32 %v4539, %v4756
  %v5148 = vmul.f32 %v4541, %v4761
  %v5149 = vmul.f32 %v4544, %v4766
  %v5150 = vmul.f32 %v4546, %v4771
  %v5151 = vmul.f32 %v4549, %v4776
  %v5152 = vmul.f32 %v4551, %v4781
  %v5153 = vmul.f32 %v4554, %v4786
  %v5154 = vmul.f32 %v4556, %v4791
  %v5155 = vmul.f32 %v4559, %v4796
  %v5156 = vmul.f32 %v4561, %v4801
  %v5157 = vmul.f32 %v4564, %v4806
  %v5158 = vmul.f32 %v4566, %v4811
  %v5159 = vmul.f32 %v4569, %v4816
  %v5160 = vmul.f32 %v4571, %v4821
  %v5161 = vmul.f32 %v4574, %v4826
  %v5162 = vmul.f32 %v4576, %v4831
  %v5163 = vmul.f32 %v4579, %v4836
  %v5164 = vmul.f32 %v4581, %v4841
  %v5165 = vmul.f32 %v4584, %v4846
  %v5166 = vmul.f32 %v4586, %v4851
  %v5167 = vmul.f32 %v4589, %v4856
  %v5168 = vmul.f32 %v4591, %v4861
  %v5169 = vmul.f32 %v4594, %v4866
  %v5170 = vmul.f32 %v4596, %v4871
  %v5171 = vmul.f32 %v4599, %v4876
  %v5172 = vmul.f32 %v4601, %v4881
  %v5173 = vmul.f32 %v4604, %v4886
  %v5174 = vmul.f32 %v4606, %v4891
  %v5175 = vmul.f32 %v4609, %v4896
  %v5176 = vmul.f32 %v4611, %v4901
  %v5177 = vmul.f32 %v4614, %v4906
  %v5178 = vmul.f32 %v4616, %v4911
  %v5179 = vmul.f32 %v4619, %v4916
  %v5180 = vmul.f32 %v4621, %v4921
  %v5181 = vmul.f32 %v4624, %v4926
  %v5182 = vmul.f32 %v4626, %v4931
  %v5183 = vmul.f32 %v4629, %v4936
  %v5184 = vmul.f32 %v4631, %v4941
  %v5185 = vmul.f32 %v4634, %v4946
  %v5186 = vmul.f32 %v4636, %v4951
  %v5187 = vmul.f32 %v4639, %v4956
  %v5188 = vmul.f32 %v4641, %v4961
  %v5189 = vmul.f32 %v4644, %v4966
  %v5190 = vmul.f32 %v4646, %v4971
  %v5191 = vmul.f32 %v4649, %v4976
  %v5192 = vmul.f32 %v4651, %v4981
  %v5193 = vmul.f32 %v4654, %v4986
  %v5194 = vmul.f32 %v4656, %v4991
  %v5195 = vmul.f32 %v4659, %v4996
  %v5196 = vmul.f32 %v4661, %v5001
  %v5197 = vmul.f32 %v4664, %v5006
  %v5198 = vmul.f32 %v4666, %v5011
  %v5199 = vmul.f32 %v4669, %v5016
  %v5200 = vmul.f32 %v4671, %v5021
  %v5201 = vmul.f32 %v4674, %v5026
  %v5202 = vmul.f32 %v4676, %v5031
  %v5203 = vmul.f32 %v4679, %v5036
  %v5204 = vmul.f32 %v4681, %v5041
  %v5205 = vmul.f32 %v4684, %v5046
  %v5206 = vmul.f32 %v4686, %v5051
  %v5207 = vmul.f32 %v4689, %v5056
  %v5208 = vmul.f32 %v4691, %v5061
  %v5209 = vmul.f32 %v4694, %v5066
  %v5210 = vmul.f32 %v4696, %v5071
  %v5211 = vmul.f32 %v4699, %v5076
  %v5212 = vmul.f32 %v4701, %v5081
  %v5213 = vmul.f32 %v4704, %v5086
  %v5214 = vmul.f32 %v4706, %v5091
  %v5215 = vmul.f32 %v4709, %v5096
  %v5216 = vmul.f32 %v4711, %v5101
  %v5217 = vmul.f32 %v4714, %v5106
  %v5218 = vmul.f32 %v4716, %v5111
  %v5219 = vmul.f32 %v4719, %v5116
  %v5220 = vmul.f32 %v4721, %v5121
  %v5221 = vmul.f32 %v4724, %v5126
  %v5222 = vmul.f32 %v4726, %v5131
  %v5223 = vmul.f32 %v4729, %v5136
  %v5224 = vmul.f32 %v4731, %v5141
  %v5225 = vsel %vm2144, %v5143, 0.0
  %v5226 = vsel %vm2144, %v5144, 0.0
  %v5227 = vadd.f32 %v5225, %v5226
  %v5228 = vsel %vm2144, %v5145, 0.0
  %v5229 = vadd.f32 %v5227, %v5228
  %v5230 = vsel %vm2144, %v5146, 0.0
  %v5231 = vadd.f32 %v5229, %v5230
  %v5232 = vsel %vm2144, %v5147, 0.0
  %v5233 = vadd.f32 %v5231, %v5232
  %v5234 = vsel %vm2144, %v5148, 0.0
  %v5235 = vadd.f32 %v5233, %v5234
  %v5236 = vsel %vm2144, %v5149, 0.0
  %v5237 = vadd.f32 %v5235, %v5236
  %v5238 = vsel %vm2144, %v5150, 0.0
  %v5239 = vadd.f32 %v5237, %v5238
  %v5240 = vsel %vm2144, %v5151, 0.0
  %v5241 = vadd.f32 %v5239, %v5240
  %v5242 = vsel %vm2144, %v5152, 0.0
  %v5243 = vadd.f32 %v5241, %v5242
  %v5244 = vsel %vm2144, %v5153, 0.0
  %v5245 = vadd.f32 %v5243, %v5244
  %v5246 = vsel %vm2144, %v5154, 0.0
  %v5247 = vadd.f32 %v5245, %v5246
  %v5248 = vsel %vm2144, %v5155, 0.0
  %v5249 = vadd.f32 %v5247, %v5248
  %v5250 = vsel %vm2144, %v5156, 0.0
  %v5251 = vadd.f32 %v5249, %v5250
  %v5252 = vsel %vm2144, %v5157, 0.0
  %v5253 = vadd.f32 %v5251, %v5252
  %v5254 = vsel %vm2144, %v5158, 0.0
  %v5255 = vadd.f32 %v5253, %v5254
  %v5256 = vsel %vm2144, %v5159, 0.0
  %v5257 = vadd.f32 %v5255, %v5256
  %v5258 = vsel %vm2144, %v5160, 0.0
  %v5259 = vadd.f32 %v5257, %v5258
  %v5260 = vsel %vm2144, %v5161, 0.0
  %v5261 = vadd.f32 %v5259, %v5260
  %v5262 = vsel %vm2144, %v5162, 0.0
  %v5263 = vadd.f32 %v5261, %v5262
  %v5264 = vsel %vm2144, %v5163, 0.0
  %v5265 = vadd.f32 %v5263, %v5264
  %v5266 = vsel %vm2144, %v5164, 0.0
  %v5267 = vadd.f32 %v5265, %v5266
  %v5268 = vsel %vm2144, %v5165, 0.0
  %v5269 = vadd.f32 %v5267, %v5268
  %v5270 = vsel %vm2144, %v5166, 0.0
  %v5271 = vadd.f32 %v5269, %v5270
  %v5272 = vsel %vm2144, %v5167, 0.0
  %v5273 = vadd.f32 %v5271, %v5272
  %v5274 = vsel %vm2144, %v5168, 0.0
  %v5275 = vadd.f32 %v5273, %v5274
  %v5276 = vsel %vm2144, %v5169, 0.0
  %v5277 = vadd.f32 %v5275, %v5276
  %v5278 = vsel %vm2144, %v5170, 0.0
  %v5279 = vadd.f32 %v5277, %v5278
  %v5280 = vsel %vm2144, %v5171, 0.0
  %v5281 = vadd.f32 %v5279, %v5280
  %v5282 = vsel %vm2144, %v5172, 0.0
  %v5283 = vadd.f32 %v5281, %v5282
  %v5284 = vsel %vm2144, %v5173, 0.0
  %v5285 = vadd.f32 %v5283, %v5284
  %v5286 = vsel %vm2144, %v5174, 0.0
  %v5287 = vadd.f32 %v5285, %v5286
  %v5288 = vsel %vm2144, %v5175, 0.0
  %v5289 = vadd.f32 %v5287, %v5288
  %v5290 = vsel %vm2144, %v5176, 0.0
  %v5291 = vadd.f32 %v5289, %v5290
  %v5292 = vsel %vm2144, %v5177, 0.0
  %v5293 = vadd.f32 %v5291, %v5292
  %v5294 = vsel %vm2144, %v5178, 0.0
  %v5295 = vadd.f32 %v5293, %v5294
  %v5296 = vsel %vm2144, %v5179, 0.0
  %v5297 = vadd.f32 %v5295, %v5296
  %v5298 = vsel %vm2144, %v5180, 0.0
  %v5299 = vadd.f32 %v5297, %v5298
  %v5300 = vsel %vm2144, %v5181, 0.0
  %v5301 = vadd.f32 %v5299, %v5300
  %v5302 = vsel %vm2144, %v5182, 0.0
  %v5303 = vadd.f32 %v5301, %v5302
  %v5304 = vsel %vm2144, %v5183, 0.0
  %v5305 = vadd.f32 %v5303, %v5304
  %v5306 = vsel %vm2144, %v5184, 0.0
  %v5307 = vadd.f32 %v5305, %v5306
  %v5308 = vsel %vm2144, %v5185, 0.0
  %v5309 = vadd.f32 %v5307, %v5308
  %v5310 = vsel %vm2144, %v5186, 0.0
  %v5311 = vadd.f32 %v5309, %v5310
  %v5312 = vsel %vm2144, %v5187, 0.0
  %v5313 = vadd.f32 %v5311, %v5312
  %v5314 = vsel %vm2144, %v5188, 0.0
  %v5315 = vadd.f32 %v5313, %v5314
  %v5316 = vsel %vm2144, %v5189, 0.0
  %v5317 = vadd.f32 %v5315, %v5316
  %v5318 = vsel %vm2144, %v5190, 0.0
  %v5319 = vadd.f32 %v5317, %v5318
  %v5320 = vsel %vm2144, %v5191, 0.0
  %v5321 = vadd.f32 %v5319, %v5320
  %v5322 = vsel %vm2144, %v5192, 0.0
  %v5323 = vadd.f32 %v5321, %v5322
  %v5324 = vsel %vm2144, %v5193, 0.0
  %v5325 = vadd.f32 %v5323, %v5324
  %v5326 = vsel %vm2144, %v5194, 0.0
  %v5327 = vadd.f32 %v5325, %v5326
  %v5328 = vsel %vm2144, %v5195, 0.0
  %v5329 = vadd.f32 %v5327, %v5328
  %v5330 = vsel %vm2144, %v5196, 0.0
  %v5331 = vadd.f32 %v5329, %v5330
  %v5332 = vsel %vm2144, %v5197, 0.0
  %v5333 = vadd.f32 %v5331, %v5332
  %v5334 = vsel %vm2144, %v5198, 0.0
  %v5335 = vadd.f32 %v5333, %v5334
  %v5336 = vsel %vm2144, %v5199, 0.0
  %v5337 = vadd.f32 %v5335, %v5336
  %v5338 = vsel %vm2144, %v5200, 0.0
  %v5339 = vadd.f32 %v5337, %v5338
  %v5340 = vsel %vm2144, %v5201, 0.0
  %v5341 = vadd.f32 %v5339, %v5340
  %v5342 = vsel %vm2144, %v5202, 0.0
  %v5343 = vadd.f32 %v5341, %v5342
  %v5344 = vsel %vm2144, %v5203, 0.0
  %v5345 = vadd.f32 %v5343, %v5344
  %v5346 = vsel %vm2144, %v5204, 0.0
  %v5347 = vadd.f32 %v5345, %v5346
  %v5348 = vsel %vm2144, %v5205, 0.0
  %v5349 = vadd.f32 %v5347, %v5348
  %v5350 = vsel %vm2144, %v5206, 0.0
  %v5351 = vadd.f32 %v5349, %v5350
  %v5352 = vsel %vm2144, %v5207, 0.0
  %v5353 = vadd.f32 %v5351, %v5352
  %v5354 = vsel %vm2144, %v5208, 0.0
  %v5355 = vadd.f32 %v5353, %v5354
  %v5356 = vsel %vm2144, %v5209, 0.0
  %v5357 = vadd.f32 %v5355, %v5356
  %v5358 = vsel %vm2144, %v5210, 0.0
  %v5359 = vadd.f32 %v5357, %v5358
  %v5360 = vsel %vm2144, %v5211, 0.0
  %v5361 = vadd.f32 %v5359, %v5360
  %v5362 = vsel %vm2144, %v5212, 0.0
  %v5363 = vadd.f32 %v5361, %v5362
  %v5364 = vsel %vm2144, %v5213, 0.0
  %v5365 = vadd.f32 %v5363, %v5364
  %v5366 = vsel %vm2144, %v5214, 0.0
  %v5367 = vadd.f32 %v5365, %v5366
  %v5368 = vsel %vm2144, %v5215, 0.0
  %v5369 = vadd.f32 %v5367, %v5368
  %v5370 = vsel %vm2144, %v5216, 0.0
  %v5371 = vadd.f32 %v5369, %v5370
  %v5372 = vsel %vm2144, %v5217, 0.0
  %v5373 = vadd.f32 %v5371, %v5372
  %v5374 = vsel %vm2144, %v5218, 0.0
  %v5375 = vadd.f32 %v5373, %v5374
  %v5376 = vsel %vm2144, %v5219, 0.0
  %v5377 = vadd.f32 %v5375, %v5376
  %v5378 = vsel %vm2144, %v5220, 0.0
  %v5379 = vadd.f32 %v5377, %v5378
  %v5380 = vsel %vm2144, %v5221, 0.0
  %v5381 = vadd.f32 %v5379, %v5380
  %v5382 = vsel %vm2144, %v5222, 0.0
  %v5383 = vadd.f32 %v5381, %v5382
  %v5384 = vsel %vm2144, %v5223, 0.0
  %v5385 = vadd.f32 %v5383, %v5384
  %v5386 = vsel %vm2144, %v5224, 0.0
  %v5387 = vadd.f32 %v5385, %v5386
  %v5388 = vrot.slane %v5387, 4
  %v5389 = vadd.f32 %v5387, %v5388
  %v5390 = vrot.slane %v5389, 2
  %v5391 = vadd.f32 %v5389, %v5390
  %v5392 = vrot.slane %v5391, 1
  %v5393 = vadd.f32 %v5391, %v5392
  %v5394 = vmul.f32 %v5393, 0.001953125
  %v5395 = vmul.f32 %v5143, %v5143
  %v5396 = vmul.f32 %v5144, %v5144
  %v5397 = vmul.f32 %v5145, %v5145
  %v5398 = vmul.f32 %v5146, %v5146
  %v5399 = vmul.f32 %v5147, %v5147
  %v5400 = vmul.f32 %v5148, %v5148
  %v5401 = vmul.f32 %v5149, %v5149
  %v5402 = vmul.f32 %v5150, %v5150
  %v5403 = vmul.f32 %v5151, %v5151
  %v5404 = vmul.f32 %v5152, %v5152
  %v5405 = vmul.f32 %v5153, %v5153
  %v5406 = vmul.f32 %v5154, %v5154
  %v5407 = vmul.f32 %v5155, %v5155
  %v5408 = vmul.f32 %v5156, %v5156
  %v5409 = vmul.f32 %v5157, %v5157
  %v5410 = vmul.f32 %v5158, %v5158
  %v5411 = vmul.f32 %v5159, %v5159
  %v5412 = vmul.f32 %v5160, %v5160
  %v5413 = vmul.f32 %v5161, %v5161
  %v5414 = vmul.f32 %v5162, %v5162
  %v5415 = vmul.f32 %v5163, %v5163
  %v5416 = vmul.f32 %v5164, %v5164
  %v5417 = vmul.f32 %v5165, %v5165
  %v5418 = vmul.f32 %v5166, %v5166
  %v5419 = vmul.f32 %v5167, %v5167
  %v5420 = vmul.f32 %v5168, %v5168
  %v5421 = vmul.f32 %v5169, %v5169
  %v5422 = vmul.f32 %v5170, %v5170
  %v5423 = vmul.f32 %v5171, %v5171
  %v5424 = vmul.f32 %v5172, %v5172
  %v5425 = vmul.f32 %v5173, %v5173
  %v5426 = vmul.f32 %v5174, %v5174
  %v5427 = vmul.f32 %v5175, %v5175
  %v5428 = vmul.f32 %v5176, %v5176
  %v5429 = vmul.f32 %v5177, %v5177
  %v5430 = vmul.f32 %v5178, %v5178
  %v5431 = vmul.f32 %v5179, %v5179
  %v5432 = vmul.f32 %v5180, %v5180
  %v5433 = vmul.f32 %v5181, %v5181
  %v5434 = vmul.f32 %v5182, %v5182
  %v5435 = vmul.f32 %v5183, %v5183
  %v5436 = vmul.f32 %v5184, %v5184
  %v5437 = vmul.f32 %v5185, %v5185
  %v5438 = vmul.f32 %v5186, %v5186
  %v5439 = vmul.f32 %v5187, %v5187
  %v5440 = vmul.f32 %v5188, %v5188
  %v5441 = vmul.f32 %v5189, %v5189
  %v5442 = vmul.f32 %v5190, %v5190
  %v5443 = vmul.f32 %v5191, %v5191
  %v5444 = vmul.f32 %v5192, %v5192
  %v5445 = vmul.f32 %v5193, %v5193
  %v5446 = vmul.f32 %v5194, %v5194
  %v5447 = vmul.f32 %v5195, %v5195
  %v5448 = vmul.f32 %v5196, %v5196
  %v5449 = vmul.f32 %v5197, %v5197
  %v5450 = vmul.f32 %v5198, %v5198
  %v5451 = vmul.f32 %v5199, %v5199
  %v5452 = vmul.f32 %v5200, %v5200
  %v5453 = vmul.f32 %v5201, %v5201
  %v5454 = vmul.f32 %v5202, %v5202
  %v5455 = vmul.f32 %v5203, %v5203
  %v5456 = vmul.f32 %v5204, %v5204
  %v5457 = vmul.f32 %v5205, %v5205
  %v5458 = vmul.f32 %v5206, %v5206
  %v5459 = vmul.f32 %v5207, %v5207
  %v5460 = vmul.f32 %v5208, %v5208
  %v5461 = vmul.f32 %v5209, %v5209
  %v5462 = vmul.f32 %v5210, %v5210
  %v5463 = vmul.f32 %v5211, %v5211
  %v5464 = vmul.f32 %v5212, %v5212
  %v5465 = vmul.f32 %v5213, %v5213
  %v5466 = vmul.f32 %v5214, %v5214
  %v5467 = vmul.f32 %v5215, %v5215
  %v5468 = vmul.f32 %v5216, %v5216
  %v5469 = vmul.f32 %v5217, %v5217
  %v5470 = vmul.f32 %v5218, %v5218
  %v5471 = vmul.f32 %v5219, %v5219
  %v5472 = vmul.f32 %v5220, %v5220
  %v5473 = vmul.f32 %v5221, %v5221
  %v5474 = vmul.f32 %v5222, %v5222
  %v5475 = vmul.f32 %v5223, %v5223
  %v5476 = vmul.f32 %v5224, %v5224
  %v5477 = vsel %vm2144, %v5395, 0.0
  %v5478 = vsel %vm2144, %v5396, 0.0
  %v5479 = vadd.f32 %v5477, %v5478
  %v5480 = vsel %vm2144, %v5397, 0.0
  %v5481 = vadd.f32 %v5479, %v5480
  %v5482 = vsel %vm2144, %v5398, 0.0
  %v5483 = vadd.f32 %v5481, %v5482
  %v5484 = vsel %vm2144, %v5399, 0.0
  %v5485 = vadd.f32 %v5483, %v5484
  %v5486 = vsel %vm2144, %v5400, 0.0
  %v5487 = vadd.f32 %v5485, %v5486
  %v5488 = vsel %vm2144, %v5401, 0.0
  %v5489 = vadd.f32 %v5487, %v5488
  %v5490 = vsel %vm2144, %v5402, 0.0
  %v5491 = vadd.f32 %v5489, %v5490
  %v5492 = vsel %vm2144, %v5403, 0.0
  %v5493 = vadd.f32 %v5491, %v5492
  %v5494 = vsel %vm2144, %v5404, 0.0
  %v5495 = vadd.f32 %v5493, %v5494
  %v5496 = vsel %vm2144, %v5405, 0.0
  %v5497 = vadd.f32 %v5495, %v5496
  %v5498 = vsel %vm2144, %v5406, 0.0
  %v5499 = vadd.f32 %v5497, %v5498
  %v5500 = vsel %vm2144, %v5407, 0.0
  %v5501 = vadd.f32 %v5499, %v5500
  %v5502 = vsel %vm2144, %v5408, 0.0
  %v5503 = vadd.f32 %v5501, %v5502
  %v5504 = vsel %vm2144, %v5409, 0.0
  %v5505 = vadd.f32 %v5503, %v5504
  %v5506 = vsel %vm2144, %v5410, 0.0
  %v5507 = vadd.f32 %v5505, %v5506
  %v5508 = vsel %vm2144, %v5411, 0.0
  %v5509 = vadd.f32 %v5507, %v5508
  %v5510 = vsel %vm2144, %v5412, 0.0
  %v5511 = vadd.f32 %v5509, %v5510
  %v5512 = vsel %vm2144, %v5413, 0.0
  %v5513 = vadd.f32 %v5511, %v5512
  %v5514 = vsel %vm2144, %v5414, 0.0
  %v5515 = vadd.f32 %v5513, %v5514
  %v5516 = vsel %vm2144, %v5415, 0.0
  %v5517 = vadd.f32 %v5515, %v5516
  %v5518 = vsel %vm2144, %v5416, 0.0
  %v5519 = vadd.f32 %v5517, %v5518
  %v5520 = vsel %vm2144, %v5417, 0.0
  %v5521 = vadd.f32 %v5519, %v5520
  %v5522 = vsel %vm2144, %v5418, 0.0
  %v5523 = vadd.f32 %v5521, %v5522
  %v5524 = vsel %vm2144, %v5419, 0.0
  %v5525 = vadd.f32 %v5523, %v5524
  %v5526 = vsel %vm2144, %v5420, 0.0
  %v5527 = vadd.f32 %v5525, %v5526
  %v5528 = vsel %vm2144, %v5421, 0.0
  %v5529 = vadd.f32 %v5527, %v5528
  %v5530 = vsel %vm2144, %v5422, 0.0
  %v5531 = vadd.f32 %v5529, %v5530
  %v5532 = vsel %vm2144, %v5423, 0.0
  %v5533 = vadd.f32 %v5531, %v5532
  %v5534 = vsel %vm2144, %v5424, 0.0
  %v5535 = vadd.f32 %v5533, %v5534
  %v5536 = vsel %vm2144, %v5425, 0.0
  %v5537 = vadd.f32 %v5535, %v5536
  %v5538 = vsel %vm2144, %v5426, 0.0
  %v5539 = vadd.f32 %v5537, %v5538
  %v5540 = vsel %vm2144, %v5427, 0.0
  %v5541 = vadd.f32 %v5539, %v5540
  %v5542 = vsel %vm2144, %v5428, 0.0
  %v5543 = vadd.f32 %v5541, %v5542
  %v5544 = vsel %vm2144, %v5429, 0.0
  %v5545 = vadd.f32 %v5543, %v5544
  %v5546 = vsel %vm2144, %v5430, 0.0
  %v5547 = vadd.f32 %v5545, %v5546
  %v5548 = vsel %vm2144, %v5431, 0.0
  %v5549 = vadd.f32 %v5547, %v5548
  %v5550 = vsel %vm2144, %v5432, 0.0
  %v5551 = vadd.f32 %v5549, %v5550
  %v5552 = vsel %vm2144, %v5433, 0.0
  %v5553 = vadd.f32 %v5551, %v5552
  %v5554 = vsel %vm2144, %v5434, 0.0
  %v5555 = vadd.f32 %v5553, %v5554
  %v5556 = vsel %vm2144, %v5435, 0.0
  %v5557 = vadd.f32 %v5555, %v5556
  %v5558 = vsel %vm2144, %v5436, 0.0
  %v5559 = vadd.f32 %v5557, %v5558
  %v5560 = vsel %vm2144, %v5437, 0.0
  %v5561 = vadd.f32 %v5559, %v5560
  %v5562 = vsel %vm2144, %v5438, 0.0
  %v5563 = vadd.f32 %v5561, %v5562
  %v5564 = vsel %vm2144, %v5439, 0.0
  %v5565 = vadd.f32 %v5563, %v5564
  %v5566 = vsel %vm2144, %v5440, 0.0
  %v5567 = vadd.f32 %v5565, %v5566
  %v5568 = vsel %vm2144, %v5441, 0.0
  %v5569 = vadd.f32 %v5567, %v5568
  %v5570 = vsel %vm2144, %v5442, 0.0
  %v5571 = vadd.f32 %v5569, %v5570
  %v5572 = vsel %vm2144, %v5443, 0.0
  %v5573 = vadd.f32 %v5571, %v5572
  %v5574 = vsel %vm2144, %v5444, 0.0
  %v5575 = vadd.f32 %v5573, %v5574
  %v5576 = vsel %vm2144, %v5445, 0.0
  %v5577 = vadd.f32 %v5575, %v5576
  %v5578 = vsel %vm2144, %v5446, 0.0
  %v5579 = vadd.f32 %v5577, %v5578
  %v5580 = vsel %vm2144, %v5447, 0.0
  %v5581 = vadd.f32 %v5579, %v5580
  %v5582 = vsel %vm2144, %v5448, 0.0
  %v5583 = vadd.f32 %v5581, %v5582
  %v5584 = vsel %vm2144, %v5449, 0.0
  %v5585 = vadd.f32 %v5583, %v5584
  %v5586 = vsel %vm2144, %v5450, 0.0
  %v5587 = vadd.f32 %v5585, %v5586
  %v5588 = vsel %vm2144, %v5451, 0.0
  %v5589 = vadd.f32 %v5587, %v5588
  %v5590 = vsel %vm2144, %v5452, 0.0
  %v5591 = vadd.f32 %v5589, %v5590
  %v5592 = vsel %vm2144, %v5453, 0.0
  %v5593 = vadd.f32 %v5591, %v5592
  %v5594 = vsel %vm2144, %v5454, 0.0
  %v5595 = vadd.f32 %v5593, %v5594
  %v5596 = vsel %vm2144, %v5455, 0.0
  %v5597 = vadd.f32 %v5595, %v5596
  %v5598 = vsel %vm2144, %v5456, 0.0
  %v5599 = vadd.f32 %v5597, %v5598
  %v5600 = vsel %vm2144, %v5457, 0.0
  %v5601 = vadd.f32 %v5599, %v5600
  %v5602 = vsel %vm2144, %v5458, 0.0
  %v5603 = vadd.f32 %v5601, %v5602
  %v5604 = vsel %vm2144, %v5459, 0.0
  %v5605 = vadd.f32 %v5603, %v5604
  %v5606 = vsel %vm2144, %v5460, 0.0
  %v5607 = vadd.f32 %v5605, %v5606
  %v5608 = vsel %vm2144, %v5461, 0.0
  %v5609 = vadd.f32 %v5607, %v5608
  %v5610 = vsel %vm2144, %v5462, 0.0
  %v5611 = vadd.f32 %v5609, %v5610
  %v5612 = vsel %vm2144, %v5463, 0.0
  %v5613 = vadd.f32 %v5611, %v5612
  %v5614 = vsel %vm2144, %v5464, 0.0
  %v5615 = vadd.f32 %v5613, %v5614
  %v5616 = vsel %vm2144, %v5465, 0.0
  %v5617 = vadd.f32 %v5615, %v5616
  %v5618 = vsel %vm2144, %v5466, 0.0
  %v5619 = vadd.f32 %v5617, %v5618
  %v5620 = vsel %vm2144, %v5467, 0.0
  %v5621 = vadd.f32 %v5619, %v5620
  %v5622 = vsel %vm2144, %v5468, 0.0
  %v5623 = vadd.f32 %v5621, %v5622
  %v5624 = vsel %vm2144, %v5469, 0.0
  %v5625 = vadd.f32 %v5623, %v5624
  %v5626 = vsel %vm2144, %v5470, 0.0
  %v5627 = vadd.f32 %v5625, %v5626
  %v5628 = vsel %vm2144, %v5471, 0.0
  %v5629 = vadd.f32 %v5627, %v5628
  %v5630 = vsel %vm2144, %v5472, 0.0
  %v5631 = vadd.f32 %v5629, %v5630
  %v5632 = vsel %vm2144, %v5473, 0.0
  %v5633 = vadd.f32 %v5631, %v5632
  %v5634 = vsel %vm2144, %v5474, 0.0
  %v5635 = vadd.f32 %v5633, %v5634
  %v5636 = vsel %vm2144, %v5475, 0.0
  %v5637 = vadd.f32 %v5635, %v5636
  %v5638 = vsel %vm2144, %v5476, 0.0
  %v5639 = vadd.f32 %v5637, %v5638
  %v5640 = vrot.slane %v5639, 4
  %v5641 = vadd.f32 %v5639, %v5640
  %v5642 = vrot.slane %v5641, 2
  %v5643 = vadd.f32 %v5641, %v5642
  %v5644 = vrot.slane %v5643, 1
  %v5645 = vadd.f32 %v5643, %v5644
  %v5646 = vmul.f32 %v5645, 0.001953125
  %v5647 = vmul.f32 %v5394, %v5394
  %v5648 = vsub.f32 %v5646, %v5647
  %v5649 = vsub.f32 %v4529, %v5394
  %v5650 = vsub.f32 %v4531, %v5394
  %v5651 = vsub.f32 %v4534, %v5394
  %v5652 = vsub.f32 %v4536, %v5394
  %v5653 = vsub.f32 %v4539, %v5394
  %v5654 = vsub.f32 %v4541, %v5394
  %v5655 = vsub.f32 %v4544, %v5394
  %v5656 = vsub.f32 %v4546, %v5394
  %v5657 = vsub.f32 %v4549, %v5394
  %v5658 = vsub.f32 %v4551, %v5394
  %v5659 = vsub.f32 %v4554, %v5394
  %v5660 = vsub.f32 %v4556, %v5394
  %v5661 = vsub.f32 %v4559, %v5394
  %v5662 = vsub.f32 %v4561, %v5394
  %v5663 = vsub.f32 %v4564, %v5394
  %v5664 = vsub.f32 %v4566, %v5394
  %v5665 = vsub.f32 %v4569, %v5394
  %v5666 = vsub.f32 %v4571, %v5394
  %v5667 = vsub.f32 %v4574, %v5394
  %v5668 = vsub.f32 %v4576, %v5394
  %v5669 = vsub.f32 %v4579, %v5394
  %v5670 = vsub.f32 %v4581, %v5394
  %v5671 = vsub.f32 %v4584, %v5394
  %v5672 = vsub.f32 %v4586, %v5394
  %v5673 = vsub.f32 %v4589, %v5394
  %v5674 = vsub.f32 %v4591, %v5394
  %v5675 = vsub.f32 %v4594, %v5394
  %v5676 = vsub.f32 %v4596, %v5394
  %v5677 = vsub.f32 %v4599, %v5394
  %v5678 = vsub.f32 %v4601, %v5394
  %v5679 = vsub.f32 %v4604, %v5394
  %v5680 = vsub.f32 %v4606, %v5394
  %v5681 = vsub.f32 %v4609, %v5394
  %v5682 = vsub.f32 %v4611, %v5394
  %v5683 = vsub.f32 %v4614, %v5394
  %v5684 = vsub.f32 %v4616, %v5394
  %v5685 = vsub.f32 %v4619, %v5394
  %v5686 = vsub.f32 %v4621, %v5394
  %v5687 = vsub.f32 %v4624, %v5394
  %v5688 = vsub.f32 %v4626, %v5394
  %v5689 = vsub.f32 %v4629, %v5394
  %v5690 = vsub.f32 %v4631, %v5394
  %v5691 = vsub.f32 %v4634, %v5394
  %v5692 = vsub.f32 %v4636, %v5394
  %v5693 = vsub.f32 %v4639, %v5394
  %v5694 = vsub.f32 %v4641, %v5394
  %v5695 = vsub.f32 %v4644, %v5394
  %v5696 = vsub.f32 %v4646, %v5394
  %v5697 = vsub.f32 %v4649, %v5394
  %v5698 = vsub.f32 %v4651, %v5394
  %v5699 = vsub.f32 %v4654, %v5394
  %v5700 = vsub.f32 %v4656, %v5394
  %v5701 = vsub.f32 %v4659, %v5394
  %v5702 = vsub.f32 %v4661, %v5394
  %v5703 = vsub.f32 %v4664, %v5394
  %v5704 = vsub.f32 %v4666, %v5394
  %v5705 = vsub.f32 %v4669, %v5394
  %v5706 = vsub.f32 %v4671, %v5394
  %v5707 = vsub.f32 %v4674, %v5394
  %v5708 = vsub.f32 %v4676, %v5394
  %v5709 = vsub.f32 %v4679, %v5394
  %v5710 = vsub.f32 %v4681, %v5394
  %v5711 = vsub.f32 %v4684, %v5394
  %v5712 = vsub.f32 %v4686, %v5394
  %v5713 = vsub.f32 %v4689, %v5394
  %v5714 = vsub.f32 %v4691, %v5394
  %v5715 = vsub.f32 %v4694, %v5394
  %v5716 = vsub.f32 %v4696, %v5394
  %v5717 = vsub.f32 %v4699, %v5394
  %v5718 = vsub.f32 %v4701, %v5394
  %v5719 = vsub.f32 %v4704, %v5394
  %v5720 = vsub.f32 %v4706, %v5394
  %v5721 = vsub.f32 %v4709, %v5394
  %v5722 = vsub.f32 %v4711, %v5394
  %v5723 = vsub.f32 %v4714, %v5394
  %v5724 = vsub.f32 %v4716, %v5394
  %v5725 = vsub.f32 %v4719, %v5394
  %v5726 = vsub.f32 %v4721, %v5394
  %v5727 = vsub.f32 %v4724, %v5394
  %v5728 = vsub.f32 %v4726, %v5394
  %v5729 = vsub.f32 %v4729, %v5394
  %v5730 = vsub.f32 %v4731, %v5394
  %v5731 = vadd.f32 %v5648, 1e-05
  %v5732 = vrsqrt.pop %v5731
  %v5733 = vmul.f32 %v5732, %v5731
  %v5734 = vmul.f32 %v5733, %v5732
  %v5735 = vmul.f32 0.5, %v5734
  %v5736 = vsub.f32 1.5, %v5735
  %v5737 = vmul.f32 %v5732, %v5736
  %vm5738 = vweird.f32 %v5731
  %vm5739 = vweird.f32 %v5732
  %vm5740 = vmor %vm5738, %vm5739
  %v5741 = vsel %vm5740, %v5732, %v5737
  %v5742 = vmul.f32 %v5649, %v5741
  %v5743 = vmul.f32 %v5650, %v5741
  %v5744 = vmul.f32 %v5651, %v5741
  %v5745 = vmul.f32 %v5652, %v5741
  %v5746 = vmul.f32 %v5653, %v5741
  %v5747 = vmul.f32 %v5654, %v5741
  %v5748 = vmul.f32 %v5655, %v5741
  %v5749 = vmul.f32 %v5656, %v5741
  %v5750 = vmul.f32 %v5657, %v5741
  %v5751 = vmul.f32 %v5658, %v5741
  %v5752 = vmul.f32 %v5659, %v5741
  %v5753 = vmul.f32 %v5660, %v5741
  %v5754 = vmul.f32 %v5661, %v5741
  %v5755 = vmul.f32 %v5662, %v5741
  %v5756 = vmul.f32 %v5663, %v5741
  %v5757 = vmul.f32 %v5664, %v5741
  %v5758 = vmul.f32 %v5665, %v5741
  %v5759 = vmul.f32 %v5666, %v5741
  %v5760 = vmul.f32 %v5667, %v5741
  %v5761 = vmul.f32 %v5668, %v5741
  %v5762 = vmul.f32 %v5669, %v5741
  %v5763 = vmul.f32 %v5670, %v5741
  %v5764 = vmul.f32 %v5671, %v5741
  %v5765 = vmul.f32 %v5672, %v5741
  %v5766 = vmul.f32 %v5673, %v5741
  %v5767 = vmul.f32 %v5674, %v5741
  %v5768 = vmul.f32 %v5675, %v5741
  %v5769 = vmul.f32 %v5676, %v5741
  %v5770 = vmul.f32 %v5677, %v5741
  %v5771 = vmul.f32 %v5678, %v5741
  %v5772 = vmul.f32 %v5679, %v5741
  %v5773 = vmul.f32 %v5680, %v5741
  %v5774 = vmul.f32 %v5681, %v5741
  %v5775 = vmul.f32 %v5682, %v5741
  %v5776 = vmul.f32 %v5683, %v5741
  %v5777 = vmul.f32 %v5684, %v5741
  %v5778 = vmul.f32 %v5685, %v5741
  %v5779 = vmul.f32 %v5686, %v5741
  %v5780 = vmul.f32 %v5687, %v5741
  %v5781 = vmul.f32 %v5688, %v5741
  %v5782 = vmul.f32 %v5689, %v5741
  %v5783 = vmul.f32 %v5690, %v5741
  %v5784 = vmul.f32 %v5691, %v5741
  %v5785 = vmul.f32 %v5692, %v5741
  %v5786 = vmul.f32 %v5693, %v5741
  %v5787 = vmul.f32 %v5694, %v5741
  %v5788 = vmul.f32 %v5695, %v5741
  %v5789 = vmul.f32 %v5696, %v5741
  %v5790 = vmul.f32 %v5697, %v5741
  %v5791 = vmul.f32 %v5698, %v5741
  %v5792 = vmul.f32 %v5699, %v5741
  %v5793 = vmul.f32 %v5700, %v5741
  %v5794 = vmul.f32 %v5701, %v5741
  %v5795 = vmul.f32 %v5702, %v5741
  %v5796 = vmul.f32 %v5703, %v5741
  %v5797 = vmul.f32 %v5704, %v5741
  %v5798 = vmul.f32 %v5705, %v5741
  %v5799 = vmul.f32 %v5706, %v5741
  %v5800 = vmul.f32 %v5707, %v5741
  %v5801 = vmul.f32 %v5708, %v5741
  %v5802 = vmul.f32 %v5709, %v5741
  %v5803 = vmul.f32 %v5710, %v5741
  %v5804 = vmul.f32 %v5711, %v5741
  %v5805 = vmul.f32 %v5712, %v5741
  %v5806 = vmul.f32 %v5713, %v5741
  %v5807 = vmul.f32 %v5714, %v5741
  %v5808 = vmul.f32 %v5715, %v5741
  %v5809 = vmul.f32 %v5716, %v5741
  %v5810 = vmul.f32 %v5717, %v5741
  %v5811 = vmul.f32 %v5718, %v5741
  %v5812 = vmul.f32 %v5719, %v5741
  %v5813 = vmul.f32 %v5720, %v5741
  %v5814 = vmul.f32 %v5721, %v5741
  %v5815 = vmul.f32 %v5722, %v5741
  %v5816 = vmul.f32 %v5723, %v5741
  %v5817 = vmul.f32 %v5724, %v5741
  %v5818 = vmul.f32 %v5725, %v5741
  %v5819 = vmul.f32 %v5726, %v5741
  %v5820 = vmul.f32 %v5727, %v5741
  %v5821 = vmul.f32 %v5728, %v5741
  %v5822 = vmul.f32 %v5729, %v5741
  %v5823 = vmul.f32 %v5730, %v5741
  %v5824 = vld [vmem:[%s4] sm:$0x1]
  %v5826 = vperm.slane %v5824, 0
  %v5828 = vmul.f32 %v5742, %v5826
  %v5829 = vmul.f32 %v5743, %v5826
  %v5830 = vmul.f32 %v5744, %v5826
  %v5831 = vmul.f32 %v5745, %v5826
  %v5832 = vmul.f32 %v5746, %v5826
  %v5833 = vmul.f32 %v5747, %v5826
  %v5834 = vmul.f32 %v5748, %v5826
  %v5835 = vmul.f32 %v5749, %v5826
  %v5836 = vmul.f32 %v5750, %v5826
  %v5837 = vmul.f32 %v5751, %v5826
  %v5838 = vmul.f32 %v5752, %v5826
  %v5839 = vmul.f32 %v5753, %v5826
  %v5840 = vmul.f32 %v5754, %v5826
  %v5841 = vmul.f32 %v5755, %v5826
  %v5842 = vmul.f32 %v5756, %v5826
  %v5843 = vmul.f32 %v5757, %v5826
  %v5844 = vmul.f32 %v5758, %v5826
  %v5845 = vmul.f32 %v5759, %v5826
  %v5846 = vmul.f32 %v5760, %v5826
  %v5847 = vmul.f32 %v5761, %v5826
  %v5848 = vmul.f32 %v5762, %v5826
  %v5849 = vmul.f32 %v5763, %v5826
  %v5850 = vmul.f32 %v5764, %v5826
  %v5851 = vmul.f32 %v5765, %v5826
  %v5852 = vmul.f32 %v5766, %v5826
  %v5853 = vmul.f32 %v5767, %v5826
  %v5854 = vmul.f32 %v5768, %v5826
  %v5855 = vmul.f32 %v5769, %v5826
  %v5856 = vmul.f32 %v5770, %v5826
  %v5857 = vmul.f32 %v5771, %v5826
  %v5858 = vmul.f32 %v5772, %v5826
  %v5859 = vmul.f32 %v5773, %v5826
  %v5860 = vmul.f32 %v5774, %v5826
  %v5861 = vmul.f32 %v5775, %v5826
  %v5862 = vmul.f32 %v5776, %v5826
  %v5863 = vmul.f32 %v5777, %v5826
  %v5864 = vmul.f32 %v5778, %v5826
  %v5865 = vmul.f32 %v5779, %v5826
  %v5866 = vmul.f32 %v5780, %v5826
  %v5867 = vmul.f32 %v5781, %v5826
  %v5868 = vmul.f32 %v5782, %v5826
  %v5869 = vmul.f32 %v5783, %v5826
  %v5870 = vmul.f32 %v5784, %v5826
  %v5871 = vmul.f32 %v5785, %v5826
  %v5872 = vmul.f32 %v5786, %v5826
  %v5873 = vmul.f32 %v5787, %v5826
  %v5874 = vmul.f32 %v5788, %v5826
  %v5875 = vmul.f32 %v5789, %v5826
  %v5876 = vmul.f32 %v5790, %v5826
  %v5877 = vmul.f32 %v5791, %v5826
  %v5878 = vmul.f32 %v5792, %v5826
  %v5879 = vmul.f32 %v5793, %v5826
  %v5880 = vmul.f32 %v5794, %v5826
  %v5881 = vmul.f32 %v5795, %v5826
  %v5882 = vmul.f32 %v5796, %v5826
  %v5883 = vmul.f32 %v5797, %v5826
  %v5884 = vmul.f32 %v5798, %v5826
  %v5885 = vmul.f32 %v5799, %v5826
  %v5886 = vmul.f32 %v5800, %v5826
  %v5887 = vmul.f32 %v5801, %v5826
  %v5888 = vmul.f32 %v5802, %v5826
  %v5889 = vmul.f32 %v5803, %v5826
  %v5890 = vmul.f32 %v5804, %v5826
  %v5891 = vmul.f32 %v5805, %v5826
  %v5892 = vmul.f32 %v5806, %v5826
  %v5893 = vmul.f32 %v5807, %v5826
  %v5894 = vmul.f32 %v5808, %v5826
  %v5895 = vmul.f32 %v5809, %v5826
  %v5896 = vmul.f32 %v5810, %v5826
  %v5897 = vmul.f32 %v5811, %v5826
  %v5898 = vmul.f32 %v5812, %v5826
  %v5899 = vmul.f32 %v5813, %v5826
  %v5900 = vmul.f32 %v5814, %v5826
  %v5901 = vmul.f32 %v5815, %v5826
  %v5902 = vmul.f32 %v5816, %v5826
  %v5903 = vmul.f32 %v5817, %v5826
  %v5904 = vmul.f32 %v5818, %v5826
  %v5905 = vmul.f32 %v5819, %v5826
  %v5906 = vmul.f32 %v5820, %v5826
  %v5907 = vmul.f32 %v5821, %v5826
  %v5908 = vmul.f32 %v5822, %v5826
  %v5909 = vmul.f32 %v5823, %v5826
  %v5910 = vld [vmem:[%s5] sm:$0x1]
  %v5912 = vperm.slane %v5910, 0
  %v5914 = vadd.f32 %v5828, %v5912
  %v5915 = vadd.f32 %v5829, %v5912
  %v5916 = vadd.f32 %v5830, %v5912
  %v5917 = vadd.f32 %v5831, %v5912
  %v5918 = vadd.f32 %v5832, %v5912
  %v5919 = vadd.f32 %v5833, %v5912
  %v5920 = vadd.f32 %v5834, %v5912
  %v5921 = vadd.f32 %v5835, %v5912
  %v5922 = vadd.f32 %v5836, %v5912
  %v5923 = vadd.f32 %v5837, %v5912
  %v5924 = vadd.f32 %v5838, %v5912
  %v5925 = vadd.f32 %v5839, %v5912
  %v5926 = vadd.f32 %v5840, %v5912
  %v5927 = vadd.f32 %v5841, %v5912
  %v5928 = vadd.f32 %v5842, %v5912
  %v5929 = vadd.f32 %v5843, %v5912
  %v5930 = vadd.f32 %v5844, %v5912
  %v5931 = vadd.f32 %v5845, %v5912
  %v5932 = vadd.f32 %v5846, %v5912
  %v5933 = vadd.f32 %v5847, %v5912
  %v5934 = vadd.f32 %v5848, %v5912
  %v5935 = vadd.f32 %v5849, %v5912
  %v5936 = vadd.f32 %v5850, %v5912
  %v5937 = vadd.f32 %v5851, %v5912
  %v5938 = vadd.f32 %v5852, %v5912
  %v5939 = vadd.f32 %v5853, %v5912
  %v5940 = vadd.f32 %v5854, %v5912
  %v5941 = vadd.f32 %v5855, %v5912
  %v5942 = vadd.f32 %v5856, %v5912
  %v5943 = vadd.f32 %v5857, %v5912
  %v5944 = vadd.f32 %v5858, %v5912
  %v5945 = vadd.f32 %v5859, %v5912
  %v5946 = vadd.f32 %v5860, %v5912
  %v5947 = vadd.f32 %v5861, %v5912
  %v5948 = vadd.f32 %v5862, %v5912
  %v5949 = vadd.f32 %v5863, %v5912
  %v5950 = vadd.f32 %v5864, %v5912
  %v5951 = vadd.f32 %v5865, %v5912
  %v5952 = vadd.f32 %v5866, %v5912
  %v5953 = vadd.f32 %v5867, %v5912
  %v5954 = vadd.f32 %v5868, %v5912
  %v5955 = vadd.f32 %v5869, %v5912
  %v5956 = vadd.f32 %v5870, %v5912
  %v5957 = vadd.f32 %v5871, %v5912
  %v5958 = vadd.f32 %v5872, %v5912
  %v5959 = vadd.f32 %v5873, %v5912
  %v5960 = vadd.f32 %v5874, %v5912
  %v5961 = vadd.f32 %v5875, %v5912
  %v5962 = vadd.f32 %v5876, %v5912
  %v5963 = vadd.f32 %v5877, %v5912
  %v5964 = vadd.f32 %v5878, %v5912
  %v5965 = vadd.f32 %v5879, %v5912
  %v5966 = vadd.f32 %v5880, %v5912
  %v5967 = vadd.f32 %v5881, %v5912
  %v5968 = vadd.f32 %v5882, %v5912
  %v5969 = vadd.f32 %v5883, %v5912
  %v5970 = vadd.f32 %v5884, %v5912
  %v5971 = vadd.f32 %v5885, %v5912
  %v5972 = vadd.f32 %v5886, %v5912
  %v5973 = vadd.f32 %v5887, %v5912
  %v5974 = vadd.f32 %v5888, %v5912
  %v5975 = vadd.f32 %v5889, %v5912
  %v5976 = vadd.f32 %v5890, %v5912
  %v5977 = vadd.f32 %v5891, %v5912
  %v5978 = vadd.f32 %v5892, %v5912
  %v5979 = vadd.f32 %v5893, %v5912
  %v5980 = vadd.f32 %v5894, %v5912
  %v5981 = vadd.f32 %v5895, %v5912
  %v5982 = vadd.f32 %v5896, %v5912
  %v5983 = vadd.f32 %v5897, %v5912
  %v5984 = vadd.f32 %v5898, %v5912
  %v5985 = vadd.f32 %v5899, %v5912
  %v5986 = vadd.f32 %v5900, %v5912
  %v5987 = vadd.f32 %v5901, %v5912
  %v5988 = vadd.f32 %v5902, %v5912
  %v5989 = vadd.f32 %v5903, %v5912
  %v5990 = vadd.f32 %v5904, %v5912
  %v5991 = vadd.f32 %v5905, %v5912
  %v5992 = vadd.f32 %v5906, %v5912
  %v5993 = vadd.f32 %v5907, %v5912
  %v5994 = vadd.f32 %v5908, %v5912
  %v5995 = vadd.f32 %v5909, %v5912
  %v5996 = vmax.f32 %v5914, 0.0
  %v5997 = vmax.f32 %v5915, 0.0
  %v5998 = vmax.f32 %v5916, 0.0
  %v5999 = vmax.f32 %v5917, 0.0
  %v6000 = vmax.f32 %v5918, 0.0
  %v6001 = vmax.f32 %v5919, 0.0
  %v6002 = vmax.f32 %v5920, 0.0
  %v6003 = vmax.f32 %v5921, 0.0
  %v6004 = vmax.f32 %v5922, 0.0
  %v6005 = vmax.f32 %v5923, 0.0
  %v6006 = vmax.f32 %v5924, 0.0
  %v6007 = vmax.f32 %v5925, 0.0
  %v6008 = vmax.f32 %v5926, 0.0
  %v6009 = vmax.f32 %v5927, 0.0
  %v6010 = vmax.f32 %v5928, 0.0
  %v6011 = vmax.f32 %v5929, 0.0
  %v6012 = vmax.f32 %v5930, 0.0
  %v6013 = vmax.f32 %v5931, 0.0
  %v6014 = vmax.f32 %v5932, 0.0
  %v6015 = vmax.f32 %v5933, 0.0
  %v6016 = vmax.f32 %v5934, 0.0
  %v6017 = vmax.f32 %v5935, 0.0
  %v6018 = vmax.f32 %v5936, 0.0
  %v6019 = vmax.f32 %v5937, 0.0
  %v6020 = vmax.f32 %v5938, 0.0
  %v6021 = vmax.f32 %v5939, 0.0
  %v6022 = vmax.f32 %v5940, 0.0
  %v6023 = vmax.f32 %v5941, 0.0
  %v6024 = vmax.f32 %v5942, 0.0
  %v6025 = vmax.f32 %v5943, 0.0
  %v6026 = vmax.f32 %v5944, 0.0
  %v6027 = vmax.f32 %v5945, 0.0
  %v6028 = vmax.f32 %v5946, 0.0
  %v6029 = vmax.f32 %v5947, 0.0
  %v6030 = vmax.f32 %v5948, 0.0
  %v6031 = vmax.f32 %v5949, 0.0
  %v6032 = vmax.f32 %v5950, 0.0
  %v6033 = vmax.f32 %v5951, 0.0
  %v6034 = vmax.f32 %v5952, 0.0
  %v6035 = vmax.f32 %v5953, 0.0
  %v6036 = vmax.f32 %v5954, 0.0
  %v6037 = vmax.f32 %v5955, 0.0
  %v6038 = vmax.f32 %v5956, 0.0
  %v6039 = vmax.f32 %v5957, 0.0
  %v6040 = vmax.f32 %v5958, 0.0
  %v6041 = vmax.f32 %v5959, 0.0
  %v6042 = vmax.f32 %v5960, 0.0
  %v6043 = vmax.f32 %v5961, 0.0
  %v6044 = vmax.f32 %v5962, 0.0
  %v6045 = vmax.f32 %v5963, 0.0
  %v6046 = vmax.f32 %v5964, 0.0
  %v6047 = vmax.f32 %v5965, 0.0
  %v6048 = vmax.f32 %v5966, 0.0
  %v6049 = vmax.f32 %v5967, 0.0
  %v6050 = vmax.f32 %v5968, 0.0
  %v6051 = vmax.f32 %v5969, 0.0
  %v6052 = vmax.f32 %v5970, 0.0
  %v6053 = vmax.f32 %v5971, 0.0
  %v6054 = vmax.f32 %v5972, 0.0
  %v6055 = vmax.f32 %v5973, 0.0
  %v6056 = vmax.f32 %v5974, 0.0
  %v6057 = vmax.f32 %v5975, 0.0
  %v6058 = vmax.f32 %v5976, 0.0
  %v6059 = vmax.f32 %v5977, 0.0
  %v6060 = vmax.f32 %v5978, 0.0
  %v6061 = vmax.f32 %v5979, 0.0
  %v6062 = vmax.f32 %v5980, 0.0
  %v6063 = vmax.f32 %v5981, 0.0
  %v6064 = vmax.f32 %v5982, 0.0
  %v6065 = vmax.f32 %v5983, 0.0
  %v6066 = vmax.f32 %v5984, 0.0
  %v6067 = vmax.f32 %v5985, 0.0
  %v6068 = vmax.f32 %v5986, 0.0
  %v6069 = vmax.f32 %v5987, 0.0
  %v6070 = vmax.f32 %v5988, 0.0
  %v6071 = vmax.f32 %v5989, 0.0
  %v6072 = vmax.f32 %v5990, 0.0
  %v6073 = vmax.f32 %v5991, 0.0
  %v6074 = vmax.f32 %v5992, 0.0
  %v6075 = vmax.f32 %v5993, 0.0
  %v6076 = vmax.f32 %v5994, 0.0
  %v6077 = vmax.f32 %v5995, 0.0
  %v6078 = vmul.f32 %v5996, %v4736
  %v6079 = vmul.f32 %v5997, %v4741
  %v6080 = vmul.f32 %v5998, %v4746
  %v6081 = vmul.f32 %v5999, %v4751
  %v6082 = vmul.f32 %v6000, %v4756
  %v6083 = vmul.f32 %v6001, %v4761
  %v6084 = vmul.f32 %v6002, %v4766
  %v6085 = vmul.f32 %v6003, %v4771
  %v6086 = vmul.f32 %v6004, %v4776
  %v6087 = vmul.f32 %v6005, %v4781
  %v6088 = vmul.f32 %v6006, %v4786
  %v6089 = vmul.f32 %v6007, %v4791
  %v6090 = vmul.f32 %v6008, %v4796
  %v6091 = vmul.f32 %v6009, %v4801
  %v6092 = vmul.f32 %v6010, %v4806
  %v6093 = vmul.f32 %v6011, %v4811
  %v6094 = vmul.f32 %v6012, %v4816
  %v6095 = vmul.f32 %v6013, %v4821
  %v6096 = vmul.f32 %v6014, %v4826
  %v6097 = vmul.f32 %v6015, %v4831
  %v6098 = vmul.f32 %v6016, %v4836
  %v6099 = vmul.f32 %v6017, %v4841
  %v6100 = vmul.f32 %v6018, %v4846
  %v6101 = vmul.f32 %v6019, %v4851
  %v6102 = vmul.f32 %v6020, %v4856
  %v6103 = vmul.f32 %v6021, %v4861
  %v6104 = vmul.f32 %v6022, %v4866
  %v6105 = vmul.f32 %v6023, %v4871
  %v6106 = vmul.f32 %v6024, %v4876
  %v6107 = vmul.f32 %v6025, %v4881
  %v6108 = vmul.f32 %v6026, %v4886
  %v6109 = vmul.f32 %v6027, %v4891
  %v6110 = vmul.f32 %v6028, %v4896
  %v6111 = vmul.f32 %v6029, %v4901
  %v6112 = vmul.f32 %v6030, %v4906
  %v6113 = vmul.f32 %v6031, %v4911
  %v6114 = vmul.f32 %v6032, %v4916
  %v6115 = vmul.f32 %v6033, %v4921
  %v6116 = vmul.f32 %v6034, %v4926
  %v6117 = vmul.f32 %v6035, %v4931
  %v6118 = vmul.f32 %v6036, %v4936
  %v6119 = vmul.f32 %v6037, %v4941
  %v6120 = vmul.f32 %v6038, %v4946
  %v6121 = vmul.f32 %v6039, %v4951
  %v6122 = vmul.f32 %v6040, %v4956
  %v6123 = vmul.f32 %v6041, %v4961
  %v6124 = vmul.f32 %v6042, %v4966
  %v6125 = vmul.f32 %v6043, %v4971
  %v6126 = vmul.f32 %v6044, %v4976
  %v6127 = vmul.f32 %v6045, %v4981
  %v6128 = vmul.f32 %v6046, %v4986
  %v6129 = vmul.f32 %v6047, %v4991
  %v6130 = vmul.f32 %v6048, %v4996
  %v6131 = vmul.f32 %v6049, %v5001
  %v6132 = vmul.f32 %v6050, %v5006
  %v6133 = vmul.f32 %v6051, %v5011
  %v6134 = vmul.f32 %v6052, %v5016
  %v6135 = vmul.f32 %v6053, %v5021
  %v6136 = vmul.f32 %v6054, %v5026
  %v6137 = vmul.f32 %v6055, %v5031
  %v6138 = vmul.f32 %v6056, %v5036
  %v6139 = vmul.f32 %v6057, %v5041
  %v6140 = vmul.f32 %v6058, %v5046
  %v6141 = vmul.f32 %v6059, %v5051
  %v6142 = vmul.f32 %v6060, %v5056
  %v6143 = vmul.f32 %v6061, %v5061
  %v6144 = vmul.f32 %v6062, %v5066
  %v6145 = vmul.f32 %v6063, %v5071
  %v6146 = vmul.f32 %v6064, %v5076
  %v6147 = vmul.f32 %v6065, %v5081
  %v6148 = vmul.f32 %v6066, %v5086
  %v6149 = vmul.f32 %v6067, %v5091
  %v6150 = vmul.f32 %v6068, %v5096
  %v6151 = vmul.f32 %v6069, %v5101
  %v6152 = vmul.f32 %v6070, %v5106
  %v6153 = vmul.f32 %v6071, %v5111
  %v6154 = vmul.f32 %v6072, %v5116
  %v6155 = vmul.f32 %v6073, %v5121
  %v6156 = vmul.f32 %v6074, %v5126
  %v6157 = vmul.f32 %v6075, %v5131
  %v6158 = vmul.f32 %v6076, %v5136
  %v6159 = vmul.f32 %v6077, %v5141
  %v6160 = vpack.c.bf16 %v6078, %v6078
  %v6161 = vpack.c.bf16 %v6079, %v6079
  %v6162 = vpack.c.bf16 %v6080, %v6080
  %v6163 = vpack.c.bf16 %v6081, %v6081
  %v6164 = vpack.c.bf16 %v6082, %v6082
  %v6165 = vpack.c.bf16 %v6083, %v6083
  %v6166 = vpack.c.bf16 %v6084, %v6084
  %v6167 = vpack.c.bf16 %v6085, %v6085
  %v6168 = vpack.c.bf16 %v6086, %v6086
  %v6169 = vpack.c.bf16 %v6087, %v6087
  %v6170 = vpack.c.bf16 %v6088, %v6088
  %v6171 = vpack.c.bf16 %v6089, %v6089
  %v6172 = vpack.c.bf16 %v6090, %v6090
  %v6173 = vpack.c.bf16 %v6091, %v6091
  %v6174 = vpack.c.bf16 %v6092, %v6092
  %v6175 = vpack.c.bf16 %v6093, %v6093
  %v6176 = vpack.c.bf16 %v6094, %v6094
  %v6177 = vpack.c.bf16 %v6095, %v6095
  %v6178 = vpack.c.bf16 %v6096, %v6096
  %v6179 = vpack.c.bf16 %v6097, %v6097
  %v6180 = vpack.c.bf16 %v6098, %v6098
  %v6181 = vpack.c.bf16 %v6099, %v6099
  %v6182 = vpack.c.bf16 %v6100, %v6100
  %v6183 = vpack.c.bf16 %v6101, %v6101
  %v6184 = vpack.c.bf16 %v6102, %v6102
  %v6185 = vpack.c.bf16 %v6103, %v6103
  %v6186 = vpack.c.bf16 %v6104, %v6104
  %v6187 = vpack.c.bf16 %v6105, %v6105
  %v6188 = vpack.c.bf16 %v6106, %v6106
  %v6189 = vpack.c.bf16 %v6107, %v6107
  %v6190 = vpack.c.bf16 %v6108, %v6108
  %v6191 = vpack.c.bf16 %v6109, %v6109
  %v6192 = vpack.c.bf16 %v6110, %v6110
  %v6193 = vpack.c.bf16 %v6111, %v6111
  %v6194 = vpack.c.bf16 %v6112, %v6112
  %v6195 = vpack.c.bf16 %v6113, %v6113
  %v6196 = vpack.c.bf16 %v6114, %v6114
  %v6197 = vpack.c.bf16 %v6115, %v6115
  %v6198 = vpack.c.bf16 %v6116, %v6116
  %v6199 = vpack.c.bf16 %v6117, %v6117
  %v6200 = vpack.c.bf16 %v6118, %v6118
  %v6201 = vpack.c.bf16 %v6119, %v6119
  %v6202 = vpack.c.bf16 %v6120, %v6120
  %v6203 = vpack.c.bf16 %v6121, %v6121
  %v6204 = vpack.c.bf16 %v6122, %v6122
  %v6205 = vpack.c.bf16 %v6123, %v6123
  %v6206 = vpack.c.bf16 %v6124, %v6124
  %v6207 = vpack.c.bf16 %v6125, %v6125
  %v6208 = vpack.c.bf16 %v6126, %v6126
  %v6209 = vpack.c.bf16 %v6127, %v6127
  %v6210 = vpack.c.bf16 %v6128, %v6128
  %v6211 = vpack.c.bf16 %v6129, %v6129
  %v6212 = vpack.c.bf16 %v6130, %v6130
  %v6213 = vpack.c.bf16 %v6131, %v6131
  %v6214 = vpack.c.bf16 %v6132, %v6132
  %v6215 = vpack.c.bf16 %v6133, %v6133
  %v6216 = vpack.c.bf16 %v6134, %v6134
  %v6217 = vpack.c.bf16 %v6135, %v6135
  %v6218 = vpack.c.bf16 %v6136, %v6136
  %v6219 = vpack.c.bf16 %v6137, %v6137
  %v6220 = vpack.c.bf16 %v6138, %v6138
  %v6221 = vpack.c.bf16 %v6139, %v6139
  %v6222 = vpack.c.bf16 %v6140, %v6140
  %v6223 = vpack.c.bf16 %v6141, %v6141
  %v6224 = vpack.c.bf16 %v6142, %v6142
  %v6225 = vpack.c.bf16 %v6143, %v6143
  %v6226 = vpack.c.bf16 %v6144, %v6144
  %v6227 = vpack.c.bf16 %v6145, %v6145
  %v6228 = vpack.c.bf16 %v6146, %v6146
  %v6229 = vpack.c.bf16 %v6147, %v6147
  %v6230 = vpack.c.bf16 %v6148, %v6148
  %v6231 = vpack.c.bf16 %v6149, %v6149
  %v6232 = vpack.c.bf16 %v6150, %v6150
  %v6233 = vpack.c.bf16 %v6151, %v6151
  %v6234 = vpack.c.bf16 %v6152, %v6152
  %v6235 = vpack.c.bf16 %v6153, %v6153
  %v6236 = vpack.c.bf16 %v6154, %v6154
  %v6237 = vpack.c.bf16 %v6155, %v6155
  %v6238 = vpack.c.bf16 %v6156, %v6156
  %v6239 = vpack.c.bf16 %v6157, %v6157
  %v6240 = vpack.c.bf16 %v6158, %v6158
  %v6241 = vpack.c.bf16 %v6159, %v6159
  %vm6242 = vcmask 257024
  %6243 = vst.msk [vmem:[#allocation2] sm:$0xf] %vm6242, 0
  %6244 = vst.msk [vmem:[#allocation2 + $0x4] sm:$0xf] %vm6242, 0
  %6245 = vst.msk [vmem:[#allocation2 + $0x8] sm:$0xf] %vm6242, 0
  %6246 = vst.msk [vmem:[#allocation2 + $0xc] sm:$0xf] %vm6242, 0
  %6247 = vst.msk [vmem:[#allocation2 + $0x158] sm:$0xf] %vm6242, 0
  %6248 = vst.msk [vmem:[#allocation2 + $0x15c] sm:$0xf] %vm6242, 0
  %6249 = vst.msk [vmem:[#allocation2 + $0x160] sm:$0xf] %vm6242, 0
  %6250 = vst.msk [vmem:[#allocation2 + $0x164] sm:$0xf] %vm6242, 0
  %6251 = vst.msk [vmem:[#allocation2 + $0x10] sm:$0xf] %vm6242, %v6160
  %6252 = vst.msk [vmem:[#allocation2 + $0x14] sm:$0xf] %vm6242, %v6161
  %6253 = vst.msk [vmem:[#allocation2 + $0x18] sm:$0xf] %vm6242, %v6162
  %6254 = vst.msk [vmem:[#allocation2 + $0x1c] sm:$0xf] %vm6242, %v6163
  %6255 = vst.msk [vmem:[#allocation2 + $0x20] sm:$0xf] %vm6242, %v6164
  %6256 = vst.msk [vmem:[#allocation2 + $0x24] sm:$0xf] %vm6242, %v6165
  %6257 = vst.msk [vmem:[#allocation2 + $0x28] sm:$0xf] %vm6242, %v6166
  %6258 = vst.msk [vmem:[#allocation2 + $0x2c] sm:$0xf] %vm6242, %v6167
  %6259 = vst.msk [vmem:[#allocation2 + $0x30] sm:$0xf] %vm6242, %v6168
  %6260 = vst.msk [vmem:[#allocation2 + $0x34] sm:$0xf] %vm6242, %v6169
  %6261 = vst.msk [vmem:[#allocation2 + $0x38] sm:$0xf] %vm6242, %v6170
  %6262 = vst.msk [vmem:[#allocation2 + $0x3c] sm:$0xf] %vm6242, %v6171
  %6263 = vst.msk [vmem:[#allocation2 + $0x40] sm:$0xf] %vm6242, %v6172
  %6264 = vst.msk [vmem:[#allocation2 + $0x44] sm:$0xf] %vm6242, %v6173
  %6265 = vst.msk [vmem:[#allocation2 + $0x48] sm:$0xf] %vm6242, %v6174
  %6266 = vst.msk [vmem:[#allocation2 + $0x4c] sm:$0xf] %vm6242, %v6175
  %6267 = vst.msk [vmem:[#allocation2 + $0x50] sm:$0xf] %vm6242, %v6176
  %6268 = vst.msk [vmem:[#allocation2 + $0x54] sm:$0xf] %vm6242, %v6177
  %6269 = vst.msk [vmem:[#allocation2 + $0x58] sm:$0xf] %vm6242, %v6178
  %6270 = vst.msk [vmem:[#allocation2 + $0x5c] sm:$0xf] %vm6242, %v6179
  %6271 = vst.msk [vmem:[#allocation2 + $0x60] sm:$0xf] %vm6242, %v6180
  %6272 = vst.msk [vmem:[#allocation2 + $0x64] sm:$0xf] %vm6242, %v6181
  %6273 = vst.msk [vmem:[#allocation2 + $0x68] sm:$0xf] %vm6242, %v6182
  %6274 = vst.msk [vmem:[#allocation2 + $0x6c] sm:$0xf] %vm6242, %v6183
  %6275 = vst.msk [vmem:[#allocation2 + $0x70] sm:$0xf] %vm6242, %v6184
  %6276 = vst.msk [vmem:[#allocation2 + $0x74] sm:$0xf] %vm6242, %v6185
  %6277 = vst.msk [vmem:[#allocation2 + $0x78] sm:$0xf] %vm6242, %v6186
  %6278 = vst.msk [vmem:[#allocation2 + $0x7c] sm:$0xf] %vm6242, %v6187
  %6279 = vst.msk [vmem:[#allocation2 + $0x80] sm:$0xf] %vm6242, %v6188
  %6280 = vst.msk [vmem:[#allocation2 + $0x84] sm:$0xf] %vm6242, %v6189
  %6281 = vst.msk [vmem:[#allocation2 + $0x88] sm:$0xf] %vm6242, %v6190
  %6282 = vst.msk [vmem:[#allocation2 + $0x8c] sm:$0xf] %vm6242, %v6191
  %6283 = vst.msk [vmem:[#allocation2 + $0x90] sm:$0xf] %vm6242, %v6192
  %6284 = vst.msk [vmem:[#allocation2 + $0x94] sm:$0xf] %vm6242, %v6193
  %6285 = vst.msk [vmem:[#allocation2 + $0x98] sm:$0xf] %vm6242, %v6194
  %6286 = vst.msk [vmem:[#allocation2 + $0x9c] sm:$0xf] %vm6242, %v6195
  %6287 = vst.msk [vmem:[#allocation2 + $0xa0] sm:$0xf] %vm6242, %v6196
  %6288 = vst.msk [vmem:[#allocation2 + $0xa4] sm:$0xf] %vm6242, %v6197
  %6289 = vst.msk [vmem:[#allocation2 + $0xa8] sm:$0xf] %vm6242, %v6198
  %6290 = vst.msk [vmem:[#allocation2 + $0xac] sm:$0xf] %vm6242, %v6199
  %6291 = vst.msk [vmem:[#allocation2 + $0xb0] sm:$0xf] %vm6242, %v6200
  %6292 = vst.msk [vmem:[#allocation2 + $0xb4] sm:$0xf] %vm6242, %v6201
  %6293 = vst.msk [vmem:[#allocation2 + $0xb8] sm:$0xf] %vm6242, %v6202
  %6294 = vst.msk [vmem:[#allocation2 + $0xbc] sm:$0xf] %vm6242, %v6203
  %6295 = vst.msk [vmem:[#allocation2 + $0xc0] sm:$0xf] %vm6242, %v6204
  %6296 = vst.msk [vmem:[#allocation2 + $0xc4] sm:$0xf] %vm6242, %v6205
  %6297 = vst.msk [vmem:[#allocation2 + $0xc8] sm:$0xf] %vm6242, %v6206
  %6298 = vst.msk [vmem:[#allocation2 + $0xcc] sm:$0xf] %vm6242, %v6207
  %6299 = vst.msk [vmem:[#allocation2 + $0xd0] sm:$0xf] %vm6242, %v6208
  %6300 = vst.msk [vmem:[#allocation2 + $0xd4] sm:$0xf] %vm6242, %v6209
  %6301 = vst.msk [vmem:[#allocation2 + $0xd8] sm:$0xf] %vm6242, %v6210
  %6302 = vst.msk [vmem:[#allocation2 + $0xdc] sm:$0xf] %vm6242, %v6211
  %6303 = vst.msk [vmem:[#allocation2 + $0xe0] sm:$0xf] %vm6242, %v6212
  %6304 = vst.msk [vmem:[#allocation2 + $0xe4] sm:$0xf] %vm6242, %v6213
  %6305 = vst.msk [vmem:[#allocation2 + $0xe8] sm:$0xf] %vm6242, %v6214
  %6306 = vst.msk [vmem:[#allocation2 + $0xec] sm:$0xf] %vm6242, %v6215
  %6307 = vst.msk [vmem:[#allocation2 + $0xf0] sm:$0xf] %vm6242, %v6216
  %6308 = vst.msk [vmem:[#allocation2 + $0xf4] sm:$0xf] %vm6242, %v6217
  %6309 = vst.msk [vmem:[#allocation2 + $0xf8] sm:$0xf] %vm6242, %v6218
  %6310 = vst.msk [vmem:[#allocation2 + $0xfc] sm:$0xf] %vm6242, %v6219
  %6311 = vst.msk [vmem:[#allocation2 + $0x100] sm:$0xf] %vm6242, %v6220
  %6312 = vst.msk [vmem:[#allocation2 + $0x104] sm:$0xf] %vm6242, %v6221
  %6313 = vst.msk [vmem:[#allocation2 + $0x108] sm:$0xf] %vm6242, %v6222
  %6314 = vst.msk [vmem:[#allocation2 + $0x10c] sm:$0xf] %vm6242, %v6223
  %6315 = vst.msk [vmem:[#allocation2 + $0x110] sm:$0xf] %vm6242, %v6224
  %6316 = vst.msk [vmem:[#allocation2 + $0x114] sm:$0xf] %vm6242, %v6225
  %6317 = vst.msk [vmem:[#allocation2 + $0x118] sm:$0xf] %vm6242, %v6226
  %6318 = vst.msk [vmem:[#allocation2 + $0x11c] sm:$0xf] %vm6242, %v6227
  %6319 = vst.msk [vmem:[#allocation2 + $0x120] sm:$0xf] %vm6242, %v6228
  %6320 = vst.msk [vmem:[#allocation2 + $0x124] sm:$0xf] %vm6242, %v6229
  %6321 = vst.msk [vmem:[#allocation2 + $0x128] sm:$0xf] %vm6242, %v6230
  %6322 = vst.msk [vmem:[#allocation2 + $0x12c] sm:$0xf] %vm6242, %v6231
  %6323 = vst.msk [vmem:[#allocation2 + $0x130] sm:$0xf] %vm6242, %v6232
  %6324 = vst.msk [vmem:[#allocation2 + $0x134] sm:$0xf] %vm6242, %v6233
  %6325 = vst.msk [vmem:[#allocation2 + $0x138] sm:$0xf] %vm6242, %v6234
  %6326 = vst.msk [vmem:[#allocation2 + $0x13c] sm:$0xf] %vm6242, %v6235
  %6327 = vst.msk [vmem:[#allocation2 + $0x140] sm:$0xf] %vm6242, %v6236
  %6328 = vst.msk [vmem:[#allocation2 + $0x144] sm:$0xf] %vm6242, %v6237
  %6329 = vst.msk [vmem:[#allocation2 + $0x148] sm:$0xf] %vm6242, %v6238
  %6330 = vst.msk [vmem:[#allocation2 + $0x14c] sm:$0xf] %vm6242, %v6239
  %6331 = vst.msk [vmem:[#allocation2 + $0x150] sm:$0xf] %vm6242, %v6240
  %6332 = vst.msk [vmem:[#allocation2 + $0x154] sm:$0xf] %vm6242, %v6241
  %v6333 = vld [vmem:[#allocation2 + $0x4] sm:$0xc]
  %v6334 = vld [vmem:[#allocation2 + $0x8] sm:$0xf]
  %v6335 = vld [vmem:[#allocation2 + $0xc] sm:$0xf]
  %v6336 = vld [vmem:[#allocation2 + $0x10] sm:$0xf]
  %v6337 = vld [vmem:[#allocation2 + $0x14] sm:$0xf]
  %v6338 = vld [vmem:[#allocation2 + $0x18] sm:$0xf]
  %v6339 = vld [vmem:[#allocation2 + $0x1c] sm:$0xf]
  %v6340 = vld [vmem:[#allocation2 + $0x20] sm:$0xf]
  %v6341 = vld [vmem:[#allocation2 + $0x24] sm:$0xf]
  %v6342 = vld [vmem:[#allocation2 + $0x28] sm:$0xf]
  %v6343 = vld [vmem:[#allocation2 + $0x2c] sm:$0xf]
  %v6344 = vld [vmem:[#allocation2 + $0x30] sm:$0xf]
  %v6345 = vld [vmem:[#allocation2 + $0x34] sm:$0xf]
  %v6346 = vld [vmem:[#allocation2 + $0x38] sm:$0xf]
  %v6347 = vld [vmem:[#allocation2 + $0x3c] sm:$0xf]
  %v6348 = vld [vmem:[#allocation2 + $0x40] sm:$0xf]
  %v6349 = vld [vmem:[#allocation2 + $0x44] sm:$0xf]
  %v6350 = vld [vmem:[#allocation2 + $0x48] sm:$0xf]
  %v6351 = vld [vmem:[#allocation2 + $0x4c] sm:$0xf]
  %v6352 = vld [vmem:[#allocation2 + $0x50] sm:$0xf]
  %v6353 = vld [vmem:[#allocation2 + $0x54] sm:$0xf]
  %v6354 = vld [vmem:[#allocation2 + $0x58] sm:$0xf]
  %v6355 = vld [vmem:[#allocation2 + $0x5c] sm:$0xf]
  %v6356 = vld [vmem:[#allocation2 + $0x60] sm:$0xf]
  %v6357 = vld [vmem:[#allocation2 + $0x64] sm:$0xf]
  %v6358 = vld [vmem:[#allocation2 + $0x68] sm:$0xf]
  %v6359 = vld [vmem:[#allocation2 + $0x6c] sm:$0xf]
  %v6360 = vld [vmem:[#allocation2 + $0x70] sm:$0xf]
  %v6361 = vld [vmem:[#allocation2 + $0x74] sm:$0xf]
  %v6362 = vld [vmem:[#allocation2 + $0x78] sm:$0xf]
  %v6363 = vld [vmem:[#allocation2 + $0x7c] sm:$0xf]
  %v6364 = vld [vmem:[#allocation2 + $0x80] sm:$0xf]
  %v6365 = vld [vmem:[#allocation2 + $0x84] sm:$0xf]
  %v6366 = vld [vmem:[#allocation2 + $0x88] sm:$0xf]
  %v6367 = vld [vmem:[#allocation2 + $0x8c] sm:$0xf]
  %v6368 = vld [vmem:[#allocation2 + $0x90] sm:$0xf]
  %v6369 = vld [vmem:[#allocation2 + $0x94] sm:$0xf]
  %v6370 = vld [vmem:[#allocation2 + $0x98] sm:$0xf]
  %v6371 = vld [vmem:[#allocation2 + $0x9c] sm:$0xf]
  %v6372 = vld [vmem:[#allocation2 + $0xa0] sm:$0xf]
  %v6373 = vld [vmem:[#allocation2 + $0xa4] sm:$0xf]
  %v6374 = vld [vmem:[#allocation2 + $0xa8] sm:$0xf]
  %v6375 = vld [vmem:[#allocation2 + $0xac] sm:$0xf]
  %v6376 = vld [vmem:[#allocation2 + $0xb0] sm:$0xf]
  %v6377 = vld [vmem:[#allocation2 + $0xb4] sm:$0xf]
  %v6378 = vld [vmem:[#allocation2 + $0xb8] sm:$0xf]
  %v6379 = vld [vmem:[#allocation2 + $0xbc] sm:$0xf]
  %v6380 = vld [vmem:[#allocation2 + $0xc0] sm:$0xf]
  %v6381 = vld [vmem:[#allocation2 + $0xc4] sm:$0xf]
  %v6382 = vld [vmem:[#allocation2 + $0xc8] sm:$0xf]
  %v6383 = vld [vmem:[#allocation2 + $0xcc] sm:$0xf]
  %v6384 = vld [vmem:[#allocation2 + $0xd0] sm:$0xf]
  %v6385 = vld [vmem:[#allocation2 + $0xd4] sm:$0xf]
  %v6386 = vld [vmem:[#allocation2 + $0xd8] sm:$0xf]
  %v6387 = vld [vmem:[#allocation2 + $0xdc] sm:$0xf]
  %v6388 = vld [vmem:[#allocation2 + $0xe0] sm:$0xf]
  %v6389 = vld [vmem:[#allocation2 + $0xe4] sm:$0xf]
  %v6390 = vld [vmem:[#allocation2 + $0xe8] sm:$0xf]
  %v6391 = vld [vmem:[#allocation2 + $0xec] sm:$0xf]
  %v6392 = vld [vmem:[#allocation2 + $0xf0] sm:$0xf]
  %v6393 = vld [vmem:[#allocation2 + $0xf4] sm:$0xf]
  %v6394 = vld [vmem:[#allocation2 + $0xf8] sm:$0xf]
  %v6395 = vld [vmem:[#allocation2 + $0xfc] sm:$0xf]
  %v6396 = vld [vmem:[#allocation2 + $0x100] sm:$0xf]
  %v6397 = vld [vmem:[#allocation2 + $0x104] sm:$0xf]
  %v6398 = vld [vmem:[#allocation2 + $0x108] sm:$0xf]
  %v6399 = vld [vmem:[#allocation2 + $0x10c] sm:$0xf]
  %v6400 = vld [vmem:[#allocation2 + $0x110] sm:$0xf]
  %v6401 = vld [vmem:[#allocation2 + $0x114] sm:$0xf]
  %v6402 = vld [vmem:[#allocation2 + $0x118] sm:$0xf]
  %v6403 = vld [vmem:[#allocation2 + $0x11c] sm:$0xf]
  %v6404 = vld [vmem:[#allocation2 + $0x120] sm:$0xf]
  %v6405 = vld [vmem:[#allocation2 + $0x124] sm:$0xf]
  %v6406 = vld [vmem:[#allocation2 + $0x128] sm:$0xf]
  %v6407 = vld [vmem:[#allocation2 + $0x12c] sm:$0xf]
  %v6408 = vld [vmem:[#allocation2 + $0x130] sm:$0xf]
  %v6409 = vld [vmem:[#allocation2 + $0x134] sm:$0xf]
  %v6410 = vld [vmem:[#allocation2 + $0x138] sm:$0xf]
  %v6411 = vld [vmem:[#allocation2 + $0x13c] sm:$0xf]
  %v6412 = vld [vmem:[#allocation2 + $0x140] sm:$0xf]
  %v6413 = vld [vmem:[#allocation2 + $0x144] sm:$0xf]
  %v6414 = vld [vmem:[#allocation2 + $0x148] sm:$0xf]
  %v6415 = vld [vmem:[#allocation2 + $0x14c] sm:$0x7]
  %v6416 = vld [vmem:[#allocation2 + $0x4] sm:$0x8]
  %v6417 = vld [vmem:[#allocation2 + $0x14c] sm:$0xf]
  %v6418 = vld [vmem:[#allocation2 + $0xc] sm:$0x8]
  %v6419 = vld [vmem:[#allocation2 + $0x150] sm:$0xf]
  %v6420 = vld [vmem:[#allocation2 + $0x154] sm:$0xf]
  %v6421 = vld [vmem:[#allocation2 + $0x158] sm:$0x1]
  %v6422 = vld [vmem:[#allocation2 + $0x158] sm:$0xf]
  %v6423 = vld [vmem:[#allocation2 + $0x15c] sm:$0xf]
  %v6424 = vld [vmem:[#allocation2 + $0x160] sm:$0x1]
  %v6425 = vld [vmem:[#allocation2 + $0x18] sm:$0xe]
  %v6426 = vld [vmem:[#allocation2 + $0x160] sm:$0x3]
  %v6510 = vunpack.c.l.b16 %v6333
  %v6511 = vunpack.c.l.b16 %v6334
  %v6512 = vunpack.c.l.b16 %v6335
  %v6513 = vunpack.c.l.b16 %v6336
  %v6514 = vunpack.c.l.b16 %v6337
  %v6515 = vunpack.c.l.b16 %v6338
  %v6516 = vunpack.c.l.b16 %v6339
  %v6517 = vunpack.c.l.b16 %v6340
  %v6518 = vunpack.c.l.b16 %v6341
  %v6519 = vunpack.c.l.b16 %v6342
  %v6520 = vunpack.c.l.b16 %v6343
  %v6521 = vunpack.c.l.b16 %v6344
  %v6522 = vunpack.c.l.b16 %v6345
  %v6523 = vunpack.c.l.b16 %v6346
  %v6524 = vunpack.c.l.b16 %v6347
  %v6525 = vunpack.c.l.b16 %v6348
  %v6526 = vunpack.c.l.b16 %v6349
  %v6527 = vunpack.c.l.b16 %v6350
  %v6528 = vunpack.c.l.b16 %v6351
  %v6529 = vunpack.c.l.b16 %v6352
  %v6530 = vunpack.c.l.b16 %v6353
  %v6531 = vunpack.c.l.b16 %v6354
  %v6532 = vunpack.c.l.b16 %v6355
  %v6533 = vunpack.c.l.b16 %v6356
  %v6534 = vunpack.c.l.b16 %v6357
  %v6535 = vunpack.c.l.b16 %v6358
  %v6536 = vunpack.c.l.b16 %v6359
  %v6537 = vunpack.c.l.b16 %v6360
  %v6538 = vunpack.c.l.b16 %v6361
  %v6539 = vunpack.c.l.b16 %v6362
  %v6540 = vunpack.c.l.b16 %v6363
  %v6541 = vunpack.c.l.b16 %v6364
  %v6542 = vunpack.c.l.b16 %v6365
  %v6543 = vunpack.c.l.b16 %v6366
  %v6544 = vunpack.c.l.b16 %v6367
  %v6545 = vunpack.c.l.b16 %v6368
  %v6546 = vunpack.c.l.b16 %v6369
  %v6547 = vunpack.c.l.b16 %v6370
  %v6548 = vunpack.c.l.b16 %v6371
  %v6549 = vunpack.c.l.b16 %v6372
  %v6550 = vunpack.c.l.b16 %v6373
  %v6551 = vunpack.c.l.b16 %v6374
  %v6552 = vunpack.c.l.b16 %v6375
  %v6553 = vunpack.c.l.b16 %v6376
  %v6554 = vunpack.c.l.b16 %v6377
  %v6555 = vunpack.c.l.b16 %v6378
  %v6556 = vunpack.c.l.b16 %v6379
  %v6557 = vunpack.c.l.b16 %v6380
  %v6558 = vunpack.c.l.b16 %v6381
  %v6559 = vunpack.c.l.b16 %v6382
  %v6560 = vunpack.c.l.b16 %v6383
  %v6561 = vunpack.c.l.b16 %v6384
  %v6562 = vunpack.c.l.b16 %v6385
  %v6563 = vunpack.c.l.b16 %v6386
  %v6564 = vunpack.c.l.b16 %v6387
  %v6565 = vunpack.c.l.b16 %v6388
  %v6566 = vunpack.c.l.b16 %v6389
  %v6567 = vunpack.c.l.b16 %v6390
  %v6568 = vunpack.c.l.b16 %v6391
  %v6569 = vunpack.c.l.b16 %v6392
  %v6570 = vunpack.c.l.b16 %v6393
  %v6571 = vunpack.c.l.b16 %v6394
  %v6572 = vunpack.c.l.b16 %v6395
  %v6573 = vunpack.c.l.b16 %v6396
  %v6574 = vunpack.c.l.b16 %v6397
  %v6575 = vunpack.c.l.b16 %v6398
  %v6576 = vunpack.c.l.b16 %v6399
  %v6577 = vunpack.c.l.b16 %v6400
  %v6578 = vunpack.c.l.b16 %v6401
  %v6579 = vunpack.c.l.b16 %v6402
  %v6580 = vunpack.c.l.b16 %v6403
  %v6581 = vunpack.c.l.b16 %v6404
  %v6582 = vunpack.c.l.b16 %v6405
  %v6583 = vunpack.c.l.b16 %v6406
  %v6584 = vunpack.c.l.b16 %v6407
  %v6585 = vunpack.c.l.b16 %v6408
  %v6586 = vunpack.c.l.b16 %v6409
  %v6587 = vunpack.c.l.b16 %v6410
  %v6588 = vunpack.c.l.b16 %v6411
  %v6589 = vunpack.c.l.b16 %v6412
  %v6590 = vunpack.c.l.b16 %v6413
  %v6591 = vunpack.c.l.b16 %v6414
  %v6592 = vunpack.c.l.b16 %v6415
  %v6593 = vpack.c.b16 %v6511, %v6510
  %v6594 = vpack.c.b16 %v6513, %v6512
  %v6595 = vpack.c.b16 %v6515, %v6514
  %v6596 = vpack.c.b16 %v6517, %v6516
  %v6597 = vpack.c.b16 %v6519, %v6518
  %v6598 = vpack.c.b16 %v6521, %v6520
  %v6599 = vpack.c.b16 %v6523, %v6522
  %v6600 = vpack.c.b16 %v6525, %v6524
  %v6601 = vpack.c.b16 %v6527, %v6526
  %v6602 = vpack.c.b16 %v6529, %v6528
  %v6603 = vpack.c.b16 %v6531, %v6530
  %v6604 = vpack.c.b16 %v6533, %v6532
  %v6605 = vpack.c.b16 %v6535, %v6534
  %v6606 = vpack.c.b16 %v6537, %v6536
  %v6607 = vpack.c.b16 %v6539, %v6538
  %v6608 = vpack.c.b16 %v6541, %v6540
  %v6609 = vpack.c.b16 %v6543, %v6542
  %v6610 = vpack.c.b16 %v6545, %v6544
  %v6611 = vpack.c.b16 %v6547, %v6546
  %v6612 = vpack.c.b16 %v6549, %v6548
  %v6613 = vpack.c.b16 %v6551, %v6550
  %v6614 = vpack.c.b16 %v6553, %v6552
  %v6615 = vpack.c.b16 %v6555, %v6554
  %v6616 = vpack.c.b16 %v6557, %v6556
  %v6617 = vpack.c.b16 %v6559, %v6558
  %v6618 = vpack.c.b16 %v6561, %v6560
  %v6619 = vpack.c.b16 %v6563, %v6562
  %v6620 = vpack.c.b16 %v6565, %v6564
  %v6621 = vpack.c.b16 %v6567, %v6566
  %v6622 = vpack.c.b16 %v6569, %v6568
  %v6623 = vpack.c.b16 %v6571, %v6570
  %v6624 = vpack.c.b16 %v6573, %v6572
  %v6625 = vpack.c.b16 %v6575, %v6574
  %v6626 = vpack.c.b16 %v6577, %v6576
  %v6627 = vpack.c.b16 %v6579, %v6578
  %v6628 = vpack.c.b16 %v6581, %v6580
  %v6629 = vpack.c.b16 %v6583, %v6582
  %v6630 = vpack.c.b16 %v6585, %v6584
  %v6631 = vpack.c.b16 %v6587, %v6586
  %v6632 = vpack.c.b16 %v6589, %v6588
  %v6633 = vpack.c.b16 %v6591, %v6590
  %v6634 = vpack.c.b16 %v6592, %v6592
  %v6636 = vunpack.c.l.b16 %v6416
  %v6637 = vpack.c.b16 %v6511, %v6636
  %v6639 = vshrl.u32 %v6637, 16
  %v6641 = vshll.u32 %v6637, 16
  %v6643 = vrot.slane %v6641, 1
  %v6644 = vor.u32 %v6639, %v6643
  %v6646 = vshll.u32 %v6594, 16
  %v6648 = vrot.slane %v6646, 1
  %v6649 = vsel %vm420, %v6644, %v6648
  %v6650 = vshrl.u32 %v6594, 16
  %v6652 = vor.u32 %v6650, %v6648
  %v6654 = vshll.u32 %v6595, 16
  %v6656 = vrot.slane %v6654, 1
  %v6657 = vsel %vm420, %v6652, %v6656
  %v6658 = vshrl.u32 %v6595, 16
  %v6660 = vor.u32 %v6658, %v6656
  %v6662 = vshll.u32 %v6596, 16
  %v6664 = vrot.slane %v6662, 1
  %v6665 = vsel %vm420, %v6660, %v6664
  %v6666 = vshrl.u32 %v6596, 16
  %v6668 = vor.u32 %v6666, %v6664
  %v6670 = vshll.u32 %v6597, 16
  %v6672 = vrot.slane %v6670, 1
  %v6673 = vsel %vm420, %v6668, %v6672
  %v6674 = vshrl.u32 %v6597, 16
  %v6676 = vor.u32 %v6674, %v6672
  %v6678 = vshll.u32 %v6598, 16
  %v6680 = vrot.slane %v6678, 1
  %v6681 = vsel %vm420, %v6676, %v6680
  %v6682 = vshrl.u32 %v6598, 16
  %v6684 = vor.u32 %v6682, %v6680
  %v6686 = vshll.u32 %v6599, 16
  %v6688 = vrot.slane %v6686, 1
  %v6689 = vsel %vm420, %v6684, %v6688
  %v6690 = vshrl.u32 %v6599, 16
  %v6692 = vor.u32 %v6690, %v6688
  %v6694 = vshll.u32 %v6600, 16
  %v6696 = vrot.slane %v6694, 1
  %v6697 = vsel %vm420, %v6692, %v6696
  %v6698 = vshrl.u32 %v6600, 16
  %v6700 = vor.u32 %v6698, %v6696
  %v6702 = vshll.u32 %v6601, 16
  %v6704 = vrot.slane %v6702, 1
  %v6705 = vsel %vm420, %v6700, %v6704
  %v6706 = vshrl.u32 %v6601, 16
  %v6708 = vor.u32 %v6706, %v6704
  %v6710 = vshll.u32 %v6602, 16
  %v6712 = vrot.slane %v6710, 1
  %v6713 = vsel %vm420, %v6708, %v6712
  %v6714 = vshrl.u32 %v6602, 16
  %v6716 = vor.u32 %v6714, %v6712
  %v6718 = vshll.u32 %v6603, 16
  %v6720 = vrot.slane %v6718, 1
  %v6721 = vsel %vm420, %v6716, %v6720
  %v6722 = vshrl.u32 %v6603, 16
  %v6724 = vor.u32 %v6722, %v6720
  %v6726 = vshll.u32 %v6604, 16
  %v6728 = vrot.slane %v6726, 1
  %v6729 = vsel %vm420, %v6724, %v6728
  %v6730 = vshrl.u32 %v6604, 16
  %v6732 = vor.u32 %v6730, %v6728
  %v6734 = vshll.u32 %v6605, 16
  %v6736 = vrot.slane %v6734, 1
  %v6737 = vsel %vm420, %v6732, %v6736
  %v6738 = vshrl.u32 %v6605, 16
  %v6740 = vor.u32 %v6738, %v6736
  %v6742 = vshll.u32 %v6606, 16
  %v6744 = vrot.slane %v6742, 1
  %v6745 = vsel %vm420, %v6740, %v6744
  %v6746 = vshrl.u32 %v6606, 16
  %v6748 = vor.u32 %v6746, %v6744
  %v6750 = vshll.u32 %v6607, 16
  %v6752 = vrot.slane %v6750, 1
  %v6753 = vsel %vm420, %v6748, %v6752
  %v6754 = vshrl.u32 %v6607, 16
  %v6756 = vor.u32 %v6754, %v6752
  %v6758 = vshll.u32 %v6608, 16
  %v6760 = vrot.slane %v6758, 1
  %v6761 = vsel %vm420, %v6756, %v6760
  %v6762 = vshrl.u32 %v6608, 16
  %v6764 = vor.u32 %v6762, %v6760
  %v6766 = vshll.u32 %v6609, 16
  %v6768 = vrot.slane %v6766, 1
  %v6769 = vsel %vm420, %v6764, %v6768
  %v6770 = vshrl.u32 %v6609, 16
  %v6772 = vor.u32 %v6770, %v6768
  %v6774 = vshll.u32 %v6610, 16
  %v6776 = vrot.slane %v6774, 1
  %v6777 = vsel %vm420, %v6772, %v6776
  %v6778 = vshrl.u32 %v6610, 16
  %v6780 = vor.u32 %v6778, %v6776
  %v6782 = vshll.u32 %v6611, 16
  %v6784 = vrot.slane %v6782, 1
  %v6785 = vsel %vm420, %v6780, %v6784
  %v6786 = vshrl.u32 %v6611, 16
  %v6788 = vor.u32 %v6786, %v6784
  %v6790 = vshll.u32 %v6612, 16
  %v6792 = vrot.slane %v6790, 1
  %v6793 = vsel %vm420, %v6788, %v6792
  %v6794 = vshrl.u32 %v6612, 16
  %v6796 = vor.u32 %v6794, %v6792
  %v6798 = vshll.u32 %v6613, 16
  %v6800 = vrot.slane %v6798, 1
  %v6801 = vsel %vm420, %v6796, %v6800
  %v6802 = vshrl.u32 %v6613, 16
  %v6804 = vor.u32 %v6802, %v6800
  %v6806 = vshll.u32 %v6614, 16
  %v6808 = vrot.slane %v6806, 1
  %v6809 = vsel %vm420, %v6804, %v6808
  %v6810 = vshrl.u32 %v6614, 16
  %v6812 = vor.u32 %v6810, %v6808
  %v6814 = vshll.u32 %v6615, 16
  %v6816 = vrot.slane %v6814, 1
  %v6817 = vsel %vm420, %v6812, %v6816
  %v6818 = vshrl.u32 %v6615, 16
  %v6820 = vor.u32 %v6818, %v6816
  %v6822 = vshll.u32 %v6616, 16
  %v6824 = vrot.slane %v6822, 1
  %v6825 = vsel %vm420, %v6820, %v6824
  %v6826 = vshrl.u32 %v6616, 16
  %v6828 = vor.u32 %v6826, %v6824
  %v6830 = vshll.u32 %v6617, 16
  %v6832 = vrot.slane %v6830, 1
  %v6833 = vsel %vm420, %v6828, %v6832
  %v6834 = vshrl.u32 %v6617, 16
  %v6836 = vor.u32 %v6834, %v6832
  %v6838 = vshll.u32 %v6618, 16
  %v6840 = vrot.slane %v6838, 1
  %v6841 = vsel %vm420, %v6836, %v6840
  %v6842 = vshrl.u32 %v6618, 16
  %v6844 = vor.u32 %v6842, %v6840
  %v6846 = vshll.u32 %v6619, 16
  %v6848 = vrot.slane %v6846, 1
  %v6849 = vsel %vm420, %v6844, %v6848
  %v6850 = vshrl.u32 %v6619, 16
  %v6852 = vor.u32 %v6850, %v6848
  %v6854 = vshll.u32 %v6620, 16
  %v6856 = vrot.slane %v6854, 1
  %v6857 = vsel %vm420, %v6852, %v6856
  %v6858 = vshrl.u32 %v6620, 16
  %v6860 = vor.u32 %v6858, %v6856
  %v6862 = vshll.u32 %v6621, 16
  %v6864 = vrot.slane %v6862, 1
  %v6865 = vsel %vm420, %v6860, %v6864
  %v6866 = vshrl.u32 %v6621, 16
  %v6868 = vor.u32 %v6866, %v6864
  %v6870 = vshll.u32 %v6622, 16
  %v6872 = vrot.slane %v6870, 1
  %v6873 = vsel %vm420, %v6868, %v6872
  %v6874 = vshrl.u32 %v6622, 16
  %v6876 = vor.u32 %v6874, %v6872
  %v6878 = vshll.u32 %v6623, 16
  %v6880 = vrot.slane %v6878, 1
  %v6881 = vsel %vm420, %v6876, %v6880
  %v6882 = vshrl.u32 %v6623, 16
  %v6884 = vor.u32 %v6882, %v6880
  %v6886 = vshll.u32 %v6624, 16
  %v6888 = vrot.slane %v6886, 1
  %v6889 = vsel %vm420, %v6884, %v6888
  %v6890 = vshrl.u32 %v6624, 16
  %v6892 = vor.u32 %v6890, %v6888
  %v6894 = vshll.u32 %v6625, 16
  %v6896 = vrot.slane %v6894, 1
  %v6897 = vsel %vm420, %v6892, %v6896
  %v6898 = vshrl.u32 %v6625, 16
  %v6900 = vor.u32 %v6898, %v6896
  %v6902 = vshll.u32 %v6626, 16
  %v6904 = vrot.slane %v6902, 1
  %v6905 = vsel %vm420, %v6900, %v6904
  %v6906 = vshrl.u32 %v6626, 16
  %v6908 = vor.u32 %v6906, %v6904
  %v6910 = vshll.u32 %v6627, 16
  %v6912 = vrot.slane %v6910, 1
  %v6913 = vsel %vm420, %v6908, %v6912
  %v6914 = vshrl.u32 %v6627, 16
  %v6916 = vor.u32 %v6914, %v6912
  %v6918 = vshll.u32 %v6628, 16
  %v6920 = vrot.slane %v6918, 1
  %v6921 = vsel %vm420, %v6916, %v6920
  %v6922 = vshrl.u32 %v6628, 16
  %v6924 = vor.u32 %v6922, %v6920
  %v6926 = vshll.u32 %v6629, 16
  %v6928 = vrot.slane %v6926, 1
  %v6929 = vsel %vm420, %v6924, %v6928
  %v6930 = vshrl.u32 %v6629, 16
  %v6932 = vor.u32 %v6930, %v6928
  %v6934 = vshll.u32 %v6630, 16
  %v6936 = vrot.slane %v6934, 1
  %v6937 = vsel %vm420, %v6932, %v6936
  %v6938 = vshrl.u32 %v6630, 16
  %v6940 = vor.u32 %v6938, %v6936
  %v6942 = vshll.u32 %v6631, 16
  %v6944 = vrot.slane %v6942, 1
  %v6945 = vsel %vm420, %v6940, %v6944
  %v6946 = vshrl.u32 %v6631, 16
  %v6948 = vor.u32 %v6946, %v6944
  %v6950 = vshll.u32 %v6632, 16
  %v6952 = vrot.slane %v6950, 1
  %v6953 = vsel %vm420, %v6948, %v6952
  %v6954 = vshrl.u32 %v6632, 16
  %v6956 = vor.u32 %v6954, %v6952
  %v6958 = vshll.u32 %v6633, 16
  %v6960 = vrot.slane %v6958, 1
  %v6961 = vsel %vm420, %v6956, %v6960
  %v6962 = vshrl.u32 %v6633, 16
  %v6964 = vor.u32 %v6962, %v6960
  %v6966 = vshll.u32 %v6634, 16
  %v6968 = vrot.slane %v6966, 1
  %v6969 = vsel %vm420, %v6964, %v6968
  %v6970 = vshrl.u32 %v6634, 16
  %v6972 = vor.u32 %v6970, %v6968
  %6973 = vrot.lane.b32.xlu0 %v6649, 32
  %v6974 = vpop.permute.xlu0 %6973
  %6975 = vrot.lane.b32.xlu0 %v6657, 32
  %v6976 = vpop.permute.xlu0 %6975
  %6977 = vrot.lane.b32.xlu0 %v6665, 32
  %v6978 = vpop.permute.xlu0 %6977
  %6979 = vrot.lane.b32.xlu0 %v6673, 32
  %v6980 = vpop.permute.xlu0 %6979
  %6981 = vrot.lane.b32.xlu0 %v6681, 32
  %v6982 = vpop.permute.xlu0 %6981
  %6983 = vrot.lane.b32.xlu0 %v6689, 32
  %v6984 = vpop.permute.xlu0 %6983
  %6985 = vrot.lane.b32.xlu0 %v6697, 32
  %v6986 = vpop.permute.xlu0 %6985
  %6987 = vrot.lane.b32.xlu0 %v6705, 32
  %v6988 = vpop.permute.xlu0 %6987
  %6989 = vrot.lane.b32.xlu0 %v6713, 32
  %v6990 = vpop.permute.xlu0 %6989
  %6991 = vrot.lane.b32.xlu0 %v6721, 32
  %v6992 = vpop.permute.xlu0 %6991
  %6993 = vrot.lane.b32.xlu0 %v6729, 32
  %v6994 = vpop.permute.xlu0 %6993
  %6995 = vrot.lane.b32.xlu0 %v6737, 32
  %v6996 = vpop.permute.xlu0 %6995
  %6997 = vrot.lane.b32.xlu0 %v6745, 32
  %v6998 = vpop.permute.xlu0 %6997
  %6999 = vrot.lane.b32.xlu0 %v6753, 32
  %v7000 = vpop.permute.xlu0 %6999
  %7001 = vrot.lane.b32.xlu0 %v6761, 32
  %v7002 = vpop.permute.xlu0 %7001
  %7003 = vrot.lane.b32.xlu0 %v6769, 32
  %v7004 = vpop.permute.xlu0 %7003
  %7005 = vrot.lane.b32.xlu0 %v6777, 32
  %v7006 = vpop.permute.xlu0 %7005
  %7007 = vrot.lane.b32.xlu0 %v6785, 32
  %v7008 = vpop.permute.xlu0 %7007
  %7009 = vrot.lane.b32.xlu0 %v6793, 32
  %v7010 = vpop.permute.xlu0 %7009
  %7011 = vrot.lane.b32.xlu0 %v6801, 32
  %v7012 = vpop.permute.xlu0 %7011
  %7013 = vrot.lane.b32.xlu0 %v6809, 32
  %v7014 = vpop.permute.xlu0 %7013
  %7015 = vrot.lane.b32.xlu0 %v6817, 32
  %v7016 = vpop.permute.xlu0 %7015
  %7017 = vrot.lane.b32.xlu0 %v6825, 32
  %v7018 = vpop.permute.xlu0 %7017
  %7019 = vrot.lane.b32.xlu0 %v6833, 32
  %v7020 = vpop.permute.xlu0 %7019
  %7021 = vrot.lane.b32.xlu0 %v6841, 32
  %v7022 = vpop.permute.xlu0 %7021
  %7023 = vrot.lane.b32.xlu0 %v6849, 32
  %v7024 = vpop.permute.xlu0 %7023
  %7025 = vrot.lane.b32.xlu0 %v6857, 32
  %v7026 = vpop.permute.xlu0 %7025
  %7027 = vrot.lane.b32.xlu0 %v6865, 32
  %v7028 = vpop.permute.xlu0 %7027
  %7029 = vrot.lane.b32.xlu0 %v6873, 32
  %v7030 = vpop.permute.xlu0 %7029
  %7031 = vrot.lane.b32.xlu0 %v6881, 32
  %v7032 = vpop.permute.xlu0 %7031
  %7033 = vrot.lane.b32.xlu0 %v6889, 32
  %v7034 = vpop.permute.xlu0 %7033
  %7035 = vrot.lane.b32.xlu0 %v6897, 32
  %v7036 = vpop.permute.xlu0 %7035
  %7037 = vrot.lane.b32.xlu0 %v6905, 32
  %v7038 = vpop.permute.xlu0 %7037
  %7039 = vrot.lane.b32.xlu0 %v6913, 32
  %v7040 = vpop.permute.xlu0 %7039
  %7041 = vrot.lane.b32.xlu0 %v6921, 32
  %v7042 = vpop.permute.xlu0 %7041
  %7043 = vrot.lane.b32.xlu0 %v6929, 32
  %v7044 = vpop.permute.xlu0 %7043
  %7045 = vrot.lane.b32.xlu0 %v6937, 32
  %v7046 = vpop.permute.xlu0 %7045
  %7047 = vrot.lane.b32.xlu0 %v6945, 32
  %v7048 = vpop.permute.xlu0 %7047
  %7049 = vrot.lane.b32.xlu0 %v6953, 32
  %v7050 = vpop.permute.xlu0 %7049
  %7051 = vrot.lane.b32.xlu0 %v6961, 32
  %v7052 = vpop.permute.xlu0 %7051
  %7053 = vrot.lane.b32.xlu0 %v6969, 32
  %v7054 = vpop.permute.xlu0 %7053
  %7055 = vrot.lane.b32.xlu0 %v6972, 32
  %v7056 = vpop.permute.xlu0 %7055
  %v7058 = vunpack.c.l.b16 %v6417
  %v7059 = vpack.c.b16 %v7058, %v7058
  %v7060 = vrot.slane %v6637, 1
  %v7061 = vrot.slane %v6594, 1
  %v7062 = vsel %vm843, %v7060, %v7061
  %v7063 = vrot.slane %v6595, 1
  %v7064 = vsel %vm843, %v7061, %v7063
  %v7065 = vrot.slane %v6596, 1
  %v7066 = vsel %vm843, %v7063, %v7065
  %v7067 = vrot.slane %v6597, 1
  %v7068 = vsel %vm843, %v7065, %v7067
  %v7069 = vrot.slane %v6598, 1
  %v7070 = vsel %vm843, %v7067, %v7069
  %v7071 = vrot.slane %v6599, 1
  %v7072 = vsel %vm843, %v7069, %v7071
  %v7073 = vrot.slane %v6600, 1
  %v7074 = vsel %vm843, %v7071, %v7073
  %v7075 = vrot.slane %v6601, 1
  %v7076 = vsel %vm843, %v7073, %v7075
  %v7077 = vrot.slane %v6602, 1
  %v7078 = vsel %vm843, %v7075, %v7077
  %v7079 = vrot.slane %v6603, 1
  %v7080 = vsel %vm843, %v7077, %v7079
  %v7081 = vrot.slane %v6604, 1
  %v7082 = vsel %vm843, %v7079, %v7081
  %v7083 = vrot.slane %v6605, 1
  %v7084 = vsel %vm843, %v7081, %v7083
  %v7085 = vrot.slane %v6606, 1
  %v7086 = vsel %vm843, %v7083, %v7085
  %v7087 = vrot.slane %v6607, 1
  %v7088 = vsel %vm843, %v7085, %v7087
  %v7089 = vrot.slane %v6608, 1
  %v7090 = vsel %vm843, %v7087, %v7089
  %v7091 = vrot.slane %v6609, 1
  %v7092 = vsel %vm843, %v7089, %v7091
  %v7093 = vrot.slane %v6610, 1
  %v7094 = vsel %vm843, %v7091, %v7093
  %v7095 = vrot.slane %v6611, 1
  %v7096 = vsel %vm843, %v7093, %v7095
  %v7097 = vrot.slane %v6612, 1
  %v7098 = vsel %vm843, %v7095, %v7097
  %v7099 = vrot.slane %v6613, 1
  %v7100 = vsel %vm843, %v7097, %v7099
  %v7101 = vrot.slane %v6614, 1
  %v7102 = vsel %vm843, %v7099, %v7101
  %v7103 = vrot.slane %v6615, 1
  %v7104 = vsel %vm843, %v7101, %v7103
  %v7105 = vrot.slane %v6616, 1
  %v7106 = vsel %vm843, %v7103, %v7105
  %v7107 = vrot.slane %v6617, 1
  %v7108 = vsel %vm843, %v7105, %v7107
  %v7109 = vrot.slane %v6618, 1
  %v7110 = vsel %vm843, %v7107, %v7109
  %v7111 = vrot.slane %v6619, 1
  %v7112 = vsel %vm843, %v7109, %v7111
  %v7113 = vrot.slane %v6620, 1
  %v7114 = vsel %vm843, %v7111, %v7113
  %v7115 = vrot.slane %v6621, 1
  %v7116 = vsel %vm843, %v7113, %v7115
  %v7117 = vrot.slane %v6622, 1
  %v7118 = vsel %vm843, %v7115, %v7117
  %v7119 = vrot.slane %v6623, 1
  %v7120 = vsel %vm843, %v7117, %v7119
  %v7121 = vrot.slane %v6624, 1
  %v7122 = vsel %vm843, %v7119, %v7121
  %v7123 = vrot.slane %v6625, 1
  %v7124 = vsel %vm843, %v7121, %v7123
  %v7125 = vrot.slane %v6626, 1
  %v7126 = vsel %vm843, %v7123, %v7125
  %v7127 = vrot.slane %v6627, 1
  %v7128 = vsel %vm843, %v7125, %v7127
  %v7129 = vrot.slane %v6628, 1
  %v7130 = vsel %vm843, %v7127, %v7129
  %v7131 = vrot.slane %v6629, 1
  %v7132 = vsel %vm843, %v7129, %v7131
  %v7133 = vrot.slane %v6630, 1
  %v7134 = vsel %vm843, %v7131, %v7133
  %v7135 = vrot.slane %v6631, 1
  %v7136 = vsel %vm843, %v7133, %v7135
  %v7137 = vrot.slane %v6632, 1
  %v7138 = vsel %vm843, %v7135, %v7137
  %v7139 = vrot.slane %v6633, 1
  %v7140 = vsel %vm843, %v7137, %v7139
  %v7141 = vrot.slane %v7059, 1
  %v7142 = vsel %vm843, %v7139, %v7141
  %7143 = vrot.lane.b32.xlu0 %v7062, 64
  %v7144 = vpop.permute.xlu0 %7143
  %7145 = vrot.lane.b32.xlu0 %v7064, 64
  %v7146 = vpop.permute.xlu0 %7145
  %7147 = vrot.lane.b32.xlu0 %v7066, 64
  %v7148 = vpop.permute.xlu0 %7147
  %7149 = vrot.lane.b32.xlu0 %v7068, 64
  %v7150 = vpop.permute.xlu0 %7149
  %7151 = vrot.lane.b32.xlu0 %v7070, 64
  %v7152 = vpop.permute.xlu0 %7151
  %7153 = vrot.lane.b32.xlu0 %v7072, 64
  %v7154 = vpop.permute.xlu0 %7153
  %7155 = vrot.lane.b32.xlu0 %v7074, 64
  %v7156 = vpop.permute.xlu0 %7155
  %7157 = vrot.lane.b32.xlu0 %v7076, 64
  %v7158 = vpop.permute.xlu0 %7157
  %7159 = vrot.lane.b32.xlu0 %v7078, 64
  %v7160 = vpop.permute.xlu0 %7159
  %7161 = vrot.lane.b32.xlu0 %v7080, 64
  %v7162 = vpop.permute.xlu0 %7161
  %7163 = vrot.lane.b32.xlu0 %v7082, 64
  %v7164 = vpop.permute.xlu0 %7163
  %7165 = vrot.lane.b32.xlu0 %v7084, 64
  %v7166 = vpop.permute.xlu0 %7165
  %7167 = vrot.lane.b32.xlu0 %v7086, 64
  %v7168 = vpop.permute.xlu0 %7167
  %7169 = vrot.lane.b32.xlu0 %v7088, 64
  %v7170 = vpop.permute.xlu0 %7169
  %7171 = vrot.lane.b32.xlu0 %v7090, 64
  %v7172 = vpop.permute.xlu0 %7171
  %7173 = vrot.lane.b32.xlu0 %v7092, 64
  %v7174 = vpop.permute.xlu0 %7173
  %7175 = vrot.lane.b32.xlu0 %v7094, 64
  %v7176 = vpop.permute.xlu0 %7175
  %7177 = vrot.lane.b32.xlu0 %v7096, 64
  %v7178 = vpop.permute.xlu0 %7177
  %7179 = vrot.lane.b32.xlu0 %v7098, 64
  %v7180 = vpop.permute.xlu0 %7179
  %7181 = vrot.lane.b32.xlu0 %v7100, 64
  %v7182 = vpop.permute.xlu0 %7181
  %7183 = vrot.lane.b32.xlu0 %v7102, 64
  %v7184 = vpop.permute.xlu0 %7183
  %7185 = vrot.lane.b32.xlu0 %v7104, 64
  %v7186 = vpop.permute.xlu0 %7185
  %7187 = vrot.lane.b32.xlu0 %v7106, 64
  %v7188 = vpop.permute.xlu0 %7187
  %7189 = vrot.lane.b32.xlu0 %v7108, 64
  %v7190 = vpop.permute.xlu0 %7189
  %7191 = vrot.lane.b32.xlu0 %v7110, 64
  %v7192 = vpop.permute.xlu0 %7191
  %7193 = vrot.lane.b32.xlu0 %v7112, 64
  %v7194 = vpop.permute.xlu0 %7193
  %7195 = vrot.lane.b32.xlu0 %v7114, 64
  %v7196 = vpop.permute.xlu0 %7195
  %7197 = vrot.lane.b32.xlu0 %v7116, 64
  %v7198 = vpop.permute.xlu0 %7197
  %7199 = vrot.lane.b32.xlu0 %v7118, 64
  %v7200 = vpop.permute.xlu0 %7199
  %7201 = vrot.lane.b32.xlu0 %v7120, 64
  %v7202 = vpop.permute.xlu0 %7201
  %7203 = vrot.lane.b32.xlu0 %v7122, 64
  %v7204 = vpop.permute.xlu0 %7203
  %7205 = vrot.lane.b32.xlu0 %v7124, 64
  %v7206 = vpop.permute.xlu0 %7205
  %7207 = vrot.lane.b32.xlu0 %v7126, 64
  %v7208 = vpop.permute.xlu0 %7207
  %7209 = vrot.lane.b32.xlu0 %v7128, 64
  %v7210 = vpop.permute.xlu0 %7209
  %7211 = vrot.lane.b32.xlu0 %v7130, 64
  %v7212 = vpop.permute.xlu0 %7211
  %7213 = vrot.lane.b32.xlu0 %v7132, 64
  %v7214 = vpop.permute.xlu0 %7213
  %7215 = vrot.lane.b32.xlu0 %v7134, 64
  %v7216 = vpop.permute.xlu0 %7215
  %7217 = vrot.lane.b32.xlu0 %v7136, 64
  %v7218 = vpop.permute.xlu0 %7217
  %7219 = vrot.lane.b32.xlu0 %v7138, 64
  %v7220 = vpop.permute.xlu0 %7219
  %7221 = vrot.lane.b32.xlu0 %v7140, 64
  %v7222 = vpop.permute.xlu0 %7221
  %7223 = vrot.lane.b32.xlu0 %v7142, 64
  %v7224 = vpop.permute.xlu0 %7223
  %7225 = vrot.lane.b32.xlu0 %v7141, 64
  %v7226 = vpop.permute.xlu0 %7225
  %v7230 = vunpack.c.l.b16 %v6418
  %v7231 = vunpack.c.l.b16 %v6419
  %v7232 = vunpack.c.l.b16 %v6420
  %v7233 = vpack.c.b16 %v6513, %v7230
  %v7234 = vpack.c.b16 %v7231, %v7058
  %v7235 = vpack.c.b16 %v7232, %v7232
  %v7236 = vrot.slane %v7233, 1
  %v7237 = vsel %vm843, %v7236, %v7063
  %v7238 = vrot.slane %v7234, 1
  %v7239 = vsel %vm843, %v7139, %v7238
  %v7240 = vrot.slane %v7235, 1
  %v7241 = vsel %vm843, %v7238, %v7240
  %7242 = vrot.lane.b32.xlu0 %v7237, 96
  %v7243 = vpop.permute.xlu0 %7242
  %7244 = vrot.lane.b32.xlu0 %v7066, 96
  %v7245 = vpop.permute.xlu0 %7244
  %7246 = vrot.lane.b32.xlu0 %v7068, 96
  %v7247 = vpop.permute.xlu0 %7246
  %7248 = vrot.lane.b32.xlu0 %v7070, 96
  %v7249 = vpop.permute.xlu0 %7248
  %7250 = vrot.lane.b32.xlu0 %v7072, 96
  %v7251 = vpop.permute.xlu0 %7250
  %7252 = vrot.lane.b32.xlu0 %v7074, 96
  %v7253 = vpop.permute.xlu0 %7252
  %7254 = vrot.lane.b32.xlu0 %v7076, 96
  %v7255 = vpop.permute.xlu0 %7254
  %7256 = vrot.lane.b32.xlu0 %v7078, 96
  %v7257 = vpop.permute.xlu0 %7256
  %7258 = vrot.lane.b32.xlu0 %v7080, 96
  %v7259 = vpop.permute.xlu0 %7258
  %7260 = vrot.lane.b32.xlu0 %v7082, 96
  %v7261 = vpop.permute.xlu0 %7260
  %7262 = vrot.lane.b32.xlu0 %v7084, 96
  %v7263 = vpop.permute.xlu0 %7262
  %7264 = vrot.lane.b32.xlu0 %v7086, 96
  %v7265 = vpop.permute.xlu0 %7264
  %7266 = vrot.lane.b32.xlu0 %v7088, 96
  %v7267 = vpop.permute.xlu0 %7266
  %7268 = vrot.lane.b32.xlu0 %v7090, 96
  %v7269 = vpop.permute.xlu0 %7268
  %7270 = vrot.lane.b32.xlu0 %v7092, 96
  %v7271 = vpop.permute.xlu0 %7270
  %7272 = vrot.lane.b32.xlu0 %v7094, 96
  %v7273 = vpop.permute.xlu0 %7272
  %7274 = vrot.lane.b32.xlu0 %v7096, 96
  %v7275 = vpop.permute.xlu0 %7274
  %7276 = vrot.lane.b32.xlu0 %v7098, 96
  %v7277 = vpop.permute.xlu0 %7276
  %7278 = vrot.lane.b32.xlu0 %v7100, 96
  %v7279 = vpop.permute.xlu0 %7278
  %7280 = vrot.lane.b32.xlu0 %v7102, 96
  %v7281 = vpop.permute.xlu0 %7280
  %7282 = vrot.lane.b32.xlu0 %v7104, 96
  %v7283 = vpop.permute.xlu0 %7282
  %7284 = vrot.lane.b32.xlu0 %v7106, 96
  %v7285 = vpop.permute.xlu0 %7284
  %7286 = vrot.lane.b32.xlu0 %v7108, 96
  %v7287 = vpop.permute.xlu0 %7286
  %7288 = vrot.lane.b32.xlu0 %v7110, 96
  %v7289 = vpop.permute.xlu0 %7288
  %7290 = vrot.lane.b32.xlu0 %v7112, 96
  %v7291 = vpop.permute.xlu0 %7290
  %7292 = vrot.lane.b32.xlu0 %v7114, 96
  %v7293 = vpop.permute.xlu0 %7292
  %7294 = vrot.lane.b32.xlu0 %v7116, 96
  %v7295 = vpop.permute.xlu0 %7294
  %7296 = vrot.lane.b32.xlu0 %v7118, 96
  %v7297 = vpop.permute.xlu0 %7296
  %7298 = vrot.lane.b32.xlu0 %v7120, 96
  %v7299 = vpop.permute.xlu0 %7298
  %7300 = vrot.lane.b32.xlu0 %v7122, 96
  %v7301 = vpop.permute.xlu0 %7300
  %7302 = vrot.lane.b32.xlu0 %v7124, 96
  %v7303 = vpop.permute.xlu0 %7302
  %7304 = vrot.lane.b32.xlu0 %v7126, 96
  %v7305 = vpop.permute.xlu0 %7304
  %7306 = vrot.lane.b32.xlu0 %v7128, 96
  %v7307 = vpop.permute.xlu0 %7306
  %7308 = vrot.lane.b32.xlu0 %v7130, 96
  %v7309 = vpop.permute.xlu0 %7308
  %7310 = vrot.lane.b32.xlu0 %v7132, 96
  %v7311 = vpop.permute.xlu0 %7310
  %7312 = vrot.lane.b32.xlu0 %v7134, 96
  %v7313 = vpop.permute.xlu0 %7312
  %7314 = vrot.lane.b32.xlu0 %v7136, 96
  %v7315 = vpop.permute.xlu0 %7314
  %7316 = vrot.lane.b32.xlu0 %v7138, 96
  %v7317 = vpop.permute.xlu0 %7316
  %7318 = vrot.lane.b32.xlu0 %v7140, 96
  %v7319 = vpop.permute.xlu0 %7318
  %7320 = vrot.lane.b32.xlu0 %v7239, 96
  %v7321 = vpop.permute.xlu0 %7320
  %7322 = vrot.lane.b32.xlu0 %v7241, 96
  %v7323 = vpop.permute.xlu0 %7322
  %7324 = vrot.lane.b32.xlu0 %v7240, 96
  %v7325 = vpop.permute.xlu0 %7324
  %v7326 = vpack.c.b16 %v6514, %v6513
  %v7327 = vpack.c.b16 %v6516, %v6515
  %v7328 = vpack.c.b16 %v6518, %v6517
  %v7329 = vpack.c.b16 %v6520, %v6519
  %v7330 = vpack.c.b16 %v6522, %v6521
  %v7331 = vpack.c.b16 %v6524, %v6523
  %v7332 = vpack.c.b16 %v6526, %v6525
  %v7333 = vpack.c.b16 %v6528, %v6527
  %v7334 = vpack.c.b16 %v6530, %v6529
  %v7335 = vpack.c.b16 %v6532, %v6531
  %v7336 = vpack.c.b16 %v6534, %v6533
  %v7337 = vpack.c.b16 %v6536, %v6535
  %v7338 = vpack.c.b16 %v6538, %v6537
  %v7339 = vpack.c.b16 %v6540, %v6539
  %v7340 = vpack.c.b16 %v6542, %v6541
  %v7341 = vpack.c.b16 %v6544, %v6543
  %v7342 = vpack.c.b16 %v6546, %v6545
  %v7343 = vpack.c.b16 %v6548, %v6547
  %v7344 = vpack.c.b16 %v6550, %v6549
  %v7345 = vpack.c.b16 %v6552, %v6551
  %v7346 = vpack.c.b16 %v6554, %v6553
  %v7347 = vpack.c.b16 %v6556, %v6555
  %v7348 = vpack.c.b16 %v6558, %v6557
  %v7349 = vpack.c.b16 %v6560, %v6559
  %v7350 = vpack.c.b16 %v6562, %v6561
  %v7351 = vpack.c.b16 %v6564, %v6563
  %v7352 = vpack.c.b16 %v6566, %v6565
  %v7353 = vpack.c.b16 %v6568, %v6567
  %v7354 = vpack.c.b16 %v6570, %v6569
  %v7355 = vpack.c.b16 %v6572, %v6571
  %v7356 = vpack.c.b16 %v6574, %v6573
  %v7357 = vpack.c.b16 %v6576, %v6575
  %v7358 = vpack.c.b16 %v6578, %v6577
  %v7359 = vpack.c.b16 %v6580, %v6579
  %v7360 = vpack.c.b16 %v6582, %v6581
  %v7361 = vpack.c.b16 %v6584, %v6583
  %v7362 = vpack.c.b16 %v6586, %v6585
  %v7363 = vpack.c.b16 %v6588, %v6587
  %v7364 = vpack.c.b16 %v6590, %v6589
  %v7365 = vpack.c.b16 %v7058, %v6591
  %v7366 = vpack.c.b16 %v7232, %v7231
  %v7368 = vshrl.u32 %v7326, 16
  %v7370 = vrot.slane %v7368, 5
  %v7371 = vshll.u32 %v7326, 16
  %v7373 = vrot.slane %v7371, 6
  %v7374 = vor.u32 %v7370, %v7373
  %v7376 = vshrl.u32 %v7327, 16
  %v7378 = vrot.slane %v7376, 5
  %v7379 = vshll.u32 %v7327, 16
  %v7381 = vrot.slane %v7379, 6
  %v7382 = vor.u32 %v7378, %v7381
  %v7383 = vsel %vm1151, %v7374, %v7382
  %v7385 = vshrl.u32 %v7328, 16
  %v7387 = vrot.slane %v7385, 5
  %v7388 = vshll.u32 %v7328, 16
  %v7390 = vrot.slane %v7388, 6
  %v7391 = vor.u32 %v7387, %v7390
  %v7392 = vsel %vm1151, %v7382, %v7391
  %v7394 = vshrl.u32 %v7329, 16
  %v7396 = vrot.slane %v7394, 5
  %v7397 = vshll.u32 %v7329, 16
  %v7399 = vrot.slane %v7397, 6
  %v7400 = vor.u32 %v7396, %v7399
  %v7401 = vsel %vm1151, %v7391, %v7400
  %v7403 = vshrl.u32 %v7330, 16
  %v7405 = vrot.slane %v7403, 5
  %v7406 = vshll.u32 %v7330, 16
  %v7408 = vrot.slane %v7406, 6
  %v7409 = vor.u32 %v7405, %v7408
  %v7410 = vsel %vm1151, %v7400, %v7409
  %v7412 = vshrl.u32 %v7331, 16
  %v7414 = vrot.slane %v7412, 5
  %v7415 = vshll.u32 %v7331, 16
  %v7417 = vrot.slane %v7415, 6
  %v7418 = vor.u32 %v7414, %v7417
  %v7419 = vsel %vm1151, %v7409, %v7418
  %v7421 = vshrl.u32 %v7332, 16
  %v7423 = vrot.slane %v7421, 5
  %v7424 = vshll.u32 %v7332, 16
  %v7426 = vrot.slane %v7424, 6
  %v7427 = vor.u32 %v7423, %v7426
  %v7428 = vsel %vm1151, %v7418, %v7427
  %v7430 = vshrl.u32 %v7333, 16
  %v7432 = vrot.slane %v7430, 5
  %v7433 = vshll.u32 %v7333, 16
  %v7435 = vrot.slane %v7433, 6
  %v7436 = vor.u32 %v7432, %v7435
  %v7437 = vsel %vm1151, %v7427, %v7436
  %v7439 = vshrl.u32 %v7334, 16
  %v7441 = vrot.slane %v7439, 5
  %v7442 = vshll.u32 %v7334, 16
  %v7444 = vrot.slane %v7442, 6
  %v7445 = vor.u32 %v7441, %v7444
  %v7446 = vsel %vm1151, %v7436, %v7445
  %v7448 = vshrl.u32 %v7335, 16
  %v7450 = vrot.slane %v7448, 5
  %v7451 = vshll.u32 %v7335, 16
  %v7453 = vrot.slane %v7451, 6
  %v7454 = vor.u32 %v7450, %v7453
  %v7455 = vsel %vm1151, %v7445, %v7454
  %v7457 = vshrl.u32 %v7336, 16
  %v7459 = vrot.slane %v7457, 5
  %v7460 = vshll.u32 %v7336, 16
  %v7462 = vrot.slane %v7460, 6
  %v7463 = vor.u32 %v7459, %v7462
  %v7464 = vsel %vm1151, %v7454, %v7463
  %v7466 = vshrl.u32 %v7337, 16
  %v7468 = vrot.slane %v7466, 5
  %v7469 = vshll.u32 %v7337, 16
  %v7471 = vrot.slane %v7469, 6
  %v7472 = vor.u32 %v7468, %v7471
  %v7473 = vsel %vm1151, %v7463, %v7472
  %v7475 = vshrl.u32 %v7338, 16
  %v7477 = vrot.slane %v7475, 5
  %v7478 = vshll.u32 %v7338, 16
  %v7480 = vrot.slane %v7478, 6
  %v7481 = vor.u32 %v7477, %v7480
  %v7482 = vsel %vm1151, %v7472, %v7481
  %v7484 = vshrl.u32 %v7339, 16
  %v7486 = vrot.slane %v7484, 5
  %v7487 = vshll.u32 %v7339, 16
  %v7489 = vrot.slane %v7487, 6
  %v7490 = vor.u32 %v7486, %v7489
  %v7491 = vsel %vm1151, %v7481, %v7490
  %v7493 = vshrl.u32 %v7340, 16
  %v7495 = vrot.slane %v7493, 5
  %v7496 = vshll.u32 %v7340, 16
  %v7498 = vrot.slane %v7496, 6
  %v7499 = vor.u32 %v7495, %v7498
  %v7500 = vsel %vm1151, %v7490, %v7499
  %v7502 = vshrl.u32 %v7341, 16
  %v7504 = vrot.slane %v7502, 5
  %v7505 = vshll.u32 %v7341, 16
  %v7507 = vrot.slane %v7505, 6
  %v7508 = vor.u32 %v7504, %v7507
  %v7509 = vsel %vm1151, %v7499, %v7508
  %v7511 = vshrl.u32 %v7342, 16
  %v7513 = vrot.slane %v7511, 5
  %v7514 = vshll.u32 %v7342, 16
  %v7516 = vrot.slane %v7514, 6
  %v7517 = vor.u32 %v7513, %v7516
  %v7518 = vsel %vm1151, %v7508, %v7517
  %v7520 = vshrl.u32 %v7343, 16
  %v7522 = vrot.slane %v7520, 5
  %v7523 = vshll.u32 %v7343, 16
  %v7525 = vrot.slane %v7523, 6
  %v7526 = vor.u32 %v7522, %v7525
  %v7527 = vsel %vm1151, %v7517, %v7526
  %v7529 = vshrl.u32 %v7344, 16
  %v7531 = vrot.slane %v7529, 5
  %v7532 = vshll.u32 %v7344, 16
  %v7534 = vrot.slane %v7532, 6
  %v7535 = vor.u32 %v7531, %v7534
  %v7536 = vsel %vm1151, %v7526, %v7535
  %v7538 = vshrl.u32 %v7345, 16
  %v7540 = vrot.slane %v7538, 5
  %v7541 = vshll.u32 %v7345, 16
  %v7543 = vrot.slane %v7541, 6
  %v7544 = vor.u32 %v7540, %v7543
  %v7545 = vsel %vm1151, %v7535, %v7544
  %v7547 = vshrl.u32 %v7346, 16
  %v7549 = vrot.slane %v7547, 5
  %v7550 = vshll.u32 %v7346, 16
  %v7552 = vrot.slane %v7550, 6
  %v7553 = vor.u32 %v7549, %v7552
  %v7554 = vsel %vm1151, %v7544, %v7553
  %v7556 = vshrl.u32 %v7347, 16
  %v7558 = vrot.slane %v7556, 5
  %v7559 = vshll.u32 %v7347, 16
  %v7561 = vrot.slane %v7559, 6
  %v7562 = vor.u32 %v7558, %v7561
  %v7563 = vsel %vm1151, %v7553, %v7562
  %v7565 = vshrl.u32 %v7348, 16
  %v7567 = vrot.slane %v7565, 5
  %v7568 = vshll.u32 %v7348, 16
  %v7570 = vrot.slane %v7568, 6
  %v7571 = vor.u32 %v7567, %v7570
  %v7572 = vsel %vm1151, %v7562, %v7571
  %v7574 = vshrl.u32 %v7349, 16
  %v7576 = vrot.slane %v7574, 5
  %v7577 = vshll.u32 %v7349, 16
  %v7579 = vrot.slane %v7577, 6
  %v7580 = vor.u32 %v7576, %v7579
  %v7581 = vsel %vm1151, %v7571, %v7580
  %v7583 = vshrl.u32 %v7350, 16
  %v7585 = vrot.slane %v7583, 5
  %v7586 = vshll.u32 %v7350, 16
  %v7588 = vrot.slane %v7586, 6
  %v7589 = vor.u32 %v7585, %v7588
  %v7590 = vsel %vm1151, %v7580, %v7589
  %v7592 = vshrl.u32 %v7351, 16
  %v7594 = vrot.slane %v7592, 5
  %v7595 = vshll.u32 %v7351, 16
  %v7597 = vrot.slane %v7595, 6
  %v7598 = vor.u32 %v7594, %v7597
  %v7599 = vsel %vm1151, %v7589, %v7598
  %v7601 = vshrl.u32 %v7352, 16
  %v7603 = vrot.slane %v7601, 5
  %v7604 = vshll.u32 %v7352, 16
  %v7606 = vrot.slane %v7604, 6
  %v7607 = vor.u32 %v7603, %v7606
  %v7608 = vsel %vm1151, %v7598, %v7607
  %v7610 = vshrl.u32 %v7353, 16
  %v7612 = vrot.slane %v7610, 5
  %v7613 = vshll.u32 %v7353, 16
  %v7615 = vrot.slane %v7613, 6
  %v7616 = vor.u32 %v7612, %v7615
  %v7617 = vsel %vm1151, %v7607, %v7616
  %v7619 = vshrl.u32 %v7354, 16
  %v7621 = vrot.slane %v7619, 5
  %v7622 = vshll.u32 %v7354, 16
  %v7624 = vrot.slane %v7622, 6
  %v7625 = vor.u32 %v7621, %v7624
  %v7626 = vsel %vm1151, %v7616, %v7625
  %v7628 = vshrl.u32 %v7355, 16
  %v7630 = vrot.slane %v7628, 5
  %v7631 = vshll.u32 %v7355, 16
  %v7633 = vrot.slane %v7631, 6
  %v7634 = vor.u32 %v7630, %v7633
  %v7635 = vsel %vm1151, %v7625, %v7634
  %v7637 = vshrl.u32 %v7356, 16
  %v7639 = vrot.slane %v7637, 5
  %v7640 = vshll.u32 %v7356, 16
  %v7642 = vrot.slane %v7640, 6
  %v7643 = vor.u32 %v7639, %v7642
  %v7644 = vsel %vm1151, %v7634, %v7643
  %v7646 = vshrl.u32 %v7357, 16
  %v7648 = vrot.slane %v7646, 5
  %v7649 = vshll.u32 %v7357, 16
  %v7651 = vrot.slane %v7649, 6
  %v7652 = vor.u32 %v7648, %v7651
  %v7653 = vsel %vm1151, %v7643, %v7652
  %v7655 = vshrl.u32 %v7358, 16
  %v7657 = vrot.slane %v7655, 5
  %v7658 = vshll.u32 %v7358, 16
  %v7660 = vrot.slane %v7658, 6
  %v7661 = vor.u32 %v7657, %v7660
  %v7662 = vsel %vm1151, %v7652, %v7661
  %v7664 = vshrl.u32 %v7359, 16
  %v7666 = vrot.slane %v7664, 5
  %v7667 = vshll.u32 %v7359, 16
  %v7669 = vrot.slane %v7667, 6
  %v7670 = vor.u32 %v7666, %v7669
  %v7671 = vsel %vm1151, %v7661, %v7670
  %v7673 = vshrl.u32 %v7360, 16
  %v7675 = vrot.slane %v7673, 5
  %v7676 = vshll.u32 %v7360, 16
  %v7678 = vrot.slane %v7676, 6
  %v7679 = vor.u32 %v7675, %v7678
  %v7680 = vsel %vm1151, %v7670, %v7679
  %v7682 = vshrl.u32 %v7361, 16
  %v7684 = vrot.slane %v7682, 5
  %v7685 = vshll.u32 %v7361, 16
  %v7687 = vrot.slane %v7685, 6
  %v7688 = vor.u32 %v7684, %v7687
  %v7689 = vsel %vm1151, %v7679, %v7688
  %v7691 = vshrl.u32 %v7362, 16
  %v7693 = vrot.slane %v7691, 5
  %v7694 = vshll.u32 %v7362, 16
  %v7696 = vrot.slane %v7694, 6
  %v7697 = vor.u32 %v7693, %v7696
  %v7698 = vsel %vm1151, %v7688, %v7697
  %v7700 = vshrl.u32 %v7363, 16
  %v7702 = vrot.slane %v7700, 5
  %v7703 = vshll.u32 %v7363, 16
  %v7705 = vrot.slane %v7703, 6
  %v7706 = vor.u32 %v7702, %v7705
  %v7707 = vsel %vm1151, %v7697, %v7706
  %v7709 = vshrl.u32 %v7364, 16
  %v7711 = vrot.slane %v7709, 5
  %v7712 = vshll.u32 %v7364, 16
  %v7714 = vrot.slane %v7712, 6
  %v7715 = vor.u32 %v7711, %v7714
  %v7716 = vsel %vm1151, %v7706, %v7715
  %v7718 = vshrl.u32 %v7365, 16
  %v7720 = vrot.slane %v7718, 5
  %v7721 = vshll.u32 %v7365, 16
  %v7723 = vrot.slane %v7721, 6
  %v7724 = vor.u32 %v7720, %v7723
  %v7725 = vsel %vm1151, %v7715, %v7724
  %v7727 = vshrl.u32 %v7366, 16
  %v7729 = vrot.slane %v7727, 5
  %v7730 = vshll.u32 %v7366, 16
  %v7732 = vrot.slane %v7730, 6
  %v7733 = vor.u32 %v7729, %v7732
  %v7734 = vsel %vm1151, %v7724, %v7733
  %v7736 = vunpack.c.l.b16 %v6421
  %v7737 = vpack.c.b16 %v7736, %v7736
  %v7738 = vrot.slane %v7326, 6
  %v7739 = vrot.slane %v7327, 6
  %v7740 = vsel %vm1523, %v7738, %v7739
  %v7741 = vrot.slane %v7328, 6
  %v7742 = vsel %vm1523, %v7739, %v7741
  %v7743 = vrot.slane %v7329, 6
  %v7744 = vsel %vm1523, %v7741, %v7743
  %v7745 = vrot.slane %v7330, 6
  %v7746 = vsel %vm1523, %v7743, %v7745
  %v7747 = vrot.slane %v7331, 6
  %v7748 = vsel %vm1523, %v7745, %v7747
  %v7749 = vrot.slane %v7332, 6
  %v7750 = vsel %vm1523, %v7747, %v7749
  %v7751 = vrot.slane %v7333, 6
  %v7752 = vsel %vm1523, %v7749, %v7751
  %v7753 = vrot.slane %v7334, 6
  %v7754 = vsel %vm1523, %v7751, %v7753
  %v7755 = vrot.slane %v7335, 6
  %v7756 = vsel %vm1523, %v7753, %v7755
  %v7757 = vrot.slane %v7336, 6
  %v7758 = vsel %vm1523, %v7755, %v7757
  %v7759 = vrot.slane %v7337, 6
  %v7760 = vsel %vm1523, %v7757, %v7759
  %v7761 = vrot.slane %v7338, 6
  %v7762 = vsel %vm1523, %v7759, %v7761
  %v7763 = vrot.slane %v7339, 6
  %v7764 = vsel %vm1523, %v7761, %v7763
  %v7765 = vrot.slane %v7340, 6
  %v7766 = vsel %vm1523, %v7763, %v7765
  %v7767 = vrot.slane %v7341, 6
  %v7768 = vsel %vm1523, %v7765, %v7767
  %v7769 = vrot.slane %v7342, 6
  %v7770 = vsel %vm1523, %v7767, %v7769
  %v7771 = vrot.slane %v7343, 6
  %v7772 = vsel %vm1523, %v7769, %v7771
  %v7773 = vrot.slane %v7344, 6
  %v7774 = vsel %vm1523, %v7771, %v7773
  %v7775 = vrot.slane %v7345, 6
  %v7776 = vsel %vm1523, %v7773, %v7775
  %v7777 = vrot.slane %v7346, 6
  %v7778 = vsel %vm1523, %v7775, %v7777
  %v7779 = vrot.slane %v7347, 6
  %v7780 = vsel %vm1523, %v7777, %v7779
  %v7781 = vrot.slane %v7348, 6
  %v7782 = vsel %vm1523, %v7779, %v7781
  %v7783 = vrot.slane %v7349, 6
  %v7784 = vsel %vm1523, %v7781, %v7783
  %v7785 = vrot.slane %v7350, 6
  %v7786 = vsel %vm1523, %v7783, %v7785
  %v7787 = vrot.slane %v7351, 6
  %v7788 = vsel %vm1523, %v7785, %v7787
  %v7789 = vrot.slane %v7352, 6
  %v7790 = vsel %vm1523, %v7787, %v7789
  %v7791 = vrot.slane %v7353, 6
  %v7792 = vsel %vm1523, %v7789, %v7791
  %v7793 = vrot.slane %v7354, 6
  %v7794 = vsel %vm1523, %v7791, %v7793
  %v7795 = vrot.slane %v7355, 6
  %v7796 = vsel %vm1523, %v7793, %v7795
  %v7797 = vrot.slane %v7356, 6
  %v7798 = vsel %vm1523, %v7795, %v7797
  %v7799 = vrot.slane %v7357, 6
  %v7800 = vsel %vm1523, %v7797, %v7799
  %v7801 = vrot.slane %v7358, 6
  %v7802 = vsel %vm1523, %v7799, %v7801
  %v7803 = vrot.slane %v7359, 6
  %v7804 = vsel %vm1523, %v7801, %v7803
  %v7805 = vrot.slane %v7360, 6
  %v7806 = vsel %vm1523, %v7803, %v7805
  %v7807 = vrot.slane %v7361, 6
  %v7808 = vsel %vm1523, %v7805, %v7807
  %v7809 = vrot.slane %v7362, 6
  %v7810 = vsel %vm1523, %v7807, %v7809
  %v7811 = vrot.slane %v7363, 6
  %v7812 = vsel %vm1523, %v7809, %v7811
  %v7813 = vrot.slane %v7364, 6
  %v7814 = vsel %vm1523, %v7811, %v7813
  %v7815 = vrot.slane %v7365, 6
  %v7816 = vsel %vm1523, %v7813, %v7815
  %v7817 = vrot.slane %v7366, 6
  %v7818 = vsel %vm1523, %v7815, %v7817
  %v7819 = vrot.slane %v7737, 6
  %v7820 = vsel %vm1523, %v7817, %v7819
  %7821 = vrot.lane.b32.xlu0 %v7738, 32
  %v7822 = vpop.permute.xlu0 %7821
  %7823 = vrot.lane.b32.xlu0 %v7740, 32
  %v7824 = vpop.permute.xlu0 %7823
  %7825 = vrot.lane.b32.xlu0 %v7742, 32
  %v7826 = vpop.permute.xlu0 %7825
  %7827 = vrot.lane.b32.xlu0 %v7744, 32
  %v7828 = vpop.permute.xlu0 %7827
  %7829 = vrot.lane.b32.xlu0 %v7746, 32
  %v7830 = vpop.permute.xlu0 %7829
  %7831 = vrot.lane.b32.xlu0 %v7748, 32
  %v7832 = vpop.permute.xlu0 %7831
  %7833 = vrot.lane.b32.xlu0 %v7750, 32
  %v7834 = vpop.permute.xlu0 %7833
  %7835 = vrot.lane.b32.xlu0 %v7752, 32
  %v7836 = vpop.permute.xlu0 %7835
  %7837 = vrot.lane.b32.xlu0 %v7754, 32
  %v7838 = vpop.permute.xlu0 %7837
  %7839 = vrot.lane.b32.xlu0 %v7756, 32
  %v7840 = vpop.permute.xlu0 %7839
  %7841 = vrot.lane.b32.xlu0 %v7758, 32
  %v7842 = vpop.permute.xlu0 %7841
  %7843 = vrot.lane.b32.xlu0 %v7760, 32
  %v7844 = vpop.permute.xlu0 %7843
  %7845 = vrot.lane.b32.xlu0 %v7762, 32
  %v7846 = vpop.permute.xlu0 %7845
  %7847 = vrot.lane.b32.xlu0 %v7764, 32
  %v7848 = vpop.permute.xlu0 %7847
  %7849 = vrot.lane.b32.xlu0 %v7766, 32
  %v7850 = vpop.permute.xlu0 %7849
  %7851 = vrot.lane.b32.xlu0 %v7768, 32
  %v7852 = vpop.permute.xlu0 %7851
  %7853 = vrot.lane.b32.xlu0 %v7770, 32
  %v7854 = vpop.permute.xlu0 %7853
  %7855 = vrot.lane.b32.xlu0 %v7772, 32
  %v7856 = vpop.permute.xlu0 %7855
  %7857 = vrot.lane.b32.xlu0 %v7774, 32
  %v7858 = vpop.permute.xlu0 %7857
  %7859 = vrot.lane.b32.xlu0 %v7776, 32
  %v7860 = vpop.permute.xlu0 %7859
  %7861 = vrot.lane.b32.xlu0 %v7778, 32
  %v7862 = vpop.permute.xlu0 %7861
  %7863 = vrot.lane.b32.xlu0 %v7780, 32
  %v7864 = vpop.permute.xlu0 %7863
  %7865 = vrot.lane.b32.xlu0 %v7782, 32
  %v7866 = vpop.permute.xlu0 %7865
  %7867 = vrot.lane.b32.xlu0 %v7784, 32
  %v7868 = vpop.permute.xlu0 %7867
  %7869 = vrot.lane.b32.xlu0 %v7786, 32
  %v7870 = vpop.permute.xlu0 %7869
  %7871 = vrot.lane.b32.xlu0 %v7788, 32
  %v7872 = vpop.permute.xlu0 %7871
  %7873 = vrot.lane.b32.xlu0 %v7790, 32
  %v7874 = vpop.permute.xlu0 %7873
  %7875 = vrot.lane.b32.xlu0 %v7792, 32
  %v7876 = vpop.permute.xlu0 %7875
  %7877 = vrot.lane.b32.xlu0 %v7794, 32
  %v7878 = vpop.permute.xlu0 %7877
  %7879 = vrot.lane.b32.xlu0 %v7796, 32
  %v7880 = vpop.permute.xlu0 %7879
  %7881 = vrot.lane.b32.xlu0 %v7798, 32
  %v7882 = vpop.permute.xlu0 %7881
  %7883 = vrot.lane.b32.xlu0 %v7800, 32
  %v7884 = vpop.permute.xlu0 %7883
  %7885 = vrot.lane.b32.xlu0 %v7802, 32
  %v7886 = vpop.permute.xlu0 %7885
  %7887 = vrot.lane.b32.xlu0 %v7804, 32
  %v7888 = vpop.permute.xlu0 %7887
  %7889 = vrot.lane.b32.xlu0 %v7806, 32
  %v7890 = vpop.permute.xlu0 %7889
  %7891 = vrot.lane.b32.xlu0 %v7808, 32
  %v7892 = vpop.permute.xlu0 %7891
  %7893 = vrot.lane.b32.xlu0 %v7810, 32
  %v7894 = vpop.permute.xlu0 %7893
  %7895 = vrot.lane.b32.xlu0 %v7812, 32
  %v7896 = vpop.permute.xlu0 %7895
  %7897 = vrot.lane.b32.xlu0 %v7814, 32
  %v7898 = vpop.permute.xlu0 %7897
  %7899 = vrot.lane.b32.xlu0 %v7816, 32
  %v7900 = vpop.permute.xlu0 %7899
  %7901 = vrot.lane.b32.xlu0 %v7818, 32
  %v7902 = vpop.permute.xlu0 %7901
  %7903 = vrot.lane.b32.xlu0 %v7820, 32
  %v7904 = vpop.permute.xlu0 %7903
  %v7908 = vunpack.c.l.b16 %v6422
  %v7909 = vunpack.c.l.b16 %v6423
  %v7910 = vunpack.c.l.b16 %v6424
  %v7911 = vpack.c.b16 %v7909, %v7908
  %v7912 = vpack.c.b16 %v7910, %v7910
  %v7913 = vrot.slane %v7911, 6
  %v7914 = vsel %vm1523, %v7817, %v7913
  %v7915 = vrot.slane %v7912, 6
  %v7916 = vsel %vm1523, %v7913, %v7915
  %7917 = vrot.lane.b32.xlu0 %v7739, 64
  %v7918 = vpop.permute.xlu0 %7917
  %7919 = vrot.lane.b32.xlu0 %v7742, 64
  %v7920 = vpop.permute.xlu0 %7919
  %7921 = vrot.lane.b32.xlu0 %v7744, 64
  %v7922 = vpop.permute.xlu0 %7921
  %7923 = vrot.lane.b32.xlu0 %v7746, 64
  %v7924 = vpop.permute.xlu0 %7923
  %7925 = vrot.lane.b32.xlu0 %v7748, 64
  %v7926 = vpop.permute.xlu0 %7925
  %7927 = vrot.lane.b32.xlu0 %v7750, 64
  %v7928 = vpop.permute.xlu0 %7927
  %7929 = vrot.lane.b32.xlu0 %v7752, 64
  %v7930 = vpop.permute.xlu0 %7929
  %7931 = vrot.lane.b32.xlu0 %v7754, 64
  %v7932 = vpop.permute.xlu0 %7931
  %7933 = vrot.lane.b32.xlu0 %v7756, 64
  %v7934 = vpop.permute.xlu0 %7933
  %7935 = vrot.lane.b32.xlu0 %v7758, 64
  %v7936 = vpop.permute.xlu0 %7935
  %7937 = vrot.lane.b32.xlu0 %v7760, 64
  %v7938 = vpop.permute.xlu0 %7937
  %7939 = vrot.lane.b32.xlu0 %v7762, 64
  %v7940 = vpop.permute.xlu0 %7939
  %7941 = vrot.lane.b32.xlu0 %v7764, 64
  %v7942 = vpop.permute.xlu0 %7941
  %7943 = vrot.lane.b32.xlu0 %v7766, 64
  %v7944 = vpop.permute.xlu0 %7943
  %7945 = vrot.lane.b32.xlu0 %v7768, 64
  %v7946 = vpop.permute.xlu0 %7945
  %7947 = vrot.lane.b32.xlu0 %v7770, 64
  %v7948 = vpop.permute.xlu0 %7947
  %7949 = vrot.lane.b32.xlu0 %v7772, 64
  %v7950 = vpop.permute.xlu0 %7949
  %7951 = vrot.lane.b32.xlu0 %v7774, 64
  %v7952 = vpop.permute.xlu0 %7951
  %7953 = vrot.lane.b32.xlu0 %v7776, 64
  %v7954 = vpop.permute.xlu0 %7953
  %7955 = vrot.lane.b32.xlu0 %v7778, 64
  %v7956 = vpop.permute.xlu0 %7955
  %7957 = vrot.lane.b32.xlu0 %v7780, 64
  %v7958 = vpop.permute.xlu0 %7957
  %7959 = vrot.lane.b32.xlu0 %v7782, 64
  %v7960 = vpop.permute.xlu0 %7959
  %7961 = vrot.lane.b32.xlu0 %v7784, 64
  %v7962 = vpop.permute.xlu0 %7961
  %7963 = vrot.lane.b32.xlu0 %v7786, 64
  %v7964 = vpop.permute.xlu0 %7963
  %7965 = vrot.lane.b32.xlu0 %v7788, 64
  %v7966 = vpop.permute.xlu0 %7965
  %7967 = vrot.lane.b32.xlu0 %v7790, 64
  %v7968 = vpop.permute.xlu0 %7967
  %7969 = vrot.lane.b32.xlu0 %v7792, 64
  %v7970 = vpop.permute.xlu0 %7969
  %7971 = vrot.lane.b32.xlu0 %v7794, 64
  %v7972 = vpop.permute.xlu0 %7971
  %7973 = vrot.lane.b32.xlu0 %v7796, 64
  %v7974 = vpop.permute.xlu0 %7973
  %7975 = vrot.lane.b32.xlu0 %v7798, 64
  %v7976 = vpop.permute.xlu0 %7975
  %7977 = vrot.lane.b32.xlu0 %v7800, 64
  %v7978 = vpop.permute.xlu0 %7977
  %7979 = vrot.lane.b32.xlu0 %v7802, 64
  %v7980 = vpop.permute.xlu0 %7979
  %7981 = vrot.lane.b32.xlu0 %v7804, 64
  %v7982 = vpop.permute.xlu0 %7981
  %7983 = vrot.lane.b32.xlu0 %v7806, 64
  %v7984 = vpop.permute.xlu0 %7983
  %7985 = vrot.lane.b32.xlu0 %v7808, 64
  %v7986 = vpop.permute.xlu0 %7985
  %7987 = vrot.lane.b32.xlu0 %v7810, 64
  %v7988 = vpop.permute.xlu0 %7987
  %7989 = vrot.lane.b32.xlu0 %v7812, 64
  %v7990 = vpop.permute.xlu0 %7989
  %7991 = vrot.lane.b32.xlu0 %v7814, 64
  %v7992 = vpop.permute.xlu0 %7991
  %7993 = vrot.lane.b32.xlu0 %v7816, 64
  %v7994 = vpop.permute.xlu0 %7993
  %7995 = vrot.lane.b32.xlu0 %v7818, 64
  %v7996 = vpop.permute.xlu0 %7995
  %7997 = vrot.lane.b32.xlu0 %v7914, 64
  %v7998 = vpop.permute.xlu0 %7997
  %7999 = vrot.lane.b32.xlu0 %v7916, 64
  %v8000 = vpop.permute.xlu0 %7999
  %v8002 = vunpack.c.l.b16 %v6425
  %v8003 = vpack.c.b16 %v6516, %v8002
  %v8005 = vshrl.u32 %v8003, 16
  %v8007 = vrot.slane %v8005, 6
  %v8008 = vshll.u32 %v8003, 16
  %v8010 = vrot.slane %v8008, 7
  %v8011 = vor.u32 %v8007, %v8010
  %v8012 = vrot.slane %v7385, 6
  %v8013 = vrot.slane %v7388, 7
  %v8014 = vor.u32 %v8012, %v8013
  %v8015 = vsel %vm1790, %v8011, %v8014
  %v8016 = vrot.slane %v7394, 6
  %v8017 = vrot.slane %v7397, 7
  %v8018 = vor.u32 %v8016, %v8017
  %v8019 = vsel %vm1790, %v8014, %v8018
  %v8020 = vrot.slane %v7403, 6
  %v8021 = vrot.slane %v7406, 7
  %v8022 = vor.u32 %v8020, %v8021
  %v8023 = vsel %vm1790, %v8018, %v8022
  %v8024 = vrot.slane %v7412, 6
  %v8025 = vrot.slane %v7415, 7
  %v8026 = vor.u32 %v8024, %v8025
  %v8027 = vsel %vm1790, %v8022, %v8026
  %v8028 = vrot.slane %v7421, 6
  %v8029 = vrot.slane %v7424, 7
  %v8030 = vor.u32 %v8028, %v8029
  %v8031 = vsel %vm1790, %v8026, %v8030
  %v8032 = vrot.slane %v7430, 6
  %v8033 = vrot.slane %v7433, 7
  %v8034 = vor.u32 %v8032, %v8033
  %v8035 = vsel %vm1790, %v8030, %v8034
  %v8036 = vrot.slane %v7439, 6
  %v8037 = vrot.slane %v7442, 7
  %v8038 = vor.u32 %v8036, %v8037
  %v8039 = vsel %vm1790, %v8034, %v8038
  %v8040 = vrot.slane %v7448, 6
  %v8041 = vrot.slane %v7451, 7
  %v8042 = vor.u32 %v8040, %v8041
  %v8043 = vsel %vm1790, %v8038, %v8042
  %v8044 = vrot.slane %v7457, 6
  %v8045 = vrot.slane %v7460, 7
  %v8046 = vor.u32 %v8044, %v8045
  %v8047 = vsel %vm1790, %v8042, %v8046
  %v8048 = vrot.slane %v7466, 6
  %v8049 = vrot.slane %v7469, 7
  %v8050 = vor.u32 %v8048, %v8049
  %v8051 = vsel %vm1790, %v8046, %v8050
  %v8052 = vrot.slane %v7475, 6
  %v8053 = vrot.slane %v7478, 7
  %v8054 = vor.u32 %v8052, %v8053
  %v8055 = vsel %vm1790, %v8050, %v8054
  %v8056 = vrot.slane %v7484, 6
  %v8057 = vrot.slane %v7487, 7
  %v8058 = vor.u32 %v8056, %v8057
  %v8059 = vsel %vm1790, %v8054, %v8058
  %v8060 = vrot.slane %v7493, 6
  %v8061 = vrot.slane %v7496, 7
  %v8062 = vor.u32 %v8060, %v8061
  %v8063 = vsel %vm1790, %v8058, %v8062
  %v8064 = vrot.slane %v7502, 6
  %v8065 = vrot.slane %v7505, 7
  %v8066 = vor.u32 %v8064, %v8065
  %v8067 = vsel %vm1790, %v8062, %v8066
  %v8068 = vrot.slane %v7511, 6
  %v8069 = vrot.slane %v7514, 7
  %v8070 = vor.u32 %v8068, %v8069
  %v8071 = vsel %vm1790, %v8066, %v8070
  %v8072 = vrot.slane %v7520, 6
  %v8073 = vrot.slane %v7523, 7
  %v8074 = vor.u32 %v8072, %v8073
  %v8075 = vsel %vm1790, %v8070, %v8074
  %v8076 = vrot.slane %v7529, 6
  %v8077 = vrot.slane %v7532, 7
  %v8078 = vor.u32 %v8076, %v8077
  %v8079 = vsel %vm1790, %v8074, %v8078
  %v8080 = vrot.slane %v7538, 6
  %v8081 = vrot.slane %v7541, 7
  %v8082 = vor.u32 %v8080, %v8081
  %v8083 = vsel %vm1790, %v8078, %v8082
  %v8084 = vrot.slane %v7547, 6
  %v8085 = vrot.slane %v7550, 7
  %v8086 = vor.u32 %v8084, %v8085
  %v8087 = vsel %vm1790, %v8082, %v8086
  %v8088 = vrot.slane %v7556, 6
  %v8089 = vrot.slane %v7559, 7
  %v8090 = vor.u32 %v8088, %v8089
  %v8091 = vsel %vm1790, %v8086, %v8090
  %v8092 = vrot.slane %v7565, 6
  %v8093 = vrot.slane %v7568, 7
  %v8094 = vor.u32 %v8092, %v8093
  %v8095 = vsel %vm1790, %v8090, %v8094
  %v8096 = vrot.slane %v7574, 6
  %v8097 = vrot.slane %v7577, 7
  %v8098 = vor.u32 %v8096, %v8097
  %v8099 = vsel %vm1790, %v8094, %v8098
  %v8100 = vrot.slane %v7583, 6
  %v8101 = vrot.slane %v7586, 7
  %v8102 = vor.u32 %v8100, %v8101
  %v8103 = vsel %vm1790, %v8098, %v8102
  %v8104 = vrot.slane %v7592, 6
  %v8105 = vrot.slane %v7595, 7
  %v8106 = vor.u32 %v8104, %v8105
  %v8107 = vsel %vm1790, %v8102, %v8106
  %v8108 = vrot.slane %v7601, 6
  %v8109 = vrot.slane %v7604, 7
  %v8110 = vor.u32 %v8108, %v8109
  %v8111 = vsel %vm1790, %v8106, %v8110
  %v8112 = vrot.slane %v7610, 6
  %v8113 = vrot.slane %v7613, 7
  %v8114 = vor.u32 %v8112, %v8113
  %v8115 = vsel %vm1790, %v8110, %v8114
  %v8116 = vrot.slane %v7619, 6
  %v8117 = vrot.slane %v7622, 7
  %v8118 = vor.u32 %v8116, %v8117
  %v8119 = vsel %vm1790, %v8114, %v8118
  %v8120 = vrot.slane %v7628, 6
  %v8121 = vrot.slane %v7631, 7
  %v8122 = vor.u32 %v8120, %v8121
  %v8123 = vsel %vm1790, %v8118, %v8122
  %v8124 = vrot.slane %v7637, 6
  %v8125 = vrot.slane %v7640, 7
  %v8126 = vor.u32 %v8124, %v8125
  %v8127 = vsel %vm1790, %v8122, %v8126
  %v8128 = vrot.slane %v7646, 6
  %v8129 = vrot.slane %v7649, 7
  %v8130 = vor.u32 %v8128, %v8129
  %v8131 = vsel %vm1790, %v8126, %v8130
  %v8132 = vrot.slane %v7655, 6
  %v8133 = vrot.slane %v7658, 7
  %v8134 = vor.u32 %v8132, %v8133
  %v8135 = vsel %vm1790, %v8130, %v8134
  %v8136 = vrot.slane %v7664, 6
  %v8137 = vrot.slane %v7667, 7
  %v8138 = vor.u32 %v8136, %v8137
  %v8139 = vsel %vm1790, %v8134, %v8138
  %v8140 = vrot.slane %v7673, 6
  %v8141 = vrot.slane %v7676, 7
  %v8142 = vor.u32 %v8140, %v8141
  %v8143 = vsel %vm1790, %v8138, %v8142
  %v8144 = vrot.slane %v7682, 6
  %v8145 = vrot.slane %v7685, 7
  %v8146 = vor.u32 %v8144, %v8145
  %v8147 = vsel %vm1790, %v8142, %v8146
  %v8148 = vrot.slane %v7691, 6
  %v8149 = vrot.slane %v7694, 7
  %v8150 = vor.u32 %v8148, %v8149
  %v8151 = vsel %vm1790, %v8146, %v8150
  %v8152 = vrot.slane %v7700, 6
  %v8153 = vrot.slane %v7703, 7
  %v8154 = vor.u32 %v8152, %v8153
  %v8155 = vsel %vm1790, %v8150, %v8154
  %v8156 = vrot.slane %v7709, 6
  %v8157 = vrot.slane %v7712, 7
  %v8158 = vor.u32 %v8156, %v8157
  %v8159 = vsel %vm1790, %v8154, %v8158
  %v8160 = vrot.slane %v7718, 6
  %v8161 = vrot.slane %v7721, 7
  %v8162 = vor.u32 %v8160, %v8161
  %v8163 = vsel %vm1790, %v8158, %v8162
  %v8164 = vrot.slane %v7727, 6
  %v8165 = vrot.slane %v7730, 7
  %v8166 = vor.u32 %v8164, %v8165
  %v8167 = vsel %vm1790, %v8162, %v8166
  %v8169 = vshrl.u32 %v7911, 16
  %v8171 = vrot.slane %v8169, 6
  %v8172 = vshll.u32 %v7911, 16
  %v8174 = vrot.slane %v8172, 7
  %v8175 = vor.u32 %v8171, %v8174
  %v8176 = vsel %vm1790, %v8166, %v8175
  %v8178 = vshrl.u32 %v7912, 16
  %v8180 = vrot.slane %v8178, 6
  %v8181 = vshll.u32 %v7912, 16
  %v8183 = vrot.slane %v8181, 7
  %v8184 = vor.u32 %v8180, %v8183
  %v8185 = vsel %vm1790, %v8175, %v8184
  %8186 = vrot.lane.b32.xlu0 %v8011, 96
  %v8187 = vpop.permute.xlu0 %8186
  %8188 = vrot.lane.b32.xlu0 %v8015, 96
  %v8189 = vpop.permute.xlu0 %8188
  %8190 = vrot.lane.b32.xlu0 %v8019, 96
  %v8191 = vpop.permute.xlu0 %8190
  %8192 = vrot.lane.b32.xlu0 %v8023, 96
  %v8193 = vpop.permute.xlu0 %8192
  %8194 = vrot.lane.b32.xlu0 %v8027, 96
  %v8195 = vpop.permute.xlu0 %8194
  %8196 = vrot.lane.b32.xlu0 %v8031, 96
  %v8197 = vpop.permute.xlu0 %8196
  %8198 = vrot.lane.b32.xlu0 %v8035, 96
  %v8199 = vpop.permute.xlu0 %8198
  %8200 = vrot.lane.b32.xlu0 %v8039, 96
  %v8201 = vpop.permute.xlu0 %8200
  %8202 = vrot.lane.b32.xlu0 %v8043, 96
  %v8203 = vpop.permute.xlu0 %8202
  %8204 = vrot.lane.b32.xlu0 %v8047, 96
  %v8205 = vpop.permute.xlu0 %8204
  %8206 = vrot.lane.b32.xlu0 %v8051, 96
  %v8207 = vpop.permute.xlu0 %8206
  %8208 = vrot.lane.b32.xlu0 %v8055, 96
  %v8209 = vpop.permute.xlu0 %8208
  %8210 = vrot.lane.b32.xlu0 %v8059, 96
  %v8211 = vpop.permute.xlu0 %8210
  %8212 = vrot.lane.b32.xlu0 %v8063, 96
  %v8213 = vpop.permute.xlu0 %8212
  %8214 = vrot.lane.b32.xlu0 %v8067, 96
  %v8215 = vpop.permute.xlu0 %8214
  %8216 = vrot.lane.b32.xlu0 %v8071, 96
  %v8217 = vpop.permute.xlu0 %8216
  %8218 = vrot.lane.b32.xlu0 %v8075, 96
  %v8219 = vpop.permute.xlu0 %8218
  %8220 = vrot.lane.b32.xlu0 %v8079, 96
  %v8221 = vpop.permute.xlu0 %8220
  %8222 = vrot.lane.b32.xlu0 %v8083, 96
  %v8223 = vpop.permute.xlu0 %8222
  %8224 = vrot.lane.b32.xlu0 %v8087, 96
  %v8225 = vpop.permute.xlu0 %8224
  %8226 = vrot.lane.b32.xlu0 %v8091, 96
  %v8227 = vpop.permute.xlu0 %8226
  %8228 = vrot.lane.b32.xlu0 %v8095, 96
  %v8229 = vpop.permute.xlu0 %8228
  %8230 = vrot.lane.b32.xlu0 %v8099, 96
  %v8231 = vpop.permute.xlu0 %8230
  %8232 = vrot.lane.b32.xlu0 %v8103, 96
  %v8233 = vpop.permute.xlu0 %8232
  %8234 = vrot.lane.b32.xlu0 %v8107, 96
  %v8235 = vpop.permute.xlu0 %8234
  %8236 = vrot.lane.b32.xlu0 %v8111, 96
  %v8237 = vpop.permute.xlu0 %8236
  %8238 = vrot.lane.b32.xlu0 %v8115, 96
  %v8239 = vpop.permute.xlu0 %8238
  %8240 = vrot.lane.b32.xlu0 %v8119, 96
  %v8241 = vpop.permute.xlu0 %8240
  %8242 = vrot.lane.b32.xlu0 %v8123, 96
  %v8243 = vpop.permute.xlu0 %8242
  %8244 = vrot.lane.b32.xlu0 %v8127, 96
  %v8245 = vpop.permute.xlu0 %8244
  %8246 = vrot.lane.b32.xlu0 %v8131, 96
  %v8247 = vpop.permute.xlu0 %8246
  %8248 = vrot.lane.b32.xlu0 %v8135, 96
  %v8249 = vpop.permute.xlu0 %8248
  %8250 = vrot.lane.b32.xlu0 %v8139, 96
  %v8251 = vpop.permute.xlu0 %8250
  %8252 = vrot.lane.b32.xlu0 %v8143, 96
  %v8253 = vpop.permute.xlu0 %8252
  %8254 = vrot.lane.b32.xlu0 %v8147, 96
  %v8255 = vpop.permute.xlu0 %8254
  %8256 = vrot.lane.b32.xlu0 %v8151, 96
  %v8257 = vpop.permute.xlu0 %8256
  %8258 = vrot.lane.b32.xlu0 %v8155, 96
  %v8259 = vpop.permute.xlu0 %8258
  %8260 = vrot.lane.b32.xlu0 %v8159, 96
  %v8261 = vpop.permute.xlu0 %8260
  %8262 = vrot.lane.b32.xlu0 %v8163, 96
  %v8263 = vpop.permute.xlu0 %8262
  %8264 = vrot.lane.b32.xlu0 %v8167, 96
  %v8265 = vpop.permute.xlu0 %8264
  %8266 = vrot.lane.b32.xlu0 %v8176, 96
  %v8267 = vpop.permute.xlu0 %8266
  %8268 = vrot.lane.b32.xlu0 %v8185, 96
  %v8269 = vpop.permute.xlu0 %8268
  %v8271 = vunpack.c.l.b16 %v6426
  %v8272 = vpack.c.b16 %v8271, %v8271
  %v8273 = vrot.slane %v8003, 7
  %v8274 = vrot.slane %v7328, 7
  %v8275 = vsel %vm2060, %v8273, %v8274
  %v8276 = vrot.slane %v7329, 7
  %v8277 = vsel %vm2060, %v8274, %v8276
  %v8278 = vrot.slane %v7330, 7
  %v8279 = vsel %vm2060, %v8276, %v8278
  %v8280 = vrot.slane %v7331, 7
  %v8281 = vsel %vm2060, %v8278, %v8280
  %v8282 = vrot.slane %v7332, 7
  %v8283 = vsel %vm2060, %v8280, %v8282
  %v8284 = vrot.slane %v7333, 7
  %v8285 = vsel %vm2060, %v8282, %v8284
  %v8286 = vrot.slane %v7334, 7
  %v8287 = vsel %vm2060, %v8284, %v8286
  %v8288 = vrot.slane %v7335, 7
  %v8289 = vsel %vm2060, %v8286, %v8288
  %v8290 = vrot.slane %v7336, 7
  %v8291 = vsel %vm2060, %v8288, %v8290
  %v8292 = vrot.slane %v7337, 7
  %v8293 = vsel %vm2060, %v8290, %v8292
  %v8294 = vrot.slane %v7338, 7
  %v8295 = vsel %vm2060, %v8292, %v8294
  %v8296 = vrot.slane %v7339, 7
  %v8297 = vsel %vm2060, %v8294, %v8296
  %v8298 = vrot.slane %v7340, 7
  %v8299 = vsel %vm2060, %v8296, %v8298
  %v8300 = vrot.slane %v7341, 7
  %v8301 = vsel %vm2060, %v8298, %v8300
  %v8302 = vrot.slane %v7342, 7
  %v8303 = vsel %vm2060, %v8300, %v8302
  %v8304 = vrot.slane %v7343, 7
  %v8305 = vsel %vm2060, %v8302, %v8304
  %v8306 = vrot.slane %v7344, 7
  %v8307 = vsel %vm2060, %v8304, %v8306
  %v8308 = vrot.slane %v7345, 7
  %v8309 = vsel %vm2060, %v8306, %v8308
  %v8310 = vrot.slane %v7346, 7
  %v8311 = vsel %vm2060, %v8308, %v8310
  %v8312 = vrot.slane %v7347, 7
  %v8313 = vsel %vm2060, %v8310, %v8312
  %v8314 = vrot.slane %v7348, 7
  %v8315 = vsel %vm2060, %v8312, %v8314
  %v8316 = vrot.slane %v7349, 7
  %v8317 = vsel %vm2060, %v8314, %v8316
  %v8318 = vrot.slane %v7350, 7
  %v8319 = vsel %vm2060, %v8316, %v8318
  %v8320 = vrot.slane %v7351, 7
  %v8321 = vsel %vm2060, %v8318, %v8320
  %v8322 = vrot.slane %v7352, 7
  %v8323 = vsel %vm2060, %v8320, %v8322
  %v8324 = vrot.slane %v7353, 7
  %v8325 = vsel %vm2060, %v8322, %v8324
  %v8326 = vrot.slane %v7354, 7
  %v8327 = vsel %vm2060, %v8324, %v8326
  %v8328 = vrot.slane %v7355, 7
  %v8329 = vsel %vm2060, %v8326, %v8328
  %v8330 = vrot.slane %v7356, 7
  %v8331 = vsel %vm2060, %v8328, %v8330
  %v8332 = vrot.slane %v7357, 7
  %v8333 = vsel %vm2060, %v8330, %v8332
  %v8334 = vrot.slane %v7358, 7
  %v8335 = vsel %vm2060, %v8332, %v8334
  %v8336 = vrot.slane %v7359, 7
  %v8337 = vsel %vm2060, %v8334, %v8336
  %v8338 = vrot.slane %v7360, 7
  %v8339 = vsel %vm2060, %v8336, %v8338
  %v8340 = vrot.slane %v7361, 7
  %v8341 = vsel %vm2060, %v8338, %v8340
  %v8342 = vrot.slane %v7362, 7
  %v8343 = vsel %vm2060, %v8340, %v8342
  %v8344 = vrot.slane %v7363, 7
  %v8345 = vsel %vm2060, %v8342, %v8344
  %v8346 = vrot.slane %v7364, 7
  %v8347 = vsel %vm2060, %v8344, %v8346
  %v8348 = vrot.slane %v7365, 7
  %v8349 = vsel %vm2060, %v8346, %v8348
  %v8350 = vrot.slane %v7366, 7
  %v8351 = vsel %vm2060, %v8348, %v8350
  %v8352 = vrot.slane %v7911, 7
  %v8353 = vsel %vm2060, %v8350, %v8352
  %v8354 = vrot.slane %v8272, 7
  %v8355 = vsel %vm2060, %v8352, %v8354
  %v8358 = vsel %vm2144, %v6593, %v6974
  %v8360 = vsel %vm2144, %v6594, %v6976
  %v8362 = vsel %vm2144, %v6595, %v6978
  %v8364 = vsel %vm2144, %v6596, %v6980
  %v8366 = vsel %vm2144, %v6597, %v6982
  %v8368 = vsel %vm2144, %v6598, %v6984
  %v8370 = vsel %vm2144, %v6599, %v6986
  %v8372 = vsel %vm2144, %v6600, %v6988
  %v8374 = vsel %vm2144, %v6601, %v6990
  %v8376 = vsel %vm2144, %v6602, %v6992
  %v8378 = vsel %vm2144, %v6603, %v6994
  %v8380 = vsel %vm2144, %v6604, %v6996
  %v8382 = vsel %vm2144, %v6605, %v6998
  %v8384 = vsel %vm2144, %v6606, %v7000
  %v8386 = vsel %vm2144, %v6607, %v7002
  %v8388 = vsel %vm2144, %v6608, %v7004
  %v8390 = vsel %vm2144, %v6609, %v7006
  %v8392 = vsel %vm2144, %v6610, %v7008
  %v8394 = vsel %vm2144, %v6611, %v7010
  %v8396 = vsel %vm2144, %v6612, %v7012
  %v8398 = vsel %vm2144, %v6613, %v7014
  %v8400 = vsel %vm2144, %v6614, %v7016
  %v8402 = vsel %vm2144, %v6615, %v7018
  %v8404 = vsel %vm2144, %v6616, %v7020
  %v8406 = vsel %vm2144, %v6617, %v7022
  %v8408 = vsel %vm2144, %v6618, %v7024
  %v8410 = vsel %vm2144, %v6619, %v7026
  %v8412 = vsel %vm2144, %v6620, %v7028
  %v8414 = vsel %vm2144, %v6621, %v7030
  %v8416 = vsel %vm2144, %v6622, %v7032
  %v8418 = vsel %vm2144, %v6623, %v7034
  %v8420 = vsel %vm2144, %v6624, %v7036
  %v8422 = vsel %vm2144, %v6625, %v7038
  %v8424 = vsel %vm2144, %v6626, %v7040
  %v8426 = vsel %vm2144, %v6627, %v7042
  %v8428 = vsel %vm2144, %v6628, %v7044
  %v8430 = vsel %vm2144, %v6629, %v7046
  %v8432 = vsel %vm2144, %v6630, %v7048
  %v8434 = vsel %vm2144, %v6631, %v7050
  %v8436 = vsel %vm2144, %v6632, %v7052
  %v8438 = vsel %vm2144, %v6633, %v7054
  %v8440 = vsel %vm2144, %v6634, %v7056
  %v8442 = vsel %vm2230, %v8358, %v7144
  %v8444 = vsel %vm2230, %v8360, %v7146
  %v8446 = vsel %vm2230, %v8362, %v7148
  %v8448 = vsel %vm2230, %v8364, %v7150
  %v8450 = vsel %vm2230, %v8366, %v7152
  %v8452 = vsel %vm2230, %v8368, %v7154
  %v8454 = vsel %vm2230, %v8370, %v7156
  %v8456 = vsel %vm2230, %v8372, %v7158
  %v8458 = vsel %vm2230, %v8374, %v7160
  %v8460 = vsel %vm2230, %v8376, %v7162
  %v8462 = vsel %vm2230, %v8378, %v7164
  %v8464 = vsel %vm2230, %v8380, %v7166
  %v8466 = vsel %vm2230, %v8382, %v7168
  %v8468 = vsel %vm2230, %v8384, %v7170
  %v8470 = vsel %vm2230, %v8386, %v7172
  %v8472 = vsel %vm2230, %v8388, %v7174
  %v8474 = vsel %vm2230, %v8390, %v7176
  %v8476 = vsel %vm2230, %v8392, %v7178
  %v8478 = vsel %vm2230, %v8394, %v7180
  %v8480 = vsel %vm2230, %v8396, %v7182
  %v8482 = vsel %vm2230, %v8398, %v7184
  %v8484 = vsel %vm2230, %v8400, %v7186
  %v8486 = vsel %vm2230, %v8402, %v7188
  %v8488 = vsel %vm2230, %v8404, %v7190
  %v8490 = vsel %vm2230, %v8406, %v7192
  %v8492 = vsel %vm2230, %v8408, %v7194
  %v8494 = vsel %vm2230, %v8410, %v7196
  %v8496 = vsel %vm2230, %v8412, %v7198
  %v8498 = vsel %vm2230, %v8414, %v7200
  %v8500 = vsel %vm2230, %v8416, %v7202
  %v8502 = vsel %vm2230, %v8418, %v7204
  %v8504 = vsel %vm2230, %v8420, %v7206
  %v8506 = vsel %vm2230, %v8422, %v7208
  %v8508 = vsel %vm2230, %v8424, %v7210
  %v8510 = vsel %vm2230, %v8426, %v7212
  %v8512 = vsel %vm2230, %v8428, %v7214
  %v8514 = vsel %vm2230, %v8430, %v7216
  %v8516 = vsel %vm2230, %v8432, %v7218
  %v8518 = vsel %vm2230, %v8434, %v7220
  %v8520 = vsel %vm2230, %v8436, %v7222
  %v8522 = vsel %vm2230, %v8438, %v7224
  %v8524 = vsel %vm2230, %v8440, %v7226
  %v8526 = vsel %vm2315, %v8442, %v7243
  %v8528 = vsel %vm2315, %v8444, %v7245
  %v8530 = vsel %vm2315, %v8446, %v7247
  %v8532 = vsel %vm2315, %v8448, %v7249
  %v8534 = vsel %vm2315, %v8450, %v7251
  %v8536 = vsel %vm2315, %v8452, %v7253
  %v8538 = vsel %vm2315, %v8454, %v7255
  %v8540 = vsel %vm2315, %v8456, %v7257
  %v8542 = vsel %vm2315, %v8458, %v7259
  %v8544 = vsel %vm2315, %v8460, %v7261
  %v8546 = vsel %vm2315, %v8462, %v7263
  %v8548 = vsel %vm2315, %v8464, %v7265
  %v8550 = vsel %vm2315, %v8466, %v7267
  %v8552 = vsel %vm2315, %v8468, %v7269
  %v8554 = vsel %vm2315, %v8470, %v7271
  %v8556 = vsel %vm2315, %v8472, %v7273
  %v8558 = vsel %vm2315, %v8474, %v7275
  %v8560 = vsel %vm2315, %v8476, %v7277
  %v8562 = vsel %vm2315, %v8478, %v7279
  %v8564 = vsel %vm2315, %v8480, %v7281
  %v8566 = vsel %vm2315, %v8482, %v7283
  %v8568 = vsel %vm2315, %v8484, %v7285
  %v8570 = vsel %vm2315, %v8486, %v7287
  %v8572 = vsel %vm2315, %v8488, %v7289
  %v8574 = vsel %vm2315, %v8490, %v7291
  %v8576 = vsel %vm2315, %v8492, %v7293
  %v8578 = vsel %vm2315, %v8494, %v7295
  %v8580 = vsel %vm2315, %v8496, %v7297
  %v8582 = vsel %vm2315, %v8498, %v7299
  %v8584 = vsel %vm2315, %v8500, %v7301
  %v8586 = vsel %vm2315, %v8502, %v7303
  %v8588 = vsel %vm2315, %v8504, %v7305
  %v8590 = vsel %vm2315, %v8506, %v7307
  %v8592 = vsel %vm2315, %v8508, %v7309
  %v8594 = vsel %vm2315, %v8510, %v7311
  %v8596 = vsel %vm2315, %v8512, %v7313
  %v8598 = vsel %vm2315, %v8514, %v7315
  %v8600 = vsel %vm2315, %v8516, %v7317
  %v8602 = vsel %vm2315, %v8518, %v7319
  %v8604 = vsel %vm2315, %v8520, %v7321
  %v8606 = vsel %vm2315, %v8522, %v7323
  %v8608 = vsel %vm2315, %v8524, %v7325
  %v8611 = vsel %vm2144, %v7374, %v7822
  %v8614 = vsel %vm2144, %v7383, %v7824
  %v8617 = vsel %vm2144, %v7392, %v7826
  %v8620 = vsel %vm2144, %v7401, %v7828
  %v8623 = vsel %vm2144, %v7410, %v7830
  %v8626 = vsel %vm2144, %v7419, %v7832
  %v8629 = vsel %vm2144, %v7428, %v7834
  %v8632 = vsel %vm2144, %v7437, %v7836
  %v8635 = vsel %vm2144, %v7446, %v7838
  %v8638 = vsel %vm2144, %v7455, %v7840
  %v8641 = vsel %vm2144, %v7464, %v7842
  %v8644 = vsel %vm2144, %v7473, %v7844
  %v8647 = vsel %vm2144, %v7482, %v7846
  %v8650 = vsel %vm2144, %v7491, %v7848
  %v8653 = vsel %vm2144, %v7500, %v7850
  %v8656 = vsel %vm2144, %v7509, %v7852
  %v8659 = vsel %vm2144, %v7518, %v7854
  %v8662 = vsel %vm2144, %v7527, %v7856
  %v8665 = vsel %vm2144, %v7536, %v7858
  %v8668 = vsel %vm2144, %v7545, %v7860
  %v8671 = vsel %vm2144, %v7554, %v7862
  %v8674 = vsel %vm2144, %v7563, %v7864
  %v8677 = vsel %vm2144, %v7572, %v7866
  %v8680 = vsel %vm2144, %v7581, %v7868
  %v8683 = vsel %vm2144, %v7590, %v7870
  %v8686 = vsel %vm2144, %v7599, %v7872
  %v8689 = vsel %vm2144, %v7608, %v7874
  %v8692 = vsel %vm2144, %v7617, %v7876
  %v8695 = vsel %vm2144, %v7626, %v7878
  %v8698 = vsel %vm2144, %v7635, %v7880
  %v8701 = vsel %vm2144, %v7644, %v7882
  %v8704 = vsel %vm2144, %v7653, %v7884
  %v8707 = vsel %vm2144, %v7662, %v7886
  %v8710 = vsel %vm2144, %v7671, %v7888
  %v8713 = vsel %vm2144, %v7680, %v7890
  %v8716 = vsel %vm2144, %v7689, %v7892
  %v8719 = vsel %vm2144, %v7698, %v7894
  %v8722 = vsel %vm2144, %v7707, %v7896
  %v8725 = vsel %vm2144, %v7716, %v7898
  %v8728 = vsel %vm2144, %v7725, %v7900
  %v8731 = vsel %vm2144, %v7734, %v7902
  %v8734 = vsel %vm2144, %v7733, %v7904
  %v8736 = vsel %vm2230, %v8611, %v7918
  %v8738 = vsel %vm2230, %v8614, %v7920
  %v8740 = vsel %vm2230, %v8617, %v7922
  %v8742 = vsel %vm2230, %v8620, %v7924
  %v8744 = vsel %vm2230, %v8623, %v7926
  %v8746 = vsel %vm2230, %v8626, %v7928
  %v8748 = vsel %vm2230, %v8629, %v7930
  %v8750 = vsel %vm2230, %v8632, %v7932
  %v8752 = vsel %vm2230, %v8635, %v7934
  %v8754 = vsel %vm2230, %v8638, %v7936
  %v8756 = vsel %vm2230, %v8641, %v7938
  %v8758 = vsel %vm2230, %v8644, %v7940
  %v8760 = vsel %vm2230, %v8647, %v7942
  %v8762 = vsel %vm2230, %v8650, %v7944
  %v8764 = vsel %vm2230, %v8653, %v7946
  %v8766 = vsel %vm2230, %v8656, %v7948
  %v8768 = vsel %vm2230, %v8659, %v7950
  %v8770 = vsel %vm2230, %v8662, %v7952
  %v8772 = vsel %vm2230, %v8665, %v7954
  %v8774 = vsel %vm2230, %v8668, %v7956
  %v8776 = vsel %vm2230, %v8671, %v7958
  %v8778 = vsel %vm2230, %v8674, %v7960
  %v8780 = vsel %vm2230, %v8677, %v7962
  %v8782 = vsel %vm2230, %v8680, %v7964
  %v8784 = vsel %vm2230, %v8683, %v7966
  %v8786 = vsel %vm2230, %v8686, %v7968
  %v8788 = vsel %vm2230, %v8689, %v7970
  %v8790 = vsel %vm2230, %v8692, %v7972
  %v8792 = vsel %vm2230, %v8695, %v7974
  %v8794 = vsel %vm2230, %v8698, %v7976
  %v8796 = vsel %vm2230, %v8701, %v7978
  %v8798 = vsel %vm2230, %v8704, %v7980
  %v8800 = vsel %vm2230, %v8707, %v7982
  %v8802 = vsel %vm2230, %v8710, %v7984
  %v8804 = vsel %vm2230, %v8713, %v7986
  %v8806 = vsel %vm2230, %v8716, %v7988
  %v8808 = vsel %vm2230, %v8719, %v7990
  %v8810 = vsel %vm2230, %v8722, %v7992
  %v8812 = vsel %vm2230, %v8725, %v7994
  %v8814 = vsel %vm2230, %v8728, %v7996
  %v8816 = vsel %vm2230, %v8731, %v7998
  %v8818 = vsel %vm2230, %v8734, %v8000
  %v8820 = vsel %vm2315, %v8736, %v8187
  %v8822 = vsel %vm2315, %v8738, %v8189
  %v8824 = vsel %vm2315, %v8740, %v8191
  %v8826 = vsel %vm2315, %v8742, %v8193
  %v8828 = vsel %vm2315, %v8744, %v8195
  %v8830 = vsel %vm2315, %v8746, %v8197
  %v8832 = vsel %vm2315, %v8748, %v8199
  %v8834 = vsel %vm2315, %v8750, %v8201
  %v8836 = vsel %vm2315, %v8752, %v8203
  %v8838 = vsel %vm2315, %v8754, %v8205
  %v8840 = vsel %vm2315, %v8756, %v8207
  %v8842 = vsel %vm2315, %v8758, %v8209
  %v8844 = vsel %vm2315, %v8760, %v8211
  %v8846 = vsel %vm2315, %v8762, %v8213
  %v8848 = vsel %vm2315, %v8764, %v8215
  %v8850 = vsel %vm2315, %v8766, %v8217
  %v8852 = vsel %vm2315, %v8768, %v8219
  %v8854 = vsel %vm2315, %v8770, %v8221
  %v8856 = vsel %vm2315, %v8772, %v8223
  %v8858 = vsel %vm2315, %v8774, %v8225
  %v8860 = vsel %vm2315, %v8776, %v8227
  %v8862 = vsel %vm2315, %v8778, %v8229
  %v8864 = vsel %vm2315, %v8780, %v8231
  %v8866 = vsel %vm2315, %v8782, %v8233
  %v8868 = vsel %vm2315, %v8784, %v8235
  %v8870 = vsel %vm2315, %v8786, %v8237
  %v8872 = vsel %vm2315, %v8788, %v8239
  %v8874 = vsel %vm2315, %v8790, %v8241
  %v8876 = vsel %vm2315, %v8792, %v8243
  %v8878 = vsel %vm2315, %v8794, %v8245
  %v8880 = vsel %vm2315, %v8796, %v8247
  %v8882 = vsel %vm2315, %v8798, %v8249
  %v8884 = vsel %vm2315, %v8800, %v8251
  %v8886 = vsel %vm2315, %v8802, %v8253
  %v8888 = vsel %vm2315, %v8804, %v8255
  %v8890 = vsel %vm2315, %v8806, %v8257
  %v8892 = vsel %vm2315, %v8808, %v8259
  %v8894 = vsel %vm2315, %v8810, %v8261
  %v8896 = vsel %vm2315, %v8812, %v8263
  %v8898 = vsel %vm2315, %v8814, %v8265
  %v8900 = vsel %vm2315, %v8816, %v8267
  %v8902 = vsel %vm2315, %v8818, %v8269
  %v8903 = vld [vmem:[%s6] sm:$0xf]
  %v8904 = vld [vmem:[%s6 + $0x4] sm:$0xf]
  %v8905 = vld [vmem:[%s6 + $0x8] sm:$0xf]
  %v8906 = vld [vmem:[%s6 + $0xc] sm:$0xf]
  %v8907 = vld [vmem:[%s6 + $0x10] sm:$0xf]
  %v8908 = vld [vmem:[%s6 + $0x14] sm:$0xf]
  %v8909 = vld [vmem:[%s6 + $0x18] sm:$0xf]
  %v8910 = vld [vmem:[%s6 + $0x1c] sm:$0xf]
  %v8911 = vld [vmem:[%s6 + $0x20] sm:$0xf]
  %v8912 = vld [vmem:[%s6 + $0x24] sm:$0xf]
  %v8913 = vld [vmem:[%s6 + $0x28] sm:$0xf]
  %v8914 = vld [vmem:[%s6 + $0x2c] sm:$0xf]
  %v8915 = vld [vmem:[%s6 + $0x30] sm:$0xf]
  %v8916 = vld [vmem:[%s6 + $0x34] sm:$0xf]
  %v8917 = vld [vmem:[%s6 + $0x38] sm:$0xf]
  %v8918 = vld [vmem:[%s6 + $0x3c] sm:$0xf]
  %v8919 = vld [vmem:[%s6 + $0x40] sm:$0xf]
  %v8920 = vld [vmem:[%s6 + $0x44] sm:$0xf]
  %v8921 = vld [vmem:[%s6 + $0x48] sm:$0xf]
  %v8922 = vld [vmem:[%s6 + $0x4c] sm:$0xf]
  %v8923 = vld [vmem:[%s6 + $0x50] sm:$0xf]
  %v8924 = vld [vmem:[%s6 + $0x54] sm:$0xf]
  %v8925 = vld [vmem:[%s6 + $0x58] sm:$0xf]
  %v8926 = vld [vmem:[%s6 + $0x5c] sm:$0xf]
  %v8927 = vld [vmem:[%s6 + $0x60] sm:$0xf]
  %v8928 = vld [vmem:[%s6 + $0x64] sm:$0xf]
  %v8929 = vld [vmem:[%s6 + $0x68] sm:$0xf]
  %v8930 = vld [vmem:[%s6 + $0x6c] sm:$0xf]
  %v8931 = vld [vmem:[%s6 + $0x70] sm:$0xf]
  %v8932 = vld [vmem:[%s6 + $0x74] sm:$0xf]
  %v8933 = vld [vmem:[%s6 + $0x78] sm:$0xf]
  %v8934 = vld [vmem:[%s6 + $0x7c] sm:$0xf]
  %v8935 = vld [vmem:[%s6 + $0x80] sm:$0xf]
  %v8936 = vld [vmem:[%s6 + $0x84] sm:$0xf]
  %v8937 = vld [vmem:[%s6 + $0x88] sm:$0xf]
  %v8938 = vld [vmem:[%s6 + $0x8c] sm:$0xf]
  %v8939 = vshrl.u32 %v8526, 16
  %v8941 = vrot.slane %v8939, 2
  %v8942 = vshll.u32 %v8526, 16
  %v8944 = vrot.slane %v8942, 3
  %v8945 = vor.u32 %v8941, %v8944
  %v8946 = vshrl.u32 %v8528, 16
  %v8948 = vrot.slane %v8946, 2
  %v8949 = vshll.u32 %v8528, 16
  %v8951 = vrot.slane %v8949, 3
  %v8952 = vor.u32 %v8948, %v8951
  %v8953 = vsel %vm2730, %v8945, %v8952
  %v8954 = vshrl.u32 %v8820, 16
  %v8956 = vrot.slane %v8954, 2
  %v8957 = vshll.u32 %v8820, 16
  %v8959 = vrot.slane %v8957, 3
  %v8960 = vor.u32 %v8956, %v8959
  %v8961 = vshrl.u32 %v8822, 16
  %v8963 = vrot.slane %v8961, 2
  %v8964 = vshll.u32 %v8822, 16
  %v8966 = vrot.slane %v8964, 3
  %v8967 = vor.u32 %v8963, %v8966
  %v8968 = vsel %vm2730, %v8960, %v8967
  %v8970 = vshrl.u32 %v8273, 16
  %v8972 = vrot.slane %v8970, 2
  %v8973 = vshll.u32 %v8273, 16
  %v8975 = vrot.slane %v8973, 3
  %v8976 = vor.u32 %v8972, %v8975
  %v8978 = vshrl.u32 %v8275, 16
  %v8980 = vrot.slane %v8978, 2
  %v8981 = vshll.u32 %v8275, 16
  %v8983 = vrot.slane %v8981, 3
  %v8984 = vor.u32 %v8980, %v8983
  %v8985 = vsel %vm2730, %v8976, %v8984
  %v8986 = vshrl.u32 %v8530, 16
  %v8988 = vrot.slane %v8986, 2
  %v8989 = vshll.u32 %v8530, 16
  %v8991 = vrot.slane %v8989, 3
  %v8992 = vor.u32 %v8988, %v8991
  %v8993 = vsel %vm2730, %v8952, %v8992
  %v8994 = vshrl.u32 %v8824, 16
  %v8996 = vrot.slane %v8994, 2
  %v8997 = vshll.u32 %v8824, 16
  %v8999 = vrot.slane %v8997, 3
  %v9000 = vor.u32 %v8996, %v8999
  %v9001 = vsel %vm2730, %v8967, %v9000
  %v9003 = vshrl.u32 %v8277, 16
  %v9005 = vrot.slane %v9003, 2
  %v9006 = vshll.u32 %v8277, 16
  %v9008 = vrot.slane %v9006, 3
  %v9009 = vor.u32 %v9005, %v9008
  %v9010 = vsel %vm2730, %v8984, %v9009
  %v9011 = vshrl.u32 %v8532, 16
  %v9013 = vrot.slane %v9011, 2
  %v9014 = vshll.u32 %v8532, 16
  %v9016 = vrot.slane %v9014, 3
  %v9017 = vor.u32 %v9013, %v9016
  %v9018 = vsel %vm2730, %v8992, %v9017
  %v9019 = vshrl.u32 %v8826, 16
  %v9021 = vrot.slane %v9019, 2
  %v9022 = vshll.u32 %v8826, 16
  %v9024 = vrot.slane %v9022, 3
  %v9025 = vor.u32 %v9021, %v9024
  %v9026 = vsel %vm2730, %v9000, %v9025
  %v9028 = vshrl.u32 %v8279, 16
  %v9030 = vrot.slane %v9028, 2
  %v9031 = vshll.u32 %v8279, 16
  %v9033 = vrot.slane %v9031, 3
  %v9034 = vor.u32 %v9030, %v9033
  %v9035 = vsel %vm2730, %v9009, %v9034
  %v9036 = vshrl.u32 %v8534, 16
  %v9038 = vrot.slane %v9036, 2
  %v9039 = vshll.u32 %v8534, 16
  %v9041 = vrot.slane %v9039, 3
  %v9042 = vor.u32 %v9038, %v9041
  %v9043 = vsel %vm2730, %v9017, %v9042
  %v9044 = vshrl.u32 %v8828, 16
  %v9046 = vrot.slane %v9044, 2
  %v9047 = vshll.u32 %v8828, 16
  %v9049 = vrot.slane %v9047, 3
  %v9050 = vor.u32 %v9046, %v9049
  %v9051 = vsel %vm2730, %v9025, %v9050
  %v9053 = vshrl.u32 %v8281, 16
  %v9055 = vrot.slane %v9053, 2
  %v9056 = vshll.u32 %v8281, 16
  %v9058 = vrot.slane %v9056, 3
  %v9059 = vor.u32 %v9055, %v9058
  %v9060 = vsel %vm2730, %v9034, %v9059
  %v9061 = vshrl.u32 %v8536, 16
  %v9063 = vrot.slane %v9061, 2
  %v9064 = vshll.u32 %v8536, 16
  %v9066 = vrot.slane %v9064, 3
  %v9067 = vor.u32 %v9063, %v9066
  %v9068 = vsel %vm2730, %v9042, %v9067
  %v9069 = vshrl.u32 %v8830, 16
  %v9071 = vrot.slane %v9069, 2
  %v9072 = vshll.u32 %v8830, 16
  %v9074 = vrot.slane %v9072, 3
  %v9075 = vor.u32 %v9071, %v9074
  %v9076 = vsel %vm2730, %v9050, %v9075
  %v9078 = vshrl.u32 %v8283, 16
  %v9080 = vrot.slane %v9078, 2
  %v9081 = vshll.u32 %v8283, 16
  %v9083 = vrot.slane %v9081, 3
  %v9084 = vor.u32 %v9080, %v9083
  %v9085 = vsel %vm2730, %v9059, %v9084
  %v9086 = vshrl.u32 %v8538, 16
  %v9088 = vrot.slane %v9086, 2
  %v9089 = vshll.u32 %v8538, 16
  %v9091 = vrot.slane %v9089, 3
  %v9092 = vor.u32 %v9088, %v9091
  %v9093 = vsel %vm2730, %v9067, %v9092
  %v9094 = vshrl.u32 %v8832, 16
  %v9096 = vrot.slane %v9094, 2
  %v9097 = vshll.u32 %v8832, 16
  %v9099 = vrot.slane %v9097, 3
  %v9100 = vor.u32 %v9096, %v9099
  %v9101 = vsel %vm2730, %v9075, %v9100
  %v9103 = vshrl.u32 %v8285, 16
  %v9105 = vrot.slane %v9103, 2
  %v9106 = vshll.u32 %v8285, 16
  %v9108 = vrot.slane %v9106, 3
  %v9109 = vor.u32 %v9105, %v9108
  %v9110 = vsel %vm2730, %v9084, %v9109
  %v9111 = vshrl.u32 %v8540, 16
  %v9113 = vrot.slane %v9111, 2
  %v9114 = vshll.u32 %v8540, 16
  %v9116 = vrot.slane %v9114, 3
  %v9117 = vor.u32 %v9113, %v9116
  %v9118 = vsel %vm2730, %v9092, %v9117
  %v9119 = vshrl.u32 %v8834, 16
  %v9121 = vrot.slane %v9119, 2
  %v9122 = vshll.u32 %v8834, 16
  %v9124 = vrot.slane %v9122, 3
  %v9125 = vor.u32 %v9121, %v9124
  %v9126 = vsel %vm2730, %v9100, %v9125
  %v9128 = vshrl.u32 %v8287, 16
  %v9130 = vrot.slane %v9128, 2
  %v9131 = vshll.u32 %v8287, 16
  %v9133 = vrot.slane %v9131, 3
  %v9134 = vor.u32 %v9130, %v9133
  %v9135 = vsel %vm2730, %v9109, %v9134
  %v9136 = vshrl.u32 %v8542, 16
  %v9138 = vrot.slane %v9136, 2
  %v9139 = vshll.u32 %v8542, 16
  %v9141 = vrot.slane %v9139, 3
  %v9142 = vor.u32 %v9138, %v9141
  %v9143 = vsel %vm2730, %v9117, %v9142
  %v9144 = vshrl.u32 %v8836, 16
  %v9146 = vrot.slane %v9144, 2
  %v9147 = vshll.u32 %v8836, 16
  %v9149 = vrot.slane %v9147, 3
  %v9150 = vor.u32 %v9146, %v9149
  %v9151 = vsel %vm2730, %v9125, %v9150
  %v9153 = vshrl.u32 %v8289, 16
  %v9155 = vrot.slane %v9153, 2
  %v9156 = vshll.u32 %v8289, 16
  %v9158 = vrot.slane %v9156, 3
  %v9159 = vor.u32 %v9155, %v9158
  %v9160 = vsel %vm2730, %v9134, %v9159
  %v9161 = vshrl.u32 %v8544, 16
  %v9163 = vrot.slane %v9161, 2
  %v9164 = vshll.u32 %v8544, 16
  %v9166 = vrot.slane %v9164, 3
  %v9167 = vor.u32 %v9163, %v9166
  %v9168 = vsel %vm2730, %v9142, %v9167
  %v9169 = vshrl.u32 %v8838, 16
  %v9171 = vrot.slane %v9169, 2
  %v9172 = vshll.u32 %v8838, 16
  %v9174 = vrot.slane %v9172, 3
  %v9175 = vor.u32 %v9171, %v9174
  %v9176 = vsel %vm2730, %v9150, %v9175
  %v9178 = vshrl.u32 %v8291, 16
  %v9180 = vrot.slane %v9178, 2
  %v9181 = vshll.u32 %v8291, 16
  %v9183 = vrot.slane %v9181, 3
  %v9184 = vor.u32 %v9180, %v9183
  %v9185 = vsel %vm2730, %v9159, %v9184
  %v9186 = vshrl.u32 %v8546, 16
  %v9188 = vrot.slane %v9186, 2
  %v9189 = vshll.u32 %v8546, 16
  %v9191 = vrot.slane %v9189, 3
  %v9192 = vor.u32 %v9188, %v9191
  %v9193 = vsel %vm2730, %v9167, %v9192
  %v9194 = vshrl.u32 %v8840, 16
  %v9196 = vrot.slane %v9194, 2
  %v9197 = vshll.u32 %v8840, 16
  %v9199 = vrot.slane %v9197, 3
  %v9200 = vor.u32 %v9196, %v9199
  %v9201 = vsel %vm2730, %v9175, %v9200
  %v9203 = vshrl.u32 %v8293, 16
  %v9205 = vrot.slane %v9203, 2
  %v9206 = vshll.u32 %v8293, 16
  %v9208 = vrot.slane %v9206, 3
  %v9209 = vor.u32 %v9205, %v9208
  %v9210 = vsel %vm2730, %v9184, %v9209
  %v9211 = vshrl.u32 %v8548, 16
  %v9213 = vrot.slane %v9211, 2
  %v9214 = vshll.u32 %v8548, 16
  %v9216 = vrot.slane %v9214, 3
  %v9217 = vor.u32 %v9213, %v9216
  %v9218 = vsel %vm2730, %v9192, %v9217
  %v9219 = vshrl.u32 %v8842, 16
  %v9221 = vrot.slane %v9219, 2
  %v9222 = vshll.u32 %v8842, 16
  %v9224 = vrot.slane %v9222, 3
  %v9225 = vor.u32 %v9221, %v9224
  %v9226 = vsel %vm2730, %v9200, %v9225
  %v9228 = vshrl.u32 %v8295, 16
  %v9230 = vrot.slane %v9228, 2
  %v9231 = vshll.u32 %v8295, 16
  %v9233 = vrot.slane %v9231, 3
  %v9234 = vor.u32 %v9230, %v9233
  %v9235 = vsel %vm2730, %v9209, %v9234
  %v9236 = vshrl.u32 %v8550, 16
  %v9238 = vrot.slane %v9236, 2
  %v9239 = vshll.u32 %v8550, 16
  %v9241 = vrot.slane %v9239, 3
  %v9242 = vor.u32 %v9238, %v9241
  %v9243 = vsel %vm2730, %v9217, %v9242
  %v9244 = vshrl.u32 %v8844, 16
  %v9246 = vrot.slane %v9244, 2
  %v9247 = vshll.u32 %v8844, 16
  %v9249 = vrot.slane %v9247, 3
  %v9250 = vor.u32 %v9246, %v9249
  %v9251 = vsel %vm2730, %v9225, %v9250
  %v9253 = vshrl.u32 %v8297, 16
  %v9255 = vrot.slane %v9253, 2
  %v9256 = vshll.u32 %v8297, 16
  %v9258 = vrot.slane %v9256, 3
  %v9259 = vor.u32 %v9255, %v9258
  %v9260 = vsel %vm2730, %v9234, %v9259
  %v9261 = vshrl.u32 %v8552, 16
  %v9263 = vrot.slane %v9261, 2
  %v9264 = vshll.u32 %v8552, 16
  %v9266 = vrot.slane %v9264, 3
  %v9267 = vor.u32 %v9263, %v9266
  %v9268 = vsel %vm2730, %v9242, %v9267
  %v9269 = vshrl.u32 %v8846, 16
  %v9271 = vrot.slane %v9269, 2
  %v9272 = vshll.u32 %v8846, 16
  %v9274 = vrot.slane %v9272, 3
  %v9275 = vor.u32 %v9271, %v9274
  %v9276 = vsel %vm2730, %v9250, %v9275
  %v9278 = vshrl.u32 %v8299, 16
  %v9280 = vrot.slane %v9278, 2
  %v9281 = vshll.u32 %v8299, 16
  %v9283 = vrot.slane %v9281, 3
  %v9284 = vor.u32 %v9280, %v9283
  %v9285 = vsel %vm2730, %v9259, %v9284
  %v9286 = vshrl.u32 %v8554, 16
  %v9288 = vrot.slane %v9286, 2
  %v9289 = vshll.u32 %v8554, 16
  %v9291 = vrot.slane %v9289, 3
  %v9292 = vor.u32 %v9288, %v9291
  %v9293 = vsel %vm2730, %v9267, %v9292
  %v9294 = vshrl.u32 %v8848, 16
  %v9296 = vrot.slane %v9294, 2
  %v9297 = vshll.u32 %v8848, 16
  %v9299 = vrot.slane %v9297, 3
  %v9300 = vor.u32 %v9296, %v9299
  %v9301 = vsel %vm2730, %v9275, %v9300
  %v9303 = vshrl.u32 %v8301, 16
  %v9305 = vrot.slane %v9303, 2
  %v9306 = vshll.u32 %v8301, 16
  %v9308 = vrot.slane %v9306, 3
  %v9309 = vor.u32 %v9305, %v9308
  %v9310 = vsel %vm2730, %v9284, %v9309
  %v9311 = vshrl.u32 %v8556, 16
  %v9313 = vrot.slane %v9311, 2
  %v9314 = vshll.u32 %v8556, 16
  %v9316 = vrot.slane %v9314, 3
  %v9317 = vor.u32 %v9313, %v9316
  %v9318 = vsel %vm2730, %v9292, %v9317
  %v9319 = vshrl.u32 %v8850, 16
  %v9321 = vrot.slane %v9319, 2
  %v9322 = vshll.u32 %v8850, 16
  %v9324 = vrot.slane %v9322, 3
  %v9325 = vor.u32 %v9321, %v9324
  %v9326 = vsel %vm2730, %v9300, %v9325
  %v9328 = vshrl.u32 %v8303, 16
  %v9330 = vrot.slane %v9328, 2
  %v9331 = vshll.u32 %v8303, 16
  %v9333 = vrot.slane %v9331, 3
  %v9334 = vor.u32 %v9330, %v9333
  %v9335 = vsel %vm2730, %v9309, %v9334
  %v9336 = vshrl.u32 %v8558, 16
  %v9338 = vrot.slane %v9336, 2
  %v9339 = vshll.u32 %v8558, 16
  %v9341 = vrot.slane %v9339, 3
  %v9342 = vor.u32 %v9338, %v9341
  %v9343 = vsel %vm2730, %v9317, %v9342
  %v9344 = vshrl.u32 %v8852, 16
  %v9346 = vrot.slane %v9344, 2
  %v9347 = vshll.u32 %v8852, 16
  %v9349 = vrot.slane %v9347, 3
  %v9350 = vor.u32 %v9346, %v9349
  %v9351 = vsel %vm2730, %v9325, %v9350
  %v9353 = vshrl.u32 %v8305, 16
  %v9355 = vrot.slane %v9353, 2
  %v9356 = vshll.u32 %v8305, 16
  %v9358 = vrot.slane %v9356, 3
  %v9359 = vor.u32 %v9355, %v9358
  %v9360 = vsel %vm2730, %v9334, %v9359
  %v9361 = vshrl.u32 %v8560, 16
  %v9363 = vrot.slane %v9361, 2
  %v9364 = vshll.u32 %v8560, 16
  %v9366 = vrot.slane %v9364, 3
  %v9367 = vor.u32 %v9363, %v9366
  %v9368 = vsel %vm2730, %v9342, %v9367
  %v9369 = vshrl.u32 %v8854, 16
  %v9371 = vrot.slane %v9369, 2
  %v9372 = vshll.u32 %v8854, 16
  %v9374 = vrot.slane %v9372, 3
  %v9375 = vor.u32 %v9371, %v9374
  %v9376 = vsel %vm2730, %v9350, %v9375
  %v9378 = vshrl.u32 %v8307, 16
  %v9380 = vrot.slane %v9378, 2
  %v9381 = vshll.u32 %v8307, 16
  %v9383 = vrot.slane %v9381, 3
  %v9384 = vor.u32 %v9380, %v9383
  %v9385 = vsel %vm2730, %v9359, %v9384
  %v9386 = vshrl.u32 %v8562, 16
  %v9388 = vrot.slane %v9386, 2
  %v9389 = vshll.u32 %v8562, 16
  %v9391 = vrot.slane %v9389, 3
  %v9392 = vor.u32 %v9388, %v9391
  %v9393 = vsel %vm2730, %v9367, %v9392
  %v9394 = vshrl.u32 %v8856, 16
  %v9396 = vrot.slane %v9394, 2
  %v9397 = vshll.u32 %v8856, 16
  %v9399 = vrot.slane %v9397, 3
  %v9400 = vor.u32 %v9396, %v9399
  %v9401 = vsel %vm2730, %v9375, %v9400
  %v9403 = vshrl.u32 %v8309, 16
  %v9405 = vrot.slane %v9403, 2
  %v9406 = vshll.u32 %v8309, 16
  %v9408 = vrot.slane %v9406, 3
  %v9409 = vor.u32 %v9405, %v9408
  %v9410 = vsel %vm2730, %v9384, %v9409
  %v9411 = vshrl.u32 %v8564, 16
  %v9413 = vrot.slane %v9411, 2
  %v9414 = vshll.u32 %v8564, 16
  %v9416 = vrot.slane %v9414, 3
  %v9417 = vor.u32 %v9413, %v9416
  %v9418 = vsel %vm2730, %v9392, %v9417
  %v9419 = vshrl.u32 %v8858, 16
  %v9421 = vrot.slane %v9419, 2
  %v9422 = vshll.u32 %v8858, 16
  %v9424 = vrot.slane %v9422, 3
  %v9425 = vor.u32 %v9421, %v9424
  %v9426 = vsel %vm2730, %v9400, %v9425
  %v9428 = vshrl.u32 %v8311, 16
  %v9430 = vrot.slane %v9428, 2
  %v9431 = vshll.u32 %v8311, 16
  %v9433 = vrot.slane %v9431, 3
  %v9434 = vor.u32 %v9430, %v9433
  %v9435 = vsel %vm2730, %v9409, %v9434
  %v9436 = vshrl.u32 %v8566, 16
  %v9438 = vrot.slane %v9436, 2
  %v9439 = vshll.u32 %v8566, 16
  %v9441 = vrot.slane %v9439, 3
  %v9442 = vor.u32 %v9438, %v9441
  %v9443 = vsel %vm2730, %v9417, %v9442
  %v9444 = vshrl.u32 %v8860, 16
  %v9446 = vrot.slane %v9444, 2
  %v9447 = vshll.u32 %v8860, 16
  %v9449 = vrot.slane %v9447, 3
  %v9450 = vor.u32 %v9446, %v9449
  %v9451 = vsel %vm2730, %v9425, %v9450
  %v9453 = vshrl.u32 %v8313, 16
  %v9455 = vrot.slane %v9453, 2
  %v9456 = vshll.u32 %v8313, 16
  %v9458 = vrot.slane %v9456, 3
  %v9459 = vor.u32 %v9455, %v9458
  %v9460 = vsel %vm2730, %v9434, %v9459
  %v9461 = vshrl.u32 %v8568, 16
  %v9463 = vrot.slane %v9461, 2
  %v9464 = vshll.u32 %v8568, 16
  %v9466 = vrot.slane %v9464, 3
  %v9467 = vor.u32 %v9463, %v9466
  %v9468 = vsel %vm2730, %v9442, %v9467
  %v9469 = vshrl.u32 %v8862, 16
  %v9471 = vrot.slane %v9469, 2
  %v9472 = vshll.u32 %v8862, 16
  %v9474 = vrot.slane %v9472, 3
  %v9475 = vor.u32 %v9471, %v9474
  %v9476 = vsel %vm2730, %v9450, %v9475
  %v9478 = vshrl.u32 %v8315, 16
  %v9480 = vrot.slane %v9478, 2
  %v9481 = vshll.u32 %v8315, 16
  %v9483 = vrot.slane %v9481, 3
  %v9484 = vor.u32 %v9480, %v9483
  %v9485 = vsel %vm2730, %v9459, %v9484
  %v9486 = vshrl.u32 %v8570, 16
  %v9488 = vrot.slane %v9486, 2
  %v9489 = vshll.u32 %v8570, 16
  %v9491 = vrot.slane %v9489, 3
  %v9492 = vor.u32 %v9488, %v9491
  %v9493 = vsel %vm2730, %v9467, %v9492
  %v9494 = vshrl.u32 %v8864, 16
  %v9496 = vrot.slane %v9494, 2
  %v9497 = vshll.u32 %v8864, 16
  %v9499 = vrot.slane %v9497, 3
  %v9500 = vor.u32 %v9496, %v9499
  %v9501 = vsel %vm2730, %v9475, %v9500
  %v9503 = vshrl.u32 %v8317, 16
  %v9505 = vrot.slane %v9503, 2
  %v9506 = vshll.u32 %v8317, 16
  %v9508 = vrot.slane %v9506, 3
  %v9509 = vor.u32 %v9505, %v9508
  %v9510 = vsel %vm2730, %v9484, %v9509
  %v9511 = vshrl.u32 %v8572, 16
  %v9513 = vrot.slane %v9511, 2
  %v9514 = vshll.u32 %v8572, 16
  %v9516 = vrot.slane %v9514, 3
  %v9517 = vor.u32 %v9513, %v9516
  %v9518 = vsel %vm2730, %v9492, %v9517
  %v9519 = vshrl.u32 %v8866, 16
  %v9521 = vrot.slane %v9519, 2
  %v9522 = vshll.u32 %v8866, 16
  %v9524 = vrot.slane %v9522, 3
  %v9525 = vor.u32 %v9521, %v9524
  %v9526 = vsel %vm2730, %v9500, %v9525
  %v9528 = vshrl.u32 %v8319, 16
  %v9530 = vrot.slane %v9528, 2
  %v9531 = vshll.u32 %v8319, 16
  %v9533 = vrot.slane %v9531, 3
  %v9534 = vor.u32 %v9530, %v9533
  %v9535 = vsel %vm2730, %v9509, %v9534
  %v9536 = vshrl.u32 %v8574, 16
  %v9538 = vrot.slane %v9536, 2
  %v9539 = vshll.u32 %v8574, 16
  %v9541 = vrot.slane %v9539, 3
  %v9542 = vor.u32 %v9538, %v9541
  %v9543 = vsel %vm2730, %v9517, %v9542
  %v9544 = vshrl.u32 %v8868, 16
  %v9546 = vrot.slane %v9544, 2
  %v9547 = vshll.u32 %v8868, 16
  %v9549 = vrot.slane %v9547, 3
  %v9550 = vor.u32 %v9546, %v9549
  %v9551 = vsel %vm2730, %v9525, %v9550
  %v9553 = vshrl.u32 %v8321, 16
  %v9555 = vrot.slane %v9553, 2
  %v9556 = vshll.u32 %v8321, 16
  %v9558 = vrot.slane %v9556, 3
  %v9559 = vor.u32 %v9555, %v9558
  %v9560 = vsel %vm2730, %v9534, %v9559
  %v9561 = vshrl.u32 %v8576, 16
  %v9563 = vrot.slane %v9561, 2
  %v9564 = vshll.u32 %v8576, 16
  %v9566 = vrot.slane %v9564, 3
  %v9567 = vor.u32 %v9563, %v9566
  %v9568 = vsel %vm2730, %v9542, %v9567
  %v9569 = vshrl.u32 %v8870, 16
  %v9571 = vrot.slane %v9569, 2
  %v9572 = vshll.u32 %v8870, 16
  %v9574 = vrot.slane %v9572, 3
  %v9575 = vor.u32 %v9571, %v9574
  %v9576 = vsel %vm2730, %v9550, %v9575
  %v9578 = vshrl.u32 %v8323, 16
  %v9580 = vrot.slane %v9578, 2
  %v9581 = vshll.u32 %v8323, 16
  %v9583 = vrot.slane %v9581, 3
  %v9584 = vor.u32 %v9580, %v9583
  %v9585 = vsel %vm2730, %v9559, %v9584
  %v9586 = vshrl.u32 %v8578, 16
  %v9588 = vrot.slane %v9586, 2
  %v9589 = vshll.u32 %v8578, 16
  %v9591 = vrot.slane %v9589, 3
  %v9592 = vor.u32 %v9588, %v9591
  %v9593 = vsel %vm2730, %v9567, %v9592
  %v9594 = vshrl.u32 %v8872, 16
  %v9596 = vrot.slane %v9594, 2
  %v9597 = vshll.u32 %v8872, 16
  %v9599 = vrot.slane %v9597, 3
  %v9600 = vor.u32 %v9596, %v9599
  %v9601 = vsel %vm2730, %v9575, %v9600
  %v9603 = vshrl.u32 %v8325, 16
  %v9605 = vrot.slane %v9603, 2
  %v9606 = vshll.u32 %v8325, 16
  %v9608 = vrot.slane %v9606, 3
  %v9609 = vor.u32 %v9605, %v9608
  %v9610 = vsel %vm2730, %v9584, %v9609
  %v9611 = vshrl.u32 %v8580, 16
  %v9613 = vrot.slane %v9611, 2
  %v9614 = vshll.u32 %v8580, 16
  %v9616 = vrot.slane %v9614, 3
  %v9617 = vor.u32 %v9613, %v9616
  %v9618 = vsel %vm2730, %v9592, %v9617
  %v9619 = vshrl.u32 %v8874, 16
  %v9621 = vrot.slane %v9619, 2
  %v9622 = vshll.u32 %v8874, 16
  %v9624 = vrot.slane %v9622, 3
  %v9625 = vor.u32 %v9621, %v9624
  %v9626 = vsel %vm2730, %v9600, %v9625
  %v9628 = vshrl.u32 %v8327, 16
  %v9630 = vrot.slane %v9628, 2
  %v9631 = vshll.u32 %v8327, 16
  %v9633 = vrot.slane %v9631, 3
  %v9634 = vor.u32 %v9630, %v9633
  %v9635 = vsel %vm2730, %v9609, %v9634
  %v9636 = vshrl.u32 %v8582, 16
  %v9638 = vrot.slane %v9636, 2
  %v9639 = vshll.u32 %v8582, 16
  %v9641 = vrot.slane %v9639, 3
  %v9642 = vor.u32 %v9638, %v9641
  %v9643 = vsel %vm2730, %v9617, %v9642
  %v9644 = vshrl.u32 %v8876, 16
  %v9646 = vrot.slane %v9644, 2
  %v9647 = vshll.u32 %v8876, 16
  %v9649 = vrot.slane %v9647, 3
  %v9650 = vor.u32 %v9646, %v9649
  %v9651 = vsel %vm2730, %v9625, %v9650
  %v9653 = vshrl.u32 %v8329, 16
  %v9655 = vrot.slane %v9653, 2
  %v9656 = vshll.u32 %v8329, 16
  %v9658 = vrot.slane %v9656, 3
  %v9659 = vor.u32 %v9655, %v9658
  %v9660 = vsel %vm2730, %v9634, %v9659
  %v9661 = vshrl.u32 %v8584, 16
  %v9663 = vrot.slane %v9661, 2
  %v9664 = vshll.u32 %v8584, 16
  %v9666 = vrot.slane %v9664, 3
  %v9667 = vor.u32 %v9663, %v9666
  %v9668 = vsel %vm2730, %v9642, %v9667
  %v9669 = vshrl.u32 %v8878, 16
  %v9671 = vrot.slane %v9669, 2
  %v9672 = vshll.u32 %v8878, 16
  %v9674 = vrot.slane %v9672, 3
  %v9675 = vor.u32 %v9671, %v9674
  %v9676 = vsel %vm2730, %v9650, %v9675
  %v9678 = vshrl.u32 %v8331, 16
  %v9680 = vrot.slane %v9678, 2
  %v9681 = vshll.u32 %v8331, 16
  %v9683 = vrot.slane %v9681, 3
  %v9684 = vor.u32 %v9680, %v9683
  %v9685 = vsel %vm2730, %v9659, %v9684
  %v9686 = vshrl.u32 %v8586, 16
  %v9688 = vrot.slane %v9686, 2
  %v9689 = vshll.u32 %v8586, 16
  %v9691 = vrot.slane %v9689, 3
  %v9692 = vor.u32 %v9688, %v9691
  %v9693 = vsel %vm2730, %v9667, %v9692
  %v9694 = vshrl.u32 %v8880, 16
  %v9696 = vrot.slane %v9694, 2
  %v9697 = vshll.u32 %v8880, 16
  %v9699 = vrot.slane %v9697, 3
  %v9700 = vor.u32 %v9696, %v9699
  %v9701 = vsel %vm2730, %v9675, %v9700
  %v9703 = vshrl.u32 %v8333, 16
  %v9705 = vrot.slane %v9703, 2
  %v9706 = vshll.u32 %v8333, 16
  %v9708 = vrot.slane %v9706, 3
  %v9709 = vor.u32 %v9705, %v9708
  %v9710 = vsel %vm2730, %v9684, %v9709
  %v9711 = vshrl.u32 %v8588, 16
  %v9713 = vrot.slane %v9711, 2
  %v9714 = vshll.u32 %v8588, 16
  %v9716 = vrot.slane %v9714, 3
  %v9717 = vor.u32 %v9713, %v9716
  %v9718 = vsel %vm2730, %v9692, %v9717
  %v9719 = vshrl.u32 %v8882, 16
  %v9721 = vrot.slane %v9719, 2
  %v9722 = vshll.u32 %v8882, 16
  %v9724 = vrot.slane %v9722, 3
  %v9725 = vor.u32 %v9721, %v9724
  %v9726 = vsel %vm2730, %v9700, %v9725
  %v9728 = vshrl.u32 %v8335, 16
  %v9730 = vrot.slane %v9728, 2
  %v9731 = vshll.u32 %v8335, 16
  %v9733 = vrot.slane %v9731, 3
  %v9734 = vor.u32 %v9730, %v9733
  %v9735 = vsel %vm2730, %v9709, %v9734
  %v9736 = vshrl.u32 %v8590, 16
  %v9738 = vrot.slane %v9736, 2
  %v9739 = vshll.u32 %v8590, 16
  %v9741 = vrot.slane %v9739, 3
  %v9742 = vor.u32 %v9738, %v9741
  %v9743 = vsel %vm2730, %v9717, %v9742
  %v9744 = vshrl.u32 %v8884, 16
  %v9746 = vrot.slane %v9744, 2
  %v9747 = vshll.u32 %v8884, 16
  %v9749 = vrot.slane %v9747, 3
  %v9750 = vor.u32 %v9746, %v9749
  %v9751 = vsel %vm2730, %v9725, %v9750
  %v9753 = vshrl.u32 %v8337, 16
  %v9755 = vrot.slane %v9753, 2
  %v9756 = vshll.u32 %v8337, 16
  %v9758 = vrot.slane %v9756, 3
  %v9759 = vor.u32 %v9755, %v9758
  %v9760 = vsel %vm2730, %v9734, %v9759
  %v9761 = vshrl.u32 %v8592, 16
  %v9763 = vrot.slane %v9761, 2
  %v9764 = vshll.u32 %v8592, 16
  %v9766 = vrot.slane %v9764, 3
  %v9767 = vor.u32 %v9763, %v9766
  %v9768 = vsel %vm2730, %v9742, %v9767
  %v9769 = vshrl.u32 %v8886, 16
  %v9771 = vrot.slane %v9769, 2
  %v9772 = vshll.u32 %v8886, 16
  %v9774 = vrot.slane %v9772, 3
  %v9775 = vor.u32 %v9771, %v9774
  %v9776 = vsel %vm2730, %v9750, %v9775
  %v9778 = vshrl.u32 %v8339, 16
  %v9780 = vrot.slane %v9778, 2
  %v9781 = vshll.u32 %v8339, 16
  %v9783 = vrot.slane %v9781, 3
  %v9784 = vor.u32 %v9780, %v9783
  %v9785 = vsel %vm2730, %v9759, %v9784
  %v9786 = vshrl.u32 %v8594, 16
  %v9788 = vrot.slane %v9786, 2
  %v9789 = vshll.u32 %v8594, 16
  %v9791 = vrot.slane %v9789, 3
  %v9792 = vor.u32 %v9788, %v9791
  %v9793 = vsel %vm2730, %v9767, %v9792
  %v9794 = vshrl.u32 %v8888, 16
  %v9796 = vrot.slane %v9794, 2
  %v9797 = vshll.u32 %v8888, 16
  %v9799 = vrot.slane %v9797, 3
  %v9800 = vor.u32 %v9796, %v9799
  %v9801 = vsel %vm2730, %v9775, %v9800
  %v9803 = vshrl.u32 %v8341, 16
  %v9805 = vrot.slane %v9803, 2
  %v9806 = vshll.u32 %v8341, 16
  %v9808 = vrot.slane %v9806, 3
  %v9809 = vor.u32 %v9805, %v9808
  %v9810 = vsel %vm2730, %v9784, %v9809
  %v9811 = vshrl.u32 %v8596, 16
  %v9813 = vrot.slane %v9811, 2
  %v9814 = vshll.u32 %v8596, 16
  %v9816 = vrot.slane %v9814, 3
  %v9817 = vor.u32 %v9813, %v9816
  %v9818 = vsel %vm2730, %v9792, %v9817
  %v9819 = vshrl.u32 %v8890, 16
  %v9821 = vrot.slane %v9819, 2
  %v9822 = vshll.u32 %v8890, 16
  %v9824 = vrot.slane %v9822, 3
  %v9825 = vor.u32 %v9821, %v9824
  %v9826 = vsel %vm2730, %v9800, %v9825
  %v9828 = vshrl.u32 %v8343, 16
  %v9830 = vrot.slane %v9828, 2
  %v9831 = vshll.u32 %v8343, 16
  %v9833 = vrot.slane %v9831, 3
  %v9834 = vor.u32 %v9830, %v9833
  %v9835 = vsel %vm2730, %v9809, %v9834
  %v9836 = vshrl.u32 %v8598, 16
  %v9838 = vrot.slane %v9836, 2
  %v9839 = vshll.u32 %v8598, 16
  %v9841 = vrot.slane %v9839, 3
  %v9842 = vor.u32 %v9838, %v9841
  %v9843 = vsel %vm2730, %v9817, %v9842
  %v9844 = vshrl.u32 %v8892, 16
  %v9846 = vrot.slane %v9844, 2
  %v9847 = vshll.u32 %v8892, 16
  %v9849 = vrot.slane %v9847, 3
  %v9850 = vor.u32 %v9846, %v9849
  %v9851 = vsel %vm2730, %v9825, %v9850
  %v9853 = vshrl.u32 %v8345, 16
  %v9855 = vrot.slane %v9853, 2
  %v9856 = vshll.u32 %v8345, 16
  %v9858 = vrot.slane %v9856, 3
  %v9859 = vor.u32 %v9855, %v9858
  %v9860 = vsel %vm2730, %v9834, %v9859
  %v9861 = vshrl.u32 %v8600, 16
  %v9863 = vrot.slane %v9861, 2
  %v9864 = vshll.u32 %v8600, 16
  %v9866 = vrot.slane %v9864, 3
  %v9867 = vor.u32 %v9863, %v9866
  %v9868 = vsel %vm2730, %v9842, %v9867
  %v9869 = vshrl.u32 %v8894, 16
  %v9871 = vrot.slane %v9869, 2
  %v9872 = vshll.u32 %v8894, 16
  %v9874 = vrot.slane %v9872, 3
  %v9875 = vor.u32 %v9871, %v9874
  %v9876 = vsel %vm2730, %v9850, %v9875
  %v9878 = vshrl.u32 %v8347, 16
  %v9880 = vrot.slane %v9878, 2
  %v9881 = vshll.u32 %v8347, 16
  %v9883 = vrot.slane %v9881, 3
  %v9884 = vor.u32 %v9880, %v9883
  %v9885 = vsel %vm2730, %v9859, %v9884
  %v9886 = vshrl.u32 %v8602, 16
  %v9888 = vrot.slane %v9886, 2
  %v9889 = vshll.u32 %v8602, 16
  %v9891 = vrot.slane %v9889, 3
  %v9892 = vor.u32 %v9888, %v9891
  %v9893 = vsel %vm2730, %v9867, %v9892
  %v9894 = vshrl.u32 %v8896, 16
  %v9896 = vrot.slane %v9894, 2
  %v9897 = vshll.u32 %v8896, 16
  %v9899 = vrot.slane %v9897, 3
  %v9900 = vor.u32 %v9896, %v9899
  %v9901 = vsel %vm2730, %v9875, %v9900
  %v9903 = vshrl.u32 %v8349, 16
  %v9905 = vrot.slane %v9903, 2
  %v9906 = vshll.u32 %v8349, 16
  %v9908 = vrot.slane %v9906, 3
  %v9909 = vor.u32 %v9905, %v9908
  %v9910 = vsel %vm2730, %v9884, %v9909
  %v9911 = vshrl.u32 %v8604, 16
  %v9913 = vrot.slane %v9911, 2
  %v9914 = vshll.u32 %v8604, 16
  %v9916 = vrot.slane %v9914, 3
  %v9917 = vor.u32 %v9913, %v9916
  %v9918 = vsel %vm2730, %v9892, %v9917
  %v9919 = vshrl.u32 %v8898, 16
  %v9921 = vrot.slane %v9919, 2
  %v9922 = vshll.u32 %v8898, 16
  %v9924 = vrot.slane %v9922, 3
  %v9925 = vor.u32 %v9921, %v9924
  %v9926 = vsel %vm2730, %v9900, %v9925
  %v9928 = vshrl.u32 %v8351, 16
  %v9930 = vrot.slane %v9928, 2
  %v9931 = vshll.u32 %v8351, 16
  %v9933 = vrot.slane %v9931, 3
  %v9934 = vor.u32 %v9930, %v9933
  %v9935 = vsel %vm2730, %v9909, %v9934
  %v9936 = vshrl.u32 %v8606, 16
  %v9938 = vrot.slane %v9936, 2
  %v9939 = vshll.u32 %v8606, 16
  %v9941 = vrot.slane %v9939, 3
  %v9942 = vor.u32 %v9938, %v9941
  %v9943 = vsel %vm2730, %v9917, %v9942
  %v9944 = vshrl.u32 %v8900, 16
  %v9946 = vrot.slane %v9944, 2
  %v9947 = vshll.u32 %v8900, 16
  %v9949 = vrot.slane %v9947, 3
  %v9950 = vor.u32 %v9946, %v9949
  %v9951 = vsel %vm2730, %v9925, %v9950
  %v9953 = vshrl.u32 %v8353, 16
  %v9955 = vrot.slane %v9953, 2
  %v9956 = vshll.u32 %v8353, 16
  %v9958 = vrot.slane %v9956, 3
  %v9959 = vor.u32 %v9955, %v9958
  %v9960 = vsel %vm2730, %v9934, %v9959
  %v9961 = vshrl.u32 %v8608, 16
  %v9963 = vrot.slane %v9961, 2
  %v9964 = vshll.u32 %v8608, 16
  %v9966 = vrot.slane %v9964, 3
  %v9967 = vor.u32 %v9963, %v9966
  %v9968 = vsel %vm2730, %v9942, %v9967
  %v9969 = vshrl.u32 %v8902, 16
  %v9971 = vrot.slane %v9969, 2
  %v9972 = vshll.u32 %v8902, 16
  %v9974 = vrot.slane %v9972, 3
  %v9975 = vor.u32 %v9971, %v9974
  %v9976 = vsel %vm2730, %v9950, %v9975
  %v9978 = vshrl.u32 %v8355, 16
  %v9980 = vrot.slane %v9978, 2
  %v9981 = vshll.u32 %v8355, 16
  %v9983 = vrot.slane %v9981, 3
  %v9984 = vor.u32 %v9980, %v9983
  %v9985 = vsel %vm2730, %v9959, %v9984
  %v10104 = vunpack.c.l.b16 %v8903
  %v10105 = vunpack.c.l.b16 %v8904
  %v10106 = vunpack.c.l.b16 %v8905
  %v10107 = vunpack.c.l.b16 %v8906
  %v10108 = vunpack.c.l.b16 %v8907
  %v10109 = vunpack.c.l.b16 %v8908
  %v10110 = vunpack.c.l.b16 %v8909
  %v10111 = vunpack.c.l.b16 %v8910
  %v10112 = vunpack.c.l.b16 %v8911
  %v10113 = vunpack.c.l.b16 %v8912
  %v10114 = vunpack.c.l.b16 %v8913
  %v10115 = vunpack.c.l.b16 %v8914
  %v10116 = vunpack.c.l.b16 %v8915
  %v10117 = vunpack.c.l.b16 %v8916
  %v10118 = vunpack.c.l.b16 %v8917
  %v10119 = vunpack.c.l.b16 %v8918
  %v10120 = vunpack.c.l.b16 %v8919
  %v10121 = vunpack.c.l.b16 %v8920
  %v10122 = vunpack.c.l.b16 %v8921
  %v10123 = vunpack.c.l.b16 %v8922
  %v10124 = vunpack.c.l.b16 %v8923
  %v10125 = vunpack.c.l.b16 %v8924
  %v10126 = vunpack.c.l.b16 %v8925
  %v10127 = vunpack.c.l.b16 %v8926
  %v10128 = vunpack.c.l.b16 %v8927
  %v10129 = vunpack.c.l.b16 %v8928
  %v10130 = vunpack.c.l.b16 %v8929
  %v10131 = vunpack.c.l.b16 %v8930
  %v10132 = vunpack.c.l.b16 %v8931
  %v10133 = vunpack.c.l.b16 %v8932
  %v10134 = vunpack.c.l.b16 %v8933
  %v10135 = vunpack.c.l.b16 %v8934
  %v10136 = vunpack.c.l.b16 %v8935
  %v10137 = vunpack.c.l.b16 %v8936
  %v10138 = vunpack.c.l.b16 %v8937
  %v10139 = vunpack.c.l.b16 %v8938
  %v10140 = vpack.c.b16 %v10105, %v10104
  %v10141 = vpack.c.b16 %v10107, %v10106
  %v10142 = vpack.c.b16 %v10109, %v10108
  %v10143 = vpack.c.b16 %v10111, %v10110
  %v10144 = vpack.c.b16 %v10113, %v10112
  %v10145 = vpack.c.b16 %v10115, %v10114
  %v10146 = vpack.c.b16 %v10117, %v10116
  %v10147 = vpack.c.b16 %v10119, %v10118
  %v10148 = vpack.c.b16 %v10121, %v10120
  %v10149 = vpack.c.b16 %v10123, %v10122
  %v10150 = vpack.c.b16 %v10125, %v10124
  %v10151 = vpack.c.b16 %v10127, %v10126
  %v10152 = vpack.c.b16 %v10129, %v10128
  %v10153 = vpack.c.b16 %v10131, %v10130
  %v10154 = vpack.c.b16 %v10133, %v10132
  %v10155 = vpack.c.b16 %v10135, %v10134
  %v10156 = vpack.c.b16 %v10137, %v10136
  %v10157 = vpack.c.b16 %v10139, %v10138
  %v10177 = vsel %vm2144, %v8985, 0
  %v10180 = vsel %vm2144, %v9010, 0
  %v10183 = vsel %vm2144, %v9035, 0
  %v10186 = vsel %vm2144, %v9060, 0
  %v10189 = vsel %vm2144, %v9085, 0
  %v10192 = vsel %vm2144, %v9110, 0
  %v10195 = vsel %vm2144, %v9135, 0
  %v10198 = vsel %vm2144, %v9160, 0
  %v10201 = vsel %vm2144, %v9185, 0
  %v10204 = vsel %vm2144, %v9210, 0
  %v10207 = vsel %vm2144, %v9235, 0
  %v10210 = vsel %vm2144, %v9260, 0
  %v10213 = vsel %vm2144, %v9285, 0
  %v10216 = vsel %vm2144, %v9310, 0
  %v10219 = vsel %vm2144, %v9335, 0
  %v10222 = vsel %vm2144, %v9360, 0
  %v10225 = vsel %vm2144, %v9385, 0
  %v10228 = vsel %vm2144, %v9410, 0
  %v10231 = vsel %vm2144, %v9435, 0
  %v10234 = vsel %vm2144, %v9460, 0
  %v10237 = vsel %vm2144, %v9485, 0
  %v10240 = vsel %vm2144, %v9510, 0
  %v10243 = vsel %vm2144, %v9535, 0
  %v10246 = vsel %vm2144, %v9560, 0
  %v10249 = vsel %vm2144, %v9585, 0
  %v10252 = vsel %vm2144, %v9610, 0
  %v10255 = vsel %vm2144, %v9635, 0
  %v10258 = vsel %vm2144, %v9660, 0
  %v10261 = vsel %vm2144, %v9685, 0
  %v10264 = vsel %vm2144, %v9710, 0
  %v10267 = vsel %vm2144, %v9735, 0
  %v10270 = vsel %vm2144, %v9760, 0
  %v10273 = vsel %vm2144, %v9785, 0
  %v10276 = vsel %vm2144, %v9810, 0
  %v10279 = vsel %vm2144, %v9835, 0
  %v10282 = vsel %vm2144, %v9860, 0
  %v10285 = vsel %vm2144, %v9885, 0
  %v10288 = vsel %vm2144, %v9910, 0
  %v10291 = vsel %vm2144, %v9935, 0
  %v10294 = vsel %vm2144, %v9960, 0
  %v10297 = vsel %vm2144, %v9985, 0
  %10299 = vmatpush.bf16.msra.mxu0 %v10147
  %10300 = vmatpush.bf16.msra.mxu0 %v10146
  %10301 = vmatpush.bf16.msra.mxu0 %v10145
  %10302 = vmatpush.bf16.msra.mxu0 %v10144
  %10303 = vmatpush.bf16.msra.mxu0 %v10143
  %10304 = vmatpush.bf16.msra.mxu0 %v10142
  %10305 = vmatpush.bf16.msra.mxu0 %v10141
  %10306 = vmatpush.bf16.msra.mxu0 %v10140
  %10307 = vmatmul.bf16.gmra.mxu0 %v8953
  %v10308 = vpop.f32.mrf.mxu0
  %v10309 = vadd.f32 0.0, %v10308
  %v10310 = vpop.f32.mrf.mxu0
  %v10311 = vadd.f32 0.0, %v10310
  %10312 = vmatmul.bf16.gmra.mxu0 %v8993
  %v10313 = vpop.f32.mrf.mxu0
  %v10314 = vadd.f32 0.0, %v10313
  %v10315 = vpop.f32.mrf.mxu0
  %v10316 = vadd.f32 0.0, %v10315
  %10317 = vmatmul.bf16.gmra.mxu0 %v9018
  %v10318 = vpop.f32.mrf.mxu0
  %v10319 = vadd.f32 0.0, %v10318
  %v10320 = vpop.f32.mrf.mxu0
  %v10321 = vadd.f32 0.0, %v10320
  %10322 = vmatmul.bf16.gmra.mxu0 %v9043
  %v10323 = vpop.f32.mrf.mxu0
  %v10324 = vadd.f32 0.0, %v10323
  %v10325 = vpop.f32.mrf.mxu0
  %v10326 = vadd.f32 0.0, %v10325
  %10327 = vmatmul.bf16.gmra.mxu0 %v9068
  %v10328 = vpop.f32.mrf.mxu0
  %v10329 = vadd.f32 0.0, %v10328
  %v10330 = vpop.f32.mrf.mxu0
  %v10331 = vadd.f32 0.0, %v10330
  %10332 = vmatmul.bf16.gmra.mxu0 %v9093
  %v10333 = vpop.f32.mrf.mxu0
  %v10334 = vadd.f32 0.0, %v10333
  %v10335 = vpop.f32.mrf.mxu0
  %v10336 = vadd.f32 0.0, %v10335
  %10337 = vmatmul.bf16.gmra.mxu0 %v9118
  %v10338 = vpop.f32.mrf.mxu0
  %v10339 = vadd.f32 0.0, %v10338
  %v10340 = vpop.f32.mrf.mxu0
  %v10341 = vadd.f32 0.0, %v10340
  %10342 = vmatmul.bf16.gmra.mxu0 %v9143
  %v10343 = vpop.f32.mrf.mxu0
  %v10344 = vadd.f32 0.0, %v10343
  %v10345 = vpop.f32.mrf.mxu0
  %v10346 = vadd.f32 0.0, %v10345
  %10347 = vmatmul.bf16.gmra.mxu0 %v9168
  %v10348 = vpop.f32.mrf.mxu0
  %v10349 = vadd.f32 0.0, %v10348
  %v10350 = vpop.f32.mrf.mxu0
  %v10351 = vadd.f32 0.0, %v10350
  %10352 = vmatmul.bf16.gmra.mxu0 %v9193
  %v10353 = vpop.f32.mrf.mxu0
  %v10354 = vadd.f32 0.0, %v10353
  %v10355 = vpop.f32.mrf.mxu0
  %v10356 = vadd.f32 0.0, %v10355
  %10357 = vmatmul.bf16.gmra.mxu0 %v9218
  %v10358 = vpop.f32.mrf.mxu0
  %v10359 = vadd.f32 0.0, %v10358
  %v10360 = vpop.f32.mrf.mxu0
  %v10361 = vadd.f32 0.0, %v10360
  %10362 = vmatmul.bf16.gmra.mxu0 %v9243
  %v10363 = vpop.f32.mrf.mxu0
  %v10364 = vadd.f32 0.0, %v10363
  %v10365 = vpop.f32.mrf.mxu0
  %v10366 = vadd.f32 0.0, %v10365
  %10367 = vmatmul.bf16.gmra.mxu0 %v9268
  %v10368 = vpop.f32.mrf.mxu0
  %v10369 = vadd.f32 0.0, %v10368
  %v10370 = vpop.f32.mrf.mxu0
  %v10371 = vadd.f32 0.0, %v10370
  %10372 = vmatmul.bf16.gmra.mxu0 %v9293
  %v10373 = vpop.f32.mrf.mxu0
  %v10374 = vadd.f32 0.0, %v10373
  %v10375 = vpop.f32.mrf.mxu0
  %v10376 = vadd.f32 0.0, %v10375
  %10377 = vmatmul.bf16.gmra.mxu0 %v9318
  %v10378 = vpop.f32.mrf.mxu0
  %v10379 = vadd.f32 0.0, %v10378
  %v10380 = vpop.f32.mrf.mxu0
  %v10381 = vadd.f32 0.0, %v10380
  %10382 = vmatmul.bf16.gmra.mxu0 %v9343
  %v10383 = vpop.f32.mrf.mxu0
  %v10384 = vadd.f32 0.0, %v10383
  %v10385 = vpop.f32.mrf.mxu0
  %v10386 = vadd.f32 0.0, %v10385
  %10387 = vmatmul.bf16.gmra.mxu0 %v9368
  %v10388 = vpop.f32.mrf.mxu0
  %v10389 = vadd.f32 0.0, %v10388
  %v10390 = vpop.f32.mrf.mxu0
  %v10391 = vadd.f32 0.0, %v10390
  %10392 = vmatmul.bf16.gmra.mxu0 %v9393
  %v10393 = vpop.f32.mrf.mxu0
  %v10394 = vadd.f32 0.0, %v10393
  %v10395 = vpop.f32.mrf.mxu0
  %v10396 = vadd.f32 0.0, %v10395
  %10397 = vmatmul.bf16.gmra.mxu0 %v9418
  %v10398 = vpop.f32.mrf.mxu0
  %v10399 = vadd.f32 0.0, %v10398
  %v10400 = vpop.f32.mrf.mxu0
  %v10401 = vadd.f32 0.0, %v10400
  %10402 = vmatmul.bf16.gmra.mxu0 %v9443
  %v10403 = vpop.f32.mrf.mxu0
  %v10404 = vadd.f32 0.0, %v10403
  %v10405 = vpop.f32.mrf.mxu0
  %v10406 = vadd.f32 0.0, %v10405
  %10407 = vmatmul.bf16.gmra.mxu0 %v9468
  %v10408 = vpop.f32.mrf.mxu0
  %v10409 = vadd.f32 0.0, %v10408
  %v10410 = vpop.f32.mrf.mxu0
  %v10411 = vadd.f32 0.0, %v10410
  %10412 = vmatmul.bf16.gmra.mxu0 %v9493
  %v10413 = vpop.f32.mrf.mxu0
  %v10414 = vadd.f32 0.0, %v10413
  %v10415 = vpop.f32.mrf.mxu0
  %v10416 = vadd.f32 0.0, %v10415
  %10417 = vmatmul.bf16.gmra.mxu0 %v9518
  %v10418 = vpop.f32.mrf.mxu0
  %v10419 = vadd.f32 0.0, %v10418
  %v10420 = vpop.f32.mrf.mxu0
  %v10421 = vadd.f32 0.0, %v10420
  %10422 = vmatmul.bf16.gmra.mxu0 %v9543
  %v10423 = vpop.f32.mrf.mxu0
  %v10424 = vadd.f32 0.0, %v10423
  %v10425 = vpop.f32.mrf.mxu0
  %v10426 = vadd.f32 0.0, %v10425
  %10427 = vmatmul.bf16.gmra.mxu0 %v9568
  %v10428 = vpop.f32.mrf.mxu0
  %v10429 = vadd.f32 0.0, %v10428
  %v10430 = vpop.f32.mrf.mxu0
  %v10431 = vadd.f32 0.0, %v10430
  %10432 = vmatmul.bf16.gmra.mxu0 %v9593
  %v10433 = vpop.f32.mrf.mxu0
  %v10434 = vadd.f32 0.0, %v10433
  %v10435 = vpop.f32.mrf.mxu0
  %v10436 = vadd.f32 0.0, %v10435
  %10437 = vmatmul.bf16.gmra.mxu0 %v9618
  %v10438 = vpop.f32.mrf.mxu0
  %v10439 = vadd.f32 0.0, %v10438
  %v10440 = vpop.f32.mrf.mxu0
  %v10441 = vadd.f32 0.0, %v10440
  %10442 = vmatmul.bf16.gmra.mxu0 %v9643
  %v10443 = vpop.f32.mrf.mxu0
  %v10444 = vadd.f32 0.0, %v10443
  %v10445 = vpop.f32.mrf.mxu0
  %v10446 = vadd.f32 0.0, %v10445
  %10447 = vmatmul.bf16.gmra.mxu0 %v9668
  %v10448 = vpop.f32.mrf.mxu0
  %v10449 = vadd.f32 0.0, %v10448
  %v10450 = vpop.f32.mrf.mxu0
  %v10451 = vadd.f32 0.0, %v10450
  %10452 = vmatmul.bf16.gmra.mxu0 %v9693
  %v10453 = vpop.f32.mrf.mxu0
  %v10454 = vadd.f32 0.0, %v10453
  %v10455 = vpop.f32.mrf.mxu0
  %v10456 = vadd.f32 0.0, %v10455
  %10457 = vmatmul.bf16.gmra.mxu0 %v9718
  %v10458 = vpop.f32.mrf.mxu0
  %v10459 = vadd.f32 0.0, %v10458
  %v10460 = vpop.f32.mrf.mxu0
  %v10461 = vadd.f32 0.0, %v10460
  %10462 = vmatmul.bf16.gmra.mxu0 %v9743
  %v10463 = vpop.f32.mrf.mxu0
  %v10464 = vadd.f32 0.0, %v10463
  %v10465 = vpop.f32.mrf.mxu0
  %v10466 = vadd.f32 0.0, %v10465
  %10467 = vmatmul.bf16.gmra.mxu0 %v9768
  %v10468 = vpop.f32.mrf.mxu0
  %v10469 = vadd.f32 0.0, %v10468
  %v10470 = vpop.f32.mrf.mxu0
  %v10471 = vadd.f32 0.0, %v10470
  %10472 = vmatmul.bf16.gmra.mxu0 %v9793
  %v10473 = vpop.f32.mrf.mxu0
  %v10474 = vadd.f32 0.0, %v10473
  %v10475 = vpop.f32.mrf.mxu0
  %v10476 = vadd.f32 0.0, %v10475
  %10477 = vmatmul.bf16.gmra.mxu0 %v9818
  %v10478 = vpop.f32.mrf.mxu0
  %v10479 = vadd.f32 0.0, %v10478
  %v10480 = vpop.f32.mrf.mxu0
  %v10481 = vadd.f32 0.0, %v10480
  %10482 = vmatmul.bf16.gmra.mxu0 %v9843
  %v10483 = vpop.f32.mrf.mxu0
  %v10484 = vadd.f32 0.0, %v10483
  %v10485 = vpop.f32.mrf.mxu0
  %v10486 = vadd.f32 0.0, %v10485
  %10487 = vmatmul.bf16.gmra.mxu0 %v9868
  %v10488 = vpop.f32.mrf.mxu0
  %v10489 = vadd.f32 0.0, %v10488
  %v10490 = vpop.f32.mrf.mxu0
  %v10491 = vadd.f32 0.0, %v10490
  %10492 = vmatmul.bf16.gmra.mxu0 %v9893
  %v10493 = vpop.f32.mrf.mxu0
  %v10494 = vadd.f32 0.0, %v10493
  %v10495 = vpop.f32.mrf.mxu0
  %v10496 = vadd.f32 0.0, %v10495
  %10497 = vmatmul.bf16.gmra.mxu0 %v9918
  %v10498 = vpop.f32.mrf.mxu0
  %v10499 = vadd.f32 0.0, %v10498
  %v10500 = vpop.f32.mrf.mxu0
  %v10501 = vadd.f32 0.0, %v10500
  %10502 = vmatmul.bf16.gmra.mxu0 %v9943
  %v10503 = vpop.f32.mrf.mxu0
  %v10504 = vadd.f32 0.0, %v10503
  %v10505 = vpop.f32.mrf.mxu0
  %v10506 = vadd.f32 0.0, %v10505
  %10507 = vmatmul.bf16.gmra.mxu0 %v9968
  %v10508 = vpop.f32.mrf.mxu0
  %v10509 = vadd.f32 0.0, %v10508
  %v10510 = vpop.f32.mrf.mxu0
  %v10511 = vadd.f32 0.0, %v10510
  %10512 = vdwg.mxu0
  %10513 = vmatpush.bf16.msra.mxu0 %v10155
  %10514 = vmatpush.bf16.msra.mxu0 %v10154
  %10515 = vmatpush.bf16.msra.mxu0 %v10153
  %10516 = vmatpush.bf16.msra.mxu0 %v10152
  %10517 = vmatpush.bf16.msra.mxu0 %v10151
  %10518 = vmatpush.bf16.msra.mxu0 %v10150
  %10519 = vmatpush.bf16.msra.mxu0 %v10149
  %10520 = vmatpush.bf16.msra.mxu0 %v10148
  %10521 = vmatmul.bf16.gmra.mxu0 %v8968
  %v10522 = vpop.f32.mrf.mxu0
  %v10523 = vadd.f32 %v10309, %v10522
  %v10524 = vpop.f32.mrf.mxu0
  %v10525 = vadd.f32 %v10311, %v10524
  %10526 = vmatmul.bf16.gmra.mxu0 %v9001
  %v10527 = vpop.f32.mrf.mxu0
  %v10528 = vadd.f32 %v10314, %v10527
  %v10529 = vpop.f32.mrf.mxu0
  %v10530 = vadd.f32 %v10316, %v10529
  %10531 = vmatmul.bf16.gmra.mxu0 %v9026
  %v10532 = vpop.f32.mrf.mxu0
  %v10533 = vadd.f32 %v10319, %v10532
  %v10534 = vpop.f32.mrf.mxu0
  %v10535 = vadd.f32 %v10321, %v10534
  %10536 = vmatmul.bf16.gmra.mxu0 %v9051
  %v10537 = vpop.f32.mrf.mxu0
  %v10538 = vadd.f32 %v10324, %v10537
  %v10539 = vpop.f32.mrf.mxu0
  %v10540 = vadd.f32 %v10326, %v10539
  %10541 = vmatmul.bf16.gmra.mxu0 %v9076
  %v10542 = vpop.f32.mrf.mxu0
  %v10543 = vadd.f32 %v10329, %v10542
  %v10544 = vpop.f32.mrf.mxu0
  %v10545 = vadd.f32 %v10331, %v10544
  %10546 = vmatmul.bf16.gmra.mxu0 %v9101
  %v10547 = vpop.f32.mrf.mxu0
  %v10548 = vadd.f32 %v10334, %v10547
  %v10549 = vpop.f32.mrf.mxu0
  %v10550 = vadd.f32 %v10336, %v10549
  %10551 = vmatmul.bf16.gmra.mxu0 %v9126
  %v10552 = vpop.f32.mrf.mxu0
  %v10553 = vadd.f32 %v10339, %v10552
  %v10554 = vpop.f32.mrf.mxu0
  %v10555 = vadd.f32 %v10341, %v10554
  %10556 = vmatmul.bf16.gmra.mxu0 %v9151
  %v10557 = vpop.f32.mrf.mxu0
  %v10558 = vadd.f32 %v10344, %v10557
  %v10559 = vpop.f32.mrf.mxu0
  %v10560 = vadd.f32 %v10346, %v10559
  %10561 = vmatmul.bf16.gmra.mxu0 %v9176
  %v10562 = vpop.f32.mrf.mxu0
  %v10563 = vadd.f32 %v10349, %v10562
  %v10564 = vpop.f32.mrf.mxu0
  %v10565 = vadd.f32 %v10351, %v10564
  %10566 = vmatmul.bf16.gmra.mxu0 %v9201
  %v10567 = vpop.f32.mrf.mxu0
  %v10568 = vadd.f32 %v10354, %v10567
  %v10569 = vpop.f32.mrf.mxu0
  %v10570 = vadd.f32 %v10356, %v10569
  %10571 = vmatmul.bf16.gmra.mxu0 %v9226
  %v10572 = vpop.f32.mrf.mxu0
  %v10573 = vadd.f32 %v10359, %v10572
  %v10574 = vpop.f32.mrf.mxu0
  %v10575 = vadd.f32 %v10361, %v10574
  %10576 = vmatmul.bf16.gmra.mxu0 %v9251
  %v10577 = vpop.f32.mrf.mxu0
  %v10578 = vadd.f32 %v10364, %v10577
  %v10579 = vpop.f32.mrf.mxu0
  %v10580 = vadd.f32 %v10366, %v10579
  %10581 = vmatmul.bf16.gmra.mxu0 %v9276
  %v10582 = vpop.f32.mrf.mxu0
  %v10583 = vadd.f32 %v10369, %v10582
  %v10584 = vpop.f32.mrf.mxu0
  %v10585 = vadd.f32 %v10371, %v10584
  %10586 = vmatmul.bf16.gmra.mxu0 %v9301
  %v10587 = vpop.f32.mrf.mxu0
  %v10588 = vadd.f32 %v10374, %v10587
  %v10589 = vpop.f32.mrf.mxu0
  %v10590 = vadd.f32 %v10376, %v10589
  %10591 = vmatmul.bf16.gmra.mxu0 %v9326
  %v10592 = vpop.f32.mrf.mxu0
  %v10593 = vadd.f32 %v10379, %v10592
  %v10594 = vpop.f32.mrf.mxu0
  %v10595 = vadd.f32 %v10381, %v10594
  %10596 = vmatmul.bf16.gmra.mxu0 %v9351
  %v10597 = vpop.f32.mrf.mxu0
  %v10598 = vadd.f32 %v10384, %v10597
  %v10599 = vpop.f32.mrf.mxu0
  %v10600 = vadd.f32 %v10386, %v10599
  %10601 = vmatmul.bf16.gmra.mxu0 %v9376
  %v10602 = vpop.f32.mrf.mxu0
  %v10603 = vadd.f32 %v10389, %v10602
  %v10604 = vpop.f32.mrf.mxu0
  %v10605 = vadd.f32 %v10391, %v10604
  %10606 = vmatmul.bf16.gmra.mxu0 %v9401
  %v10607 = vpop.f32.mrf.mxu0
  %v10608 = vadd.f32 %v10394, %v10607
  %v10609 = vpop.f32.mrf.mxu0
  %v10610 = vadd.f32 %v10396, %v10609
  %10611 = vmatmul.bf16.gmra.mxu0 %v9426
  %v10612 = vpop.f32.mrf.mxu0
  %v10613 = vadd.f32 %v10399, %v10612
  %v10614 = vpop.f32.mrf.mxu0
  %v10615 = vadd.f32 %v10401, %v10614
  %10616 = vmatmul.bf16.gmra.mxu0 %v9451
  %v10617 = vpop.f32.mrf.mxu0
  %v10618 = vadd.f32 %v10404, %v10617
  %v10619 = vpop.f32.mrf.mxu0
  %v10620 = vadd.f32 %v10406, %v10619
  %10621 = vmatmul.bf16.gmra.mxu0 %v9476
  %v10622 = vpop.f32.mrf.mxu0
  %v10623 = vadd.f32 %v10409, %v10622
  %v10624 = vpop.f32.mrf.mxu0
  %v10625 = vadd.f32 %v10411, %v10624
  %10626 = vmatmul.bf16.gmra.mxu0 %v9501
  %v10627 = vpop.f32.mrf.mxu0
  %v10628 = vadd.f32 %v10414, %v10627
  %v10629 = vpop.f32.mrf.mxu0
  %v10630 = vadd.f32 %v10416, %v10629
  %10631 = vmatmul.bf16.gmra.mxu0 %v9526
  %v10632 = vpop.f32.mrf.mxu0
  %v10633 = vadd.f32 %v10419, %v10632
  %v10634 = vpop.f32.mrf.mxu0
  %v10635 = vadd.f32 %v10421, %v10634
  %10636 = vmatmul.bf16.gmra.mxu0 %v9551
  %v10637 = vpop.f32.mrf.mxu0
  %v10638 = vadd.f32 %v10424, %v10637
  %v10639 = vpop.f32.mrf.mxu0
  %v10640 = vadd.f32 %v10426, %v10639
  %10641 = vmatmul.bf16.gmra.mxu0 %v9576
  %v10642 = vpop.f32.mrf.mxu0
  %v10643 = vadd.f32 %v10429, %v10642
  %v10644 = vpop.f32.mrf.mxu0
  %v10645 = vadd.f32 %v10431, %v10644
  %10646 = vmatmul.bf16.gmra.mxu0 %v9601
  %v10647 = vpop.f32.mrf.mxu0
  %v10648 = vadd.f32 %v10434, %v10647
  %v10649 = vpop.f32.mrf.mxu0
  %v10650 = vadd.f32 %v10436, %v10649
  %10651 = vmatmul.bf16.gmra.mxu0 %v9626
  %v10652 = vpop.f32.mrf.mxu0
  %v10653 = vadd.f32 %v10439, %v10652
  %v10654 = vpop.f32.mrf.mxu0
  %v10655 = vadd.f32 %v10441, %v10654
  %10656 = vmatmul.bf16.gmra.mxu0 %v9651
  %v10657 = vpop.f32.mrf.mxu0
  %v10658 = vadd.f32 %v10444, %v10657
  %v10659 = vpop.f32.mrf.mxu0
  %v10660 = vadd.f32 %v10446, %v10659
  %10661 = vmatmul.bf16.gmra.mxu0 %v9676
  %v10662 = vpop.f32.mrf.mxu0
  %v10663 = vadd.f32 %v10449, %v10662
  %v10664 = vpop.f32.mrf.mxu0
  %v10665 = vadd.f32 %v10451, %v10664
  %10666 = vmatmul.bf16.gmra.mxu0 %v9701
  %v10667 = vpop.f32.mrf.mxu0
  %v10668 = vadd.f32 %v10454, %v10667
  %v10669 = vpop.f32.mrf.mxu0
  %v10670 = vadd.f32 %v10456, %v10669
  %10671 = vmatmul.bf16.gmra.mxu0 %v9726
  %v10672 = vpop.f32.mrf.mxu0
  %v10673 = vadd.f32 %v10459, %v10672
  %v10674 = vpop.f32.mrf.mxu0
  %v10675 = vadd.f32 %v10461, %v10674
  %10676 = vmatmul.bf16.gmra.mxu0 %v9751
  %v10677 = vpop.f32.mrf.mxu0
  %v10678 = vadd.f32 %v10464, %v10677
  %v10679 = vpop.f32.mrf.mxu0
  %v10680 = vadd.f32 %v10466, %v10679
  %10681 = vmatmul.bf16.gmra.mxu0 %v9776
  %v10682 = vpop.f32.mrf.mxu0
  %v10683 = vadd.f32 %v10469, %v10682
  %v10684 = vpop.f32.mrf.mxu0
  %v10685 = vadd.f32 %v10471, %v10684
  %10686 = vmatmul.bf16.gmra.mxu0 %v9801
  %v10687 = vpop.f32.mrf.mxu0
  %v10688 = vadd.f32 %v10474, %v10687
  %v10689 = vpop.f32.mrf.mxu0
  %v10690 = vadd.f32 %v10476, %v10689
  %10691 = vmatmul.bf16.gmra.mxu0 %v9826
  %v10692 = vpop.f32.mrf.mxu0
  %v10693 = vadd.f32 %v10479, %v10692
  %v10694 = vpop.f32.mrf.mxu0
  %v10695 = vadd.f32 %v10481, %v10694
  %10696 = vmatmul.bf16.gmra.mxu0 %v9851
  %v10697 = vpop.f32.mrf.mxu0
  %v10698 = vadd.f32 %v10484, %v10697
  %v10699 = vpop.f32.mrf.mxu0
  %v10700 = vadd.f32 %v10486, %v10699
  %10701 = vmatmul.bf16.gmra.mxu0 %v9876
  %v10702 = vpop.f32.mrf.mxu0
  %v10703 = vadd.f32 %v10489, %v10702
  %v10704 = vpop.f32.mrf.mxu0
  %v10705 = vadd.f32 %v10491, %v10704
  %10706 = vmatmul.bf16.gmra.mxu0 %v9901
  %v10707 = vpop.f32.mrf.mxu0
  %v10708 = vadd.f32 %v10494, %v10707
  %v10709 = vpop.f32.mrf.mxu0
  %v10710 = vadd.f32 %v10496, %v10709
  %10711 = vmatmul.bf16.gmra.mxu0 %v9926
  %v10712 = vpop.f32.mrf.mxu0
  %v10713 = vadd.f32 %v10499, %v10712
  %v10714 = vpop.f32.mrf.mxu0
  %v10715 = vadd.f32 %v10501, %v10714
  %10716 = vmatmul.bf16.gmra.mxu0 %v9951
  %v10717 = vpop.f32.mrf.mxu0
  %v10718 = vadd.f32 %v10504, %v10717
  %v10719 = vpop.f32.mrf.mxu0
  %v10720 = vadd.f32 %v10506, %v10719
  %10721 = vmatmul.bf16.gmra.mxu0 %v9976
  %v10722 = vpop.f32.mrf.mxu0
  %v10723 = vadd.f32 %v10509, %v10722
  %v10724 = vpop.f32.mrf.mxu0
  %v10725 = vadd.f32 %v10511, %v10724
  %10726 = vdwg.mxu0
  %10727 = vmatpush.bf16.msra.mxu0 0
  %10728 = vmatpush.bf16.msra.mxu0 0
  %10729 = vmatpush.bf16.msra.mxu0 0
  %10730 = vmatpush.bf16.msra.mxu0 0
  %10731 = vmatpush.bf16.msra.mxu0 0
  %10732 = vmatpush.bf16.msra.mxu0 0
  %10733 = vmatpush.bf16.msra.mxu0 %v10157
  %10734 = vmatpush.bf16.msra.mxu0 %v10156
  %10735 = vmatmul.bf16.gmra.mxu0 %v10177
  %v10736 = vpop.f32.mrf.mxu0
  %v10737 = vadd.f32 %v10523, %v10736
  %v10738 = vpop.f32.mrf.mxu0
  %v10739 = vadd.f32 %v10525, %v10738
  %10740 = vmatmul.bf16.gmra.mxu0 %v10180
  %v10741 = vpop.f32.mrf.mxu0
  %v10742 = vadd.f32 %v10528, %v10741
  %v10743 = vpop.f32.mrf.mxu0
  %v10744 = vadd.f32 %v10530, %v10743
  %10745 = vmatmul.bf16.gmra.mxu0 %v10183
  %v10746 = vpop.f32.mrf.mxu0
  %v10747 = vadd.f32 %v10533, %v10746
  %v10748 = vpop.f32.mrf.mxu0
  %v10749 = vadd.f32 %v10535, %v10748
  %10750 = vmatmul.bf16.gmra.mxu0 %v10186
  %v10751 = vpop.f32.mrf.mxu0
  %v10752 = vadd.f32 %v10538, %v10751
  %v10753 = vpop.f32.mrf.mxu0
  %v10754 = vadd.f32 %v10540, %v10753
  %10755 = vmatmul.bf16.gmra.mxu0 %v10189
  %v10756 = vpop.f32.mrf.mxu0
  %v10757 = vadd.f32 %v10543, %v10756
  %v10758 = vpop.f32.mrf.mxu0
  %v10759 = vadd.f32 %v10545, %v10758
  %10760 = vmatmul.bf16.gmra.mxu0 %v10192
  %v10761 = vpop.f32.mrf.mxu0
  %v10762 = vadd.f32 %v10548, %v10761
  %v10763 = vpop.f32.mrf.mxu0
  %v10764 = vadd.f32 %v10550, %v10763
  %10765 = vmatmul.bf16.gmra.mxu0 %v10195
  %v10766 = vpop.f32.mrf.mxu0
  %v10767 = vadd.f32 %v10553, %v10766
  %v10768 = vpop.f32.mrf.mxu0
  %v10769 = vadd.f32 %v10555, %v10768
  %10770 = vmatmul.bf16.gmra.mxu0 %v10198
  %v10771 = vpop.f32.mrf.mxu0
  %v10772 = vadd.f32 %v10558, %v10771
  %v10773 = vpop.f32.mrf.mxu0
  %v10774 = vadd.f32 %v10560, %v10773
  %10775 = vmatmul.bf16.gmra.mxu0 %v10201
  %v10776 = vpop.f32.mrf.mxu0
  %v10777 = vadd.f32 %v10563, %v10776
  %v10778 = vpop.f32.mrf.mxu0
  %v10779 = vadd.f32 %v10565, %v10778
  %10780 = vmatmul.bf16.gmra.mxu0 %v10204
  %v10781 = vpop.f32.mrf.mxu0
  %v10782 = vadd.f32 %v10568, %v10781
  %v10783 = vpop.f32.mrf.mxu0
  %v10784 = vadd.f32 %v10570, %v10783
  %10785 = vmatmul.bf16.gmra.mxu0 %v10207
  %v10786 = vpop.f32.mrf.mxu0
  %v10787 = vadd.f32 %v10573, %v10786
  %v10788 = vpop.f32.mrf.mxu0
  %v10789 = vadd.f32 %v10575, %v10788
  %10790 = vmatmul.bf16.gmra.mxu0 %v10210
  %v10791 = vpop.f32.mrf.mxu0
  %v10792 = vadd.f32 %v10578, %v10791
  %v10793 = vpop.f32.mrf.mxu0
  %v10794 = vadd.f32 %v10580, %v10793
  %10795 = vmatmul.bf16.gmra.mxu0 %v10213
  %v10796 = vpop.f32.mrf.mxu0
  %v10797 = vadd.f32 %v10583, %v10796
  %v10798 = vpop.f32.mrf.mxu0
  %v10799 = vadd.f32 %v10585, %v10798
  %10800 = vmatmul.bf16.gmra.mxu0 %v10216
  %v10801 = vpop.f32.mrf.mxu0
  %v10802 = vadd.f32 %v10588, %v10801
  %v10803 = vpop.f32.mrf.mxu0
  %v10804 = vadd.f32 %v10590, %v10803
  %10805 = vmatmul.bf16.gmra.mxu0 %v10219
  %v10806 = vpop.f32.mrf.mxu0
  %v10807 = vadd.f32 %v10593, %v10806
  %v10808 = vpop.f32.mrf.mxu0
  %v10809 = vadd.f32 %v10595, %v10808
  %10810 = vmatmul.bf16.gmra.mxu0 %v10222
  %v10811 = vpop.f32.mrf.mxu0
  %v10812 = vadd.f32 %v10598, %v10811
  %v10813 = vpop.f32.mrf.mxu0
  %v10814 = vadd.f32 %v10600, %v10813
  %10815 = vmatmul.bf16.gmra.mxu0 %v10225
  %v10816 = vpop.f32.mrf.mxu0
  %v10817 = vadd.f32 %v10603, %v10816
  %v10818 = vpop.f32.mrf.mxu0
  %v10819 = vadd.f32 %v10605, %v10818
  %10820 = vmatmul.bf16.gmra.mxu0 %v10228
  %v10821 = vpop.f32.mrf.mxu0
  %v10822 = vadd.f32 %v10608, %v10821
  %v10823 = vpop.f32.mrf.mxu0
  %v10824 = vadd.f32 %v10610, %v10823
  %10825 = vmatmul.bf16.gmra.mxu0 %v10231
  %v10826 = vpop.f32.mrf.mxu0
  %v10827 = vadd.f32 %v10613, %v10826
  %v10828 = vpop.f32.mrf.mxu0
  %v10829 = vadd.f32 %v10615, %v10828
  %10830 = vmatmul.bf16.gmra.mxu0 %v10234
  %v10831 = vpop.f32.mrf.mxu0
  %v10832 = vadd.f32 %v10618, %v10831
  %v10833 = vpop.f32.mrf.mxu0
  %v10834 = vadd.f32 %v10620, %v10833
  %10835 = vmatmul.bf16.gmra.mxu0 %v10237
  %v10836 = vpop.f32.mrf.mxu0
  %v10837 = vadd.f32 %v10623, %v10836
  %v10838 = vpop.f32.mrf.mxu0
  %v10839 = vadd.f32 %v10625, %v10838
  %10840 = vmatmul.bf16.gmra.mxu0 %v10240
  %v10841 = vpop.f32.mrf.mxu0
  %v10842 = vadd.f32 %v10628, %v10841
  %v10843 = vpop.f32.mrf.mxu0
  %v10844 = vadd.f32 %v10630, %v10843
  %10845 = vmatmul.bf16.gmra.mxu0 %v10243
  %v10846 = vpop.f32.mrf.mxu0
  %v10847 = vadd.f32 %v10633, %v10846
  %v10848 = vpop.f32.mrf.mxu0
  %v10849 = vadd.f32 %v10635, %v10848
  %10850 = vmatmul.bf16.gmra.mxu0 %v10246
  %v10851 = vpop.f32.mrf.mxu0
  %v10852 = vadd.f32 %v10638, %v10851
  %v10853 = vpop.f32.mrf.mxu0
  %v10854 = vadd.f32 %v10640, %v10853
  %10855 = vmatmul.bf16.gmra.mxu0 %v10249
  %v10856 = vpop.f32.mrf.mxu0
  %v10857 = vadd.f32 %v10643, %v10856
  %v10858 = vpop.f32.mrf.mxu0
  %v10859 = vadd.f32 %v10645, %v10858
  %10860 = vmatmul.bf16.gmra.mxu0 %v10252
  %v10861 = vpop.f32.mrf.mxu0
  %v10862 = vadd.f32 %v10648, %v10861
  %v10863 = vpop.f32.mrf.mxu0
  %v10864 = vadd.f32 %v10650, %v10863
  %10865 = vmatmul.bf16.gmra.mxu0 %v10255
  %v10866 = vpop.f32.mrf.mxu0
  %v10867 = vadd.f32 %v10653, %v10866
  %v10868 = vpop.f32.mrf.mxu0
  %v10869 = vadd.f32 %v10655, %v10868
  %10870 = vmatmul.bf16.gmra.mxu0 %v10258
  %v10871 = vpop.f32.mrf.mxu0
  %v10872 = vadd.f32 %v10658, %v10871
  %v10873 = vpop.f32.mrf.mxu0
  %v10874 = vadd.f32 %v10660, %v10873
  %10875 = vmatmul.bf16.gmra.mxu0 %v10261
  %v10876 = vpop.f32.mrf.mxu0
  %v10877 = vadd.f32 %v10663, %v10876
  %v10878 = vpop.f32.mrf.mxu0
  %v10879 = vadd.f32 %v10665, %v10878
  %10880 = vmatmul.bf16.gmra.mxu0 %v10264
  %v10881 = vpop.f32.mrf.mxu0
  %v10882 = vadd.f32 %v10668, %v10881
  %v10883 = vpop.f32.mrf.mxu0
  %v10884 = vadd.f32 %v10670, %v10883
  %10885 = vmatmul.bf16.gmra.mxu0 %v10267
  %v10886 = vpop.f32.mrf.mxu0
  %v10887 = vadd.f32 %v10673, %v10886
  %v10888 = vpop.f32.mrf.mxu0
  %v10889 = vadd.f32 %v10675, %v10888
  %10890 = vmatmul.bf16.gmra.mxu0 %v10270
  %v10891 = vpop.f32.mrf.mxu0
  %v10892 = vadd.f32 %v10678, %v10891
  %v10893 = vpop.f32.mrf.mxu0
  %v10894 = vadd.f32 %v10680, %v10893
  %10895 = vmatmul.bf16.gmra.mxu0 %v10273
  %v10896 = vpop.f32.mrf.mxu0
  %v10897 = vadd.f32 %v10683, %v10896
  %v10898 = vpop.f32.mrf.mxu0
  %v10899 = vadd.f32 %v10685, %v10898
  %10900 = vmatmul.bf16.gmra.mxu0 %v10276
  %v10901 = vpop.f32.mrf.mxu0
  %v10902 = vadd.f32 %v10688, %v10901
  %v10903 = vpop.f32.mrf.mxu0
  %v10904 = vadd.f32 %v10690, %v10903
  %10905 = vmatmul.bf16.gmra.mxu0 %v10279
  %v10906 = vpop.f32.mrf.mxu0
  %v10907 = vadd.f32 %v10693, %v10906
  %v10908 = vpop.f32.mrf.mxu0
  %v10909 = vadd.f32 %v10695, %v10908
  %10910 = vmatmul.bf16.gmra.mxu0 %v10282
  %v10911 = vpop.f32.mrf.mxu0
  %v10912 = vadd.f32 %v10698, %v10911
  %v10913 = vpop.f32.mrf.mxu0
  %v10914 = vadd.f32 %v10700, %v10913
  %10915 = vmatmul.bf16.gmra.mxu0 %v10285
  %v10916 = vpop.f32.mrf.mxu0
  %v10917 = vadd.f32 %v10703, %v10916
  %v10918 = vpop.f32.mrf.mxu0
  %v10919 = vadd.f32 %v10705, %v10918
  %10920 = vmatmul.bf16.gmra.mxu0 %v10288
  %v10921 = vpop.f32.mrf.mxu0
  %v10922 = vadd.f32 %v10708, %v10921
  %v10923 = vpop.f32.mrf.mxu0
  %v10924 = vadd.f32 %v10710, %v10923
  %10925 = vmatmul.bf16.gmra.mxu0 %v10291
  %v10926 = vpop.f32.mrf.mxu0
  %v10927 = vadd.f32 %v10713, %v10926
  %v10928 = vpop.f32.mrf.mxu0
  %v10929 = vadd.f32 %v10715, %v10928
  %10930 = vmatmul.bf16.gmra.mxu0 %v10294
  %v10931 = vpop.f32.mrf.mxu0
  %v10932 = vadd.f32 %v10718, %v10931
  %v10933 = vpop.f32.mrf.mxu0
  %v10934 = vadd.f32 %v10720, %v10933
  %10935 = vmatmul.bf16.gmra.mxu0 %v10297
  %v10936 = vpop.f32.mrf.mxu0
  %v10937 = vadd.f32 %v10723, %v10936
  %v10938 = vpop.f32.mrf.mxu0
  %v10939 = vadd.f32 %v10725, %v10938
  %10940 = vdwg.mxu0
  %v10941 = vmul.f32 %v10737, %v4736
  %v10942 = vmul.f32 %v10739, %v4741
  %v10943 = vmul.f32 %v10742, %v4746
  %v10944 = vmul.f32 %v10744, %v4751
  %v10945 = vmul.f32 %v10747, %v4756
  %v10946 = vmul.f32 %v10749, %v4761
  %v10947 = vmul.f32 %v10752, %v4766
  %v10948 = vmul.f32 %v10754, %v4771
  %v10949 = vmul.f32 %v10757, %v4776
  %v10950 = vmul.f32 %v10759, %v4781
  %v10951 = vmul.f32 %v10762, %v4786
  %v10952 = vmul.f32 %v10764, %v4791
  %v10953 = vmul.f32 %v10767, %v4796
  %v10954 = vmul.f32 %v10769, %v4801
  %v10955 = vmul.f32 %v10772, %v4806
  %v10956 = vmul.f32 %v10774, %v4811
  %v10957 = vmul.f32 %v10777, %v4816
  %v10958 = vmul.f32 %v10779, %v4821
  %v10959 = vmul.f32 %v10782, %v4826
  %v10960 = vmul.f32 %v10784, %v4831
  %v10961 = vmul.f32 %v10787, %v4836
  %v10962 = vmul.f32 %v10789, %v4841
  %v10963 = vmul.f32 %v10792, %v4846
  %v10964 = vmul.f32 %v10794, %v4851
  %v10965 = vmul.f32 %v10797, %v4856
  %v10966 = vmul.f32 %v10799, %v4861
  %v10967 = vmul.f32 %v10802, %v4866
  %v10968 = vmul.f32 %v10804, %v4871
  %v10969 = vmul.f32 %v10807, %v4876
  %v10970 = vmul.f32 %v10809, %v4881
  %v10971 = vmul.f32 %v10812, %v4886
  %v10972 = vmul.f32 %v10814, %v4891
  %v10973 = vmul.f32 %v10817, %v4896
  %v10974 = vmul.f32 %v10819, %v4901
  %v10975 = vmul.f32 %v10822, %v4906
  %v10976 = vmul.f32 %v10824, %v4911
  %v10977 = vmul.f32 %v10827, %v4916
  %v10978 = vmul.f32 %v10829, %v4921
  %v10979 = vmul.f32 %v10832, %v4926
  %v10980 = vmul.f32 %v10834, %v4931
  %v10981 = vmul.f32 %v10837, %v4936
  %v10982 = vmul.f32 %v10839, %v4941
  %v10983 = vmul.f32 %v10842, %v4946
  %v10984 = vmul.f32 %v10844, %v4951
  %v10985 = vmul.f32 %v10847, %v4956
  %v10986 = vmul.f32 %v10849, %v4961
  %v10987 = vmul.f32 %v10852, %v4966
  %v10988 = vmul.f32 %v10854, %v4971
  %v10989 = vmul.f32 %v10857, %v4976
  %v10990 = vmul.f32 %v10859, %v4981
  %v10991 = vmul.f32 %v10862, %v4986
  %v10992 = vmul.f32 %v10864, %v4991
  %v10993 = vmul.f32 %v10867, %v4996
  %v10994 = vmul.f32 %v10869, %v5001
  %v10995 = vmul.f32 %v10872, %v5006
  %v10996 = vmul.f32 %v10874, %v5011
  %v10997 = vmul.f32 %v10877, %v5016
  %v10998 = vmul.f32 %v10879, %v5021
  %v10999 = vmul.f32 %v10882, %v5026
  %v11000 = vmul.f32 %v10884, %v5031
  %v11001 = vmul.f32 %v10887, %v5036
  %v11002 = vmul.f32 %v10889, %v5041
  %v11003 = vmul.f32 %v10892, %v5046
  %v11004 = vmul.f32 %v10894, %v5051
  %v11005 = vmul.f32 %v10897, %v5056
  %v11006 = vmul.f32 %v10899, %v5061
  %v11007 = vmul.f32 %v10902, %v5066
  %v11008 = vmul.f32 %v10904, %v5071
  %v11009 = vmul.f32 %v10907, %v5076
  %v11010 = vmul.f32 %v10909, %v5081
  %v11011 = vmul.f32 %v10912, %v5086
  %v11012 = vmul.f32 %v10914, %v5091
  %v11013 = vmul.f32 %v10917, %v5096
  %v11014 = vmul.f32 %v10919, %v5101
  %v11015 = vmul.f32 %v10922, %v5106
  %v11016 = vmul.f32 %v10924, %v5111
  %v11017 = vmul.f32 %v10927, %v5116
  %v11018 = vmul.f32 %v10929, %v5121
  %v11019 = vmul.f32 %v10932, %v5126
  %v11020 = vmul.f32 %v10934, %v5131
  %v11021 = vmul.f32 %v10937, %v5136
  %v11022 = vmul.f32 %v10939, %v5141
  %v11023 = vsel %vm2144, %v10941, 0.0
  %v11024 = vsel %vm2144, %v10942, 0.0
  %v11025 = vadd.f32 %v11023, %v11024
  %v11026 = vsel %vm2144, %v10943, 0.0
  %v11027 = vadd.f32 %v11025, %v11026
  %v11028 = vsel %vm2144, %v10944, 0.0
  %v11029 = vadd.f32 %v11027, %v11028
  %v11030 = vsel %vm2144, %v10945, 0.0
  %v11031 = vadd.f32 %v11029, %v11030
  %v11032 = vsel %vm2144, %v10946, 0.0
  %v11033 = vadd.f32 %v11031, %v11032
  %v11034 = vsel %vm2144, %v10947, 0.0
  %v11035 = vadd.f32 %v11033, %v11034
  %v11036 = vsel %vm2144, %v10948, 0.0
  %v11037 = vadd.f32 %v11035, %v11036
  %v11038 = vsel %vm2144, %v10949, 0.0
  %v11039 = vadd.f32 %v11037, %v11038
  %v11040 = vsel %vm2144, %v10950, 0.0
  %v11041 = vadd.f32 %v11039, %v11040
  %v11042 = vsel %vm2144, %v10951, 0.0
  %v11043 = vadd.f32 %v11041, %v11042
  %v11044 = vsel %vm2144, %v10952, 0.0
  %v11045 = vadd.f32 %v11043, %v11044
  %v11046 = vsel %vm2144, %v10953, 0.0
  %v11047 = vadd.f32 %v11045, %v11046
  %v11048 = vsel %vm2144, %v10954, 0.0
  %v11049 = vadd.f32 %v11047, %v11048
  %v11050 = vsel %vm2144, %v10955, 0.0
  %v11051 = vadd.f32 %v11049, %v11050
  %v11052 = vsel %vm2144, %v10956, 0.0
  %v11053 = vadd.f32 %v11051, %v11052
  %v11054 = vsel %vm2144, %v10957, 0.0
  %v11055 = vadd.f32 %v11053, %v11054
  %v11056 = vsel %vm2144, %v10958, 0.0
  %v11057 = vadd.f32 %v11055, %v11056
  %v11058 = vsel %vm2144, %v10959, 0.0
  %v11059 = vadd.f32 %v11057, %v11058
  %v11060 = vsel %vm2144, %v10960, 0.0
  %v11061 = vadd.f32 %v11059, %v11060
  %v11062 = vsel %vm2144, %v10961, 0.0
  %v11063 = vadd.f32 %v11061, %v11062
  %v11064 = vsel %vm2144, %v10962, 0.0
  %v11065 = vadd.f32 %v11063, %v11064
  %v11066 = vsel %vm2144, %v10963, 0.0
  %v11067 = vadd.f32 %v11065, %v11066
  %v11068 = vsel %vm2144, %v10964, 0.0
  %v11069 = vadd.f32 %v11067, %v11068
  %v11070 = vsel %vm2144, %v10965, 0.0
  %v11071 = vadd.f32 %v11069, %v11070
  %v11072 = vsel %vm2144, %v10966, 0.0
  %v11073 = vadd.f32 %v11071, %v11072
  %v11074 = vsel %vm2144, %v10967, 0.0
  %v11075 = vadd.f32 %v11073, %v11074
  %v11076 = vsel %vm2144, %v10968, 0.0
  %v11077 = vadd.f32 %v11075, %v11076
  %v11078 = vsel %vm2144, %v10969, 0.0
  %v11079 = vadd.f32 %v11077, %v11078
  %v11080 = vsel %vm2144, %v10970, 0.0
  %v11081 = vadd.f32 %v11079, %v11080
  %v11082 = vsel %vm2144, %v10971, 0.0
  %v11083 = vadd.f32 %v11081, %v11082
  %v11084 = vsel %vm2144, %v10972, 0.0
  %v11085 = vadd.f32 %v11083, %v11084
  %v11086 = vsel %vm2144, %v10973, 0.0
  %v11087 = vadd.f32 %v11085, %v11086
  %v11088 = vsel %vm2144, %v10974, 0.0
  %v11089 = vadd.f32 %v11087, %v11088
  %v11090 = vsel %vm2144, %v10975, 0.0
  %v11091 = vadd.f32 %v11089, %v11090
  %v11092 = vsel %vm2144, %v10976, 0.0
  %v11093 = vadd.f32 %v11091, %v11092
  %v11094 = vsel %vm2144, %v10977, 0.0
  %v11095 = vadd.f32 %v11093, %v11094
  %v11096 = vsel %vm2144, %v10978, 0.0
  %v11097 = vadd.f32 %v11095, %v11096
  %v11098 = vsel %vm2144, %v10979, 0.0
  %v11099 = vadd.f32 %v11097, %v11098
  %v11100 = vsel %vm2144, %v10980, 0.0
  %v11101 = vadd.f32 %v11099, %v11100
  %v11102 = vsel %vm2144, %v10981, 0.0
  %v11103 = vadd.f32 %v11101, %v11102
  %v11104 = vsel %vm2144, %v10982, 0.0
  %v11105 = vadd.f32 %v11103, %v11104
  %v11106 = vsel %vm2144, %v10983, 0.0
  %v11107 = vadd.f32 %v11105, %v11106
  %v11108 = vsel %vm2144, %v10984, 0.0
  %v11109 = vadd.f32 %v11107, %v11108
  %v11110 = vsel %vm2144, %v10985, 0.0
  %v11111 = vadd.f32 %v11109, %v11110
  %v11112 = vsel %vm2144, %v10986, 0.0
  %v11113 = vadd.f32 %v11111, %v11112
  %v11114 = vsel %vm2144, %v10987, 0.0
  %v11115 = vadd.f32 %v11113, %v11114
  %v11116 = vsel %vm2144, %v10988, 0.0
  %v11117 = vadd.f32 %v11115, %v11116
  %v11118 = vsel %vm2144, %v10989, 0.0
  %v11119 = vadd.f32 %v11117, %v11118
  %v11120 = vsel %vm2144, %v10990, 0.0
  %v11121 = vadd.f32 %v11119, %v11120
  %v11122 = vsel %vm2144, %v10991, 0.0
  %v11123 = vadd.f32 %v11121, %v11122
  %v11124 = vsel %vm2144, %v10992, 0.0
  %v11125 = vadd.f32 %v11123, %v11124
  %v11126 = vsel %vm2144, %v10993, 0.0
  %v11127 = vadd.f32 %v11125, %v11126
  %v11128 = vsel %vm2144, %v10994, 0.0
  %v11129 = vadd.f32 %v11127, %v11128
  %v11130 = vsel %vm2144, %v10995, 0.0
  %v11131 = vadd.f32 %v11129, %v11130
  %v11132 = vsel %vm2144, %v10996, 0.0
  %v11133 = vadd.f32 %v11131, %v11132
  %v11134 = vsel %vm2144, %v10997, 0.0
  %v11135 = vadd.f32 %v11133, %v11134
  %v11136 = vsel %vm2144, %v10998, 0.0
  %v11137 = vadd.f32 %v11135, %v11136
  %v11138 = vsel %vm2144, %v10999, 0.0
  %v11139 = vadd.f32 %v11137, %v11138
  %v11140 = vsel %vm2144, %v11000, 0.0
  %v11141 = vadd.f32 %v11139, %v11140
  %v11142 = vsel %vm2144, %v11001, 0.0
  %v11143 = vadd.f32 %v11141, %v11142
  %v11144 = vsel %vm2144, %v11002, 0.0
  %v11145 = vadd.f32 %v11143, %v11144
  %v11146 = vsel %vm2144, %v11003, 0.0
  %v11147 = vadd.f32 %v11145, %v11146
  %v11148 = vsel %vm2144, %v11004, 0.0
  %v11149 = vadd.f32 %v11147, %v11148
  %v11150 = vsel %vm2144, %v11005, 0.0
  %v11151 = vadd.f32 %v11149, %v11150
  %v11152 = vsel %vm2144, %v11006, 0.0
  %v11153 = vadd.f32 %v11151, %v11152
  %v11154 = vsel %vm2144, %v11007, 0.0
  %v11155 = vadd.f32 %v11153, %v11154
  %v11156 = vsel %vm2144, %v11008, 0.0
  %v11157 = vadd.f32 %v11155, %v11156
  %v11158 = vsel %vm2144, %v11009, 0.0
  %v11159 = vadd.f32 %v11157, %v11158
  %v11160 = vsel %vm2144, %v11010, 0.0
  %v11161 = vadd.f32 %v11159, %v11160
  %v11162 = vsel %vm2144, %v11011, 0.0
  %v11163 = vadd.f32 %v11161, %v11162
  %v11164 = vsel %vm2144, %v11012, 0.0
  %v11165 = vadd.f32 %v11163, %v11164
  %v11166 = vsel %vm2144, %v11013, 0.0
  %v11167 = vadd.f32 %v11165, %v11166
  %v11168 = vsel %vm2144, %v11014, 0.0
  %v11169 = vadd.f32 %v11167, %v11168
  %v11170 = vsel %vm2144, %v11015, 0.0
  %v11171 = vadd.f32 %v11169, %v11170
  %v11172 = vsel %vm2144, %v11016, 0.0
  %v11173 = vadd.f32 %v11171, %v11172
  %v11174 = vsel %vm2144, %v11017, 0.0
  %v11175 = vadd.f32 %v11173, %v11174
  %v11176 = vsel %vm2144, %v11018, 0.0
  %v11177 = vadd.f32 %v11175, %v11176
  %v11178 = vsel %vm2144, %v11019, 0.0
  %v11179 = vadd.f32 %v11177, %v11178
  %v11180 = vsel %vm2144, %v11020, 0.0
  %v11181 = vadd.f32 %v11179, %v11180
  %v11182 = vsel %vm2144, %v11021, 0.0
  %v11183 = vadd.f32 %v11181, %v11182
  %v11184 = vsel %vm2144, %v11022, 0.0
  %v11185 = vadd.f32 %v11183, %v11184
  %v11186 = vrot.slane %v11185, 4
  %v11187 = vadd.f32 %v11185, %v11186
  %v11188 = vrot.slane %v11187, 2
  %v11189 = vadd.f32 %v11187, %v11188
  %v11190 = vrot.slane %v11189, 1
  %v11191 = vadd.f32 %v11189, %v11190
  %v11192 = vmul.f32 %v11191, 0.001953125
  %v11193 = vmul.f32 %v10941, %v10941
  %v11194 = vmul.f32 %v10942, %v10942
  %v11195 = vmul.f32 %v10943, %v10943
  %v11196 = vmul.f32 %v10944, %v10944
  %v11197 = vmul.f32 %v10945, %v10945
  %v11198 = vmul.f32 %v10946, %v10946
  %v11199 = vmul.f32 %v10947, %v10947
  %v11200 = vmul.f32 %v10948, %v10948
  %v11201 = vmul.f32 %v10949, %v10949
  %v11202 = vmul.f32 %v10950, %v10950
  %v11203 = vmul.f32 %v10951, %v10951
  %v11204 = vmul.f32 %v10952, %v10952
  %v11205 = vmul.f32 %v10953, %v10953
  %v11206 = vmul.f32 %v10954, %v10954
  %v11207 = vmul.f32 %v10955, %v10955
  %v11208 = vmul.f32 %v10956, %v10956
  %v11209 = vmul.f32 %v10957, %v10957
  %v11210 = vmul.f32 %v10958, %v10958
  %v11211 = vmul.f32 %v10959, %v10959
  %v11212 = vmul.f32 %v10960, %v10960
  %v11213 = vmul.f32 %v10961, %v10961
  %v11214 = vmul.f32 %v10962, %v10962
  %v11215 = vmul.f32 %v10963, %v10963
  %v11216 = vmul.f32 %v10964, %v10964
  %v11217 = vmul.f32 %v10965, %v10965
  %v11218 = vmul.f32 %v10966, %v10966
  %v11219 = vmul.f32 %v10967, %v10967
  %v11220 = vmul.f32 %v10968, %v10968
  %v11221 = vmul.f32 %v10969, %v10969
  %v11222 = vmul.f32 %v10970, %v10970
  %v11223 = vmul.f32 %v10971, %v10971
  %v11224 = vmul.f32 %v10972, %v10972
  %v11225 = vmul.f32 %v10973, %v10973
  %v11226 = vmul.f32 %v10974, %v10974
  %v11227 = vmul.f32 %v10975, %v10975
  %v11228 = vmul.f32 %v10976, %v10976
  %v11229 = vmul.f32 %v10977, %v10977
  %v11230 = vmul.f32 %v10978, %v10978
  %v11231 = vmul.f32 %v10979, %v10979
  %v11232 = vmul.f32 %v10980, %v10980
  %v11233 = vmul.f32 %v10981, %v10981
  %v11234 = vmul.f32 %v10982, %v10982
  %v11235 = vmul.f32 %v10983, %v10983
  %v11236 = vmul.f32 %v10984, %v10984
  %v11237 = vmul.f32 %v10985, %v10985
  %v11238 = vmul.f32 %v10986, %v10986
  %v11239 = vmul.f32 %v10987, %v10987
  %v11240 = vmul.f32 %v10988, %v10988
  %v11241 = vmul.f32 %v10989, %v10989
  %v11242 = vmul.f32 %v10990, %v10990
  %v11243 = vmul.f32 %v10991, %v10991
  %v11244 = vmul.f32 %v10992, %v10992
  %v11245 = vmul.f32 %v10993, %v10993
  %v11246 = vmul.f32 %v10994, %v10994
  %v11247 = vmul.f32 %v10995, %v10995
  %v11248 = vmul.f32 %v10996, %v10996
  %v11249 = vmul.f32 %v10997, %v10997
  %v11250 = vmul.f32 %v10998, %v10998
  %v11251 = vmul.f32 %v10999, %v10999
  %v11252 = vmul.f32 %v11000, %v11000
  %v11253 = vmul.f32 %v11001, %v11001
  %v11254 = vmul.f32 %v11002, %v11002
  %v11255 = vmul.f32 %v11003, %v11003
  %v11256 = vmul.f32 %v11004, %v11004
  %v11257 = vmul.f32 %v11005, %v11005
  %v11258 = vmul.f32 %v11006, %v11006
  %v11259 = vmul.f32 %v11007, %v11007
  %v11260 = vmul.f32 %v11008, %v11008
  %v11261 = vmul.f32 %v11009, %v11009
  %v11262 = vmul.f32 %v11010, %v11010
  %v11263 = vmul.f32 %v11011, %v11011
  %v11264 = vmul.f32 %v11012, %v11012
  %v11265 = vmul.f32 %v11013, %v11013
  %v11266 = vmul.f32 %v11014, %v11014
  %v11267 = vmul.f32 %v11015, %v11015
  %v11268 = vmul.f32 %v11016, %v11016
  %v11269 = vmul.f32 %v11017, %v11017
  %v11270 = vmul.f32 %v11018, %v11018
  %v11271 = vmul.f32 %v11019, %v11019
  %v11272 = vmul.f32 %v11020, %v11020
  %v11273 = vmul.f32 %v11021, %v11021
  %v11274 = vmul.f32 %v11022, %v11022
  %v11275 = vsel %vm2144, %v11193, 0.0
  %v11276 = vsel %vm2144, %v11194, 0.0
  %v11277 = vadd.f32 %v11275, %v11276
  %v11278 = vsel %vm2144, %v11195, 0.0
  %v11279 = vadd.f32 %v11277, %v11278
  %v11280 = vsel %vm2144, %v11196, 0.0
  %v11281 = vadd.f32 %v11279, %v11280
  %v11282 = vsel %vm2144, %v11197, 0.0
  %v11283 = vadd.f32 %v11281, %v11282
  %v11284 = vsel %vm2144, %v11198, 0.0
  %v11285 = vadd.f32 %v11283, %v11284
  %v11286 = vsel %vm2144, %v11199, 0.0
  %v11287 = vadd.f32 %v11285, %v11286
  %v11288 = vsel %vm2144, %v11200, 0.0
  %v11289 = vadd.f32 %v11287, %v11288
  %v11290 = vsel %vm2144, %v11201, 0.0
  %v11291 = vadd.f32 %v11289, %v11290
  %v11292 = vsel %vm2144, %v11202, 0.0
  %v11293 = vadd.f32 %v11291, %v11292
  %v11294 = vsel %vm2144, %v11203, 0.0
  %v11295 = vadd.f32 %v11293, %v11294
  %v11296 = vsel %vm2144, %v11204, 0.0
  %v11297 = vadd.f32 %v11295, %v11296
  %v11298 = vsel %vm2144, %v11205, 0.0
  %v11299 = vadd.f32 %v11297, %v11298
  %v11300 = vsel %vm2144, %v11206, 0.0
  %v11301 = vadd.f32 %v11299, %v11300
  %v11302 = vsel %vm2144, %v11207, 0.0
  %v11303 = vadd.f32 %v11301, %v11302
  %v11304 = vsel %vm2144, %v11208, 0.0
  %v11305 = vadd.f32 %v11303, %v11304
  %v11306 = vsel %vm2144, %v11209, 0.0
  %v11307 = vadd.f32 %v11305, %v11306
  %v11308 = vsel %vm2144, %v11210, 0.0
  %v11309 = vadd.f32 %v11307, %v11308
  %v11310 = vsel %vm2144, %v11211, 0.0
  %v11311 = vadd.f32 %v11309, %v11310
  %v11312 = vsel %vm2144, %v11212, 0.0
  %v11313 = vadd.f32 %v11311, %v11312
  %v11314 = vsel %vm2144, %v11213, 0.0
  %v11315 = vadd.f32 %v11313, %v11314
  %v11316 = vsel %vm2144, %v11214, 0.0
  %v11317 = vadd.f32 %v11315, %v11316
  %v11318 = vsel %vm2144, %v11215, 0.0
  %v11319 = vadd.f32 %v11317, %v11318
  %v11320 = vsel %vm2144, %v11216, 0.0
  %v11321 = vadd.f32 %v11319, %v11320
  %v11322 = vsel %vm2144, %v11217, 0.0
  %v11323 = vadd.f32 %v11321, %v11322
  %v11324 = vsel %vm2144, %v11218, 0.0
  %v11325 = vadd.f32 %v11323, %v11324
  %v11326 = vsel %vm2144, %v11219, 0.0
  %v11327 = vadd.f32 %v11325, %v11326
  %v11328 = vsel %vm2144, %v11220, 0.0
  %v11329 = vadd.f32 %v11327, %v11328
  %v11330 = vsel %vm2144, %v11221, 0.0
  %v11331 = vadd.f32 %v11329, %v11330
  %v11332 = vsel %vm2144, %v11222, 0.0
  %v11333 = vadd.f32 %v11331, %v11332
  %v11334 = vsel %vm2144, %v11223, 0.0
  %v11335 = vadd.f32 %v11333, %v11334
  %v11336 = vsel %vm2144, %v11224, 0.0
  %v11337 = vadd.f32 %v11335, %v11336
  %v11338 = vsel %vm2144, %v11225, 0.0
  %v11339 = vadd.f32 %v11337, %v11338
  %v11340 = vsel %vm2144, %v11226, 0.0
  %v11341 = vadd.f32 %v11339, %v11340
  %v11342 = vsel %vm2144, %v11227, 0.0
  %v11343 = vadd.f32 %v11341, %v11342
  %v11344 = vsel %vm2144, %v11228, 0.0
  %v11345 = vadd.f32 %v11343, %v11344
  %v11346 = vsel %vm2144, %v11229, 0.0
  %v11347 = vadd.f32 %v11345, %v11346
  %v11348 = vsel %vm2144, %v11230, 0.0
  %v11349 = vadd.f32 %v11347, %v11348
  %v11350 = vsel %vm2144, %v11231, 0.0
  %v11351 = vadd.f32 %v11349, %v11350
  %v11352 = vsel %vm2144, %v11232, 0.0
  %v11353 = vadd.f32 %v11351, %v11352
  %v11354 = vsel %vm2144, %v11233, 0.0
  %v11355 = vadd.f32 %v11353, %v11354
  %v11356 = vsel %vm2144, %v11234, 0.0
  %v11357 = vadd.f32 %v11355, %v11356
  %v11358 = vsel %vm2144, %v11235, 0.0
  %v11359 = vadd.f32 %v11357, %v11358
  %v11360 = vsel %vm2144, %v11236, 0.0
  %v11361 = vadd.f32 %v11359, %v11360
  %v11362 = vsel %vm2144, %v11237, 0.0
  %v11363 = vadd.f32 %v11361, %v11362
  %v11364 = vsel %vm2144, %v11238, 0.0
  %v11365 = vadd.f32 %v11363, %v11364
  %v11366 = vsel %vm2144, %v11239, 0.0
  %v11367 = vadd.f32 %v11365, %v11366
  %v11368 = vsel %vm2144, %v11240, 0.0
  %v11369 = vadd.f32 %v11367, %v11368
  %v11370 = vsel %vm2144, %v11241, 0.0
  %v11371 = vadd.f32 %v11369, %v11370
  %v11372 = vsel %vm2144, %v11242, 0.0
  %v11373 = vadd.f32 %v11371, %v11372
  %v11374 = vsel %vm2144, %v11243, 0.0
  %v11375 = vadd.f32 %v11373, %v11374
  %v11376 = vsel %vm2144, %v11244, 0.0
  %v11377 = vadd.f32 %v11375, %v11376
  %v11378 = vsel %vm2144, %v11245, 0.0
  %v11379 = vadd.f32 %v11377, %v11378
  %v11380 = vsel %vm2144, %v11246, 0.0
  %v11381 = vadd.f32 %v11379, %v11380
  %v11382 = vsel %vm2144, %v11247, 0.0
  %v11383 = vadd.f32 %v11381, %v11382
  %v11384 = vsel %vm2144, %v11248, 0.0
  %v11385 = vadd.f32 %v11383, %v11384
  %v11386 = vsel %vm2144, %v11249, 0.0
  %v11387 = vadd.f32 %v11385, %v11386
  %v11388 = vsel %vm2144, %v11250, 0.0
  %v11389 = vadd.f32 %v11387, %v11388
  %v11390 = vsel %vm2144, %v11251, 0.0
  %v11391 = vadd.f32 %v11389, %v11390
  %v11392 = vsel %vm2144, %v11252, 0.0
  %v11393 = vadd.f32 %v11391, %v11392
  %v11394 = vsel %vm2144, %v11253, 0.0
  %v11395 = vadd.f32 %v11393, %v11394
  %v11396 = vsel %vm2144, %v11254, 0.0
  %v11397 = vadd.f32 %v11395, %v11396
  %v11398 = vsel %vm2144, %v11255, 0.0
  %v11399 = vadd.f32 %v11397, %v11398
  %v11400 = vsel %vm2144, %v11256, 0.0
  %v11401 = vadd.f32 %v11399, %v11400
  %v11402 = vsel %vm2144, %v11257, 0.0
  %v11403 = vadd.f32 %v11401, %v11402
  %v11404 = vsel %vm2144, %v11258, 0.0
  %v11405 = vadd.f32 %v11403, %v11404
  %v11406 = vsel %vm2144, %v11259, 0.0
  %v11407 = vadd.f32 %v11405, %v11406
  %v11408 = vsel %vm2144, %v11260, 0.0
  %v11409 = vadd.f32 %v11407, %v11408
  %v11410 = vsel %vm2144, %v11261, 0.0
  %v11411 = vadd.f32 %v11409, %v11410
  %v11412 = vsel %vm2144, %v11262, 0.0
  %v11413 = vadd.f32 %v11411, %v11412
  %v11414 = vsel %vm2144, %v11263, 0.0
  %v11415 = vadd.f32 %v11413, %v11414
  %v11416 = vsel %vm2144, %v11264, 0.0
  %v11417 = vadd.f32 %v11415, %v11416
  %v11418 = vsel %vm2144, %v11265, 0.0
  %v11419 = vadd.f32 %v11417, %v11418
  %v11420 = vsel %vm2144, %v11266, 0.0
  %v11421 = vadd.f32 %v11419, %v11420
  %v11422 = vsel %vm2144, %v11267, 0.0
  %v11423 = vadd.f32 %v11421, %v11422
  %v11424 = vsel %vm2144, %v11268, 0.0
  %v11425 = vadd.f32 %v11423, %v11424
  %v11426 = vsel %vm2144, %v11269, 0.0
  %v11427 = vadd.f32 %v11425, %v11426
  %v11428 = vsel %vm2144, %v11270, 0.0
  %v11429 = vadd.f32 %v11427, %v11428
  %v11430 = vsel %vm2144, %v11271, 0.0
  %v11431 = vadd.f32 %v11429, %v11430
  %v11432 = vsel %vm2144, %v11272, 0.0
  %v11433 = vadd.f32 %v11431, %v11432
  %v11434 = vsel %vm2144, %v11273, 0.0
  %v11435 = vadd.f32 %v11433, %v11434
  %v11436 = vsel %vm2144, %v11274, 0.0
  %v11437 = vadd.f32 %v11435, %v11436
  %v11438 = vrot.slane %v11437, 4
  %v11439 = vadd.f32 %v11437, %v11438
  %v11440 = vrot.slane %v11439, 2
  %v11441 = vadd.f32 %v11439, %v11440
  %v11442 = vrot.slane %v11441, 1
  %v11443 = vadd.f32 %v11441, %v11442
  %v11444 = vmul.f32 %v11443, 0.001953125
  %v11445 = vmul.f32 %v11192, %v11192
  %v11446 = vsub.f32 %v11444, %v11445
  %v11447 = vsub.f32 %v10737, %v11192
  %v11448 = vsub.f32 %v10739, %v11192
  %v11449 = vsub.f32 %v10742, %v11192
  %v11450 = vsub.f32 %v10744, %v11192
  %v11451 = vsub.f32 %v10747, %v11192
  %v11452 = vsub.f32 %v10749, %v11192
  %v11453 = vsub.f32 %v10752, %v11192
  %v11454 = vsub.f32 %v10754, %v11192
  %v11455 = vsub.f32 %v10757, %v11192
  %v11456 = vsub.f32 %v10759, %v11192
  %v11457 = vsub.f32 %v10762, %v11192
  %v11458 = vsub.f32 %v10764, %v11192
  %v11459 = vsub.f32 %v10767, %v11192
  %v11460 = vsub.f32 %v10769, %v11192
  %v11461 = vsub.f32 %v10772, %v11192
  %v11462 = vsub.f32 %v10774, %v11192
  %v11463 = vsub.f32 %v10777, %v11192
  %v11464 = vsub.f32 %v10779, %v11192
  %v11465 = vsub.f32 %v10782, %v11192
  %v11466 = vsub.f32 %v10784, %v11192
  %v11467 = vsub.f32 %v10787, %v11192
  %v11468 = vsub.f32 %v10789, %v11192
  %v11469 = vsub.f32 %v10792, %v11192
  %v11470 = vsub.f32 %v10794, %v11192
  %v11471 = vsub.f32 %v10797, %v11192
  %v11472 = vsub.f32 %v10799, %v11192
  %v11473 = vsub.f32 %v10802, %v11192
  %v11474 = vsub.f32 %v10804, %v11192
  %v11475 = vsub.f32 %v10807, %v11192
  %v11476 = vsub.f32 %v10809, %v11192
  %v11477 = vsub.f32 %v10812, %v11192
  %v11478 = vsub.f32 %v10814, %v11192
  %v11479 = vsub.f32 %v10817, %v11192
  %v11480 = vsub.f32 %v10819, %v11192
  %v11481 = vsub.f32 %v10822, %v11192
  %v11482 = vsub.f32 %v10824, %v11192
  %v11483 = vsub.f32 %v10827, %v11192
  %v11484 = vsub.f32 %v10829, %v11192
  %v11485 = vsub.f32 %v10832, %v11192
  %v11486 = vsub.f32 %v10834, %v11192
  %v11487 = vsub.f32 %v10837, %v11192
  %v11488 = vsub.f32 %v10839, %v11192
  %v11489 = vsub.f32 %v10842, %v11192
  %v11490 = vsub.f32 %v10844, %v11192
  %v11491 = vsub.f32 %v10847, %v11192
  %v11492 = vsub.f32 %v10849, %v11192
  %v11493 = vsub.f32 %v10852, %v11192
  %v11494 = vsub.f32 %v10854, %v11192
  %v11495 = vsub.f32 %v10857, %v11192
  %v11496 = vsub.f32 %v10859, %v11192
  %v11497 = vsub.f32 %v10862, %v11192
  %v11498 = vsub.f32 %v10864, %v11192
  %v11499 = vsub.f32 %v10867, %v11192
  %v11500 = vsub.f32 %v10869, %v11192
  %v11501 = vsub.f32 %v10872, %v11192
  %v11502 = vsub.f32 %v10874, %v11192
  %v11503 = vsub.f32 %v10877, %v11192
  %v11504 = vsub.f32 %v10879, %v11192
  %v11505 = vsub.f32 %v10882, %v11192
  %v11506 = vsub.f32 %v10884, %v11192
  %v11507 = vsub.f32 %v10887, %v11192
  %v11508 = vsub.f32 %v10889, %v11192
  %v11509 = vsub.f32 %v10892, %v11192
  %v11510 = vsub.f32 %v10894, %v11192
  %v11511 = vsub.f32 %v10897, %v11192
  %v11512 = vsub.f32 %v10899, %v11192
  %v11513 = vsub.f32 %v10902, %v11192
  %v11514 = vsub.f32 %v10904, %v11192
  %v11515 = vsub.f32 %v10907, %v11192
  %v11516 = vsub.f32 %v10909, %v11192
  %v11517 = vsub.f32 %v10912, %v11192
  %v11518 = vsub.f32 %v10914, %v11192
  %v11519 = vsub.f32 %v10917, %v11192
  %v11520 = vsub.f32 %v10919, %v11192
  %v11521 = vsub.f32 %v10922, %v11192
  %v11522 = vsub.f32 %v10924, %v11192
  %v11523 = vsub.f32 %v10927, %v11192
  %v11524 = vsub.f32 %v10929, %v11192
  %v11525 = vsub.f32 %v10932, %v11192
  %v11526 = vsub.f32 %v10934, %v11192
  %v11527 = vsub.f32 %v10937, %v11192
  %v11528 = vsub.f32 %v10939, %v11192
  %v11529 = vadd.f32 %v11446, 1e-05
  %v11530 = vrsqrt.pop %v11529
  %v11531 = vmul.f32 %v11530, %v11529
  %v11532 = vmul.f32 %v11531, %v11530
  %v11533 = vmul.f32 0.5, %v11532
  %v11534 = vsub.f32 1.5, %v11533
  %v11535 = vmul.f32 %v11530, %v11534
  %vm11536 = vweird.f32 %v11529
  %vm11537 = vweird.f32 %v11530
  %vm11538 = vmor %vm11536, %vm11537
  %v11539 = vsel %vm11538, %v11530, %v11535
  %v11540 = vmul.f32 %v11447, %v11539
  %v11541 = vmul.f32 %v11448, %v11539
  %v11542 = vmul.f32 %v11449, %v11539
  %v11543 = vmul.f32 %v11450, %v11539
  %v11544 = vmul.f32 %v11451, %v11539
  %v11545 = vmul.f32 %v11452, %v11539
  %v11546 = vmul.f32 %v11453, %v11539
  %v11547 = vmul.f32 %v11454, %v11539
  %v11548 = vmul.f32 %v11455, %v11539
  %v11549 = vmul.f32 %v11456, %v11539
  %v11550 = vmul.f32 %v11457, %v11539
  %v11551 = vmul.f32 %v11458, %v11539
  %v11552 = vmul.f32 %v11459, %v11539
  %v11553 = vmul.f32 %v11460, %v11539
  %v11554 = vmul.f32 %v11461, %v11539
  %v11555 = vmul.f32 %v11462, %v11539
  %v11556 = vmul.f32 %v11463, %v11539
  %v11557 = vmul.f32 %v11464, %v11539
  %v11558 = vmul.f32 %v11465, %v11539
  %v11559 = vmul.f32 %v11466, %v11539
  %v11560 = vmul.f32 %v11467, %v11539
  %v11561 = vmul.f32 %v11468, %v11539
  %v11562 = vmul.f32 %v11469, %v11539
  %v11563 = vmul.f32 %v11470, %v11539
  %v11564 = vmul.f32 %v11471, %v11539
  %v11565 = vmul.f32 %v11472, %v11539
  %v11566 = vmul.f32 %v11473, %v11539
  %v11567 = vmul.f32 %v11474, %v11539
  %v11568 = vmul.f32 %v11475, %v11539
  %v11569 = vmul.f32 %v11476, %v11539
  %v11570 = vmul.f32 %v11477, %v11539
  %v11571 = vmul.f32 %v11478, %v11539
  %v11572 = vmul.f32 %v11479, %v11539
  %v11573 = vmul.f32 %v11480, %v11539
  %v11574 = vmul.f32 %v11481, %v11539
  %v11575 = vmul.f32 %v11482, %v11539
  %v11576 = vmul.f32 %v11483, %v11539
  %v11577 = vmul.f32 %v11484, %v11539
  %v11578 = vmul.f32 %v11485, %v11539
  %v11579 = vmul.f32 %v11486, %v11539
  %v11580 = vmul.f32 %v11487, %v11539
  %v11581 = vmul.f32 %v11488, %v11539
  %v11582 = vmul.f32 %v11489, %v11539
  %v11583 = vmul.f32 %v11490, %v11539
  %v11584 = vmul.f32 %v11491, %v11539
  %v11585 = vmul.f32 %v11492, %v11539
  %v11586 = vmul.f32 %v11493, %v11539
  %v11587 = vmul.f32 %v11494, %v11539
  %v11588 = vmul.f32 %v11495, %v11539
  %v11589 = vmul.f32 %v11496, %v11539
  %v11590 = vmul.f32 %v11497, %v11539
  %v11591 = vmul.f32 %v11498, %v11539
  %v11592 = vmul.f32 %v11499, %v11539
  %v11593 = vmul.f32 %v11500, %v11539
  %v11594 = vmul.f32 %v11501, %v11539
  %v11595 = vmul.f32 %v11502, %v11539
  %v11596 = vmul.f32 %v11503, %v11539
  %v11597 = vmul.f32 %v11504, %v11539
  %v11598 = vmul.f32 %v11505, %v11539
  %v11599 = vmul.f32 %v11506, %v11539
  %v11600 = vmul.f32 %v11507, %v11539
  %v11601 = vmul.f32 %v11508, %v11539
  %v11602 = vmul.f32 %v11509, %v11539
  %v11603 = vmul.f32 %v11510, %v11539
  %v11604 = vmul.f32 %v11511, %v11539
  %v11605 = vmul.f32 %v11512, %v11539
  %v11606 = vmul.f32 %v11513, %v11539
  %v11607 = vmul.f32 %v11514, %v11539
  %v11608 = vmul.f32 %v11515, %v11539
  %v11609 = vmul.f32 %v11516, %v11539
  %v11610 = vmul.f32 %v11517, %v11539
  %v11611 = vmul.f32 %v11518, %v11539
  %v11612 = vmul.f32 %v11519, %v11539
  %v11613 = vmul.f32 %v11520, %v11539
  %v11614 = vmul.f32 %v11521, %v11539
  %v11615 = vmul.f32 %v11522, %v11539
  %v11616 = vmul.f32 %v11523, %v11539
  %v11617 = vmul.f32 %v11524, %v11539
  %v11618 = vmul.f32 %v11525, %v11539
  %v11619 = vmul.f32 %v11526, %v11539
  %v11620 = vmul.f32 %v11527, %v11539
  %v11621 = vmul.f32 %v11528, %v11539
  %v11622 = vld [vmem:[%s7] sm:$0x1]
  %v11624 = vperm.slane %v11622, 0
  %v11626 = vmul.f32 %v11540, %v11624
  %v11627 = vmul.f32 %v11541, %v11624
  %v11628 = vmul.f32 %v11542, %v11624
  %v11629 = vmul.f32 %v11543, %v11624
  %v11630 = vmul.f32 %v11544, %v11624
  %v11631 = vmul.f32 %v11545, %v11624
  %v11632 = vmul.f32 %v11546, %v11624
  %v11633 = vmul.f32 %v11547, %v11624
  %v11634 = vmul.f32 %v11548, %v11624
  %v11635 = vmul.f32 %v11549, %v11624
  %v11636 = vmul.f32 %v11550, %v11624
  %v11637 = vmul.f32 %v11551, %v11624
  %v11638 = vmul.f32 %v11552, %v11624
  %v11639 = vmul.f32 %v11553, %v11624
  %v11640 = vmul.f32 %v11554, %v11624
  %v11641 = vmul.f32 %v11555, %v11624
  %v11642 = vmul.f32 %v11556, %v11624
  %v11643 = vmul.f32 %v11557, %v11624
  %v11644 = vmul.f32 %v11558, %v11624
  %v11645 = vmul.f32 %v11559, %v11624
  %v11646 = vmul.f32 %v11560, %v11624
  %v11647 = vmul.f32 %v11561, %v11624
  %v11648 = vmul.f32 %v11562, %v11624
  %v11649 = vmul.f32 %v11563, %v11624
  %v11650 = vmul.f32 %v11564, %v11624
  %v11651 = vmul.f32 %v11565, %v11624
  %v11652 = vmul.f32 %v11566, %v11624
  %v11653 = vmul.f32 %v11567, %v11624
  %v11654 = vmul.f32 %v11568, %v11624
  %v11655 = vmul.f32 %v11569, %v11624
  %v11656 = vmul.f32 %v11570, %v11624
  %v11657 = vmul.f32 %v11571, %v11624
  %v11658 = vmul.f32 %v11572, %v11624
  %v11659 = vmul.f32 %v11573, %v11624
  %v11660 = vmul.f32 %v11574, %v11624
  %v11661 = vmul.f32 %v11575, %v11624
  %v11662 = vmul.f32 %v11576, %v11624
  %v11663 = vmul.f32 %v11577, %v11624
  %v11664 = vmul.f32 %v11578, %v11624
  %v11665 = vmul.f32 %v11579, %v11624
  %v11666 = vmul.f32 %v11580, %v11624
  %v11667 = vmul.f32 %v11581, %v11624
  %v11668 = vmul.f32 %v11582, %v11624
  %v11669 = vmul.f32 %v11583, %v11624
  %v11670 = vmul.f32 %v11584, %v11624
  %v11671 = vmul.f32 %v11585, %v11624
  %v11672 = vmul.f32 %v11586, %v11624
  %v11673 = vmul.f32 %v11587, %v11624
  %v11674 = vmul.f32 %v11588, %v11624
  %v11675 = vmul.f32 %v11589, %v11624
  %v11676 = vmul.f32 %v11590, %v11624
  %v11677 = vmul.f32 %v11591, %v11624
  %v11678 = vmul.f32 %v11592, %v11624
  %v11679 = vmul.f32 %v11593, %v11624
  %v11680 = vmul.f32 %v11594, %v11624
  %v11681 = vmul.f32 %v11595, %v11624
  %v11682 = vmul.f32 %v11596, %v11624
  %v11683 = vmul.f32 %v11597, %v11624
  %v11684 = vmul.f32 %v11598, %v11624
  %v11685 = vmul.f32 %v11599, %v11624
  %v11686 = vmul.f32 %v11600, %v11624
  %v11687 = vmul.f32 %v11601, %v11624
  %v11688 = vmul.f32 %v11602, %v11624
  %v11689 = vmul.f32 %v11603, %v11624
  %v11690 = vmul.f32 %v11604, %v11624
  %v11691 = vmul.f32 %v11605, %v11624
  %v11692 = vmul.f32 %v11606, %v11624
  %v11693 = vmul.f32 %v11607, %v11624
  %v11694 = vmul.f32 %v11608, %v11624
  %v11695 = vmul.f32 %v11609, %v11624
  %v11696 = vmul.f32 %v11610, %v11624
  %v11697 = vmul.f32 %v11611, %v11624
  %v11698 = vmul.f32 %v11612, %v11624
  %v11699 = vmul.f32 %v11613, %v11624
  %v11700 = vmul.f32 %v11614, %v11624
  %v11701 = vmul.f32 %v11615, %v11624
  %v11702 = vmul.f32 %v11616, %v11624
  %v11703 = vmul.f32 %v11617, %v11624
  %v11704 = vmul.f32 %v11618, %v11624
  %v11705 = vmul.f32 %v11619, %v11624
  %v11706 = vmul.f32 %v11620, %v11624
  %v11707 = vmul.f32 %v11621, %v11624
  %v11708 = vld [vmem:[%s8] sm:$0x1]
  %v11710 = vperm.slane %v11708, 0
  %v11712 = vadd.f32 %v11626, %v11710
  %v11713 = vadd.f32 %v11627, %v11710
  %v11714 = vadd.f32 %v11628, %v11710
  %v11715 = vadd.f32 %v11629, %v11710
  %v11716 = vadd.f32 %v11630, %v11710
  %v11717 = vadd.f32 %v11631, %v11710
  %v11718 = vadd.f32 %v11632, %v11710
  %v11719 = vadd.f32 %v11633, %v11710
  %v11720 = vadd.f32 %v11634, %v11710
  %v11721 = vadd.f32 %v11635, %v11710
  %v11722 = vadd.f32 %v11636, %v11710
  %v11723 = vadd.f32 %v11637, %v11710
  %v11724 = vadd.f32 %v11638, %v11710
  %v11725 = vadd.f32 %v11639, %v11710
  %v11726 = vadd.f32 %v11640, %v11710
  %v11727 = vadd.f32 %v11641, %v11710
  %v11728 = vadd.f32 %v11642, %v11710
  %v11729 = vadd.f32 %v11643, %v11710
  %v11730 = vadd.f32 %v11644, %v11710
  %v11731 = vadd.f32 %v11645, %v11710
  %v11732 = vadd.f32 %v11646, %v11710
  %v11733 = vadd.f32 %v11647, %v11710
  %v11734 = vadd.f32 %v11648, %v11710
  %v11735 = vadd.f32 %v11649, %v11710
  %v11736 = vadd.f32 %v11650, %v11710
  %v11737 = vadd.f32 %v11651, %v11710
  %v11738 = vadd.f32 %v11652, %v11710
  %v11739 = vadd.f32 %v11653, %v11710
  %v11740 = vadd.f32 %v11654, %v11710
  %v11741 = vadd.f32 %v11655, %v11710
  %v11742 = vadd.f32 %v11656, %v11710
  %v11743 = vadd.f32 %v11657, %v11710
  %v11744 = vadd.f32 %v11658, %v11710
  %v11745 = vadd.f32 %v11659, %v11710
  %v11746 = vadd.f32 %v11660, %v11710
  %v11747 = vadd.f32 %v11661, %v11710
  %v11748 = vadd.f32 %v11662, %v11710
  %v11749 = vadd.f32 %v11663, %v11710
  %v11750 = vadd.f32 %v11664, %v11710
  %v11751 = vadd.f32 %v11665, %v11710
  %v11752 = vadd.f32 %v11666, %v11710
  %v11753 = vadd.f32 %v11667, %v11710
  %v11754 = vadd.f32 %v11668, %v11710
  %v11755 = vadd.f32 %v11669, %v11710
  %v11756 = vadd.f32 %v11670, %v11710
  %v11757 = vadd.f32 %v11671, %v11710
  %v11758 = vadd.f32 %v11672, %v11710
  %v11759 = vadd.f32 %v11673, %v11710
  %v11760 = vadd.f32 %v11674, %v11710
  %v11761 = vadd.f32 %v11675, %v11710
  %v11762 = vadd.f32 %v11676, %v11710
  %v11763 = vadd.f32 %v11677, %v11710
  %v11764 = vadd.f32 %v11678, %v11710
  %v11765 = vadd.f32 %v11679, %v11710
  %v11766 = vadd.f32 %v11680, %v11710
  %v11767 = vadd.f32 %v11681, %v11710
  %v11768 = vadd.f32 %v11682, %v11710
  %v11769 = vadd.f32 %v11683, %v11710
  %v11770 = vadd.f32 %v11684, %v11710
  %v11771 = vadd.f32 %v11685, %v11710
  %v11772 = vadd.f32 %v11686, %v11710
  %v11773 = vadd.f32 %v11687, %v11710
  %v11774 = vadd.f32 %v11688, %v11710
  %v11775 = vadd.f32 %v11689, %v11710
  %v11776 = vadd.f32 %v11690, %v11710
  %v11777 = vadd.f32 %v11691, %v11710
  %v11778 = vadd.f32 %v11692, %v11710
  %v11779 = vadd.f32 %v11693, %v11710
  %v11780 = vadd.f32 %v11694, %v11710
  %v11781 = vadd.f32 %v11695, %v11710
  %v11782 = vadd.f32 %v11696, %v11710
  %v11783 = vadd.f32 %v11697, %v11710
  %v11784 = vadd.f32 %v11698, %v11710
  %v11785 = vadd.f32 %v11699, %v11710
  %v11786 = vadd.f32 %v11700, %v11710
  %v11787 = vadd.f32 %v11701, %v11710
  %v11788 = vadd.f32 %v11702, %v11710
  %v11789 = vadd.f32 %v11703, %v11710
  %v11790 = vadd.f32 %v11704, %v11710
  %v11791 = vadd.f32 %v11705, %v11710
  %v11792 = vadd.f32 %v11706, %v11710
  %v11793 = vadd.f32 %v11707, %v11710
  %v11794 = vld [vmem:[%s1] sm:$0xff]
  %v11795 = vld [vmem:[%s1 + $0x8] sm:$0xff]
  %v11796 = vld [vmem:[%s1 + $0x10] sm:$0xff]
  %v11797 = vld [vmem:[%s1 + $0x18] sm:$0xff]
  %v11798 = vld [vmem:[%s1 + $0x20] sm:$0xff]
  %v11799 = vld [vmem:[%s1 + $0x28] sm:$0xff]
  %v11800 = vld [vmem:[%s1 + $0x30] sm:$0xff]
  %v11801 = vld [vmem:[%s1 + $0x38] sm:$0xff]
  %v11802 = vld [vmem:[%s1 + $0x40] sm:$0xff]
  %v11803 = vld [vmem:[%s1 + $0x48] sm:$0xff]
  %v11804 = vld [vmem:[%s1 + $0x50] sm:$0xff]
  %v11805 = vld [vmem:[%s1 + $0x58] sm:$0xff]
  %v11806 = vld [vmem:[%s1 + $0x60] sm:$0xff]
  %v11807 = vld [vmem:[%s1 + $0x68] sm:$0xff]
  %v11808 = vld [vmem:[%s1 + $0x70] sm:$0xff]
  %v11809 = vld [vmem:[%s1 + $0x78] sm:$0xff]
  %v11810 = vld [vmem:[%s1 + $0x80] sm:$0xff]
  %v11811 = vld [vmem:[%s1 + $0x88] sm:$0xff]
  %v11812 = vld [vmem:[%s1 + $0x90] sm:$0xff]
  %v11813 = vld [vmem:[%s1 + $0x98] sm:$0xff]
  %v11814 = vld [vmem:[%s1 + $0xa0] sm:$0xff]
  %v11815 = vld [vmem:[%s1 + $0xa8] sm:$0xff]
  %v11816 = vld [vmem:[%s1 + $0xb0] sm:$0xff]
  %v11817 = vld [vmem:[%s1 + $0xb8] sm:$0xff]
  %v11818 = vld [vmem:[%s1 + $0xc0] sm:$0xff]
  %v11819 = vld [vmem:[%s1 + $0xc8] sm:$0xff]
  %v11820 = vld [vmem:[%s1 + $0xd0] sm:$0xff]
  %v11821 = vld [vmem:[%s1 + $0xd8] sm:$0xff]
  %v11822 = vld [vmem:[%s1 + $0xe0] sm:$0xff]
  %v11823 = vld [vmem:[%s1 + $0xe8] sm:$0xff]
  %v11824 = vld [vmem:[%s1 + $0xf0] sm:$0xff]
  %v11825 = vld [vmem:[%s1 + $0xf8] sm:$0xff]
  %v11826 = vld [vmem:[%s1 + $0x100] sm:$0xff]
  %v11827 = vld [vmem:[%s1 + $0x108] sm:$0xff]
  %v11828 = vld [vmem:[%s1 + $0x110] sm:$0xff]
  %v11829 = vld [vmem:[%s1 + $0x118] sm:$0xff]
  %v11830 = vld [vmem:[%s1 + $0x120] sm:$0xff]
  %v11831 = vld [vmem:[%s1 + $0x128] sm:$0xff]
  %v11832 = vld [vmem:[%s1 + $0x130] sm:$0xff]
  %v11833 = vld [vmem:[%s1 + $0x138] sm:$0xff]
  %v11834 = vld [vmem:[%s1 + $0x140] sm:$0xff]
  %v11835 = vld [vmem:[%s1 + $0x148] sm:$0xff]
  %v11836 = vld [vmem:[%s1 + $0x150] sm:$0xff]
  %v11837 = vld [vmem:[%s1 + $0x158] sm:$0xff]
  %v11838 = vld [vmem:[%s1 + $0x160] sm:$0xff]
  %v11839 = vld [vmem:[%s1 + $0x168] sm:$0xff]
  %v11840 = vld [vmem:[%s1 + $0x170] sm:$0xff]
  %v11841 = vld [vmem:[%s1 + $0x178] sm:$0xff]
  %v11842 = vld [vmem:[%s1 + $0x180] sm:$0xff]
  %v11843 = vld [vmem:[%s1 + $0x188] sm:$0xff]
  %v11844 = vld [vmem:[%s1 + $0x190] sm:$0xff]
  %v11845 = vld [vmem:[%s1 + $0x198] sm:$0xff]
  %v11846 = vld [vmem:[%s1 + $0x1a0] sm:$0xff]
  %v11847 = vld [vmem:[%s1 + $0x1a8] sm:$0xff]
  %v11848 = vld [vmem:[%s1 + $0x1b0] sm:$0xff]
  %v11849 = vld [vmem:[%s1 + $0x1b8] sm:$0xff]
  %v11850 = vld [vmem:[%s1 + $0x1c0] sm:$0xff]
  %v11851 = vld [vmem:[%s1 + $0x1c8] sm:$0xff]
  %v11852 = vld [vmem:[%s1 + $0x1d0] sm:$0xff]
  %v11853 = vld [vmem:[%s1 + $0x1d8] sm:$0xff]
  %v11854 = vld [vmem:[%s1 + $0x1e0] sm:$0xff]
  %v11855 = vld [vmem:[%s1 + $0x1e8] sm:$0xff]
  %v11856 = vld [vmem:[%s1 + $0x1f0] sm:$0xff]
  %v11857 = vld [vmem:[%s1 + $0x1f8] sm:$0xff]
  %v11858 = vld [vmem:[%s1 + $0x200] sm:$0xff]
  %v11859 = vld [vmem:[%s1 + $0x208] sm:$0xff]
  %v11860 = vld [vmem:[%s1 + $0x210] sm:$0xff]
  %v11861 = vld [vmem:[%s1 + $0x218] sm:$0xff]
  %v11862 = vld [vmem:[%s1 + $0x220] sm:$0xff]
  %v11863 = vld [vmem:[%s1 + $0x228] sm:$0xff]
  %v11864 = vld [vmem:[%s1 + $0x230] sm:$0xff]
  %v11865 = vld [vmem:[%s1 + $0x238] sm:$0xff]
  %v11866 = vld [vmem:[%s1 + $0x240] sm:$0xff]
  %v11867 = vld [vmem:[%s1 + $0x248] sm:$0xff]
  %v11868 = vld [vmem:[%s1 + $0x250] sm:$0xff]
  %v11869 = vld [vmem:[%s1 + $0x258] sm:$0xff]
  %v11870 = vld [vmem:[%s1 + $0x260] sm:$0xff]
  %v11871 = vld [vmem:[%s1 + $0x268] sm:$0xff]
  %v11872 = vld [vmem:[%s1 + $0x270] sm:$0xff]
  %v11873 = vld [vmem:[%s1 + $0x278] sm:$0xff]
  %v11874 = vld [vmem:[%s1 + $0x280] sm:$0xff]
  %v11875 = vld [vmem:[%s1 + $0x288] sm:$0xff]
  %v11876 = vadd.f32 %v11712, %v11794
  %v11877 = vadd.f32 %v11713, %v11795
  %v11878 = vadd.f32 %v11714, %v11796
  %v11879 = vadd.f32 %v11715, %v11797
  %v11880 = vadd.f32 %v11716, %v11798
  %v11881 = vadd.f32 %v11717, %v11799
  %v11882 = vadd.f32 %v11718, %v11800
  %v11883 = vadd.f32 %v11719, %v11801
  %v11884 = vadd.f32 %v11720, %v11802
  %v11885 = vadd.f32 %v11721, %v11803
  %v11886 = vadd.f32 %v11722, %v11804
  %v11887 = vadd.f32 %v11723, %v11805
  %v11888 = vadd.f32 %v11724, %v11806
  %v11889 = vadd.f32 %v11725, %v11807
  %v11890 = vadd.f32 %v11726, %v11808
  %v11891 = vadd.f32 %v11727, %v11809
  %v11892 = vadd.f32 %v11728, %v11810
  %v11893 = vadd.f32 %v11729, %v11811
  %v11894 = vadd.f32 %v11730, %v11812
  %v11895 = vadd.f32 %v11731, %v11813
  %v11896 = vadd.f32 %v11732, %v11814
  %v11897 = vadd.f32 %v11733, %v11815
  %v11898 = vadd.f32 %v11734, %v11816
  %v11899 = vadd.f32 %v11735, %v11817
  %v11900 = vadd.f32 %v11736, %v11818
  %v11901 = vadd.f32 %v11737, %v11819
  %v11902 = vadd.f32 %v11738, %v11820
  %v11903 = vadd.f32 %v11739, %v11821
  %v11904 = vadd.f32 %v11740, %v11822
  %v11905 = vadd.f32 %v11741, %v11823
  %v11906 = vadd.f32 %v11742, %v11824
  %v11907 = vadd.f32 %v11743, %v11825
  %v11908 = vadd.f32 %v11744, %v11826
  %v11909 = vadd.f32 %v11745, %v11827
  %v11910 = vadd.f32 %v11746, %v11828
  %v11911 = vadd.f32 %v11747, %v11829
  %v11912 = vadd.f32 %v11748, %v11830
  %v11913 = vadd.f32 %v11749, %v11831
  %v11914 = vadd.f32 %v11750, %v11832
  %v11915 = vadd.f32 %v11751, %v11833
  %v11916 = vadd.f32 %v11752, %v11834
  %v11917 = vadd.f32 %v11753, %v11835
  %v11918 = vadd.f32 %v11754, %v11836
  %v11919 = vadd.f32 %v11755, %v11837
  %v11920 = vadd.f32 %v11756, %v11838
  %v11921 = vadd.f32 %v11757, %v11839
  %v11922 = vadd.f32 %v11758, %v11840
  %v11923 = vadd.f32 %v11759, %v11841
  %v11924 = vadd.f32 %v11760, %v11842
  %v11925 = vadd.f32 %v11761, %v11843
  %v11926 = vadd.f32 %v11762, %v11844
  %v11927 = vadd.f32 %v11763, %v11845
  %v11928 = vadd.f32 %v11764, %v11846
  %v11929 = vadd.f32 %v11765, %v11847
  %v11930 = vadd.f32 %v11766, %v11848
  %v11931 = vadd.f32 %v11767, %v11849
  %v11932 = vadd.f32 %v11768, %v11850
  %v11933 = vadd.f32 %v11769, %v11851
  %v11934 = vadd.f32 %v11770, %v11852
  %v11935 = vadd.f32 %v11771, %v11853
  %v11936 = vadd.f32 %v11772, %v11854
  %v11937 = vadd.f32 %v11773, %v11855
  %v11938 = vadd.f32 %v11774, %v11856
  %v11939 = vadd.f32 %v11775, %v11857
  %v11940 = vadd.f32 %v11776, %v11858
  %v11941 = vadd.f32 %v11777, %v11859
  %v11942 = vadd.f32 %v11778, %v11860
  %v11943 = vadd.f32 %v11779, %v11861
  %v11944 = vadd.f32 %v11780, %v11862
  %v11945 = vadd.f32 %v11781, %v11863
  %v11946 = vadd.f32 %v11782, %v11864
  %v11947 = vadd.f32 %v11783, %v11865
  %v11948 = vadd.f32 %v11784, %v11866
  %v11949 = vadd.f32 %v11785, %v11867
  %v11950 = vadd.f32 %v11786, %v11868
  %v11951 = vadd.f32 %v11787, %v11869
  %v11952 = vadd.f32 %v11788, %v11870
  %v11953 = vadd.f32 %v11789, %v11871
  %v11954 = vadd.f32 %v11790, %v11872
  %v11955 = vadd.f32 %v11791, %v11873
  %v11956 = vadd.f32 %v11792, %v11874
  %v11957 = vadd.f32 %v11793, %v11875
  %v11958 = vmax.f32 %v11876, 0.0
  %v11959 = vmax.f32 %v11877, 0.0
  %v11960 = vmax.f32 %v11878, 0.0
  %v11961 = vmax.f32 %v11879, 0.0
  %v11962 = vmax.f32 %v11880, 0.0
  %v11963 = vmax.f32 %v11881, 0.0
  %v11964 = vmax.f32 %v11882, 0.0
  %v11965 = vmax.f32 %v11883, 0.0
  %v11966 = vmax.f32 %v11884, 0.0
  %v11967 = vmax.f32 %v11885, 0.0
  %v11968 = vmax.f32 %v11886, 0.0
  %v11969 = vmax.f32 %v11887, 0.0
  %v11970 = vmax.f32 %v11888, 0.0
  %v11971 = vmax.f32 %v11889, 0.0
  %v11972 = vmax.f32 %v11890, 0.0
  %v11973 = vmax.f32 %v11891, 0.0
  %v11974 = vmax.f32 %v11892, 0.0
  %v11975 = vmax.f32 %v11893, 0.0
  %v11976 = vmax.f32 %v11894, 0.0
  %v11977 = vmax.f32 %v11895, 0.0
  %v11978 = vmax.f32 %v11896, 0.0
  %v11979 = vmax.f32 %v11897, 0.0
  %v11980 = vmax.f32 %v11898, 0.0
  %v11981 = vmax.f32 %v11899, 0.0
  %v11982 = vmax.f32 %v11900, 0.0
  %v11983 = vmax.f32 %v11901, 0.0
  %v11984 = vmax.f32 %v11902, 0.0
  %v11985 = vmax.f32 %v11903, 0.0
  %v11986 = vmax.f32 %v11904, 0.0
  %v11987 = vmax.f32 %v11905, 0.0
  %v11988 = vmax.f32 %v11906, 0.0
  %v11989 = vmax.f32 %v11907, 0.0
  %v11990 = vmax.f32 %v11908, 0.0
  %v11991 = vmax.f32 %v11909, 0.0
  %v11992 = vmax.f32 %v11910, 0.0
  %v11993 = vmax.f32 %v11911, 0.0
  %v11994 = vmax.f32 %v11912, 0.0
  %v11995 = vmax.f32 %v11913, 0.0
  %v11996 = vmax.f32 %v11914, 0.0
  %v11997 = vmax.f32 %v11915, 0.0
  %v11998 = vmax.f32 %v11916, 0.0
  %v11999 = vmax.f32 %v11917, 0.0
  %v12000 = vmax.f32 %v11918, 0.0
  %v12001 = vmax.f32 %v11919, 0.0
  %v12002 = vmax.f32 %v11920, 0.0
  %v12003 = vmax.f32 %v11921, 0.0
  %v12004 = vmax.f32 %v11922, 0.0
  %v12005 = vmax.f32 %v11923, 0.0
  %v12006 = vmax.f32 %v11924, 0.0
  %v12007 = vmax.f32 %v11925, 0.0
  %v12008 = vmax.f32 %v11926, 0.0
  %v12009 = vmax.f32 %v11927, 0.0
  %v12010 = vmax.f32 %v11928, 0.0
  %v12011 = vmax.f32 %v11929, 0.0
  %v12012 = vmax.f32 %v11930, 0.0
  %v12013 = vmax.f32 %v11931, 0.0
  %v12014 = vmax.f32 %v11932, 0.0
  %v12015 = vmax.f32 %v11933, 0.0
  %v12016 = vmax.f32 %v11934, 0.0
  %v12017 = vmax.f32 %v11935, 0.0
  %v12018 = vmax.f32 %v11936, 0.0
  %v12019 = vmax.f32 %v11937, 0.0
  %v12020 = vmax.f32 %v11938, 0.0
  %v12021 = vmax.f32 %v11939, 0.0
  %v12022 = vmax.f32 %v11940, 0.0
  %v12023 = vmax.f32 %v11941, 0.0
  %v12024 = vmax.f32 %v11942, 0.0
  %v12025 = vmax.f32 %v11943, 0.0
  %v12026 = vmax.f32 %v11944, 0.0
  %v12027 = vmax.f32 %v11945, 0.0
  %v12028 = vmax.f32 %v11946, 0.0
  %v12029 = vmax.f32 %v11947, 0.0
  %v12030 = vmax.f32 %v11948, 0.0
  %v12031 = vmax.f32 %v11949, 0.0
  %v12032 = vmax.f32 %v11950, 0.0
  %v12033 = vmax.f32 %v11951, 0.0
  %v12034 = vmax.f32 %v11952, 0.0
  %v12035 = vmax.f32 %v11953, 0.0
  %v12036 = vmax.f32 %v11954, 0.0
  %v12037 = vmax.f32 %v11955, 0.0
  %v12038 = vmax.f32 %v11956, 0.0
  %v12039 = vmax.f32 %v11957, 0.0
  %12040 = vst.msk [vmem:[%s9] sm:$0xff] %vm2144, %v11958
  %12041 = vst.msk [vmem:[%s9 + $0x8] sm:$0xff] %vm2144, %v11959
  %12042 = vst.msk [vmem:[%s9 + $0x10] sm:$0xff] %vm2144, %v11960
  %12043 = vst.msk [vmem:[%s9 + $0x18] sm:$0xff] %vm2144, %v11961
  %12044 = vst.msk [vmem:[%s9 + $0x20] sm:$0xff] %vm2144, %v11962
  %12045 = vst.msk [vmem:[%s9 + $0x28] sm:$0xff] %vm2144, %v11963
  %12046 = vst.msk [vmem:[%s9 + $0x30] sm:$0xff] %vm2144, %v11964
  %12047 = vst.msk [vmem:[%s9 + $0x38] sm:$0xff] %vm2144, %v11965
  %12048 = vst.msk [vmem:[%s9 + $0x40] sm:$0xff] %vm2144, %v11966
  %12049 = vst.msk [vmem:[%s9 + $0x48] sm:$0xff] %vm2144, %v11967
  %12050 = vst.msk [vmem:[%s9 + $0x50] sm:$0xff] %vm2144, %v11968
  %12051 = vst.msk [vmem:[%s9 + $0x58] sm:$0xff] %vm2144, %v11969
  %12052 = vst.msk [vmem:[%s9 + $0x60] sm:$0xff] %vm2144, %v11970
  %12053 = vst.msk [vmem:[%s9 + $0x68] sm:$0xff] %vm2144, %v11971
  %12054 = vst.msk [vmem:[%s9 + $0x70] sm:$0xff] %vm2144, %v11972
  %12055 = vst.msk [vmem:[%s9 + $0x78] sm:$0xff] %vm2144, %v11973
  %12056 = vst.msk [vmem:[%s9 + $0x80] sm:$0xff] %vm2144, %v11974
  %12057 = vst.msk [vmem:[%s9 + $0x88] sm:$0xff] %vm2144, %v11975
  %12058 = vst.msk [vmem:[%s9 + $0x90] sm:$0xff] %vm2144, %v11976
  %12059 = vst.msk [vmem:[%s9 + $0x98] sm:$0xff] %vm2144, %v11977
  %12060 = vst.msk [vmem:[%s9 + $0xa0] sm:$0xff] %vm2144, %v11978
  %12061 = vst.msk [vmem:[%s9 + $0xa8] sm:$0xff] %vm2144, %v11979
  %12062 = vst.msk [vmem:[%s9 + $0xb0] sm:$0xff] %vm2144, %v11980
  %12063 = vst.msk [vmem:[%s9 + $0xb8] sm:$0xff] %vm2144, %v11981
  %12064 = vst.msk [vmem:[%s9 + $0xc0] sm:$0xff] %vm2144, %v11982
  %12065 = vst.msk [vmem:[%s9 + $0xc8] sm:$0xff] %vm2144, %v11983
  %12066 = vst.msk [vmem:[%s9 + $0xd0] sm:$0xff] %vm2144, %v11984
  %12067 = vst.msk [vmem:[%s9 + $0xd8] sm:$0xff] %vm2144, %v11985
  %12068 = vst.msk [vmem:[%s9 + $0xe0] sm:$0xff] %vm2144, %v11986
  %12069 = vst.msk [vmem:[%s9 + $0xe8] sm:$0xff] %vm2144, %v11987
  %12070 = vst.msk [vmem:[%s9 + $0xf0] sm:$0xff] %vm2144, %v11988
  %12071 = vst.msk [vmem:[%s9 + $0xf8] sm:$0xff] %vm2144, %v11989
  %12072 = vst.msk [vmem:[%s9 + $0x100] sm:$0xff] %vm2144, %v11990
  %12073 = vst.msk [vmem:[%s9 + $0x108] sm:$0xff] %vm2144, %v11991
  %12074 = vst.msk [vmem:[%s9 + $0x110] sm:$0xff] %vm2144, %v11992
  %12075 = vst.msk [vmem:[%s9 + $0x118] sm:$0xff] %vm2144, %v11993
  %12076 = vst.msk [vmem:[%s9 + $0x120] sm:$0xff] %vm2144, %v11994
  %12077 = vst.msk [vmem:[%s9 + $0x128] sm:$0xff] %vm2144, %v11995
  %12078 = vst.msk [vmem:[%s9 + $0x130] sm:$0xff] %vm2144, %v11996
  %12079 = vst.msk [vmem:[%s9 + $0x138] sm:$0xff] %vm2144, %v11997
  %12080 = vst.msk [vmem:[%s9 + $0x140] sm:$0xff] %vm2144, %v11998
  %12081 = vst.msk [vmem:[%s9 + $0x148] sm:$0xff] %vm2144, %v11999
  %12082 = vst.msk [vmem:[%s9 + $0x150] sm:$0xff] %vm2144, %v12000
  %12083 = vst.msk [vmem:[%s9 + $0x158] sm:$0xff] %vm2144, %v12001
  %12084 = vst.msk [vmem:[%s9 + $0x160] sm:$0xff] %vm2144, %v12002
  %12085 = vst.msk [vmem:[%s9 + $0x168] sm:$0xff] %vm2144, %v12003
  %12086 = vst.msk [vmem:[%s9 + $0x170] sm:$0xff] %vm2144, %v12004
  %12087 = vst.msk [vmem:[%s9 + $0x178] sm:$0xff] %vm2144, %v12005
  %12088 = vst.msk [vmem:[%s9 + $0x180] sm:$0xff] %vm2144, %v12006
  %12089 = vst.msk [vmem:[%s9 + $0x188] sm:$0xff] %vm2144, %v12007
  %12090 = vst.msk [vmem:[%s9 + $0x190] sm:$0xff] %vm2144, %v12008
  %12091 = vst.msk [vmem:[%s9 + $0x198] sm:$0xff] %vm2144, %v12009
  %12092 = vst.msk [vmem:[%s9 + $0x1a0] sm:$0xff] %vm2144, %v12010
  %12093 = vst.msk [vmem:[%s9 + $0x1a8] sm:$0xff] %vm2144, %v12011
  %12094 = vst.msk [vmem:[%s9 + $0x1b0] sm:$0xff] %vm2144, %v12012
  %12095 = vst.msk [vmem:[%s9 + $0x1b8] sm:$0xff] %vm2144, %v12013
  %12096 = vst.msk [vmem:[%s9 + $0x1c0] sm:$0xff] %vm2144, %v12014
  %12097 = vst.msk [vmem:[%s9 + $0x1c8] sm:$0xff] %vm2144, %v12015
  %12098 = vst.msk [vmem:[%s9 + $0x1d0] sm:$0xff] %vm2144, %v12016
  %12099 = vst.msk [vmem:[%s9 + $0x1d8] sm:$0xff] %vm2144, %v12017
  %12100 = vst.msk [vmem:[%s9 + $0x1e0] sm:$0xff] %vm2144, %v12018
  %12101 = vst.msk [vmem:[%s9 + $0x1e8] sm:$0xff] %vm2144, %v12019
  %12102 = vst.msk [vmem:[%s9 + $0x1f0] sm:$0xff] %vm2144, %v12020
  %12103 = vst.msk [vmem:[%s9 + $0x1f8] sm:$0xff] %vm2144, %v12021
  %12104 = vst.msk [vmem:[%s9 + $0x200] sm:$0xff] %vm2144, %v12022
  %12105 = vst.msk [vmem:[%s9 + $0x208] sm:$0xff] %vm2144, %v12023
  %12106 = vst.msk [vmem:[%s9 + $0x210] sm:$0xff] %vm2144, %v12024
  %12107 = vst.msk [vmem:[%s9 + $0x218] sm:$0xff] %vm2144, %v12025
  %12108 = vst.msk [vmem:[%s9 + $0x220] sm:$0xff] %vm2144, %v12026
  %12109 = vst.msk [vmem:[%s9 + $0x228] sm:$0xff] %vm2144, %v12027
  %12110 = vst.msk [vmem:[%s9 + $0x230] sm:$0xff] %vm2144, %v12028
  %12111 = vst.msk [vmem:[%s9 + $0x238] sm:$0xff] %vm2144, %v12029
  %12112 = vst.msk [vmem:[%s9 + $0x240] sm:$0xff] %vm2144, %v12030
  %12113 = vst.msk [vmem:[%s9 + $0x248] sm:$0xff] %vm2144, %v12031
  %12114 = vst.msk [vmem:[%s9 + $0x250] sm:$0xff] %vm2144, %v12032
  %12115 = vst.msk [vmem:[%s9 + $0x258] sm:$0xff] %vm2144, %v12033
  %12116 = vst.msk [vmem:[%s9 + $0x260] sm:$0xff] %vm2144, %v12034
  %12117 = vst.msk [vmem:[%s9 + $0x268] sm:$0xff] %vm2144, %v12035
  %12118 = vst.msk [vmem:[%s9 + $0x270] sm:$0xff] %vm2144, %v12036
  %12119 = vst.msk [vmem:[%s9 + $0x278] sm:$0xff] %vm2144, %v12037
  %12120 = vst.msk [vmem:[%s9 + $0x280] sm:$0xff] %vm2144, %v12038
  %12121 = vst.msk [vmem:[%s9 + $0x288] sm:$0xff] %vm2144, %v12039
  // Predicated region
  $region38: #{resblock_pallas.1} parent=0 // pred_check
    _
  $region39: #{resblock_pallas.1} parent=0 // pred_check_branch
    %12123 = sbr.rel (0) target = $region41
  $region40: #{resblock_pallas.1} parent=0 // pred_region
    _
  $region41: #{resblock_pallas.1} parent=0 // pred_fallthru
    _
  // Predicated region
  $region42: #{resblock_pallas.1} parent=0 // pred_check
    _
  $region43: #{resblock_pallas.1} parent=0 // pred_check_branch
    %12125 = sbr.rel (0) target = $region45
  $region44: #{resblock_pallas.1} parent=0 // pred_region
    _
  $region45: #{resblock_pallas.1} parent=0 // pred_fallthru
    _

</llo_original>
